<compile_context>
chip_gen: v5e
topology: v5e:2x2
jax: 0.10.0
libtpu: 0.0.40
codegen_flags: <defaults>
</compile_context>

<pallas_src>
import jax
import jax.numpy as jnp
from jax import lax
from jax.experimental import pallas as pl
from jax.experimental.pallas import tpu as pltpu


# ----------------------------------------------------------------------------- fused MSAAGCN kernel
def _make_msaagcn_kernel(C_in, Ci, C_out, T, V, Vp, NS, Kv, Kt, Kc):
    TVp = T * Vp
    Pv = (Kv - 1) // 2
    Pt = (Kt - 1) // 2
    Pc = (Kc - 1) // 2
    inv_d = 1.0 / float(Ci * T)
    inv_T = 1.0 / float(T)
    inv_V = 1.0 / float(V)
    inv_TV = 1.0 / float(T * V)
    f32 = jnp.float32
    bf16 = jnp.bfloat16

    def _mxu(a, b):       # bf16 MXU inputs, f32 accumulation (native MXU throughput)
        return jnp.dot(a.astype(bf16), b.astype(bf16), preferred_element_type=f32)

    def _mmf(a, b):       # small / precision-sensitive matmuls stay f32
        return jnp.dot(a, b, preferred_element_type=f32)

    def kernel(scal_ref, x_ref, wa_ref, ba_ref, wb_ref, bb_ref, paT_ref, wd_ref,
               dw_ref, gsc_ref, gbi_ref, wsa_ref, wta_ref, w1_ref, b1_ref,
               w2_ref, b2_ref, wtcn_ref, wres_ref, bout_ref, out_ref, ypad_ref):
        # scalars from SMEM (scalar unit, no vreg slicing)
        alpha = scal_ref[0]
        bsa = scal_ref[1]
        bta = scal_ref[2]

        x3 = x_ref[0]                               # (T, Vp, C_in) f32
        x_tok = x3.reshape(TVp, C_in)               # token-major (free leading-dim merge)
        x_tok_h = x_tok.astype(bf16)                # cast once for the bf16 MXU matmuls

        # ---- adaptive graph conv, one subset at a time (fori_loop bounds live ranges)
        def subset(i, y_acc):
            fa = _mxu(x_tok_h, wa_ref[i]) + ba_ref[i]          # (TVp, Ci)
            fb = _mxu(x_tok_h, wb_ref[i]) + bb_ref[i]          # (TVp, Ci)
            fa3 = fa.reshape(T, Vp, Ci)
            fb3 = fb.reshape(T, Vp, Ci)
            # transposed embedding Gram; contraction (over T,Ci) kept in f32 (tanh argument)
            mT = jnp.einsum('tvc,tuc->tvu', fb3, fa3,
                            preferred_element_type=f32).sum(axis=0)      # (Vp, Vp)
            aT = paT_ref[i] + alpha * jnp.tanh(mT * inv_d)               # data-dependent A_i^T
            # TODO(synk): single lane-dense (Vp,Vp)x(Vp,T*C_in) apply blocked on Mosaic relayouts.
            aT_b = jnp.broadcast_to(aT, (T, Vp, Vp))           # live only inside this body
            z3 = jnp.einsum('tvu,tuc->tvc', aT_b, x3, preferred_element_type=f32)
            return y_acc + _mxu(z3.reshape(TVp, C_in), wd_ref[i])        # (TVp, C_out)

        y = lax.fori_loop(0, NS, subset, jnp.zeros((TVp, C_out), f32))

        # folded GCN BatchNorm + 1x1 down-projection branch + ReLU
        y = y * gsc_ref[...] + gbi_ref[...] + _mxu(x_tok_h, dw_ref[...])
        y = jnp.maximum(y, 0.0)
        if Vp != V:
            # zero padded joints so the masked pools below stay exact
            jmask = (lax.broadcasted_iota(jnp.int32, (TVp, 1), 0) % Vp) < V
            y = jnp.where(jmask, y, 0.0)

        y3 = y.reshape(T, Vp, C_out)                # (T, Vp, C_out), free leading split

        # ---- spatial (joint) attention: mean over frames (leading-dim reduce) -> 1D conv gate
        se_s = jnp.sum(y3, axis=0) * inv_T                     # (Vp, C_out)
        q_s = _mmf(se_s, wsa_ref[...])                         # (Vp, Kv)
        if Pv > 0:
            q_s = jnp.concatenate([jnp.zeros((Pv, Kv), f32), q_s,
                                   jnp.zeros((Pv, Kv), f32)], axis=0)
        att_s = jnp.zeros((Vp, 1), f32)
        for k in range(Kv):                                    # tiny banded gather
            att_s = att_s + q_s[k:k + Vp, k:k + 1]
        att_s = jax.nn.sigmoid(att_s + bsa)                    # (Vp, 1)
        y3 = y3 * (1.0 + att_s[None, :, :])                    # VPU broadcast gate (no matmul)

        # ---- temporal (frame) attention: masked mean over joints (sublane reduce) -> conv gate
        se_t = jnp.sum(y3, axis=1) * inv_V                     # (T, C_out)
        q_t = _mmf(se_t, wta_ref[...])                         # (T, Kt)
        if Pt > 0:
            q_t = jnp.concatenate([jnp.zeros((Pt, Kt), f32), q_t,
                                   jnp.zeros((Pt, Kt), f32)], axis=0)
        att_t = jnp.zeros((T, 1), f32)
        for k in range(Kt):
            att_t = att_t + q_t[k:k + T, k:k + 1]
        att_t = jax.nn.sigmoid(att_t + bta)                    # (T, 1)
        y3 = y3 * (1.0 + att_t[:, None, :])

        # ---- channel attention (squeeze-excite), masked global mean
        y = y3.reshape(TVp, C_out)
        mrow = jnp.sum(y, axis=0, keepdims=True) * inv_TV      # (1, C_out)
        h = jnp.maximum(_mmf(mrow, w1_ref[...]) + b1_ref[...], 0.0)
        s2 = jax.nn.sigmoid(_mmf(h, w2_ref[...]) + b2_ref[...])
        y = y * (1.0 + s2)

        # ---- temporal conv (Kc x 1, stride 1) via persistent bf16 zero-halo scratch
        if Pc > 0:
            ypad_ref[pl.ds(0, Pc * Vp), :] = jnp.zeros((Pc * Vp, C_out), bf16)
            ypad_ref[pl.ds(Pc * Vp + TVp, Pc * Vp), :] = jnp.zeros((Pc * Vp, C_out), bf16)
        ypad_ref[pl.ds(Pc * Vp, TVp), :] = y.astype(bf16)

        out0 = bout_ref[...] + _mxu(x_tok_h, wres_ref[...])    # 1x1 residual + folded biases

        def tap(k, acc):                                       # Kc taps, contraction over C_out
            off = pl.multiple_of(k * Vp, 8)                    # Vp is 8-aligned -> clean slices
            return acc + _mxu(ypad_ref[pl.ds(off, TVp), :], wtcn_ref[k])

        out = lax.fori_loop(0, Kc, tap, out0)
        out_ref[0] = jnp.maximum(out, 0.0)

    return kernel


def msaagcn_forward(x, P, token_major_out=False):
    N, C_in, T, V = x.shape
    NS, Ci, _ = P["wa"].shape
    C_out = P["wd"].shape[1]
    Kv = P["wsa"].shape[1]
    Kt = P["wta"].shape[1]
    Kc = P["w_tcn"].shape[2]
    Ch = P["w1"].shape[0]
    Pc = (Kc - 1) // 2
    bf16 = jnp.bfloat16

    # pad joints to a multiple of 8 so TCN tap slices are sublane-aligned
    Vp = ((V + 7) // 8) * 8
    TVp = T * Vp
    xp = x if Vp == V else jnp.pad(x, ((0, 0), (0, 0), (0, 0), (0, Vp - V)))
    pa = P["pa"] if Vp == V else jnp.pad(P["pa"], ((0, 0), (0, Vp - V), (0, Vp - V)))

    # module-boundary layout conversion (token-major)
    x_tok = jnp.transpose(xp, (0, 2, 3, 1))                        # (N, T, Vp, C_in)

    scal = jnp.array([P["alpha"], P["bsa"], P["bta"], 0.0], jnp.float32)   # -> SMEM
    wa_t = jnp.transpose(P["wa"], (0, 2, 1)).astype(bf16)          # (NS, C_in, Ci)
    wb_t = jnp.transpose(P["wb"], (0, 2, 1)).astype(bf16)
    ba_r = P["ba"][:, None, :]                                     # (NS, 1, Ci)
    bb_r = P["bb"][:, None, :]
    pa_T = jnp.transpose(pa, (0, 2, 1))                            # (NS, Vp, Vp)
    wd_t = jnp.transpose(P["wd"], (0, 2, 1)).astype(bf16)          # (NS, C_in, C_out)
    dw_t = P["dw"].T.astype(bf16)                                  # (C_in, C_out)
    g_scale = P["bnw"][None, :]                                    # folded GCN BatchNorm scale
    g_bias = (P["bd"].sum(0) * P["bnw"] + P["bnb"] + P["db"])[None, :]
    w1_t = P["w1"].T                                               # (C_out, Ch)
    b1_r = P["b1"][None, :]
    w2_t = P["w2"].T                                               # (Ch, C_out)
    b2_r = P["b2"][None, :]
    wtcn_t = jnp.transpose(P["w_tcn"], (2, 1, 0)).astype(bf16)     # (Kc, C_out, C_out)
    wres_t = P["w_res"][:, :, 0].T.astype(bf16)                    # (C_in, C_out)
    b_out = (P["b_tcn"] + P["b_res"])[None, :]                     # (1, C_out)

    args = (scal, x_tok, wa_t, ba_r, wb_t, bb_r, pa_T, wd_t, dw_t, g_scale,
            g_bias, P["wsa"], P["wta"], w1_t, b1_r, w2_t, b2_r, wtcn_t,
            wres_t, b_out)

    kernel = _make_msaagcn_kernel(C_in, Ci, C_out, T, V, Vp, NS, Kv, Kt, Kc)

    # ---- VMEM budget (per-block footprint + headroom) and cost hint
    wgt_bytes = sum(int(a.size) * (2 if a.dtype == jnp.bfloat16 else 4) for a in args[2:])
    act_bytes = (2 * T * Vp * C_in * 4              # double-buffered x block
                 + 2 * TVp * C_out * 4              # double-buffered out block
                 + (T + 2 * Pc) * Vp * C_out * 2    # bf16 TCN halo scratch
                 + 4 * TVp * C_out * 4              # y / accumulators / gate temps
                 + 3 * TVp * max(C_in, Ci) * 4      # fa, fb, z (one subset live)
                 + 2 * T * Vp * Vp * 4)             # Gram batch + broadcast adjacency
    vmem_limit = int(min(112 * 2 ** 20, max(32 * 2 ** 20, int(1.5 * (act_bytes + 2 * wgt_bytes)))))

    flops = N * (NS * (4 * TVp * C_in * Ci + 2 * T * Vp * Vp * Ci
                       + 2 * T * Vp * Vp * C_in + 2 * TVp * C_in * C_out)
                 + 4 * TVp * C_in * C_out
                 + Kc * 2 * TVp * C_out * C_out
                 + 2 * (Vp * C_out * Kv + T * C_out * Kt + 2 * C_out * Ch))
    transc = N * (NS * Vp * Vp + Vp + T + C_out)
    bytes_acc = N * (T * Vp * C_in + TVp * C_out) * 4 + wgt_bytes
    cost = pl.CostEstimate(flops=int(flops), transcendentals=int(transc),
                           bytes_accessed=int(bytes_acc))

    def build(single_buffer_weights):
        def wspec(a):
            nd = a.ndim
            idx = lambda n, _nd=nd: (0,) * _nd
            if single_buffer_weights:
                try:  # constant index map -> one buffer is enough (frees VMEM)
                    return pl.BlockSpec(a.shape, idx, pipeline_mode=pl.Buffered(1))
                except TypeError:
                    return pl.BlockSpec(a.shape, idx)
            return pl.BlockSpec(a.shape, idx)

        in_specs = [pl.BlockSpec(memory_space=pltpu.MemorySpace.SMEM),        # scalars
                    pl.BlockSpec((1, T, Vp, C_in), lambda n: (n, 0, 0, 0))]   # x block
        in_specs += [wspec(a) for a in args[2:]]

        return pl.pallas_call(
            kernel,
            out_shape=jax.ShapeDtypeStruct((N, TVp, C_out), jnp.float32),
            grid_spec=pltpu.PrefetchScalarGridSpec(
                num_scalar_prefetch=0, grid=(N,),
                in_specs=in_specs,
                out_specs=pl.BlockSpec((1, TVp, C_out), lambda n: (n, 0, 0)),
                scratch_shapes=[pltpu.VMEM(((T + 2 * Pc) * Vp, C_out), jnp.bfloat16)]),
            compiler_params=pltpu.CompilerParams(
                dimension_semantics=("parallel",),          # batch items -> megacore on v7x
                vmem_limit_bytes=vmem_limit),
            cost_estimate=cost,
        )

    try:
        out_tok = jax.block_until_ready(build(True)(*args))
    except Exception:       # fallback if Buffered(1) is rejected by this Pallas version
        out_tok = jax.block_until_ready(build(False)(*args))

    if token_major_out:
        return out_tok                                  # (N, T*Vp, C_out) for a stacked block
    out4 = out_tok.reshape(N, T, Vp, C_out)[:, :, :V, :]
    return jnp.transpose(out4, (0, 3, 1, 2))            # (N, C_out, T, V)


# ----------------------------------------------------------------------------- pure-JAX reference
def reference_forward(x, P):
    hp = lax.Precision.HIGHEST
    N, C_in, T, V = x.shape
    NS, Ci, _ = P["wa"].shape
    Co = P["wd"].shape[1]
    Kv = P["wsa"].shape[1]; Pv = (Kv - 1) // 2
    Kt = P["wta"].shape[1]; Pt = (Kt - 1) // 2
    xf = x.reshape(N, C_in, T * V)

    y = jnp.zeros((N, Co, T, V), jnp.float32)
    for i in range(NS):
        fa = (jnp.einsum("oc,ncx->nox", P["wa"][i], xf, precision=hp)
              + P["ba"][i].reshape(1, Ci, 1)).reshape(N, Ci, T, V)
        fb = (jnp.einsum("oc,ncx->nox", P["wb"][i], xf, precision=hp)
              + P["bb"][i].reshape(1, Ci, 1)).reshape(N, Ci, T, V)
        A1 = jnp.transpose(fa, (0, 3, 1, 2)).reshape(N, V, Ci * T)
        A2 = fb.reshape(N, Ci * T, V)
        M = jnp.tanh(jnp.einsum("nvk,nku->nvu", A1, A2, precision=hp) / (Ci * T))
        Aadj = P["pa"][i][None] + P["alpha"] * M
        z = jnp.einsum("nkv,nvu->nku", x.reshape(N, C_in * T, V), Aadj,
                       precision=hp).reshape(N, C_in, T, V)
        y = y + jnp.einsum("oc,nctv->notv", P["wd"][i], z, precision=hp) \
              + P["bd"][i].reshape(1, Co, 1, 1)
    y = y * P["bnw"].reshape(1, Co, 1, 1) + P["bnb"].reshape(1, Co, 1, 1)
    y = y + jnp.einsum("oc,nctv->notv", P["dw"], x, precision=hp) + P["db"].reshape(1, Co, 1, 1)
    y = jnp.maximum(y, 0.0)

    se = y.mean(axis=2)
    sep = jnp.pad(se, ((0, 0), (0, 0), (Pv, Pv)))
    att = jnp.zeros((N, V), jnp.float32)
    for k in range(Kv):
        att = att + jnp.einsum("c,ncv->nv", P["wsa"][:, k], sep[:, :, k:k + V], precision=hp)
    att = jax.nn.sigmoid(att + P["bsa"])
    y = y * att[:, None, None, :] + y

    se = y.mean(axis=3)
    sep = jnp.pad(se, ((0, 0), (0, 0), (Pt, Pt)))
    att = jnp.zeros((N, T), jnp.float32)
    for k in range(Kt):
        att = att + jnp.einsum("c,nct->nt", P["wta"][:, k], sep[:, :, k:k + T], precision=hp)
    att = jax.nn.sigmoid(att + P["bta"])
    y = y * att[:, None, :, None] + y

    se = y.mean(axis=3).mean(axis=2)
    h = jnp.maximum(jnp.einsum("hc,nc->nh", P["w1"], se, precision=hp) + P["b1"][None], 0.0)
    s2 = jax.nn.sigmoid(jnp.einsum("ch,nh->nc", P["w2"], h, precision=hp) + P["b2"][None])
    y = y * s2[:, :, None, None] + y

    Kc = P["w_tcn"].shape[2]; Pc = (Kc - 1) // 2
    yp = jnp.pad(y, ((0, 0), (0, 0), (Pc, Pc), (0, 0)))
    out = jnp.zeros((N, Co, T, V), jnp.float32)
    for k in range(Kc):
        out = out + jnp.einsum("oi,nitv->notv", P["w_tcn"][:, :, k], yp[:, :, k:k + T, :],
                               precision=hp)
    out = out + P["b_tcn"].reshape(1, Co, 1, 1)
    res = jnp.einsum("oi,nitv->notv", P["w_res"][:, :, 0], x, precision=hp) \
        + P["b_res"].reshape(1, Co, 1, 1)
    return jnp.maximum(out + res, 0.0)


# ----------------------------------------------------------------------------- deterministic params
def make_params(key, C_in, C_out, V, num_subset=3, Kt=9):
    Ci = C_out // 4          # coff_embedding = 4
    Ch = C_out // 2          # channel-attention reduction rr = 2
    Kv = V - 1 if V % 2 == 0 else V
    ks = iter(jax.random.split(key, 32))

    def nrm(shape, scale=0.1):
        return scale * jax.random.normal(next(ks), shape, jnp.float32)

    P = {}
    P["wa"] = nrm((num_subset, Ci, C_in), 0.5); P["ba"] = nrm((num_subset, Ci), 0.05)
    P["wb"] = nrm((num_subset, Ci, C_in), 0.5); P["bb"] = nrm((num_subset, Ci), 0.05)
    P["wd"] = nrm((num_subset, C_out, C_in));   P["bd"] = nrm((num_subset, C_out), 0.05)
    P["pa"] = 0.1 * jax.random.uniform(next(ks), (num_subset, V, V), jnp.float32)
    P["alpha"] = 1.0
    # GCN BatchNorm (eval) folded to per-channel affine
    P["bnw"] = 1.0 + nrm((C_out,)); P["bnb"] = nrm((C_out,))
    # down branch (1x1 conv + BN) folded
    w_dn, b_dn = nrm((C_out, C_in)), nrm((C_out,), 0.05)
    g, bb = 1.0 + nrm((C_out,)), nrm((C_out,))
    P["dw"] = g[:, None] * w_dn; P["db"] = g * b_dn + bb
    # STC attention
    P["wsa"] = nrm((C_out, Kv)); P["bsa"] = 0.02
    P["wta"] = nrm((C_out, Kt)); P["bta"] = -0.02
    P["w1"] = nrm((Ch, C_out)); P["b1"] = nrm((Ch,), 0.05)
    P["w2"] = nrm((C_out, Ch)); P["b2"] = nrm((C_out,), 0.05)
    # main TCN (9x1 conv + BN) folded
    w_t, b_t = nrm((C_out, C_out, Kt), 0.05), nrm((C_out,), 0.05)
    g, bb = 1.0 + nrm((C_out,)), nrm((C_out,))
    P["w_tcn"] = g[:, None, None] * w_t; P["b_tcn"] = g * b_t + bb
    # residual TCN (1x1 conv + BN) folded
    w_r, b_r = nrm((C_out, C_in, 1)), nrm((C_out,), 0.05)
    g, bb = 1.0 + nrm((C_out,)), nrm((C_out,))
    P["w_res"] = g[:, None, None] * w_r; P["b_res"] = g * b_r + bb
    return P


if __name__ == "__main__":
    N, C_in, C_out, T, V = 2, 4, 16, 16, 16
    key = jax.random.PRNGKey(0)
    kx, kp = jax.random.split(key)
    x = jax.random.normal(kx, (N, C_in, T, V), jnp.float32)
    P = make_params(kp, C_in, C_out, V)

    out = msaagcn_forward(x, P)
    out = jax.block_until_ready(out)
    assert out.shape == (N, C_out, T, V)

    ref = reference_forward(x, P)
    err = float(jnp.max(jnp.abs(out - ref)))
    # tolerance accounts for bf16 MXU inputs on the heavy matmuls (f32 accumulation)
    tol = 3e-2 + 3e-2 * float(jnp.max(jnp.abs(ref)))
    assert err < tol, f"mismatch vs reference: max abs err {err} (tol {tol})"
    print("KERNEL_OK")
</pallas_src>

<mosaic_0001>
module attributes {stable_mosaic.version = 11 : i64} {
  func.func @kernel(%arg0: i32, %arg1: memref<4xf32, #tpu.memory_space<smem>>, %arg2: memref<1x16x16x4xf32, #tpu.memory_space<vmem>>, %arg3: memref<3x4x4xbf16, #tpu.memory_space<vmem>>, %arg4: memref<3x1x4xf32, #tpu.memory_space<vmem>>, %arg5: memref<3x4x4xbf16, #tpu.memory_space<vmem>>, %arg6: memref<3x1x4xf32, #tpu.memory_space<vmem>>, %arg7: memref<3x16x16xf32, #tpu.memory_space<vmem>>, %arg8: memref<3x4x16xbf16, #tpu.memory_space<vmem>>, %arg9: memref<4x16xbf16, #tpu.memory_space<vmem>>, %arg10: memref<1x16xf32, #tpu.memory_space<vmem>>, %arg11: memref<1x16xf32, #tpu.memory_space<vmem>>, %arg12: memref<16x15xf32, #tpu.memory_space<vmem>>, %arg13: memref<16x9xf32, #tpu.memory_space<vmem>>, %arg14: memref<16x8xf32, #tpu.memory_space<vmem>>, %arg15: memref<1x8xf32, #tpu.memory_space<vmem>>, %arg16: memref<8x16xf32, #tpu.memory_space<vmem>>, %arg17: memref<1x16xf32, #tpu.memory_space<vmem>>, %arg18: memref<9x16x16xbf16, #tpu.memory_space<vmem>>, %arg19: memref<4x16xbf16, #tpu.memory_space<vmem>>, %arg20: memref<1x16xf32, #tpu.memory_space<vmem>>, %arg21: memref<1x256x16xf32, #tpu.memory_space<vmem>>, %arg22: memref<384x16xbf16, #tpu.memory_space<vmem>>) attributes {dimension_semantics = [#tpu.dimension_semantics<parallel>], iteration_bounds = array<i64: 2>, scalar_prefetch = 0 : i64, scratch_operands = 1 : i64, tpu.core_type = #tpu.core_type<tc>, window_params = [{transform_indices = @transform_0, window_bounds = array<i64: 4>}, {transform_indices = @transform_1, window_bounds = array<i64: 1, 16, 16, 4>}, {pipeline_mode = #tpu.pipeline_mode<synchronous>, transform_indices = @transform_2, window_bounds = array<i64: 3, 4, 4>}, {pipeline_mode = #tpu.pipeline_mode<synchronous>, transform_indices = @transform_3, window_bounds = array<i64: 3, 1, 4>}, {pipeline_mode = #tpu.pipeline_mode<synchronous>, transform_indices = @transform_4, window_bounds = array<i64: 3, 4, 4>}, {pipeline_mode = #tpu.pipeline_mode<synchronous>, transform_indices = @transform_5, window_bounds = array<i64: 3, 1, 4>}, {pipeline_mode = #tpu.pipeline_mode<synchronous>, transform_indices = @transform_6, window_bounds = array<i64: 3, 16, 16>}, {pipeline_mode = #tpu.pipeline_mode<synchronous>, transform_indices = @transform_7, window_bounds = array<i64: 3, 4, 16>}, {pipeline_mode = #tpu.pipeline_mode<synchronous>, transform_indices = @transform_8, window_bounds = array<i64: 4, 16>}, {pipeline_mode = #tpu.pipeline_mode<synchronous>, transform_indices = @transform_9, window_bounds = array<i64: 1, 16>}, {pipeline_mode = #tpu.pipeline_mode<synchronous>, transform_indices = @transform_10, window_bounds = array<i64: 1, 16>}, {pipeline_mode = #tpu.pipeline_mode<synchronous>, transform_indices = @transform_11, window_bounds = array<i64: 16, 15>}, {pipeline_mode = #tpu.pipeline_mode<synchronous>, transform_indices = @transform_12, window_bounds = array<i64: 16, 9>}, {pipeline_mode = #tpu.pipeline_mode<synchronous>, transform_indices = @transform_13, window_bounds = array<i64: 16, 8>}, {pipeline_mode = #tpu.pipeline_mode<synchronous>, transform_indices = @transform_14, window_bounds = array<i64: 1, 8>}, {pipeline_mode = #tpu.pipeline_mode<synchronous>, transform_indices = @transform_15, window_bounds = array<i64: 8, 16>}, {pipeline_mode = #tpu.pipeline_mode<synchronous>, transform_indices = @transform_16, window_bounds = array<i64: 1, 16>}, {pipeline_mode = #tpu.pipeline_mode<synchronous>, transform_indices = @transform_17, window_bounds = array<i64: 9, 16, 16>}, {pipeline_mode = #tpu.pipeline_mode<synchronous>, transform_indices = @transform_18, window_bounds = array<i64: 4, 16>}, {pipeline_mode = #tpu.pipeline_mode<synchronous>, transform_indices = @transform_19, window_bounds = array<i64: 1, 16>}, {transform_indices = @transform_20, window_bounds = array<i64: 1, 256, 16>}]} {
    %c0 = arith.constant 0 : index
    %0 = memref.load %arg1[%c0] : memref<4xf32, #tpu.memory_space<smem>>
    %c1 = arith.constant 1 : index
    %1 = memref.load %arg1[%c1] : memref<4xf32, #tpu.memory_space<smem>>
    %c2 = arith.constant 2 : index
    %2 = memref.load %arg1[%c2] : memref<4xf32, #tpu.memory_space<smem>>
    %c0_0 = arith.constant 0 : index
    %c0_1 = arith.constant 0 : index
    %c0_2 = arith.constant 0 : index
    %c0_3 = arith.constant 0 : index
    %3 = vector.load %arg2[%c0_0, %c0_1, %c0_2, %c0_3] : memref<1x16x16x4xf32, #tpu.memory_space<vmem>>, vector<1x16x16x4xf32>
    %4 = vector.shape_cast %3 : vector<1x16x16x4xf32> to vector<16x16x4xf32>
    %5 = vector.shape_cast %4 : vector<16x16x4xf32> to vector<256x4xf32>
    %6 = arith.truncf %5 : vector<256x4xf32> to vector<256x4xbf16>
    %cst = arith.constant 0.000000e+00 : f32
    %7 = vector.broadcast %cst : f32 to vector<256x16xf32>
    %c0_i32 = arith.constant 0 : i32
    %c3_i32 = arith.constant 3 : i32
    %8 = arith.addi %c0_i32, %c3_i32 : i32
    %c1_i32 = arith.constant 1 : i32
    %9 = scf.for %arg23 = %c0_i32 to %8 step %c1_i32 iter_args(%arg24 = %7) -> (vector<256x16xf32>)  : i32 {
      %154 = arith.index_cast %arg23 : i32 to index
      %c0_66 = arith.constant 0 : index
      %c0_67 = arith.constant 0 : index
      %155 = vector.load %arg3[%154, %c0_66, %c0_67] : memref<3x4x4xbf16, #tpu.memory_space<vmem>>, vector<1x4x4xbf16>
      %156 = vector.shape_cast %155 : vector<1x4x4xbf16> to vector<4x4xbf16>
      %cst_68 = arith.constant dense<0.000000e+00> : vector<256x4xf32>
      %157 = tpu.matmul %6, %156, %cst_68 {dimension_numbers = #tpu.dot_dimension_numbers<[1], [0], [0], [1], [0, 0, 1, 1], [], []>} : vector<256x4xbf16>, vector<4x4xbf16>, vector<256x4xf32> -> vector<256x4xf32>
      %158 = arith.index_cast %arg23 : i32 to index
      %c0_69 = arith.constant 0 : index
      %c0_70 = arith.constant 0 : index
      %159 = vector.load %arg4[%158, %c0_69, %c0_70] : memref<3x1x4xf32, #tpu.memory_space<vmem>>, vector<1x1x4xf32>
      %160 = vector.shape_cast %159 : vector<1x1x4xf32> to vector<1x4xf32>
      %161 = vector.broadcast %160 : vector<1x4xf32> to vector<256x4xf32>
      %162 = arith.addf %157, %161 : vector<256x4xf32>
      %163 = arith.index_cast %arg23 : i32 to index
      %c0_71 = arith.constant 0 : index
      %c0_72 = arith.constant 0 : index
      %164 = vector.load %arg5[%163, %c0_71, %c0_72] : memref<3x4x4xbf16, #tpu.memory_space<vmem>>, vector<1x4x4xbf16>
      %165 = vector.shape_cast %164 : vector<1x4x4xbf16> to vector<4x4xbf16>
      %cst_73 = arith.constant dense<0.000000e+00> : vector<256x4xf32>
      %166 = tpu.matmul %6, %165, %cst_73 {dimension_numbers = #tpu.dot_dimension_numbers<[1], [0], [0], [1], [0, 0, 1, 1], [], []>} : vector<256x4xbf16>, vector<4x4xbf16>, vector<256x4xf32> -> vector<256x4xf32>
      %167 = arith.index_cast %arg23 : i32 to index
      %c0_74 = arith.constant 0 : index
      %c0_75 = arith.constant 0 : index
      %168 = vector.load %arg6[%167, %c0_74, %c0_75] : memref<3x1x4xf32, #tpu.memory_space<vmem>>, vector<1x1x4xf32>
      %169 = vector.shape_cast %168 : vector<1x1x4xf32> to vector<1x4xf32>
      %170 = vector.broadcast %169 : vector<1x4xf32> to vector<256x4xf32>
      %171 = arith.addf %166, %170 : vector<256x4xf32>
      %172 = vector.shape_cast %162 : vector<256x4xf32> to vector<16x16x4xf32>
      %173 = vector.shape_cast %171 : vector<256x4xf32> to vector<16x16x4xf32>
      "tpu.trace_start"() <{level = 10 : i32, message = "tvc,tuc->tvu"}> : () -> ()
      %cst_76 = arith.constant dense<0.000000e+00> : vector<16x16x16xf32>
      %174 = tpu.matmul %173, %172, %cst_76 {dimension_numbers = #tpu.dot_dimension_numbers<[2], [2], [1], [1], [0, 0, 0, 1, 1, 1], [0], [0]>} : vector<16x16x4xf32>, vector<16x16x4xf32>, vector<16x16x16xf32> -> vector<16x16x16xf32>
      "tpu.trace_stop"() : () -> ()
      %cst_77 = arith.constant dense<0.000000e+00> : vector<16x16xf32>
      %175 = vector.multi_reduction <add>, %174, %cst_77 [0] : vector<16x16x16xf32> to vector<16x16xf32>
      %176 = arith.index_cast %arg23 : i32 to index
      %c0_78 = arith.constant 0 : index
      %c0_79 = arith.constant 0 : index
      %177 = vector.load %arg7[%176, %c0_78, %c0_79] : memref<3x16x16xf32, #tpu.memory_space<vmem>>, vector<1x16x16xf32>
      %178 = vector.shape_cast %177 : vector<1x16x16xf32> to vector<16x16xf32>
      %cst_80 = arith.constant 1.562500e-02 : f32
      %179 = vector.broadcast %cst_80 : f32 to vector<16x16xf32>
      %180 = arith.mulf %175, %179 : vector<16x16xf32>
      %181 = math.tanh %180 : vector<16x16xf32>
      %182 = vector.broadcast %0 : f32 to vector<16x16xf32>
      %183 = arith.mulf %182, %181 : vector<16x16xf32>
      %184 = arith.addf %178, %183 : vector<16x16xf32>
      %185 = vector.shape_cast %184 : vector<16x16xf32> to vector<1x16x16xf32>
      %186 = vector.broadcast %185 : vector<1x16x16xf32> to vector<16x16x16xf32>
      "tpu.trace_start"() <{level = 10 : i32, message = "tvu,tuc->tvc"}> : () -> ()
      %cst_81 = arith.constant dense<0.000000e+00> : vector<16x16x4xf32>
      %187 = tpu.matmul %186, %4, %cst_81 {dimension_numbers = #tpu.dot_dimension_numbers<[2], [1], [1], [2], [0, 0, 0, 1, 1, 2], [0], [0]>} : vector<16x16x16xf32>, vector<16x16x4xf32>, vector<16x16x4xf32> -> vector<16x16x4xf32>
      "tpu.trace_stop"() : () -> ()
      %188 = vector.shape_cast %187 : vector<16x16x4xf32> to vector<256x4xf32>
      %189 = arith.index_cast %arg23 : i32 to index
      %c0_82 = arith.constant 0 : index
      %c0_83 = arith.constant 0 : index
      %190 = vector.load %arg8[%189, %c0_82, %c0_83] : memref<3x4x16xbf16, #tpu.memory_space<vmem>>, vector<1x4x16xbf16>
      %191 = vector.shape_cast %190 : vector<1x4x16xbf16> to vector<4x16xbf16>
      %192 = arith.truncf %188 : vector<256x4xf32> to vector<256x4xbf16>
      %cst_84 = arith.constant dense<0.000000e+00> : vector<256x16xf32>
      %193 = tpu.matmul %192, %191, %cst_84 {dimension_numbers = #tpu.dot_dimension_numbers<[1], [0], [0], [1], [0, 0, 1, 1], [], []>} : vector<256x4xbf16>, vector<4x16xbf16>, vector<256x16xf32> -> vector<256x16xf32>
      %194 = arith.addf %arg24, %193 : vector<256x16xf32>
      scf.yield %194 : vector<256x16xf32>
    }
    %c3_i32_4 = arith.constant 3 : i32
    %c0_5 = arith.constant 0 : index
    %c0_6 = arith.constant 0 : index
    %10 = vector.load %arg10[%c0_5, %c0_6] : memref<1x16xf32, #tpu.memory_space<vmem>>, vector<1x16xf32>
    %11 = vector.broadcast %10 : vector<1x16xf32> to vector<256x16xf32>
    %12 = arith.mulf %9, %11 : vector<256x16xf32>
    %c0_7 = arith.constant 0 : index
    %c0_8 = arith.constant 0 : index
    %13 = vector.load %arg11[%c0_7, %c0_8] : memref<1x16xf32, #tpu.memory_space<vmem>>, vector<1x16xf32>
    %14 = vector.broadcast %13 : vector<1x16xf32> to vector<256x16xf32>
    %15 = arith.addf %12, %14 : vector<256x16xf32>
    %c0_9 = arith.constant 0 : index
    %c0_10 = arith.constant 0 : index
    %16 = vector.load %arg9[%c0_9, %c0_10] : memref<4x16xbf16, #tpu.memory_space<vmem>>, vector<4x16xbf16>
    %cst_11 = arith.constant dense<0.000000e+00> : vector<256x16xf32>
    %17 = tpu.matmul %6, %16, %cst_11 {dimension_numbers = #tpu.dot_dimension_numbers<[1], [0], [0], [1], [0, 0, 1, 1], [], []>} : vector<256x4xbf16>, vector<4x16xbf16>, vector<256x16xf32> -> vector<256x16xf32>
    %18 = arith.addf %15, %17 : vector<256x16xf32>
    %cst_12 = arith.constant 0.000000e+00 : f32
    %19 = vector.broadcast %cst_12 : f32 to vector<256x16xf32>
    %20 = arith.maximumf %18, %19 : vector<256x16xf32>
    %21 = vector.shape_cast %20 : vector<256x16xf32> to vector<16x16x16xf32>
    %cst_13 = arith.constant dense<0.000000e+00> : vector<16x16xf32>
    %22 = vector.multi_reduction <add>, %21, %cst_13 [0] : vector<16x16x16xf32> to vector<16x16xf32>
    %cst_14 = arith.constant 6.250000e-02 : f32
    %23 = vector.broadcast %cst_14 : f32 to vector<16x16xf32>
    %24 = arith.mulf %22, %23 : vector<16x16xf32>
    %c0_15 = arith.constant 0 : index
    %c0_16 = arith.constant 0 : index
    %25 = vector.load %arg12[%c0_15, %c0_16] : memref<16x15xf32, #tpu.memory_space<vmem>>, vector<16x15xf32>
    %cst_17 = arith.constant dense<0.000000e+00> : vector<16x15xf32>
    %26 = tpu.matmul %24, %25, %cst_17 {dimension_numbers = #tpu.dot_dimension_numbers<[1], [0], [0], [1], [0, 0, 1, 1], [], []>} : vector<16x16xf32>, vector<16x15xf32>, vector<16x15xf32> -> vector<16x15xf32>
    %cst_18 = arith.constant 0.000000e+00 : f32
    %27 = vector.broadcast %cst_18 : f32 to vector<7x15xf32>
    %cst_19 = arith.constant 0.000000e+00 : f32
    %28 = vector.broadcast %cst_19 : f32 to vector<7x15xf32>
    %29 = tpu.concatenate %27, %26, %28 in 0 : vector<7x15xf32>, vector<16x15xf32>, vector<7x15xf32> -> vector<30x15xf32>
    %cst_20 = arith.constant 0.000000e+00 : f32
    %30 = vector.broadcast %cst_20 : f32 to vector<16x1xf32>
    %31 = vector.extract_strided_slice %29 {offsets = [0, 0], sizes = [16, 1], strides = [1, 1]} : vector<30x15xf32> to vector<16x1xf32>
    %32 = arith.addf %30, %31 : vector<16x1xf32>
    %33 = vector.extract_strided_slice %29 {offsets = [1, 1], sizes = [16, 1], strides = [1, 1]} : vector<30x15xf32> to vector<16x1xf32>
    %34 = arith.addf %32, %33 : vector<16x1xf32>
    %35 = vector.extract_strided_slice %29 {offsets = [2, 2], sizes = [16, 1], strides = [1, 1]} : vector<30x15xf32> to vector<16x1xf32>
    %36 = arith.addf %34, %35 : vector<16x1xf32>
    %37 = vector.extract_strided_slice %29 {offsets = [3, 3], sizes = [16, 1], strides = [1, 1]} : vector<30x15xf32> to vector<16x1xf32>
    %38 = arith.addf %36, %37 : vector<16x1xf32>
    %39 = vector.extract_strided_slice %29 {offsets = [4, 4], sizes = [16, 1], strides = [1, 1]} : vector<30x15xf32> to vector<16x1xf32>
    %40 = arith.addf %38, %39 : vector<16x1xf32>
    %41 = vector.extract_strided_slice %29 {offsets = [5, 5], sizes = [16, 1], strides = [1, 1]} : vector<30x15xf32> to vector<16x1xf32>
    %42 = arith.addf %40, %41 : vector<16x1xf32>
    %43 = vector.extract_strided_slice %29 {offsets = [6, 6], sizes = [16, 1], strides = [1, 1]} : vector<30x15xf32> to vector<16x1xf32>
    %44 = arith.addf %42, %43 : vector<16x1xf32>
    %45 = vector.extract_strided_slice %29 {offsets = [7, 7], sizes = [16, 1], strides = [1, 1]} : vector<30x15xf32> to vector<16x1xf32>
    %46 = arith.addf %44, %45 : vector<16x1xf32>
    %47 = vector.extract_strided_slice %29 {offsets = [8, 8], sizes = [16, 1], strides = [1, 1]} : vector<30x15xf32> to vector<16x1xf32>
    %48 = arith.addf %46, %47 : vector<16x1xf32>
    %49 = vector.extract_strided_slice %29 {offsets = [9, 9], sizes = [16, 1], strides = [1, 1]} : vector<30x15xf32> to vector<16x1xf32>
    %50 = arith.addf %48, %49 : vector<16x1xf32>
    %51 = vector.extract_strided_slice %29 {offsets = [10, 10], sizes = [16, 1], strides = [1, 1]} : vector<30x15xf32> to vector<16x1xf32>
    %52 = arith.addf %50, %51 : vector<16x1xf32>
    %53 = vector.extract_strided_slice %29 {offsets = [11, 11], sizes = [16, 1], strides = [1, 1]} : vector<30x15xf32> to vector<16x1xf32>
    %54 = arith.addf %52, %53 : vector<16x1xf32>
    %55 = vector.extract_strided_slice %29 {offsets = [12, 12], sizes = [16, 1], strides = [1, 1]} : vector<30x15xf32> to vector<16x1xf32>
    %56 = arith.addf %54, %55 : vector<16x1xf32>
    %57 = vector.extract_strided_slice %29 {offsets = [13, 13], sizes = [16, 1], strides = [1, 1]} : vector<30x15xf32> to vector<16x1xf32>
    %58 = arith.addf %56, %57 : vector<16x1xf32>
    %59 = vector.extract_strided_slice %29 {offsets = [14, 14], sizes = [16, 1], strides = [1, 1]} : vector<30x15xf32> to vector<16x1xf32>
    %60 = arith.addf %58, %59 : vector<16x1xf32>
    %61 = vector.broadcast %1 : f32 to vector<16x1xf32>
    %62 = arith.addf %60, %61 : vector<16x1xf32>
    %63 = arith.negf %62 : vector<16x1xf32>
    %64 = math.exp %63 : vector<16x1xf32>
    %cst_21 = arith.constant 1.000000e+00 : f32
    %65 = vector.broadcast %cst_21 : f32 to vector<16x1xf32>
    %66 = arith.addf %65, %64 : vector<16x1xf32>
    %67 = arith.divf %65, %66 : vector<16x1xf32>
    %68 = vector.shape_cast %67 : vector<16x1xf32> to vector<1x16x1xf32>
    %cst_22 = arith.constant 1.000000e+00 : f32
    %69 = vector.broadcast %cst_22 : f32 to vector<1x16x1xf32>
    %70 = arith.addf %69, %68 : vector<1x16x1xf32>
    %71 = vector.broadcast %70 : vector<1x16x1xf32> to vector<16x16x16xf32>
    %72 = arith.mulf %21, %71 : vector<16x16x16xf32>
    %cst_23 = arith.constant dense<0.000000e+00> : vector<16x16xf32>
    %73 = vector.multi_reduction <add>, %72, %cst_23 [1] : vector<16x16x16xf32> to vector<16x16xf32>
    %cst_24 = arith.constant 6.250000e-02 : f32
    %74 = vector.broadcast %cst_24 : f32 to vector<16x16xf32>
    %75 = arith.mulf %73, %74 : vector<16x16xf32>
    %c0_25 = arith.constant 0 : index
    %c0_26 = arith.constant 0 : index
    %76 = vector.load %arg13[%c0_25, %c0_26] : memref<16x9xf32, #tpu.memory_space<vmem>>, vector<16x9xf32>
    %cst_27 = arith.constant dense<0.000000e+00> : vector<16x9xf32>
    %77 = tpu.matmul %75, %76, %cst_27 {dimension_numbers = #tpu.dot_dimension_numbers<[1], [0], [0], [1], [0, 0, 1, 1], [], []>} : vector<16x16xf32>, vector<16x9xf32>, vector<16x9xf32> -> vector<16x9xf32>
    %cst_28 = arith.constant 0.000000e+00 : f32
    %78 = vector.broadcast %cst_28 : f32 to vector<4x9xf32>
    %cst_29 = arith.constant 0.000000e+00 : f32
    %79 = vector.broadcast %cst_29 : f32 to vector<4x9xf32>
    %80 = tpu.concatenate %78, %77, %79 in 0 : vector<4x9xf32>, vector<16x9xf32>, vector<4x9xf32> -> vector<24x9xf32>
    %cst_30 = arith.constant 0.000000e+00 : f32
    %81 = vector.broadcast %cst_30 : f32 to vector<16x1xf32>
    %82 = vector.extract_strided_slice %80 {offsets = [0, 0], sizes = [16, 1], strides = [1, 1]} : vector<24x9xf32> to vector<16x1xf32>
    %83 = arith.addf %81, %82 : vector<16x1xf32>
    %84 = vector.extract_strided_slice %80 {offsets = [1, 1], sizes = [16, 1], strides = [1, 1]} : vector<24x9xf32> to vector<16x1xf32>
    %85 = arith.addf %83, %84 : vector<16x1xf32>
    %86 = vector.extract_strided_slice %80 {offsets = [2, 2], sizes = [16, 1], strides = [1, 1]} : vector<24x9xf32> to vector<16x1xf32>
    %87 = arith.addf %85, %86 : vector<16x1xf32>
    %88 = vector.extract_strided_slice %80 {offsets = [3, 3], sizes = [16, 1], strides = [1, 1]} : vector<24x9xf32> to vector<16x1xf32>
    %89 = arith.addf %87, %88 : vector<16x1xf32>
    %90 = vector.extract_strided_slice %80 {offsets = [4, 4], sizes = [16, 1], strides = [1, 1]} : vector<24x9xf32> to vector<16x1xf32>
    %91 = arith.addf %89, %90 : vector<16x1xf32>
    %92 = vector.extract_strided_slice %80 {offsets = [5, 5], sizes = [16, 1], strides = [1, 1]} : vector<24x9xf32> to vector<16x1xf32>
    %93 = arith.addf %91, %92 : vector<16x1xf32>
    %94 = vector.extract_strided_slice %80 {offsets = [6, 6], sizes = [16, 1], strides = [1, 1]} : vector<24x9xf32> to vector<16x1xf32>
    %95 = arith.addf %93, %94 : vector<16x1xf32>
    %96 = vector.extract_strided_slice %80 {offsets = [7, 7], sizes = [16, 1], strides = [1, 1]} : vector<24x9xf32> to vector<16x1xf32>
    %97 = arith.addf %95, %96 : vector<16x1xf32>
    %98 = vector.extract_strided_slice %80 {offsets = [8, 8], sizes = [16, 1], strides = [1, 1]} : vector<24x9xf32> to vector<16x1xf32>
    %99 = arith.addf %97, %98 : vector<16x1xf32>
    %100 = vector.broadcast %2 : f32 to vector<16x1xf32>
    %101 = arith.addf %99, %100 : vector<16x1xf32>
    %102 = arith.negf %101 : vector<16x1xf32>
    %103 = math.exp %102 : vector<16x1xf32>
    %cst_31 = arith.constant 1.000000e+00 : f32
    %104 = vector.broadcast %cst_31 : f32 to vector<16x1xf32>
    %105 = arith.addf %104, %103 : vector<16x1xf32>
    %106 = arith.divf %104, %105 : vector<16x1xf32>
    %107 = vector.shape_cast %106 : vector<16x1xf32> to vector<16x1x1xf32>
    %cst_32 = arith.constant 1.000000e+00 : f32
    %108 = vector.broadcast %cst_32 : f32 to vector<16x1x1xf32>
    %109 = arith.addf %108, %107 : vector<16x1x1xf32>
    %110 = vector.broadcast %109 : vector<16x1x1xf32> to vector<16x16x16xf32>
    %111 = arith.mulf %72, %110 : vector<16x16x16xf32>
    %112 = vector.shape_cast %111 : vector<16x16x16xf32> to vector<256x16xf32>
    %cst_33 = arith.constant dense<0.000000e+00> : vector<16xf32>
    %113 = vector.multi_reduction <add>, %112, %cst_33 [0] : vector<256x16xf32> to vector<16xf32>
    %114 = vector.shape_cast %113 : vector<16xf32> to vector<1x16xf32>
    %cst_34 = arith.constant 3.906250e-03 : f32
    %115 = vector.broadcast %cst_34 : f32 to vector<1x16xf32>
    %116 = arith.mulf %114, %115 : vector<1x16xf32>
    %c0_35 = arith.constant 0 : index
    %c0_36 = arith.constant 0 : index
    %117 = vector.load %arg14[%c0_35, %c0_36] : memref<16x8xf32, #tpu.memory_space<vmem>>, vector<16x8xf32>
    %cst_37 = arith.constant dense<0.000000e+00> : vector<1x8xf32>
    %118 = tpu.matmul %116, %117, %cst_37 {dimension_numbers = #tpu.dot_dimension_numbers<[1], [0], [0], [1], [0, 0, 1, 1], [], []>} : vector<1x16xf32>, vector<16x8xf32>, vector<1x8xf32> -> vector<1x8xf32>
    %c0_38 = arith.constant 0 : index
    %c0_39 = arith.constant 0 : index
    %119 = vector.load %arg15[%c0_38, %c0_39] : memref<1x8xf32, #tpu.memory_space<vmem>>, vector<1x8xf32>
    %120 = arith.addf %118, %119 : vector<1x8xf32>
    %cst_40 = arith.constant 0.000000e+00 : f32
    %121 = vector.broadcast %cst_40 : f32 to vector<1x8xf32>
    %122 = arith.maximumf %120, %121 : vector<1x8xf32>
    %c0_41 = arith.constant 0 : index
    %c0_42 = arith.constant 0 : index
    %123 = vector.load %arg16[%c0_41, %c0_42] : memref<8x16xf32, #tpu.memory_space<vmem>>, vector<8x16xf32>
    %cst_43 = arith.constant dense<0.000000e+00> : vector<1x16xf32>
    %124 = tpu.matmul %122, %123, %cst_43 {dimension_numbers = #tpu.dot_dimension_numbers<[1], [0], [0], [1], [0, 0, 1, 1], [], []>} : vector<1x8xf32>, vector<8x16xf32>, vector<1x16xf32> -> vector<1x16xf32>
    %c0_44 = arith.constant 0 : index
    %c0_45 = arith.constant 0 : index
    %125 = vector.load %arg17[%c0_44, %c0_45] : memref<1x16xf32, #tpu.memory_space<vmem>>, vector<1x16xf32>
    %126 = arith.addf %124, %125 : vector<1x16xf32>
    %127 = arith.negf %126 : vector<1x16xf32>
    %128 = math.exp %127 : vector<1x16xf32>
    %cst_46 = arith.constant 1.000000e+00 : f32
    %129 = vector.broadcast %cst_46 : f32 to vector<1x16xf32>
    %130 = arith.addf %129, %128 : vector<1x16xf32>
    %131 = arith.divf %129, %130 : vector<1x16xf32>
    %cst_47 = arith.constant 1.000000e+00 : f32
    %132 = vector.broadcast %cst_47 : f32 to vector<1x16xf32>
    %133 = arith.addf %132, %131 : vector<1x16xf32>
    %134 = vector.broadcast %133 : vector<1x16xf32> to vector<256x16xf32>
    %135 = arith.mulf %112, %134 : vector<256x16xf32>
    %cst_48 = arith.constant 0.000000e+00 : bf16
    %136 = vector.broadcast %cst_48 : bf16 to vector<64x16xbf16>
    %c0_49 = arith.constant 0 : index
    %c0_50 = arith.constant 0 : index
    %137 = vector.load %arg22[%c0_49, %c0_50] : memref<384x16xbf16, #tpu.memory_space<vmem>>, vector<64x16xbf16>
    tpu.vector_store %arg22[%c0_49, %c0_50], %136 {strides = array<i32>} : memref<384x16xbf16, #tpu.memory_space<vmem>>, vector<64x16xbf16>,
    %cst_51 = arith.constant 0.000000e+00 : bf16
    %138 = vector.broadcast %cst_51 : bf16 to vector<64x16xbf16>
    %c320 = arith.constant 320 : index
    %c0_52 = arith.constant 0 : index
    %139 = vector.load %arg22[%c320, %c0_52] : memref<384x16xbf16, #tpu.memory_space<vmem>>, vector<64x16xbf16>
    tpu.vector_store %arg22[%c320, %c0_52], %138 {strides = array<i32>} : memref<384x16xbf16, #tpu.memory_space<vmem>>, vector<64x16xbf16>,
    %140 = arith.truncf %135 : vector<256x16xf32> to vector<256x16xbf16>
    %c64 = arith.constant 64 : index
    %c0_53 = arith.constant 0 : index
    %141 = vector.load %arg22[%c64, %c0_53] : memref<384x16xbf16, #tpu.memory_space<vmem>>, vector<256x16xbf16>
    tpu.vector_store %arg22[%c64, %c0_53], %140 {strides = array<i32>} : memref<384x16xbf16, #tpu.memory_space<vmem>>, vector<256x16xbf16>,
    %c0_54 = arith.constant 0 : index
    %c0_55 = arith.constant 0 : index
    %142 = vector.load %arg20[%c0_54, %c0_55] : memref<1x16xf32, #tpu.memory_space<vmem>>, vector<1x16xf32>
    %c0_56 = arith.constant 0 : index
    %c0_57 = arith.constant 0 : index
    %143 = vector.load %arg19[%c0_56, %c0_57] : memref<4x16xbf16, #tpu.memory_space<vmem>>, vector<4x16xbf16>
    %cst_58 = arith.constant dense<0.000000e+00> : vector<256x16xf32>
    %144 = tpu.matmul %6, %143, %cst_58 {dimension_numbers = #tpu.dot_dimension_numbers<[1], [0], [0], [1], [0, 0, 1, 1], [], []>} : vector<256x4xbf16>, vector<4x16xbf16>, vector<256x16xf32> -> vector<256x16xf32>
    %145 = vector.broadcast %142 : vector<1x16xf32> to vector<256x16xf32>
    %146 = arith.addf %145, %144 : vector<256x16xf32>
    %c0_i32_59 = arith.constant 0 : i32
    %c9_i32 = arith.constant 9 : i32
    %147 = arith.addi %c0_i32_59, %c9_i32 : i32
    %c1_i32_60 = arith.constant 1 : i32
    %148 = scf.for %arg23 = %c0_i32_59 to %147 step %c1_i32_60 iter_args(%arg24 = %146) -> (vector<256x16xf32>)  : i32 {
      %c16_i32 = arith.constant 16 : i32
      %154 = arith.muli %arg23, %c16_i32 : i32
      %155 = tpu.assume_multiple %154, 8 : i32
      %156 = arith.index_cast %155 : i32 to index
      %c0_66 = arith.constant 0 : index
      %157 = vector.load %arg22[%156, %c0_66] : memref<384x16xbf16, #tpu.memory_space<vmem>>, vector<256x16xbf16>
      %158 = arith.index_cast %arg23 : i32 to index
      %c0_67 = arith.constant 0 : index
      %c0_68 = arith.constant 0 : index
      %159 = vector.load %arg18[%158, %c0_67, %c0_68] : memref<9x16x16xbf16, #tpu.memory_space<vmem>>, vector<1x16x16xbf16>
      %160 = vector.shape_cast %159 : vector<1x16x16xbf16> to vector<16x16xbf16>
      %cst_69 = arith.constant dense<0.000000e+00> : vector<256x16xf32>
      %161 = tpu.matmul %157, %160, %cst_69 {dimension_numbers = #tpu.dot_dimension_numbers<[1], [0], [0], [1], [0, 0, 1, 1], [], []>} : vector<256x16xbf16>, vector<16x16xbf16>, vector<256x16xf32> -> vector<256x16xf32>
      %162 = arith.addf %arg24, %161 : vector<256x16xf32>
      scf.yield %162 : vector<256x16xf32>
    }
    %c9_i32_61 = arith.constant 9 : i32
    %cst_62 = arith.constant 0.000000e+00 : f32
    %149 = vector.broadcast %cst_62 : f32 to vector<256x16xf32>
    %150 = arith.maximumf %148, %149 : vector<256x16xf32>
    %c0_63 = arith.constant 0 : index
    %c0_64 = arith.constant 0 : index
    %c0_65 = arith.constant 0 : index
    %151 = vector.load %arg21[%c0_63, %c0_64, %c0_65] : memref<1x256x16xf32, #tpu.memory_space<vmem>>, vector<1x256x16xf32>
    %152 = vector.shape_cast %151 : vector<1x256x16xf32> to vector<256x16xf32>
    %153 = vector.shape_cast %150 : vector<256x16xf32> to vector<1x256x16xf32>
    tpu.vector_store %arg21[%c0_63, %c0_64, %c0_65], %153 {strides = array<i32>} : memref<1x256x16xf32, #tpu.memory_space<vmem>>, vector<1x256x16xf32>,
    return
  }
  func.func @transform_0(%arg0: i32) -> i32 {
    %c0_i32 = arith.constant 0 : i32
    %c0_i32_0 = arith.constant 0 : i32
    return %c0_i32 : i32
  }
  func.func @transform_1(%arg0: i32) -> (i32, i32, i32, i32) {
    %c0_i32 = arith.constant 0 : i32
    %c0_i32_0 = arith.constant 0 : i32
    %c0_i32_1 = arith.constant 0 : i32
    %c0_i32_2 = arith.constant 0 : i32
    return %arg0, %c0_i32, %c0_i32_0, %c0_i32_1 : i32, i32, i32, i32
  }
  func.func @transform_2(%arg0: i32) -> (i32, i32, i32) {
    %c0_i32 = arith.constant 0 : i32
    %c0_i32_0 = arith.constant 0 : i32
    %c0_i32_1 = arith.constant 0 : i32
    %c0_i32_2 = arith.constant 0 : i32
    return %c0_i32, %c0_i32_0, %c0_i32_1 : i32, i32, i32
  }
  func.func @transform_3(%arg0: i32) -> (i32, i32, i32) {
    %c0_i32 = arith.constant 0 : i32
    %c0_i32_0 = arith.constant 0 : i32
    %c0_i32_1 = arith.constant 0 : i32
    %c0_i32_2 = arith.constant 0 : i32
    return %c0_i32, %c0_i32_0, %c0_i32_1 : i32, i32, i32
  }
  func.func @transform_4(%arg0: i32) -> (i32, i32, i32) {
    %c0_i32 = arith.constant 0 : i32
    %c0_i32_0 = arith.constant 0 : i32
    %c0_i32_1 = arith.constant 0 : i32
    %c0_i32_2 = arith.constant 0 : i32
    return %c0_i32, %c0_i32_0, %c0_i32_1 : i32, i32, i32
  }
  func.func @transform_5(%arg0: i32) -> (i32, i32, i32) {
    %c0_i32 = arith.constant 0 : i32
    %c0_i32_0 = arith.constant 0 : i32
    %c0_i32_1 = arith.constant 0 : i32
    %c0_i32_2 = arith.constant 0 : i32
    return %c0_i32, %c0_i32_0, %c0_i32_1 : i32, i32, i32
  }
  func.func @transform_6(%arg0: i32) -> (i32, i32, i32) {
    %c0_i32 = arith.constant 0 : i32
    %c0_i32_0 = arith.constant 0 : i32
    %c0_i32_1 = arith.constant 0 : i32
    %c0_i32_2 = arith.constant 0 : i32
    return %c0_i32, %c0_i32_0, %c0_i32_1 : i32, i32, i32
  }
  func.func @transform_7(%arg0: i32) -> (i32, i32, i32) {
    %c0_i32 = arith.constant 0 : i32
    %c0_i32_0 = arith.constant 0 : i32
    %c0_i32_1 = arith.constant 0 : i32
    %c0_i32_2 = arith.constant 0 : i32
    return %c0_i32, %c0_i32_0, %c0_i32_1 : i32, i32, i32
  }
  func.func @transform_8(%arg0: i32) -> (i32, i32) {
    %c0_i32 = arith.constant 0 : i32
    %c0_i32_0 = arith.constant 0 : i32
    %c0_i32_1 = arith.constant 0 : i32
    return %c0_i32, %c0_i32_0 : i32, i32
  }
  func.func @transform_9(%arg0: i32) -> (i32, i32) {
    %c0_i32 = arith.constant 0 : i32
    %c0_i32_0 = arith.constant 0 : i32
    %c0_i32_1 = arith.constant 0 : i32
    return %c0_i32, %c0_i32_0 : i32, i32
  }
  func.func @transform_10(%arg0: i32) -> (i32, i32) {
    %c0_i32 = arith.constant 0 : i32
    %c0_i32_0 = arith.constant 0 : i32
    %c0_i32_1 = arith.constant 0 : i32
    return %c0_i32, %c0_i32_0 : i32, i32
  }
  func.func @transform_11(%arg0: i32) -> (i32, i32) {
    %c0_i32 = arith.constant 0 : i32
    %c0_i32_0 = arith.constant 0 : i32
    %c0_i32_1 = arith.constant 0 : i32
    return %c0_i32, %c0_i32_0 : i32, i32
  }
  func.func @transform_12(%arg0: i32) -> (i32, i32) {
    %c0_i32 = arith.constant 0 : i32
    %c0_i32_0 = arith.constant 0 : i32
    %c0_i32_1 = arith.constant 0 : i32
    return %c0_i32, %c0_i32_0 : i32, i32
  }
  func.func @transform_13(%arg0: i32) -> (i32, i32) {
    %c0_i32 = arith.constant 0 : i32
    %c0_i32_0 = arith.constant 0 : i32
    %c0_i32_1 = arith.constant 0 : i32
    return %c0_i32, %c0_i32_0 : i32, i32
  }
  func.func @transform_14(%arg0: i32) -> (i32, i32) {
    %c0_i32 = arith.constant 0 : i32
    %c0_i32_0 = arith.constant 0 : i32
    %c0_i32_1 = arith.constant 0 : i32
    return %c0_i32, %c0_i32_0 : i32, i32
  }
  func.func @transform_15(%arg0: i32) -> (i32, i32) {
    %c0_i32 = arith.constant 0 : i32
    %c0_i32_0 = arith.constant 0 : i32
    %c0_i32_1 = arith.constant 0 : i32
    return %c0_i32, %c0_i32_0 : i32, i32
  }
  func.func @transform_16(%arg0: i32) -> (i32, i32) {
    %c0_i32 = arith.constant 0 : i32
    %c0_i32_0 = arith.constant 0 : i32
    %c0_i32_1 = arith.constant 0 : i32
    return %c0_i32, %c0_i32_0 : i32, i32
  }
  func.func @transform_17(%arg0: i32) -> (i32, i32, i32) {
    %c0_i32 = arith.constant 0 : i32
    %c0_i32_0 = arith.constant 0 : i32
    %c0_i32_1 = arith.constant 0 : i32
    %c0_i32_2 = arith.constant 0 : i32
    return %c0_i32, %c0_i32_0, %c0_i32_1 : i32, i32, i32
  }
  func.func @transform_18(%arg0: i32) -> (i32, i32) {
    %c0_i32 = arith.constant 0 : i32
    %c0_i32_0 = arith.constant 0 : i32
    %c0_i32_1 = arith.constant 0 : i32
    return %c0_i32, %c0_i32_0 : i32, i32
  }
  func.func @transform_19(%arg0: i32) -> (i32, i32) {
    %c0_i32 = arith.constant 0 : i32
    %c0_i32_0 = arith.constant 0 : i32
    %c0_i32_1 = arith.constant 0 : i32
    return %c0_i32, %c0_i32_0 : i32, i32
  }
  func.func @transform_20(%arg0: i32) -> (i32, i32, i32) {
    %c0_i32 = arith.constant 0 : i32
    %c0_i32_0 = arith.constant 0 : i32
    %c0_i32_1 = arith.constant 0 : i32
    return %arg0, %c0_i32, %c0_i32_0 : i32, i32, i32
  }
}

module attributes {stable_mosaic.version = 11 : i64} {
  func.func @kernel(%arg0: i32, %arg1: memref<4xf32, #tpu.memory_space<smem>>, %arg2: memref<1x16x16x4xf32, #tpu.memory_space<vmem>>, %arg3: memref<3x4x4xbf16, #tpu.memory_space<vmem>>, %arg4: memref<3x1x4xf32, #tpu.memory_space<vmem>>, %arg5: memref<3x4x4xbf16, #tpu.memory_space<vmem>>, %arg6: memref<3x1x4xf32, #tpu.memory_space<vmem>>, %arg7: memref<3x16x16xf32, #tpu.memory_space<vmem>>, %arg8: memref<3x4x16xbf16, #tpu.memory_space<vmem>>, %arg9: memref<4x16xbf16, #tpu.memory_space<vmem>>, %arg10: memref<1x16xf32, #tpu.memory_space<vmem>>, %arg11: memref<1x16xf32, #tpu.memory_space<vmem>>, %arg12: memref<16x15xf32, #tpu.memory_space<vmem>>, %arg13: memref<16x9xf32, #tpu.memory_space<vmem>>, %arg14: memref<16x8xf32, #tpu.memory_space<vmem>>, %arg15: memref<1x8xf32, #tpu.memory_space<vmem>>, %arg16: memref<8x16xf32, #tpu.memory_space<vmem>>, %arg17: memref<1x16xf32, #tpu.memory_space<vmem>>, %arg18: memref<9x16x16xbf16, #tpu.memory_space<vmem>>, %arg19: memref<4x16xbf16, #tpu.memory_space<vmem>>, %arg20: memref<1x16xf32, #tpu.memory_space<vmem>>, %arg21: memref<1x256x16xf32, #tpu.memory_space<vmem>>, %arg22: memref<384x16xbf16, #tpu.memory_space<vmem>>) attributes {dimension_semantics = [#tpu.dimension_semantics<parallel>], iteration_bounds = array<i64: 2>, scalar_prefetch = 0 : i64, scratch_operands = 1 : i64, tpu.core_type = #tpu.core_type<tc>, window_params = [{transform_indices = @transform_0, window_bounds = array<i64: 4>}, {transform_indices = @transform_1, window_bounds = array<i64: 1, 16, 16, 4>}, {pipeline_mode = #tpu.pipeline_mode<synchronous>, transform_indices = @transform_2, window_bounds = array<i64: 3, 4, 4>}, {pipeline_mode = #tpu.pipeline_mode<synchronous>, transform_indices = @transform_3, window_bounds = array<i64: 3, 1, 4>}, {pipeline_mode = #tpu.pipeline_mode<synchronous>, transform_indices = @transform_4, window_bounds = array<i64: 3, 4, 4>}, {pipeline_mode = #tpu.pipeline_mode<synchronous>, transform_indices = @transform_5, window_bounds = array<i64: 3, 1, 4>}, {pipeline_mode = #tpu.pipeline_mode<synchronous>, transform_indices = @transform_6, window_bounds = array<i64: 3, 16, 16>}, {pipeline_mode = #tpu.pipeline_mode<synchronous>, transform_indices = @transform_7, window_bounds = array<i64: 3, 4, 16>}, {pipeline_mode = #tpu.pipeline_mode<synchronous>, transform_indices = @transform_8, window_bounds = array<i64: 4, 16>}, {pipeline_mode = #tpu.pipeline_mode<synchronous>, transform_indices = @transform_9, window_bounds = array<i64: 1, 16>}, {pipeline_mode = #tpu.pipeline_mode<synchronous>, transform_indices = @transform_10, window_bounds = array<i64: 1, 16>}, {pipeline_mode = #tpu.pipeline_mode<synchronous>, transform_indices = @transform_11, window_bounds = array<i64: 16, 15>}, {pipeline_mode = #tpu.pipeline_mode<synchronous>, transform_indices = @transform_12, window_bounds = array<i64: 16, 9>}, {pipeline_mode = #tpu.pipeline_mode<synchronous>, transform_indices = @transform_13, window_bounds = array<i64: 16, 8>}, {pipeline_mode = #tpu.pipeline_mode<synchronous>, transform_indices = @transform_14, window_bounds = array<i64: 1, 8>}, {pipeline_mode = #tpu.pipeline_mode<synchronous>, transform_indices = @transform_15, window_bounds = array<i64: 8, 16>}, {pipeline_mode = #tpu.pipeline_mode<synchronous>, transform_indices = @transform_16, window_bounds = array<i64: 1, 16>}, {pipeline_mode = #tpu.pipeline_mode<synchronous>, transform_indices = @transform_17, window_bounds = array<i64: 9, 16, 16>}, {pipeline_mode = #tpu.pipeline_mode<synchronous>, transform_indices = @transform_18, window_bounds = array<i64: 4, 16>}, {pipeline_mode = #tpu.pipeline_mode<synchronous>, transform_indices = @transform_19, window_bounds = array<i64: 1, 16>}, {transform_indices = @transform_20, window_bounds = array<i64: 1, 256, 16>}]} {
    %c0 = arith.constant 0 : index
    %0 = memref.load %arg1[%c0] : memref<4xf32, #tpu.memory_space<smem>>
    %c1 = arith.constant 1 : index
    %1 = memref.load %arg1[%c1] : memref<4xf32, #tpu.memory_space<smem>>
    %c2 = arith.constant 2 : index
    %2 = memref.load %arg1[%c2] : memref<4xf32, #tpu.memory_space<smem>>
    %c0_0 = arith.constant 0 : index
    %c0_1 = arith.constant 0 : index
    %c0_2 = arith.constant 0 : index
    %c0_3 = arith.constant 0 : index
    %3 = vector.load %arg2[%c0_0, %c0_1, %c0_2, %c0_3] : memref<1x16x16x4xf32, #tpu.memory_space<vmem>>, vector<1x16x16x4xf32>
    %4 = vector.shape_cast %3 : vector<1x16x16x4xf32> to vector<16x16x4xf32>
    %5 = vector.shape_cast %4 : vector<16x16x4xf32> to vector<256x4xf32>
    %6 = arith.truncf %5 : vector<256x4xf32> to vector<256x4xbf16>
    %cst = arith.constant 0.000000e+00 : f32
    %7 = vector.broadcast %cst : f32 to vector<256x16xf32>
    %c0_i32 = arith.constant 0 : i32
    %c3_i32 = arith.constant 3 : i32
    %8 = arith.addi %c0_i32, %c3_i32 : i32
    %c1_i32 = arith.constant 1 : i32
    %9 = scf.for %arg23 = %c0_i32 to %8 step %c1_i32 iter_args(%arg24 = %7) -> (vector<256x16xf32>)  : i32 {
      %154 = arith.index_cast %arg23 : i32 to index
      %c0_66 = arith.constant 0 : index
      %c0_67 = arith.constant 0 : index
      %155 = vector.load %arg3[%154, %c0_66, %c0_67] : memref<3x4x4xbf16, #tpu.memory_space<vmem>>, vector<1x4x4xbf16>
      %156 = vector.shape_cast %155 : vector<1x4x4xbf16> to vector<4x4xbf16>
      %cst_68 = arith.constant dense<0.000000e+00> : vector<256x4xf32>
      %157 = tpu.matmul %6, %156, %cst_68 {dimension_numbers = #tpu.dot_dimension_numbers<[1], [0], [0], [1], [0, 0, 1, 1], [], []>} : vector<256x4xbf16>, vector<4x4xbf16>, vector<256x4xf32> -> vector<256x4xf32>
      %158 = arith.index_cast %arg23 : i32 to index
      %c0_69 = arith.constant 0 : index
      %c0_70 = arith.constant 0 : index
      %159 = vector.load %arg4[%158, %c0_69, %c0_70] : memref<3x1x4xf32, #tpu.memory_space<vmem>>, vector<1x1x4xf32>
      %160 = vector.shape_cast %159 : vector<1x1x4xf32> to vector<1x4xf32>
      %161 = vector.broadcast %160 : vector<1x4xf32> to vector<256x4xf32>
      %162 = arith.addf %157, %161 : vector<256x4xf32>
      %163 = arith.index_cast %arg23 : i32 to index
      %c0_71 = arith.constant 0 : index
      %c0_72 = arith.constant 0 : index
      %164 = vector.load %arg5[%163, %c0_71, %c0_72] : memref<3x4x4xbf16, #tpu.memory_space<vmem>>, vector<1x4x4xbf16>
      %165 = vector.shape_cast %164 : vector<1x4x4xbf16> to vector<4x4xbf16>
      %cst_73 = arith.constant dense<0.000000e+00> : vector<256x4xf32>
      %166 = tpu.matmul %6, %165, %cst_73 {dimension_numbers = #tpu.dot_dimension_numbers<[1], [0], [0], [1], [0, 0, 1, 1], [], []>} : vector<256x4xbf16>, vector<4x4xbf16>, vector<256x4xf32> -> vector<256x4xf32>
      %167 = arith.index_cast %arg23 : i32 to index
      %c0_74 = arith.constant 0 : index
      %c0_75 = arith.constant 0 : index
      %168 = vector.load %arg6[%167, %c0_74, %c0_75] : memref<3x1x4xf32, #tpu.memory_space<vmem>>, vector<1x1x4xf32>
      %169 = vector.shape_cast %168 : vector<1x1x4xf32> to vector<1x4xf32>
      %170 = vector.broadcast %169 : vector<1x4xf32> to vector<256x4xf32>
      %171 = arith.addf %166, %170 : vector<256x4xf32>
      %172 = vector.shape_cast %162 : vector<256x4xf32> to vector<16x16x4xf32>
      %173 = vector.shape_cast %171 : vector<256x4xf32> to vector<16x16x4xf32>
      "tpu.trace_start"() <{level = 10 : i32, message = "tvc,tuc->tvu"}> : () -> ()
      %cst_76 = arith.constant dense<0.000000e+00> : vector<16x16x16xf32>
      %174 = tpu.matmul %173, %172, %cst_76 {dimension_numbers = #tpu.dot_dimension_numbers<[2], [2], [1], [1], [0, 0, 0, 1, 1, 1], [0], [0]>} : vector<16x16x4xf32>, vector<16x16x4xf32>, vector<16x16x16xf32> -> vector<16x16x16xf32>
      "tpu.trace_stop"() : () -> ()
      %cst_77 = arith.constant dense<0.000000e+00> : vector<16x16xf32>
      %175 = vector.multi_reduction <add>, %174, %cst_77 [0] : vector<16x16x16xf32> to vector<16x16xf32>
      %176 = arith.index_cast %arg23 : i32 to index
      %c0_78 = arith.constant 0 : index
      %c0_79 = arith.constant 0 : index
      %177 = vector.load %arg7[%176, %c0_78, %c0_79] : memref<3x16x16xf32, #tpu.memory_space<vmem>>, vector<1x16x16xf32>
      %178 = vector.shape_cast %177 : vector<1x16x16xf32> to vector<16x16xf32>
      %cst_80 = arith.constant 1.562500e-02 : f32
      %179 = vector.broadcast %cst_80 : f32 to vector<16x16xf32>
      %180 = arith.mulf %175, %179 : vector<16x16xf32>
      %181 = math.tanh %180 : vector<16x16xf32>
      %182 = vector.broadcast %0 : f32 to vector<16x16xf32>
      %183 = arith.mulf %182, %181 : vector<16x16xf32>
      %184 = arith.addf %178, %183 : vector<16x16xf32>
      %185 = vector.shape_cast %184 : vector<16x16xf32> to vector<1x16x16xf32>
      %186 = vector.broadcast %185 : vector<1x16x16xf32> to vector<16x16x16xf32>
      "tpu.trace_start"() <{level = 10 : i32, message = "tvu,tuc->tvc"}> : () -> ()
      %cst_81 = arith.constant dense<0.000000e+00> : vector<16x16x4xf32>
      %187 = tpu.matmul %186, %4, %cst_81 {dimension_numbers = #tpu.dot_dimension_numbers<[2], [1], [1], [2], [0, 0, 0, 1, 1, 2], [0], [0]>} : vector<16x16x16xf32>, vector<16x16x4xf32>, vector<16x16x4xf32> -> vector<16x16x4xf32>
      "tpu.trace_stop"() : () -> ()
      %188 = vector.shape_cast %187 : vector<16x16x4xf32> to vector<256x4xf32>
      %189 = arith.index_cast %arg23 : i32 to index
      %c0_82 = arith.constant 0 : index
      %c0_83 = arith.constant 0 : index
      %190 = vector.load %arg8[%189, %c0_82, %c0_83] : memref<3x4x16xbf16, #tpu.memory_space<vmem>>, vector<1x4x16xbf16>
      %191 = vector.shape_cast %190 : vector<1x4x16xbf16> to vector<4x16xbf16>
      %192 = arith.truncf %188 : vector<256x4xf32> to vector<256x4xbf16>
      %cst_84 = arith.constant dense<0.000000e+00> : vector<256x16xf32>
      %193 = tpu.matmul %192, %191, %cst_84 {dimension_numbers = #tpu.dot_dimension_numbers<[1], [0], [0], [1], [0, 0, 1, 1], [], []>} : vector<256x4xbf16>, vector<4x16xbf16>, vector<256x16xf32> -> vector<256x16xf32>
      %194 = arith.addf %arg24, %193 : vector<256x16xf32>
      scf.yield %194 : vector<256x16xf32>
    }
    %c3_i32_4 = arith.constant 3 : i32
    %c0_5 = arith.constant 0 : index
    %c0_6 = arith.constant 0 : index
    %10 = vector.load %arg10[%c0_5, %c0_6] : memref<1x16xf32, #tpu.memory_space<vmem>>, vector<1x16xf32>
    %11 = vector.broadcast %10 : vector<1x16xf32> to vector<256x16xf32>
    %12 = arith.mulf %9, %11 : vector<256x16xf32>
    %c0_7 = arith.constant 0 : index
    %c0_8 = arith.constant 0 : index
    %13 = vector.load %arg11[%c0_7, %c0_8] : memref<1x16xf32, #tpu.memory_space<vmem>>, vector<1x16xf32>
    %14 = vector.broadcast %13 : vector<1x16xf32> to vector<256x16xf32>
    %15 = arith.addf %12, %14 : vector<256x16xf32>
    %c0_9 = arith.constant 0 : index
    %c0_10 = arith.constant 0 : index
    %16 = vector.load %arg9[%c0_9, %c0_10] : memref<4x16xbf16, #tpu.memory_space<vmem>>, vector<4x16xbf16>
    %cst_11 = arith.constant dense<0.000000e+00> : vector<256x16xf32>
    %17 = tpu.matmul %6, %16, %cst_11 {dimension_numbers = #tpu.dot_dimension_numbers<[1], [0], [0], [1], [0, 0, 1, 1], [], []>} : vector<256x4xbf16>, vector<4x16xbf16>, vector<256x16xf32> -> vector<256x16xf32>
    %18 = arith.addf %15, %17 : vector<256x16xf32>
    %cst_12 = arith.constant 0.000000e+00 : f32
    %19 = vector.broadcast %cst_12 : f32 to vector<256x16xf32>
    %20 = arith.maximumf %18, %19 : vector<256x16xf32>
    %21 = vector.shape_cast %20 : vector<256x16xf32> to vector<16x16x16xf32>
    %cst_13 = arith.constant dense<0.000000e+00> : vector<16x16xf32>
    %22 = vector.multi_reduction <add>, %21, %cst_13 [0] : vector<16x16x16xf32> to vector<16x16xf32>
    %cst_14 = arith.constant 6.250000e-02 : f32
    %23 = vector.broadcast %cst_14 : f32 to vector<16x16xf32>
    %24 = arith.mulf %22, %23 : vector<16x16xf32>
    %c0_15 = arith.constant 0 : index
    %c0_16 = arith.constant 0 : index
    %25 = vector.load %arg12[%c0_15, %c0_16] : memref<16x15xf32, #tpu.memory_space<vmem>>, vector<16x15xf32>
    %cst_17 = arith.constant dense<0.000000e+00> : vector<16x15xf32>
    %26 = tpu.matmul %24, %25, %cst_17 {dimension_numbers = #tpu.dot_dimension_numbers<[1], [0], [0], [1], [0, 0, 1, 1], [], []>} : vector<16x16xf32>, vector<16x15xf32>, vector<16x15xf32> -> vector<16x15xf32>
    %cst_18 = arith.constant 0.000000e+00 : f32
    %27 = vector.broadcast %cst_18 : f32 to vector<7x15xf32>
    %cst_19 = arith.constant 0.000000e+00 : f32
    %28 = vector.broadcast %cst_19 : f32 to vector<7x15xf32>
    %29 = tpu.concatenate %27, %26, %28 in 0 : vector<7x15xf32>, vector<16x15xf32>, vector<7x15xf32> -> vector<30x15xf32>
    %cst_20 = arith.constant 0.000000e+00 : f32
    %30 = vector.broadcast %cst_20 : f32 to vector<16x1xf32>
    %31 = vector.extract_strided_slice %29 {offsets = [0, 0], sizes = [16, 1], strides = [1, 1]} : vector<30x15xf32> to vector<16x1xf32>
    %32 = arith.addf %30, %31 : vector<16x1xf32>
    %33 = vector.extract_strided_slice %29 {offsets = [1, 1], sizes = [16, 1], strides = [1, 1]} : vector<30x15xf32> to vector<16x1xf32>
    %34 = arith.addf %32, %33 : vector<16x1xf32>
    %35 = vector.extract_strided_slice %29 {offsets = [2, 2], sizes = [16, 1], strides = [1, 1]} : vector<30x15xf32> to vector<16x1xf32>
    %36 = arith.addf %34, %35 : vector<16x1xf32>
    %37 = vector.extract_strided_slice %29 {offsets = [3, 3], sizes = [16, 1], strides = [1, 1]} : vector<30x15xf32> to vector<16x1xf32>
    %38 = arith.addf %36, %37 : vector<16x1xf32>
    %39 = vector.extract_strided_slice %29 {offsets = [4, 4], sizes = [16, 1], strides = [1, 1]} : vector<30x15xf32> to vector<16x1xf32>
    %40 = arith.addf %38, %39 : vector<16x1xf32>
    %41 = vector.extract_strided_slice %29 {offsets = [5, 5], sizes = [16, 1], strides = [1, 1]} : vector<30x15xf32> to vector<16x1xf32>
    %42 = arith.addf %40, %41 : vector<16x1xf32>
    %43 = vector.extract_strided_slice %29 {offsets = [6, 6], sizes = [16, 1], strides = [1, 1]} : vector<30x15xf32> to vector<16x1xf32>
    %44 = arith.addf %42, %43 : vector<16x1xf32>
    %45 = vector.extract_strided_slice %29 {offsets = [7, 7], sizes = [16, 1], strides = [1, 1]} : vector<30x15xf32> to vector<16x1xf32>
    %46 = arith.addf %44, %45 : vector<16x1xf32>
    %47 = vector.extract_strided_slice %29 {offsets = [8, 8], sizes = [16, 1], strides = [1, 1]} : vector<30x15xf32> to vector<16x1xf32>
    %48 = arith.addf %46, %47 : vector<16x1xf32>
    %49 = vector.extract_strided_slice %29 {offsets = [9, 9], sizes = [16, 1], strides = [1, 1]} : vector<30x15xf32> to vector<16x1xf32>
    %50 = arith.addf %48, %49 : vector<16x1xf32>
    %51 = vector.extract_strided_slice %29 {offsets = [10, 10], sizes = [16, 1], strides = [1, 1]} : vector<30x15xf32> to vector<16x1xf32>
    %52 = arith.addf %50, %51 : vector<16x1xf32>
    %53 = vector.extract_strided_slice %29 {offsets = [11, 11], sizes = [16, 1], strides = [1, 1]} : vector<30x15xf32> to vector<16x1xf32>
    %54 = arith.addf %52, %53 : vector<16x1xf32>
    %55 = vector.extract_strided_slice %29 {offsets = [12, 12], sizes = [16, 1], strides = [1, 1]} : vector<30x15xf32> to vector<16x1xf32>
    %56 = arith.addf %54, %55 : vector<16x1xf32>
    %57 = vector.extract_strided_slice %29 {offsets = [13, 13], sizes = [16, 1], strides = [1, 1]} : vector<30x15xf32> to vector<16x1xf32>
    %58 = arith.addf %56, %57 : vector<16x1xf32>
    %59 = vector.extract_strided_slice %29 {offsets = [14, 14], sizes = [16, 1], strides = [1, 1]} : vector<30x15xf32> to vector<16x1xf32>
    %60 = arith.addf %58, %59 : vector<16x1xf32>
    %61 = vector.broadcast %1 : f32 to vector<16x1xf32>
    %62 = arith.addf %60, %61 : vector<16x1xf32>
    %63 = arith.negf %62 : vector<16x1xf32>
    %64 = math.exp %63 : vector<16x1xf32>
    %cst_21 = arith.constant 1.000000e+00 : f32
    %65 = vector.broadcast %cst_21 : f32 to vector<16x1xf32>
    %66 = arith.addf %65, %64 : vector<16x1xf32>
    %67 = arith.divf %65, %66 : vector<16x1xf32>
    %68 = vector.shape_cast %67 : vector<16x1xf32> to vector<1x16x1xf32>
    %cst_22 = arith.constant 1.000000e+00 : f32
    %69 = vector.broadcast %cst_22 : f32 to vector<1x16x1xf32>
    %70 = arith.addf %69, %68 : vector<1x16x1xf32>
    %71 = vector.broadcast %70 : vector<1x16x1xf32> to vector<16x16x16xf32>
    %72 = arith.mulf %21, %71 : vector<16x16x16xf32>
    %cst_23 = arith.constant dense<0.000000e+00> : vector<16x16xf32>
    %73 = vector.multi_reduction <add>, %72, %cst_23 [1] : vector<16x16x16xf32> to vector<16x16xf32>
    %cst_24 = arith.constant 6.250000e-02 : f32
    %74 = vector.broadcast %cst_24 : f32 to vector<16x16xf32>
    %75 = arith.mulf %73, %74 : vector<16x16xf32>
    %c0_25 = arith.constant 0 : index
    %c0_26 = arith.constant 0 : index
    %76 = vector.load %arg13[%c0_25, %c0_26] : memref<16x9xf32, #tpu.memory_space<vmem>>, vector<16x9xf32>
    %cst_27 = arith.constant dense<0.000000e+00> : vector<16x9xf32>
    %77 = tpu.matmul %75, %76, %cst_27 {dimension_numbers = #tpu.dot_dimension_numbers<[1], [0], [0], [1], [0, 0, 1, 1], [], []>} : vector<16x16xf32>, vector<16x9xf32>, vector<16x9xf32> -> vector<16x9xf32>
    %cst_28 = arith.constant 0.000000e+00 : f32
    %78 = vector.broadcast %cst_28 : f32 to vector<4x9xf32>
    %cst_29 = arith.constant 0.000000e+00 : f32
    %79 = vector.broadcast %cst_29 : f32 to vector<4x9xf32>
    %80 = tpu.concatenate %78, %77, %79 in 0 : vector<4x9xf32>, vector<16x9xf32>, vector<4x9xf32> -> vector<24x9xf32>
    %cst_30 = arith.constant 0.000000e+00 : f32
    %81 = vector.broadcast %cst_30 : f32 to vector<16x1xf32>
    %82 = vector.extract_strided_slice %80 {offsets = [0, 0], sizes = [16, 1], strides = [1, 1]} : vector<24x9xf32> to vector<16x1xf32>
    %83 = arith.addf %81, %82 : vector<16x1xf32>
    %84 = vector.extract_strided_slice %80 {offsets = [1, 1], sizes = [16, 1], strides = [1, 1]} : vector<24x9xf32> to vector<16x1xf32>
    %85 = arith.addf %83, %84 : vector<16x1xf32>
    %86 = vector.extract_strided_slice %80 {offsets = [2, 2], sizes = [16, 1], strides = [1, 1]} : vector<24x9xf32> to vector<16x1xf32>
    %87 = arith.addf %85, %86 : vector<16x1xf32>
    %88 = vector.extract_strided_slice %80 {offsets = [3, 3], sizes = [16, 1], strides = [1, 1]} : vector<24x9xf32> to vector<16x1xf32>
    %89 = arith.addf %87, %88 : vector<16x1xf32>
    %90 = vector.extract_strided_slice %80 {offsets = [4, 4], sizes = [16, 1], strides = [1, 1]} : vector<24x9xf32> to vector<16x1xf32>
    %91 = arith.addf %89, %90 : vector<16x1xf32>
    %92 = vector.extract_strided_slice %80 {offsets = [5, 5], sizes = [16, 1], strides = [1, 1]} : vector<24x9xf32> to vector<16x1xf32>
    %93 = arith.addf %91, %92 : vector<16x1xf32>
    %94 = vector.extract_strided_slice %80 {offsets = [6, 6], sizes = [16, 1], strides = [1, 1]} : vector<24x9xf32> to vector<16x1xf32>
    %95 = arith.addf %93, %94 : vector<16x1xf32>
    %96 = vector.extract_strided_slice %80 {offsets = [7, 7], sizes = [16, 1], strides = [1, 1]} : vector<24x9xf32> to vector<16x1xf32>
    %97 = arith.addf %95, %96 : vector<16x1xf32>
    %98 = vector.extract_strided_slice %80 {offsets = [8, 8], sizes = [16, 1], strides = [1, 1]} : vector<24x9xf32> to vector<16x1xf32>
    %99 = arith.addf %97, %98 : vector<16x1xf32>
    %100 = vector.broadcast %2 : f32 to vector<16x1xf32>
    %101 = arith.addf %99, %100 : vector<16x1xf32>
    %102 = arith.negf %101 : vector<16x1xf32>
    %103 = math.exp %102 : vector<16x1xf32>
    %cst_31 = arith.constant 1.000000e+00 : f32
    %104 = vector.broadcast %cst_31 : f32 to vector<16x1xf32>
    %105 = arith.addf %104, %103 : vector<16x1xf32>
    %106 = arith.divf %104, %105 : vector<16x1xf32>
    %107 = vector.shape_cast %106 : vector<16x1xf32> to vector<16x1x1xf32>
    %cst_32 = arith.constant 1.000000e+00 : f32
    %108 = vector.broadcast %cst_32 : f32 to vector<16x1x1xf32>
    %109 = arith.addf %108, %107 : vector<16x1x1xf32>
    %110 = vector.broadcast %109 : vector<16x1x1xf32> to vector<16x16x16xf32>
    %111 = arith.mulf %72, %110 : vector<16x16x16xf32>
    %112 = vector.shape_cast %111 : vector<16x16x16xf32> to vector<256x16xf32>
    %cst_33 = arith.constant dense<0.000000e+00> : vector<16xf32>
    %113 = vector.multi_reduction <add>, %112, %cst_33 [0] : vector<256x16xf32> to vector<16xf32>
    %114 = vector.shape_cast %113 : vector<16xf32> to vector<1x16xf32>
    %cst_34 = arith.constant 3.906250e-03 : f32
    %115 = vector.broadcast %cst_34 : f32 to vector<1x16xf32>
    %116 = arith.mulf %114, %115 : vector<1x16xf32>
    %c0_35 = arith.constant 0 : index
    %c0_36 = arith.constant 0 : index
    %117 = vector.load %arg14[%c0_35, %c0_36] : memref<16x8xf32, #tpu.memory_space<vmem>>, vector<16x8xf32>
    %cst_37 = arith.constant dense<0.000000e+00> : vector<1x8xf32>
    %118 = tpu.matmul %116, %117, %cst_37 {dimension_numbers = #tpu.dot_dimension_numbers<[1], [0], [0], [1], [0, 0, 1, 1], [], []>} : vector<1x16xf32>, vector<16x8xf32>, vector<1x8xf32> -> vector<1x8xf32>
    %c0_38 = arith.constant 0 : index
    %c0_39 = arith.constant 0 : index
    %119 = vector.load %arg15[%c0_38, %c0_39] : memref<1x8xf32, #tpu.memory_space<vmem>>, vector<1x8xf32>
    %120 = arith.addf %118, %119 : vector<1x8xf32>
    %cst_40 = arith.constant 0.000000e+00 : f32
    %121 = vector.broadcast %cst_40 : f32 to vector<1x8xf32>
    %122 = arith.maximumf %120, %121 : vector<1x8xf32>
    %c0_41 = arith.constant 0 : index
    %c0_42 = arith.constant 0 : index
    %123 = vector.load %arg16[%c0_41, %c0_42] : memref<8x16xf32, #tpu.memory_space<vmem>>, vector<8x16xf32>
    %cst_43 = arith.constant dense<0.000000e+00> : vector<1x16xf32>
    %124 = tpu.matmul %122, %123, %cst_43 {dimension_numbers = #tpu.dot_dimension_numbers<[1], [0], [0], [1], [0, 0, 1, 1], [], []>} : vector<1x8xf32>, vector<8x16xf32>, vector<1x16xf32> -> vector<1x16xf32>
    %c0_44 = arith.constant 0 : index
    %c0_45 = arith.constant 0 : index
    %125 = vector.load %arg17[%c0_44, %c0_45] : memref<1x16xf32, #tpu.memory_space<vmem>>, vector<1x16xf32>
    %126 = arith.addf %124, %125 : vector<1x16xf32>
    %127 = arith.negf %126 : vector<1x16xf32>
    %128 = math.exp %127 : vector<1x16xf32>
    %cst_46 = arith.constant 1.000000e+00 : f32
    %129 = vector.broadcast %cst_46 : f32 to vector<1x16xf32>
    %130 = arith.addf %129, %128 : vector<1x16xf32>
    %131 = arith.divf %129, %130 : vector<1x16xf32>
    %cst_47 = arith.constant 1.000000e+00 : f32
    %132 = vector.broadcast %cst_47 : f32 to vector<1x16xf32>
    %133 = arith.addf %132, %131 : vector<1x16xf32>
    %134 = vector.broadcast %133 : vector<1x16xf32> to vector<256x16xf32>
    %135 = arith.mulf %112, %134 : vector<256x16xf32>
    %cst_48 = arith.constant 0.000000e+00 : bf16
    %136 = vector.broadcast %cst_48 : bf16 to vector<64x16xbf16>
    %c0_49 = arith.constant 0 : index
    %c0_50 = arith.constant 0 : index
    %137 = vector.load %arg22[%c0_49, %c0_50] : memref<384x16xbf16, #tpu.memory_space<vmem>>, vector<64x16xbf16>
    tpu.vector_store %arg22[%c0_49, %c0_50], %136 {strides = array<i32>} : memref<384x16xbf16, #tpu.memory_space<vmem>>, vector<64x16xbf16>,
    %cst_51 = arith.constant 0.000000e+00 : bf16
    %138 = vector.broadcast %cst_51 : bf16 to vector<64x16xbf16>
    %c320 = arith.constant 320 : index
    %c0_52 = arith.constant 0 : index
    %139 = vector.load %arg22[%c320, %c0_52] : memref<384x16xbf16, #tpu.memory_space<vmem>>, vector<64x16xbf16>
    tpu.vector_store %arg22[%c320, %c0_52], %138 {strides = array<i32>} : memref<384x16xbf16, #tpu.memory_space<vmem>>, vector<64x16xbf16>,
    %140 = arith.truncf %135 : vector<256x16xf32> to vector<256x16xbf16>
    %c64 = arith.constant 64 : index
    %c0_53 = arith.constant 0 : index
    %141 = vector.load %arg22[%c64, %c0_53] : memref<384x16xbf16, #tpu.memory_space<vmem>>, vector<256x16xbf16>
    tpu.vector_store %arg22[%c64, %c0_53], %140 {strides = array<i32>} : memref<384x16xbf16, #tpu.memory_space<vmem>>, vector<256x16xbf16>,
    %c0_54 = arith.constant 0 : index
    %c0_55 = arith.constant 0 : index
    %142 = vector.load %arg20[%c0_54, %c0_55] : memref<1x16xf32, #tpu.memory_space<vmem>>, vector<1x16xf32>
    %c0_56 = arith.constant 0 : index
    %c0_57 = arith.constant 0 : index
    %143 = vector.load %arg19[%c0_56, %c0_57] : memref<4x16xbf16, #tpu.memory_space<vmem>>, vector<4x16xbf16>
    %cst_58 = arith.constant dense<0.000000e+00> : vector<256x16xf32>
    %144 = tpu.matmul %6, %143, %cst_58 {dimension_numbers = #tpu.dot_dimension_numbers<[1], [0], [0], [1], [0, 0, 1, 1], [], []>} : vector<256x4xbf16>, vector<4x16xbf16>, vector<256x16xf32> -> vector<256x16xf32>
    %145 = vector.broadcast %142 : vector<1x16xf32> to vector<256x16xf32>
    %146 = arith.addf %145, %144 : vector<256x16xf32>
    %c0_i32_59 = arith.constant 0 : i32
    %c9_i32 = arith.constant 9 : i32
    %147 = arith.addi %c0_i32_59, %c9_i32 : i32
    %c1_i32_60 = arith.constant 1 : i32
    %148 = scf.for %arg23 = %c0_i32_59 to %147 step %c1_i32_60 iter_args(%arg24 = %146) -> (vector<256x16xf32>)  : i32 {
      %c16_i32 = arith.constant 16 : i32
      %154 = arith.muli %arg23, %c16_i32 : i32
      %155 = tpu.assume_multiple %154, 8 : i32
      %156 = arith.index_cast %155 : i32 to index
      %c0_66 = arith.constant 0 : index
      %157 = vector.load %arg22[%156, %c0_66] : memref<384x16xbf16, #tpu.memory_space<vmem>>, vector<256x16xbf16>
      %158 = arith.index_cast %arg23 : i32 to index
      %c0_67 = arith.constant 0 : index
      %c0_68 = arith.constant 0 : index
      %159 = vector.load %arg18[%158, %c0_67, %c0_68] : memref<9x16x16xbf16, #tpu.memory_space<vmem>>, vector<1x16x16xbf16>
      %160 = vector.shape_cast %159 : vector<1x16x16xbf16> to vector<16x16xbf16>
      %cst_69 = arith.constant dense<0.000000e+00> : vector<256x16xf32>
      %161 = tpu.matmul %157, %160, %cst_69 {dimension_numbers = #tpu.dot_dimension_numbers<[1], [0], [0], [1], [0, 0, 1, 1], [], []>} : vector<256x16xbf16>, vector<16x16xbf16>, vector<256x16xf32> -> vector<256x16xf32>
      %162 = arith.addf %arg24, %161 : vector<256x16xf32>
      scf.yield %162 : vector<256x16xf32>
    }
    %c9_i32_61 = arith.constant 9 : i32
    %cst_62 = arith.constant 0.000000e+00 : f32
    %149 = vector.broadcast %cst_62 : f32 to vector<256x16xf32>
    %150 = arith.maximumf %148, %149 : vector<256x16xf32>
    %c0_63 = arith.constant 0 : index
    %c0_64 = arith.constant 0 : index
    %c0_65 = arith.constant 0 : index
    %151 = vector.load %arg21[%c0_63, %c0_64, %c0_65] : memref<1x256x16xf32, #tpu.memory_space<vmem>>, vector<1x256x16xf32>
    %152 = vector.shape_cast %151 : vector<1x256x16xf32> to vector<256x16xf32>
    %153 = vector.shape_cast %150 : vector<256x16xf32> to vector<1x256x16xf32>
    tpu.vector_store %arg21[%c0_63, %c0_64, %c0_65], %153 {strides = array<i32>} : memref<1x256x16xf32, #tpu.memory_space<vmem>>, vector<1x256x16xf32>,
    return
  }
  func.func @transform_0(%arg0: i32) -> i32 {
    %c0_i32 = arith.constant 0 : i32
    %c0_i32_0 = arith.constant 0 : i32
    return %c0_i32 : i32
  }
  func.func @transform_1(%arg0: i32) -> (i32, i32, i32, i32) {
    %c0_i32 = arith.constant 0 : i32
    %c0_i32_0 = arith.constant 0 : i32
    %c0_i32_1 = arith.constant 0 : i32
    %c0_i32_2 = arith.constant 0 : i32
    return %arg0, %c0_i32, %c0_i32_0, %c0_i32_1 : i32, i32, i32, i32
  }
  func.func @transform_2(%arg0: i32) -> (i32, i32, i32) {
    %c0_i32 = arith.constant 0 : i32
    %c0_i32_0 = arith.constant 0 : i32
    %c0_i32_1 = arith.constant 0 : i32
    %c0_i32_2 = arith.constant 0 : i32
    return %c0_i32, %c0_i32_0, %c0_i32_1 : i32, i32, i32
  }
  func.func @transform_3(%arg0: i32) -> (i32, i32, i32) {
    %c0_i32 = arith.constant 0 : i32
    %c0_i32_0 = arith.constant 0 : i32
    %c0_i32_1 = arith.constant 0 : i32
    %c0_i32_2 = arith.constant 0 : i32
    return %c0_i32, %c0_i32_0, %c0_i32_1 : i32, i32, i32
  }
  func.func @transform_4(%arg0: i32) -> (i32, i32, i32) {
    %c0_i32 = arith.constant 0 : i32
    %c0_i32_0 = arith.constant 0 : i32
    %c0_i32_1 = arith.constant 0 : i32
    %c0_i32_2 = arith.constant 0 : i32
    return %c0_i32, %c0_i32_0, %c0_i32_1 : i32, i32, i32
  }
  func.func @transform_5(%arg0: i32) -> (i32, i32, i32) {
    %c0_i32 = arith.constant 0 : i32
    %c0_i32_0 = arith.constant 0 : i32
    %c0_i32_1 = arith.constant 0 : i32
    %c0_i32_2 = arith.constant 0 : i32
    return %c0_i32, %c0_i32_0, %c0_i32_1 : i32, i32, i32
  }
  func.func @transform_6(%arg0: i32) -> (i32, i32, i32) {
    %c0_i32 = arith.constant 0 : i32
    %c0_i32_0 = arith.constant 0 : i32
    %c0_i32_1 = arith.constant 0 : i32
    %c0_i32_2 = arith.constant 0 : i32
    return %c0_i32, %c0_i32_0, %c0_i32_1 : i32, i32, i32
  }
  func.func @transform_7(%arg0: i32) -> (i32, i32, i32) {
    %c0_i32 = arith.constant 0 : i32
    %c0_i32_0 = arith.constant 0 : i32
    %c0_i32_1 = arith.constant 0 : i32
    %c0_i32_2 = arith.constant 0 : i32
    return %c0_i32, %c0_i32_0, %c0_i32_1 : i32, i32, i32
  }
  func.func @transform_8(%arg0: i32) -> (i32, i32) {
    %c0_i32 = arith.constant 0 : i32
    %c0_i32_0 = arith.constant 0 : i32
    %c0_i32_1 = arith.constant 0 : i32
    return %c0_i32, %c0_i32_0 : i32, i32
  }
  func.func @transform_9(%arg0: i32) -> (i32, i32) {
    %c0_i32 = arith.constant 0 : i32
    %c0_i32_0 = arith.constant 0 : i32
    %c0_i32_1 = arith.constant 0 : i32
    return %c0_i32, %c0_i32_0 : i32, i32
  }
  func.func @transform_10(%arg0: i32) -> (i32, i32) {
    %c0_i32 = arith.constant 0 : i32
    %c0_i32_0 = arith.constant 0 : i32
    %c0_i32_1 = arith.constant 0 : i32
    return %c0_i32, %c0_i32_0 : i32, i32
  }
  func.func @transform_11(%arg0: i32) -> (i32, i32) {
    %c0_i32 = arith.constant 0 : i32
    %c0_i32_0 = arith.constant 0 : i32
    %c0_i32_1 = arith.constant 0 : i32
    return %c0_i32, %c0_i32_0 : i32, i32
  }
  func.func @transform_12(%arg0: i32) -> (i32, i32) {
    %c0_i32 = arith.constant 0 : i32
    %c0_i32_0 = arith.constant 0 : i32
    %c0_i32_1 = arith.constant 0 : i32
    return %c0_i32, %c0_i32_0 : i32, i32
  }
  func.func @transform_13(%arg0: i32) -> (i32, i32) {
    %c0_i32 = arith.constant 0 : i32
    %c0_i32_0 = arith.constant 0 : i32
    %c0_i32_1 = arith.constant 0 : i32
    return %c0_i32, %c0_i32_0 : i32, i32
  }
  func.func @transform_14(%arg0: i32) -> (i32, i32) {
    %c0_i32 = arith.constant 0 : i32
    %c0_i32_0 = arith.constant 0 : i32
    %c0_i32_1 = arith.constant 0 : i32
    return %c0_i32, %c0_i32_0 : i32, i32
  }
  func.func @transform_15(%arg0: i32) -> (i32, i32) {
    %c0_i32 = arith.constant 0 : i32
    %c0_i32_0 = arith.constant 0 : i32
    %c0_i32_1 = arith.constant 0 : i32
    return %c0_i32, %c0_i32_0 : i32, i32
  }
  func.func @transform_16(%arg0: i32) -> (i32, i32) {
    %c0_i32 = arith.constant 0 : i32
    %c0_i32_0 = arith.constant 0 : i32
    %c0_i32_1 = arith.constant 0 : i32
    return %c0_i32, %c0_i32_0 : i32, i32
  }
  func.func @transform_17(%arg0: i32) -> (i32, i32, i32) {
    %c0_i32 = arith.constant 0 : i32
    %c0_i32_0 = arith.constant 0 : i32
    %c0_i32_1 = arith.constant 0 : i32
    %c0_i32_2 = arith.constant 0 : i32
    return %c0_i32, %c0_i32_0, %c0_i32_1 : i32, i32, i32
  }
  func.func @transform_18(%arg0: i32) -> (i32, i32) {
    %c0_i32 = arith.constant 0 : i32
    %c0_i32_0 = arith.constant 0 : i32
    %c0_i32_1 = arith.constant 0 : i32
    return %c0_i32, %c0_i32_0 : i32, i32
  }
  func.func @transform_19(%arg0: i32) -> (i32, i32) {
    %c0_i32 = arith.constant 0 : i32
    %c0_i32_0 = arith.constant 0 : i32
    %c0_i32_1 = arith.constant 0 : i32
    return %c0_i32, %c0_i32_0 : i32, i32
  }
  func.func @transform_20(%arg0: i32) -> (i32, i32, i32) {
    %c0_i32 = arith.constant 0 : i32
    %c0_i32_0 = arith.constant 0 : i32
    %c0_i32_1 = arith.constant 0 : i32
    return %arg0, %c0_i32, %c0_i32_0 : i32, i32, i32
  }
}

</mosaic_0001>

<llo_original>
// kernel: tpu_custom_call.1
$region0: #{tpu_custom_call.1}
  #allocation0 [shape = 'u32[]', space=smem, size = 0x4, offset = 0x4, fixed_abs, tag = 'smem constant byte address 0x4 - core index']
  #allocation1 [shape = 'u32[72,128]{1,0:T(1,128)}', space=vmem, size = 0x9000, scoped, tag = 'internal scratch']
  #allocation2 [shape = 'bf16[384,16]{1,0:T(8,128)(2,1)}', space=vmem, size = 0x18000, scoped, tag = 'scratch operand']
  %s0 = inlined_call_operand.vmem [shape: f32[4], index: 0, kind: input, shape index: {}]
  %s1 = inlined_call_operand.vmem [shape: f32[2,16,16,4], index: 1, kind: input, shape index: {}]
  %s2 = inlined_call_operand.vmem [shape: bf16[3,4,4], index: 2, kind: input, shape index: {}]
  %s3 = inlined_call_operand.vmem [shape: f32[3,1,4], index: 3, kind: input, shape index: {}]
  %s4 = inlined_call_operand.vmem [shape: bf16[3,4,4], index: 4, kind: input, shape index: {}]
  %s5 = inlined_call_operand.vmem [shape: f32[3,1,4], index: 5, kind: input, shape index: {}]
  %s6 = inlined_call_operand.vmem [shape: f32[3,16,16], index: 6, kind: input, shape index: {}]
  %s7 = inlined_call_operand.vmem [shape: bf16[3,4,16], index: 7, kind: input, shape index: {}]
  %s8 = inlined_call_operand.vmem [shape: bf16[4,16], index: 8, kind: input, shape index: {}]
  %s9 = inlined_call_operand.vmem [shape: f32[1,16], index: 9, kind: input, shape index: {}]
  %s10 = inlined_call_operand.vmem [shape: f32[1,16], index: 10, kind: input, shape index: {}]
  %s11 = inlined_call_operand.vmem [shape: f32[16,15], index: 11, kind: input, shape index: {}]
  %s12 = inlined_call_operand.vmem [shape: f32[16,9], index: 12, kind: input, shape index: {}]
  %s13 = inlined_call_operand.vmem [shape: f32[16,8], index: 13, kind: input, shape index: {}]
  %s14 = inlined_call_operand.vmem [shape: f32[1,8], index: 14, kind: input, shape index: {}]
  %s15 = inlined_call_operand.vmem [shape: f32[8,16], index: 15, kind: input, shape index: {}]
  %s16 = inlined_call_operand.vmem [shape: f32[1,16], index: 16, kind: input, shape index: {}]
  %s17 = inlined_call_operand.vmem [shape: bf16[9,16,16], index: 17, kind: input, shape index: {}]
  %s18 = inlined_call_operand.vmem [shape: bf16[4,16], index: 18, kind: input, shape index: {}]
  %s19 = inlined_call_operand.vmem [shape: f32[1,16], index: 19, kind: input, shape index: {}]
  %s20 = inlined_call_operand.vmem [shape: f32[2,256,16], index: 20, kind: output, shape index: {}]
  %s21 = sld [smem:[#allocation0]]
  $region131: #{tpu_custom_call.1} parent=0
    _
  %s23 = ssub.s32 1, %s21
  %s24 = scalar_select 0, %s23, %s21
  $region1: #{tpu_custom_call.1} parent=0
    #allocation3 [shape = 'u8[512]{0}', space=smem, size = 0x200, scoped, tag = 'input window, operand 0, single buffered']
    #allocation4 [shape = 's32[2]{0}', space=sflag, size = 0x8, scoped, tag = 'scoped memory for tpu_custom_call.1']
    %25 = vsyncpa [#allocation4], 0
    loop: start=0, step=1, limit=4
    $region2: #{tpu_custom_call.1} parent=1 // loop_pre_header
      _
    $region3: #{tpu_custom_call.1} parent=1 // loop_header
      %s27 = sphi 0, %s31
      %p28 = scmp.ge.s32.totalorder %s27, 4
      %s35 = sphi 0, %s35
      %s37 = sphi 0, %s35
      %s38 = sphi 0, %s37
      %s52 = sphi 0, %s38
      %s58 = sphi 0, %s60
      %s61 = sphi 0, %s58
      %s62 = sphi 0, %s61
      %s78 = sphi 0, %s62
      %s82 = sphi 0, %s82
      %s84 = sphi 0, %s82
      %s85 = sphi 0, %s84
      %s99 = sphi 0, %s85
      %s103 = sphi 0, %s103
      %s105 = sphi 0, %s103
      %s106 = sphi 0, %s105
      %s120 = sphi 0, %s106
      %s124 = sphi 0, %s124
      %s126 = sphi 0, %s124
      %s127 = sphi 0, %s126
      %s141 = sphi 0, %s127
      %s145 = sphi 0, %s145
      %s147 = sphi 0, %s145
      %s148 = sphi 0, %s147
      %s162 = sphi 0, %s148
      %s166 = sphi 0, %s166
      %s168 = sphi 0, %s166
      %s169 = sphi 0, %s168
      %s183 = sphi 0, %s169
      %s187 = sphi 0, %s187
      %s189 = sphi 0, %s187
      %s190 = sphi 0, %s189
      %s204 = sphi 0, %s190
      %s208 = sphi 0, %s208
      %s210 = sphi 0, %s208
      %s211 = sphi 0, %s210
      %s225 = sphi 0, %s211
      %s229 = sphi 0, %s229
      %s231 = sphi 0, %s229
      %s232 = sphi 0, %s231
      %s246 = sphi 0, %s232
      %s250 = sphi 0, %s250
      %s252 = sphi 0, %s250
      %s253 = sphi 0, %s252
      %s267 = sphi 0, %s253
      %s271 = sphi 0, %s271
      %s273 = sphi 0, %s271
      %s274 = sphi 0, %s273
      %s288 = sphi 0, %s274
      %s292 = sphi 0, %s292
      %s294 = sphi 0, %s292
      %s295 = sphi 0, %s294
      %s309 = sphi 0, %s295
      %s313 = sphi 0, %s313
      %s315 = sphi 0, %s313
      %s316 = sphi 0, %s315
      %s330 = sphi 0, %s316
      %s334 = sphi 0, %s334
      %s336 = sphi 0, %s334
      %s337 = sphi 0, %s336
      %s351 = sphi 0, %s337
      %s355 = sphi 0, %s355
      %s357 = sphi 0, %s355
      %s358 = sphi 0, %s357
      %s372 = sphi 0, %s358
      %s376 = sphi 0, %s376
      %s378 = sphi 0, %s376
      %s379 = sphi 0, %s378
      %s393 = sphi 0, %s379
      %s397 = sphi 0, %s397
      %s399 = sphi 0, %s397
      %s400 = sphi 0, %s399
      %s414 = sphi 0, %s400
      %s418 = sphi 0, %s418
      %s420 = sphi 0, %s418
      %s421 = sphi 0, %s420
      %s435 = sphi 0, %s421
      %s439 = sphi 0, %s439
      %s441 = sphi 0, %s439
      %s442 = sphi 0, %s441
      %s456 = sphi 0, %s442
      %s462 = sphi 0, %s464
      %s465 = sphi 0, %s462
      %s466 = sphi 0, %s465
      %s482 = sphi 0, %s466
    $region4: #{tpu_custom_call.1} parent=1 // loop_header_branch
      %30 = sbr.rel (%p28) target = $region8
    $region5: #{tpu_custom_call.1} parent=1 // loop_body
      %s32 = ssub.s32 %s27, 1
      %s33 = ssub.s32 %s27, 2
      %s34 = sadd.s32 %s27, 1
      %s36 = sadd.s32 %s35, 1
      %p39 = scmp.eq.s32.totalorder %s27, 1
      %p40 = scmp.ne.s32.totalorder %s35, %s37
      %p41 = scmp.eq.s32.totalorder %s27, 0
      %p42 = por %p40, %p41
      %p43 = scmp.ne.s32.totalorder %s35, %s37
      %p44 = scmp.eq.s32.totalorder %s32, 1
      %p45 = por %p43, %p44
      %p46 = scmp.ne.s32.totalorder %s37, %s38
      %p47 = scmp.eq.s32.totalorder %s32, 0
      %p48 = por %p46, %p47
      %p49 = scmp.ne.s32.totalorder %s37, %s38
      %p50 = scmp.eq.s32.totalorder %s33, 1
      %p51 = por %p49, %p50
      %p53 = scmp.ne.s32.totalorder %s38, %s52
      %p54 = scmp.eq.s32.totalorder %s33, 0
      %p55 = por %p53, %p54
      %s56 = ssub.s32 %s27, %s34
      %p57 = scmp.eq.s32.totalorder %s56, 0
      %s59 = sadd.s32 %s58, 1
      %s60 = scalar_select %p57, %s58, %s59
      %p63 = pneg %p57
      %p64 = scmp.eq.s32.totalorder %s27, 1
      %p65 = por %p63, %p64
      %p66 = scmp.ne.s32.totalorder %s58, %s61
      %p67 = scmp.eq.s32.totalorder %s27, 0
      %p68 = por %p66, %p67
      %p69 = scmp.ne.s32.totalorder %s58, %s61
      %p70 = scmp.eq.s32.totalorder %s32, 1
      %p71 = por %p69, %p70
      %p72 = scmp.ne.s32.totalorder %s61, %s62
      %p73 = scmp.eq.s32.totalorder %s32, 0
      %p74 = por %p72, %p73
      %p75 = scmp.ne.s32.totalorder %s61, %s62
      %p76 = scmp.eq.s32.totalorder %s33, 1
      %p77 = por %p75, %p76
      %p79 = scmp.ne.s32.totalorder %s62, %s78
      %p80 = scmp.eq.s32.totalorder %s33, 0
      %p81 = por %p79, %p80
      %s83 = sadd.s32 %s82, 1
      %p86 = scmp.eq.s32.totalorder %s27, 1
      %p87 = scmp.ne.s32.totalorder %s82, %s84
      %p88 = scmp.eq.s32.totalorder %s27, 0
      %p89 = por %p87, %p88
      %p90 = scmp.ne.s32.totalorder %s82, %s84
      %p91 = scmp.eq.s32.totalorder %s32, 1
      %p92 = por %p90, %p91
      %p93 = scmp.ne.s32.totalorder %s84, %s85
      %p94 = scmp.eq.s32.totalorder %s32, 0
      %p95 = por %p93, %p94
      %p96 = scmp.ne.s32.totalorder %s84, %s85
      %p97 = scmp.eq.s32.totalorder %s33, 1
      %p98 = por %p96, %p97
      %p100 = scmp.ne.s32.totalorder %s85, %s99
      %p101 = scmp.eq.s32.totalorder %s33, 0
      %p102 = por %p100, %p101
      %s104 = sadd.s32 %s103, 1
      %p107 = scmp.eq.s32.totalorder %s27, 1
      %p108 = scmp.ne.s32.totalorder %s103, %s105
      %p109 = scmp.eq.s32.totalorder %s27, 0
      %p110 = por %p108, %p109
      %p111 = scmp.ne.s32.totalorder %s103, %s105
      %p112 = scmp.eq.s32.totalorder %s32, 1
      %p113 = por %p111, %p112
      %p114 = scmp.ne.s32.totalorder %s105, %s106
      %p115 = scmp.eq.s32.totalorder %s32, 0
      %p116 = por %p114, %p115
      %p117 = scmp.ne.s32.totalorder %s105, %s106
      %p118 = scmp.eq.s32.totalorder %s33, 1
      %p119 = por %p117, %p118
      %p121 = scmp.ne.s32.totalorder %s106, %s120
      %p122 = scmp.eq.s32.totalorder %s33, 0
      %p123 = por %p121, %p122
      %s125 = sadd.s32 %s124, 1
      %p128 = scmp.eq.s32.totalorder %s27, 1
      %p129 = scmp.ne.s32.totalorder %s124, %s126
      %p130 = scmp.eq.s32.totalorder %s27, 0
      %p131 = por %p129, %p130
      %p132 = scmp.ne.s32.totalorder %s124, %s126
      %p133 = scmp.eq.s32.totalorder %s32, 1
      %p134 = por %p132, %p133
      %p135 = scmp.ne.s32.totalorder %s126, %s127
      %p136 = scmp.eq.s32.totalorder %s32, 0
      %p137 = por %p135, %p136
      %p138 = scmp.ne.s32.totalorder %s126, %s127
      %p139 = scmp.eq.s32.totalorder %s33, 1
      %p140 = por %p138, %p139
      %p142 = scmp.ne.s32.totalorder %s127, %s141
      %p143 = scmp.eq.s32.totalorder %s33, 0
      %p144 = por %p142, %p143
      %s146 = sadd.s32 %s145, 1
      %p149 = scmp.eq.s32.totalorder %s27, 1
      %p150 = scmp.ne.s32.totalorder %s145, %s147
      %p151 = scmp.eq.s32.totalorder %s27, 0
      %p152 = por %p150, %p151
      %p153 = scmp.ne.s32.totalorder %s145, %s147
      %p154 = scmp.eq.s32.totalorder %s32, 1
      %p155 = por %p153, %p154
      %p156 = scmp.ne.s32.totalorder %s147, %s148
      %p157 = scmp.eq.s32.totalorder %s32, 0
      %p158 = por %p156, %p157
      %p159 = scmp.ne.s32.totalorder %s147, %s148
      %p160 = scmp.eq.s32.totalorder %s33, 1
      %p161 = por %p159, %p160
      %p163 = scmp.ne.s32.totalorder %s148, %s162
      %p164 = scmp.eq.s32.totalorder %s33, 0
      %p165 = por %p163, %p164
      %s167 = sadd.s32 %s166, 1
      %p170 = scmp.eq.s32.totalorder %s27, 1
      %p171 = scmp.ne.s32.totalorder %s166, %s168
      %p172 = scmp.eq.s32.totalorder %s27, 0
      %p173 = por %p171, %p172
      %p174 = scmp.ne.s32.totalorder %s166, %s168
      %p175 = scmp.eq.s32.totalorder %s32, 1
      %p176 = por %p174, %p175
      %p177 = scmp.ne.s32.totalorder %s168, %s169
      %p178 = scmp.eq.s32.totalorder %s32, 0
      %p179 = por %p177, %p178
      %p180 = scmp.ne.s32.totalorder %s168, %s169
      %p181 = scmp.eq.s32.totalorder %s33, 1
      %p182 = por %p180, %p181
      %p184 = scmp.ne.s32.totalorder %s169, %s183
      %p185 = scmp.eq.s32.totalorder %s33, 0
      %p186 = por %p184, %p185
      %s188 = sadd.s32 %s187, 1
      %p191 = scmp.eq.s32.totalorder %s27, 1
      %p192 = scmp.ne.s32.totalorder %s187, %s189
      %p193 = scmp.eq.s32.totalorder %s27, 0
      %p194 = por %p192, %p193
      %p195 = scmp.ne.s32.totalorder %s187, %s189
      %p196 = scmp.eq.s32.totalorder %s32, 1
      %p197 = por %p195, %p196
      %p198 = scmp.ne.s32.totalorder %s189, %s190
      %p199 = scmp.eq.s32.totalorder %s32, 0
      %p200 = por %p198, %p199
      %p201 = scmp.ne.s32.totalorder %s189, %s190
      %p202 = scmp.eq.s32.totalorder %s33, 1
      %p203 = por %p201, %p202
      %p205 = scmp.ne.s32.totalorder %s190, %s204
      %p206 = scmp.eq.s32.totalorder %s33, 0
      %p207 = por %p205, %p206
      %s209 = sadd.s32 %s208, 1
      %p212 = scmp.eq.s32.totalorder %s27, 1
      %p213 = scmp.ne.s32.totalorder %s208, %s210
      %p214 = scmp.eq.s32.totalorder %s27, 0
      %p215 = por %p213, %p214
      %p216 = scmp.ne.s32.totalorder %s208, %s210
      %p217 = scmp.eq.s32.totalorder %s32, 1
      %p218 = por %p216, %p217
      %p219 = scmp.ne.s32.totalorder %s210, %s211
      %p220 = scmp.eq.s32.totalorder %s32, 0
      %p221 = por %p219, %p220
      %p222 = scmp.ne.s32.totalorder %s210, %s211
      %p223 = scmp.eq.s32.totalorder %s33, 1
      %p224 = por %p222, %p223
      %p226 = scmp.ne.s32.totalorder %s211, %s225
      %p227 = scmp.eq.s32.totalorder %s33, 0
      %p228 = por %p226, %p227
      %s230 = sadd.s32 %s229, 1
      %p233 = scmp.eq.s32.totalorder %s27, 1
      %p234 = scmp.ne.s32.totalorder %s229, %s231
      %p235 = scmp.eq.s32.totalorder %s27, 0
      %p236 = por %p234, %p235
      %p237 = scmp.ne.s32.totalorder %s229, %s231
      %p238 = scmp.eq.s32.totalorder %s32, 1
      %p239 = por %p237, %p238
      %p240 = scmp.ne.s32.totalorder %s231, %s232
      %p241 = scmp.eq.s32.totalorder %s32, 0
      %p242 = por %p240, %p241
      %p243 = scmp.ne.s32.totalorder %s231, %s232
      %p244 = scmp.eq.s32.totalorder %s33, 1
      %p245 = por %p243, %p244
      %p247 = scmp.ne.s32.totalorder %s232, %s246
      %p248 = scmp.eq.s32.totalorder %s33, 0
      %p249 = por %p247, %p248
      %s251 = sadd.s32 %s250, 1
      %p254 = scmp.eq.s32.totalorder %s27, 1
      %p255 = scmp.ne.s32.totalorder %s250, %s252
      %p256 = scmp.eq.s32.totalorder %s27, 0
      %p257 = por %p255, %p256
      %p258 = scmp.ne.s32.totalorder %s250, %s252
      %p259 = scmp.eq.s32.totalorder %s32, 1
      %p260 = por %p258, %p259
      %p261 = scmp.ne.s32.totalorder %s252, %s253
      %p262 = scmp.eq.s32.totalorder %s32, 0
      %p263 = por %p261, %p262
      %p264 = scmp.ne.s32.totalorder %s252, %s253
      %p265 = scmp.eq.s32.totalorder %s33, 1
      %p266 = por %p264, %p265
      %p268 = scmp.ne.s32.totalorder %s253, %s267
      %p269 = scmp.eq.s32.totalorder %s33, 0
      %p270 = por %p268, %p269
      %s272 = sadd.s32 %s271, 1
      %p275 = scmp.eq.s32.totalorder %s27, 1
      %p276 = scmp.ne.s32.totalorder %s271, %s273
      %p277 = scmp.eq.s32.totalorder %s27, 0
      %p278 = por %p276, %p277
      %p279 = scmp.ne.s32.totalorder %s271, %s273
      %p280 = scmp.eq.s32.totalorder %s32, 1
      %p281 = por %p279, %p280
      %p282 = scmp.ne.s32.totalorder %s273, %s274
      %p283 = scmp.eq.s32.totalorder %s32, 0
      %p284 = por %p282, %p283
      %p285 = scmp.ne.s32.totalorder %s273, %s274
      %p286 = scmp.eq.s32.totalorder %s33, 1
      %p287 = por %p285, %p286
      %p289 = scmp.ne.s32.totalorder %s274, %s288
      %p290 = scmp.eq.s32.totalorder %s33, 0
      %p291 = por %p289, %p290
      %s293 = sadd.s32 %s292, 1
      %p296 = scmp.eq.s32.totalorder %s27, 1
      %p297 = scmp.ne.s32.totalorder %s292, %s294
      %p298 = scmp.eq.s32.totalorder %s27, 0
      %p299 = por %p297, %p298
      %p300 = scmp.ne.s32.totalorder %s292, %s294
      %p301 = scmp.eq.s32.totalorder %s32, 1
      %p302 = por %p300, %p301
      %p303 = scmp.ne.s32.totalorder %s294, %s295
      %p304 = scmp.eq.s32.totalorder %s32, 0
      %p305 = por %p303, %p304
      %p306 = scmp.ne.s32.totalorder %s294, %s295
      %p307 = scmp.eq.s32.totalorder %s33, 1
      %p308 = por %p306, %p307
      %p310 = scmp.ne.s32.totalorder %s295, %s309
      %p311 = scmp.eq.s32.totalorder %s33, 0
      %p312 = por %p310, %p311
      %s314 = sadd.s32 %s313, 1
      %p317 = scmp.eq.s32.totalorder %s27, 1
      %p318 = scmp.ne.s32.totalorder %s313, %s315
      %p319 = scmp.eq.s32.totalorder %s27, 0
      %p320 = por %p318, %p319
      %p321 = scmp.ne.s32.totalorder %s313, %s315
      %p322 = scmp.eq.s32.totalorder %s32, 1
      %p323 = por %p321, %p322
      %p324 = scmp.ne.s32.totalorder %s315, %s316
      %p325 = scmp.eq.s32.totalorder %s32, 0
      %p326 = por %p324, %p325
      %p327 = scmp.ne.s32.totalorder %s315, %s316
      %p328 = scmp.eq.s32.totalorder %s33, 1
      %p329 = por %p327, %p328
      %p331 = scmp.ne.s32.totalorder %s316, %s330
      %p332 = scmp.eq.s32.totalorder %s33, 0
      %p333 = por %p331, %p332
      %s335 = sadd.s32 %s334, 1
      %p338 = scmp.eq.s32.totalorder %s27, 1
      %p339 = scmp.ne.s32.totalorder %s334, %s336
      %p340 = scmp.eq.s32.totalorder %s27, 0
      %p341 = por %p339, %p340
      %p342 = scmp.ne.s32.totalorder %s334, %s336
      %p343 = scmp.eq.s32.totalorder %s32, 1
      %p344 = por %p342, %p343
      %p345 = scmp.ne.s32.totalorder %s336, %s337
      %p346 = scmp.eq.s32.totalorder %s32, 0
      %p347 = por %p345, %p346
      %p348 = scmp.ne.s32.totalorder %s336, %s337
      %p349 = scmp.eq.s32.totalorder %s33, 1
      %p350 = por %p348, %p349
      %p352 = scmp.ne.s32.totalorder %s337, %s351
      %p353 = scmp.eq.s32.totalorder %s33, 0
      %p354 = por %p352, %p353
      %s356 = sadd.s32 %s355, 1
      %p359 = scmp.eq.s32.totalorder %s27, 1
      %p360 = scmp.ne.s32.totalorder %s355, %s357
      %p361 = scmp.eq.s32.totalorder %s27, 0
      %p362 = por %p360, %p361
      %p363 = scmp.ne.s32.totalorder %s355, %s357
      %p364 = scmp.eq.s32.totalorder %s32, 1
      %p365 = por %p363, %p364
      %p366 = scmp.ne.s32.totalorder %s357, %s358
      %p367 = scmp.eq.s32.totalorder %s32, 0
      %p368 = por %p366, %p367
      %p369 = scmp.ne.s32.totalorder %s357, %s358
      %p370 = scmp.eq.s32.totalorder %s33, 1
      %p371 = por %p369, %p370
      %p373 = scmp.ne.s32.totalorder %s358, %s372
      %p374 = scmp.eq.s32.totalorder %s33, 0
      %p375 = por %p373, %p374
      %s377 = sadd.s32 %s376, 1
      %p380 = scmp.eq.s32.totalorder %s27, 1
      %p381 = scmp.ne.s32.totalorder %s376, %s378
      %p382 = scmp.eq.s32.totalorder %s27, 0
      %p383 = por %p381, %p382
      %p384 = scmp.ne.s32.totalorder %s376, %s378
      %p385 = scmp.eq.s32.totalorder %s32, 1
      %p386 = por %p384, %p385
      %p387 = scmp.ne.s32.totalorder %s378, %s379
      %p388 = scmp.eq.s32.totalorder %s32, 0
      %p389 = por %p387, %p388
      %p390 = scmp.ne.s32.totalorder %s378, %s379
      %p391 = scmp.eq.s32.totalorder %s33, 1
      %p392 = por %p390, %p391
      %p394 = scmp.ne.s32.totalorder %s379, %s393
      %p395 = scmp.eq.s32.totalorder %s33, 0
      %p396 = por %p394, %p395
      %s398 = sadd.s32 %s397, 1
      %p401 = scmp.eq.s32.totalorder %s27, 1
      %p402 = scmp.ne.s32.totalorder %s397, %s399
      %p403 = scmp.eq.s32.totalorder %s27, 0
      %p404 = por %p402, %p403
      %p405 = scmp.ne.s32.totalorder %s397, %s399
      %p406 = scmp.eq.s32.totalorder %s32, 1
      %p407 = por %p405, %p406
      %p408 = scmp.ne.s32.totalorder %s399, %s400
      %p409 = scmp.eq.s32.totalorder %s32, 0
      %p410 = por %p408, %p409
      %p411 = scmp.ne.s32.totalorder %s399, %s400
      %p412 = scmp.eq.s32.totalorder %s33, 1
      %p413 = por %p411, %p412
      %p415 = scmp.ne.s32.totalorder %s400, %s414
      %p416 = scmp.eq.s32.totalorder %s33, 0
      %p417 = por %p415, %p416
      %s419 = sadd.s32 %s418, 1
      %p422 = scmp.eq.s32.totalorder %s27, 1
      %p423 = scmp.ne.s32.totalorder %s418, %s420
      %p424 = scmp.eq.s32.totalorder %s27, 0
      %p425 = por %p423, %p424
      %p426 = scmp.ne.s32.totalorder %s418, %s420
      %p427 = scmp.eq.s32.totalorder %s32, 1
      %p428 = por %p426, %p427
      %p429 = scmp.ne.s32.totalorder %s420, %s421
      %p430 = scmp.eq.s32.totalorder %s32, 0
      %p431 = por %p429, %p430
      %p432 = scmp.ne.s32.totalorder %s420, %s421
      %p433 = scmp.eq.s32.totalorder %s33, 1
      %p434 = por %p432, %p433
      %p436 = scmp.ne.s32.totalorder %s421, %s435
      %p437 = scmp.eq.s32.totalorder %s33, 0
      %p438 = por %p436, %p437
      %s440 = sadd.s32 %s439, 1
      %p443 = scmp.eq.s32.totalorder %s27, 1
      %p444 = scmp.ne.s32.totalorder %s439, %s441
      %p445 = scmp.eq.s32.totalorder %s27, 0
      %p446 = por %p444, %p445
      %p447 = scmp.ne.s32.totalorder %s439, %s441
      %p448 = scmp.eq.s32.totalorder %s32, 1
      %p449 = por %p447, %p448
      %p450 = scmp.ne.s32.totalorder %s441, %s442
      %p451 = scmp.eq.s32.totalorder %s32, 0
      %p452 = por %p450, %p451
      %p453 = scmp.ne.s32.totalorder %s441, %s442
      %p454 = scmp.eq.s32.totalorder %s33, 1
      %p455 = por %p453, %p454
      %p457 = scmp.ne.s32.totalorder %s442, %s456
      %p458 = scmp.eq.s32.totalorder %s33, 0
      %p459 = por %p457, %p458
      %s460 = ssub.s32 %s27, %s34
      %p461 = scmp.eq.s32.totalorder %s460, 0
      %s463 = sadd.s32 %s462, 1
      %s464 = scalar_select %p461, %s462, %s463
      %p467 = pneg %p461
      %p468 = scmp.eq.s32.totalorder %s27, 1
      %p469 = por %p467, %p468
      %p470 = scmp.ne.s32.totalorder %s462, %s465
      %p471 = scmp.eq.s32.totalorder %s27, 0
      %p472 = por %p470, %p471
      %p473 = scmp.ne.s32.totalorder %s462, %s465
      %p474 = scmp.eq.s32.totalorder %s32, 1
      %p475 = por %p473, %p474
      %p476 = scmp.ne.s32.totalorder %s465, %s466
      %p477 = scmp.eq.s32.totalorder %s32, 0
      %p478 = por %p476, %p477
      %p479 = scmp.ne.s32.totalorder %s465, %s466
      %p480 = scmp.eq.s32.totalorder %s33, 1
      %p481 = por %p479, %p480
      %p483 = scmp.ne.s32.totalorder %s466, %s482
      %p484 = scmp.eq.s32.totalorder %s33, 0
      %p485 = por %p483, %p484
      %p486 = scmp.le.s32.totalorder 1, %s27
      %p487 = scmp.lt.s32.totalorder %s27, 3
      %p488 = pnand %p486, %p487
      %p489 = pneg %p488
      // Predicated region
      $region9: #{tpu_custom_call.1} parent=5 // pred_check
        _
      $region10: #{tpu_custom_call.1} parent=5 // pred_check_branch
        %491 = sbr.rel (%p488) target = $region12
      $region11: #{tpu_custom_call.1} parent=5 // pred_region
        %s492 = ssub.s32 %s27, 1
        // Predicated region
        $region13: #{tpu_custom_call.1} parent=11 // pred_check
          %p493 = pneg %p48
        $region14: #{tpu_custom_call.1} parent=11 // pred_check_branch
          %495 = sbr.rel (%p493) target = $region16
        $region15: #{tpu_custom_call.1} parent=11 // pred_region
          %497 = vsyncadd [#allocation4], 0
          %s499 = sshll.u32 %s0, 4
          %s500 = int_to_ptr.vmem [resolvable:$true] %s499
          %502 = dma.vmem_to_smem %s500, 16, [#allocation3], [#allocation4]
        $region16: #{tpu_custom_call.1} parent=11 // pred_fallthru
          _
        // Predicated region
        $region17: #{tpu_custom_call.1} parent=11 // pred_check
          %p503 = pneg %p95
        $region18: #{tpu_custom_call.1} parent=11 // pred_check_branch
          %505 = sbr.rel (%p503) target = $region20
        $region19: #{tpu_custom_call.1} parent=11 // pred_region
          _
        $region20: #{tpu_custom_call.1} parent=11 // pred_fallthru
          _
        // Predicated region
        $region21: #{tpu_custom_call.1} parent=11 // pred_check
          %p506 = pneg %p116
        $region22: #{tpu_custom_call.1} parent=11 // pred_check_branch
          %508 = sbr.rel (%p506) target = $region24
        $region23: #{tpu_custom_call.1} parent=11 // pred_region
          _
        $region24: #{tpu_custom_call.1} parent=11 // pred_fallthru
          _
        // Predicated region
        $region25: #{tpu_custom_call.1} parent=11 // pred_check
          %p509 = pneg %p137
        $region26: #{tpu_custom_call.1} parent=11 // pred_check_branch
          %511 = sbr.rel (%p509) target = $region28
        $region27: #{tpu_custom_call.1} parent=11 // pred_region
          _
        $region28: #{tpu_custom_call.1} parent=11 // pred_fallthru
          _
        // Predicated region
        $region29: #{tpu_custom_call.1} parent=11 // pred_check
          %p512 = pneg %p158
        $region30: #{tpu_custom_call.1} parent=11 // pred_check_branch
          %514 = sbr.rel (%p512) target = $region32
        $region31: #{tpu_custom_call.1} parent=11 // pred_region
          _
        $region32: #{tpu_custom_call.1} parent=11 // pred_fallthru
          _
        // Predicated region
        $region33: #{tpu_custom_call.1} parent=11 // pred_check
          %p515 = pneg %p179
        $region34: #{tpu_custom_call.1} parent=11 // pred_check_branch
          %517 = sbr.rel (%p515) target = $region36
        $region35: #{tpu_custom_call.1} parent=11 // pred_region
          _
        $region36: #{tpu_custom_call.1} parent=11 // pred_fallthru
          _
        // Predicated region
        $region37: #{tpu_custom_call.1} parent=11 // pred_check
          %p518 = pneg %p200
        $region38: #{tpu_custom_call.1} parent=11 // pred_check_branch
          %520 = sbr.rel (%p518) target = $region40
        $region39: #{tpu_custom_call.1} parent=11 // pred_region
          _
        $region40: #{tpu_custom_call.1} parent=11 // pred_fallthru
          _
        // Predicated region
        $region41: #{tpu_custom_call.1} parent=11 // pred_check
          %p521 = pneg %p221
        $region42: #{tpu_custom_call.1} parent=11 // pred_check_branch
          %523 = sbr.rel (%p521) target = $region44
        $region43: #{tpu_custom_call.1} parent=11 // pred_region
          _
        $region44: #{tpu_custom_call.1} parent=11 // pred_fallthru
          _
        // Predicated region
        $region45: #{tpu_custom_call.1} parent=11 // pred_check
          %p524 = pneg %p242
        $region46: #{tpu_custom_call.1} parent=11 // pred_check_branch
          %526 = sbr.rel (%p524) target = $region48
        $region47: #{tpu_custom_call.1} parent=11 // pred_region
          _
        $region48: #{tpu_custom_call.1} parent=11 // pred_fallthru
          _
        // Predicated region
        $region49: #{tpu_custom_call.1} parent=11 // pred_check
          %p527 = pneg %p263
        $region50: #{tpu_custom_call.1} parent=11 // pred_check_branch
          %529 = sbr.rel (%p527) target = $region52
        $region51: #{tpu_custom_call.1} parent=11 // pred_region
          _
        $region52: #{tpu_custom_call.1} parent=11 // pred_fallthru
          _
        // Predicated region
        $region53: #{tpu_custom_call.1} parent=11 // pred_check
          %p530 = pneg %p284
        $region54: #{tpu_custom_call.1} parent=11 // pred_check_branch
          %532 = sbr.rel (%p530) target = $region56
        $region55: #{tpu_custom_call.1} parent=11 // pred_region
          _
        $region56: #{tpu_custom_call.1} parent=11 // pred_fallthru
          _
        // Predicated region
        $region57: #{tpu_custom_call.1} parent=11 // pred_check
          %p533 = pneg %p305
        $region58: #{tpu_custom_call.1} parent=11 // pred_check_branch
          %535 = sbr.rel (%p533) target = $region60
        $region59: #{tpu_custom_call.1} parent=11 // pred_region
          _
        $region60: #{tpu_custom_call.1} parent=11 // pred_fallthru
          _
        // Predicated region
        $region61: #{tpu_custom_call.1} parent=11 // pred_check
          %p536 = pneg %p326
        $region62: #{tpu_custom_call.1} parent=11 // pred_check_branch
          %538 = sbr.rel (%p536) target = $region64
        $region63: #{tpu_custom_call.1} parent=11 // pred_region
          _
        $region64: #{tpu_custom_call.1} parent=11 // pred_fallthru
          _
        // Predicated region
        $region65: #{tpu_custom_call.1} parent=11 // pred_check
          %p539 = pneg %p347
        $region66: #{tpu_custom_call.1} parent=11 // pred_check_branch
          %541 = sbr.rel (%p539) target = $region68
        $region67: #{tpu_custom_call.1} parent=11 // pred_region
          _
        $region68: #{tpu_custom_call.1} parent=11 // pred_fallthru
          _
        // Predicated region
        $region69: #{tpu_custom_call.1} parent=11 // pred_check
          %p542 = pneg %p368
        $region70: #{tpu_custom_call.1} parent=11 // pred_check_branch
          %544 = sbr.rel (%p542) target = $region72
        $region71: #{tpu_custom_call.1} parent=11 // pred_region
          _
        $region72: #{tpu_custom_call.1} parent=11 // pred_fallthru
          _
        // Predicated region
        $region73: #{tpu_custom_call.1} parent=11 // pred_check
          %p545 = pneg %p389
        $region74: #{tpu_custom_call.1} parent=11 // pred_check_branch
          %547 = sbr.rel (%p545) target = $region76
        $region75: #{tpu_custom_call.1} parent=11 // pred_region
          _
        $region76: #{tpu_custom_call.1} parent=11 // pred_fallthru
          _
        // Predicated region
        $region77: #{tpu_custom_call.1} parent=11 // pred_check
          %p548 = pneg %p410
        $region78: #{tpu_custom_call.1} parent=11 // pred_check_branch
          %550 = sbr.rel (%p548) target = $region80
        $region79: #{tpu_custom_call.1} parent=11 // pred_region
          _
        $region80: #{tpu_custom_call.1} parent=11 // pred_fallthru
          _
        // Predicated region
        $region81: #{tpu_custom_call.1} parent=11 // pred_check
          %p551 = pneg %p431
        $region82: #{tpu_custom_call.1} parent=11 // pred_check_branch
          %553 = sbr.rel (%p551) target = $region84
        $region83: #{tpu_custom_call.1} parent=11 // pred_region
          _
        $region84: #{tpu_custom_call.1} parent=11 // pred_fallthru
          _
        // Predicated region
        $region85: #{tpu_custom_call.1} parent=11 // pred_check
          %p554 = pneg %p452
        $region86: #{tpu_custom_call.1} parent=11 // pred_check_branch
          %556 = sbr.rel (%p554) target = $region88
        $region87: #{tpu_custom_call.1} parent=11 // pred_region
          _
        $region88: #{tpu_custom_call.1} parent=11 // pred_fallthru
          _
      $region12: #{tpu_custom_call.1} parent=5 // pred_fallthru
        _
      %p557 = scmp.lt.s32.totalorder %s27, 2
      // Predicated region
      $region89: #{tpu_custom_call.1} parent=5 // pred_check
        %p558 = pneg %p557
      $region90: #{tpu_custom_call.1} parent=5 // pred_check_branch
        %560 = sbr.rel (%p558) target = $region92
      $region91: #{tpu_custom_call.1} parent=5 // pred_region
        // Predicated region
        $region93: #{tpu_custom_call.1} parent=91 // pred_check
          %p561 = pneg %p68
        $region94: #{tpu_custom_call.1} parent=91 // pred_check_branch
          %563 = sbr.rel (%p561) target = $region96
        $region95: #{tpu_custom_call.1} parent=91 // pred_region
          %p564 = scmp.lt.s32.totalorder %s27, 1
          %s565 = scalar_select %p564, %s27, 1
          %s566 = smul.addr %s565, 32
          %s567 = smul.addr %s566, 8
          %s568 = scalar_lea.vmem %s1, %s567
        $region96: #{tpu_custom_call.1} parent=91 // pred_fallthru
          _
      $region92: #{tpu_custom_call.1} parent=5 // pred_fallthru
        _
      %p569 = scmp.le.s32.totalorder 1, %s27
      %p570 = scmp.lt.s32.totalorder %s27, 3
      %p571 = pnand %p569, %p570
      %p572 = pneg %p571
      // Predicated region
      $region97: #{tpu_custom_call.1} parent=5 // pred_check
        _
      $region98: #{tpu_custom_call.1} parent=5 // pred_check_branch
        %574 = sbr.rel (%p571) target = $region100
      $region99: #{tpu_custom_call.1} parent=5 // pred_region
        %s575 = ssub.s32 %s27, 1
        // Predicated region
        $region101: #{tpu_custom_call.1} parent=99 // pred_check
          %p576 = pneg %p48
        $region102: #{tpu_custom_call.1} parent=99 // pred_check_branch
          %578 = sbr.rel (%p576) target = $region104
        $region103: #{tpu_custom_call.1} parent=99 // pred_region
          %580 = dma.done [#allocation4], 16
        $region104: #{tpu_custom_call.1} parent=99 // pred_fallthru
          _
        %581 = sfence
        %p582 = pneg %p48
        %p583 = pneg %p45
        %p584 = scmp.lt.s32.totalorder %s32, 1
        %s585 = scalar_select %p584, %s32, 1
        %s586 = smul.addr %s585, 32
        %s587 = smul.addr %s586, 8
        %s588 = scalar_lea.vmem %s1, %s587
        %p589 = pneg %p74
        %p590 = pneg %p71
        %p591 = pneg %p95
        %p592 = pneg %p92
        %p593 = pneg %p116
        %p594 = pneg %p113
        %p595 = pneg %p137
        %p596 = pneg %p134
        %p597 = pneg %p158
        %p598 = pneg %p155
        %p599 = pneg %p179
        %p600 = pneg %p176
        %p601 = pneg %p200
        %p602 = pneg %p197
        %p603 = pneg %p221
        %p604 = pneg %p218
        %p605 = pneg %p242
        %p606 = pneg %p239
        %p607 = pneg %p263
        %p608 = pneg %p260
        %p609 = pneg %p284
        %p610 = pneg %p281
        %p611 = pneg %p305
        %p612 = pneg %p302
        %p613 = pneg %p326
        %p614 = pneg %p323
        %p615 = pneg %p347
        %p616 = pneg %p344
        %p617 = pneg %p368
        %p618 = pneg %p365
        %p619 = pneg %p389
        %p620 = pneg %p386
        %p621 = pneg %p410
        %p622 = pneg %p407
        %p623 = pneg %p431
        %p624 = pneg %p428
        %p625 = pneg %p452
        %p626 = pneg %p449
        %p627 = pneg %p478
        %p628 = pneg %p475
        %p629 = scmp.lt.s32.totalorder %s32, 1
        %s630 = scalar_select %p629, %s32, 1
        %s631 = smul.addr %s630, 32
        %s632 = smul.addr %s631, 8
        %s633 = scalar_lea.vmem %s20, %s632
        %p634 = scmp.lt.s32.totalorder %s32, 1
        %s635 = scalar_select %p634, %s32, 1
        %s636 = smul.addr %s635, 32
        %s637 = smul.addr %s636, 8
        %s638 = scalar_lea.vmem %s1, %s637
        %p639 = scmp.lt.s32.totalorder %s32, 1
        %s640 = scalar_select %p639, %s32, 1
        %s641 = smul.addr %s640, 32
        %s642 = smul.addr %s641, 8
        %s643 = scalar_lea.vmem %s20, %s642
        %s645 = sld [smem:[#allocation3]]
        %s646 = sld [smem:[#allocation3 + $0x1]]
        %s647 = sld [smem:[#allocation3 + $0x2]]
        %v648 = vld [vmem:[%s638] sm:$0xff]
        %v649 = vld [vmem:[%s638 + $0x8] sm:$0xff]
        %v650 = vld [vmem:[%s638 + $0x10] sm:$0xff]
        %v651 = vld [vmem:[%s638 + $0x18] sm:$0xff]
        %v652 = vld [vmem:[%s638 + $0x20] sm:$0xff]
        %v653 = vld [vmem:[%s638 + $0x28] sm:$0xff]
        %v654 = vld [vmem:[%s638 + $0x30] sm:$0xff]
        %v655 = vld [vmem:[%s638 + $0x38] sm:$0xff]
        %v656 = vld [vmem:[%s638 + $0x40] sm:$0xff]
        %v657 = vld [vmem:[%s638 + $0x48] sm:$0xff]
        %v658 = vld [vmem:[%s638 + $0x50] sm:$0xff]
        %v659 = vld [vmem:[%s638 + $0x58] sm:$0xff]
        %v660 = vld [vmem:[%s638 + $0x60] sm:$0xff]
        %v661 = vld [vmem:[%s638 + $0x68] sm:$0xff]
        %v662 = vld [vmem:[%s638 + $0x70] sm:$0xff]
        %v663 = vld [vmem:[%s638 + $0x78] sm:$0xff]
        %v664 = vld [vmem:[%s638 + $0x80] sm:$0xff]
        %v665 = vld [vmem:[%s638 + $0x88] sm:$0xff]
        %v666 = vld [vmem:[%s638 + $0x90] sm:$0xff]
        %v667 = vld [vmem:[%s638 + $0x98] sm:$0xff]
        %v668 = vld [vmem:[%s638 + $0xa0] sm:$0xff]
        %v669 = vld [vmem:[%s638 + $0xa8] sm:$0xff]
        %v670 = vld [vmem:[%s638 + $0xb0] sm:$0xff]
        %v671 = vld [vmem:[%s638 + $0xb8] sm:$0xff]
        %v672 = vld [vmem:[%s638 + $0xc0] sm:$0xff]
        %v673 = vld [vmem:[%s638 + $0xc8] sm:$0xff]
        %v674 = vld [vmem:[%s638 + $0xd0] sm:$0xff]
        %v675 = vld [vmem:[%s638 + $0xd8] sm:$0xff]
        %v676 = vld [vmem:[%s638 + $0xe0] sm:$0xff]
        %v677 = vld [vmem:[%s638 + $0xe8] sm:$0xff]
        %v678 = vld [vmem:[%s638 + $0xf0] sm:$0xff]
        %v679 = vld [vmem:[%s638 + $0xf8] sm:$0xff]
        %v680 = vpack.c.bf16 %v649, %v648
        %v681 = vpack.c.bf16 %v651, %v650
        %v682 = vpack.c.bf16 %v653, %v652
        %v683 = vpack.c.bf16 %v655, %v654
        %v684 = vpack.c.bf16 %v657, %v656
        %v685 = vpack.c.bf16 %v659, %v658
        %v686 = vpack.c.bf16 %v661, %v660
        %v687 = vpack.c.bf16 %v663, %v662
        %v688 = vpack.c.bf16 %v665, %v664
        %v689 = vpack.c.bf16 %v667, %v666
        %v690 = vpack.c.bf16 %v669, %v668
        %v691 = vpack.c.bf16 %v671, %v670
        %v692 = vpack.c.bf16 %v673, %v672
        %v693 = vpack.c.bf16 %v675, %v674
        %v694 = vpack.c.bf16 %v677, %v676
        %v695 = vpack.c.bf16 %v679, %v678
        loop: start=0, step=1, limit=3
        $region105: #{tpu_custom_call.1} parent=99 // loop_pre_header
          _
        $region106: #{tpu_custom_call.1} parent=99 // loop_header
          %s697 = sphi 0, %s701
          %p698 = scmp.ge.s32.totalorder %s697, 3
          %v702 = vphi 0.0, %v2153
          %v703 = vphi 0.0, %v2154
          %v704 = vphi 0.0, %v2155
          %v705 = vphi 0.0, %v2156
          %v706 = vphi 0.0, %v2157
          %v707 = vphi 0.0, %v2158
          %v708 = vphi 0.0, %v2159
          %v709 = vphi 0.0, %v2160
          %v710 = vphi 0.0, %v2161
          %v711 = vphi 0.0, %v2162
          %v712 = vphi 0.0, %v2163
          %v713 = vphi 0.0, %v2164
          %v714 = vphi 0.0, %v2165
          %v715 = vphi 0.0, %v2166
          %v716 = vphi 0.0, %v2167
          %v717 = vphi 0.0, %v2168
          %v718 = vphi 0.0, %v2169
          %v719 = vphi 0.0, %v2170
          %v720 = vphi 0.0, %v2171
          %v721 = vphi 0.0, %v2172
          %v722 = vphi 0.0, %v2173
          %v723 = vphi 0.0, %v2174
          %v724 = vphi 0.0, %v2175
          %v725 = vphi 0.0, %v2176
          %v726 = vphi 0.0, %v2177
          %v727 = vphi 0.0, %v2178
          %v728 = vphi 0.0, %v2179
          %v729 = vphi 0.0, %v2180
          %v730 = vphi 0.0, %v2181
          %v731 = vphi 0.0, %v2182
          %v732 = vphi 0.0, %v2183
          %v733 = vphi 0.0, %v2184
        $region107: #{tpu_custom_call.1} parent=99 // loop_header_branch
          %700 = sbr.rel (%p698) target = $region111
        $region108: #{tpu_custom_call.1} parent=99 // loop_body
          %s734 = smul.addr %s697, 2
          %s735 = scalar_lea.vmem %s2, %s734
          %v736 = vld [vmem:[%s735] sm:$0x3]
          %s737 = scalar_lea.vmem %s3, %s697
          %v738 = vld [vmem:[%s737] sm:$0x1]
          %v740 = vperm.slane %v738, 0
          %vm742 = vcmask 31744
          %v744 = vsel %vm742, %v680, 0
          %v747 = vsel %vm742, %v681, 0
          %v750 = vsel %vm742, %v682, 0
          %v753 = vsel %vm742, %v683, 0
          %v756 = vsel %vm742, %v684, 0
          %v759 = vsel %vm742, %v685, 0
          %v762 = vsel %vm742, %v686, 0
          %v765 = vsel %vm742, %v687, 0
          %v768 = vsel %vm742, %v688, 0
          %v771 = vsel %vm742, %v689, 0
          %v774 = vsel %vm742, %v690, 0
          %v777 = vsel %vm742, %v691, 0
          %v780 = vsel %vm742, %v692, 0
          %v783 = vsel %vm742, %v693, 0
          %v786 = vsel %vm742, %v694, 0
          %v789 = vsel %vm742, %v695, 0
          %vm791 = vcmask 1041408
          %v793 = vsel %vm791, %v736, 0
          %795 = vmatpush.bf16.msra.mxu0 0
          %796 = vmatpush.bf16.msra.mxu0 0
          %797 = vmatpush.bf16.msra.mxu0 0
          %798 = vmatpush.bf16.msra.mxu0 0
          %799 = vmatpush.bf16.msra.mxu0 0
          %800 = vmatpush.bf16.msra.mxu0 0
          %801 = vmatpush.bf16.msra.mxu0 0
          %802 = vmatpush.bf16.msra.mxu0 %v793
          %803 = vmatmul.bf16.gmra.mxu0 %v744
          %v804 = vpop.f32.mrf.mxu0
          %v805 = vadd.f32 %v740, %v804
          %v806 = vpop.f32.mrf.mxu0
          %v807 = vadd.f32 %v740, %v806
          %808 = vmatmul.bf16.gmra.mxu0 %v747
          %v809 = vpop.f32.mrf.mxu0
          %v810 = vadd.f32 %v740, %v809
          %v811 = vpop.f32.mrf.mxu0
          %v812 = vadd.f32 %v740, %v811
          %813 = vmatmul.bf16.gmra.mxu0 %v750
          %v814 = vpop.f32.mrf.mxu0
          %v815 = vadd.f32 %v740, %v814
          %v816 = vpop.f32.mrf.mxu0
          %v817 = vadd.f32 %v740, %v816
          %818 = vmatmul.bf16.gmra.mxu0 %v753
          %v819 = vpop.f32.mrf.mxu0
          %v820 = vadd.f32 %v740, %v819
          %v821 = vpop.f32.mrf.mxu0
          %v822 = vadd.f32 %v740, %v821
          %823 = vmatmul.bf16.gmra.mxu0 %v756
          %v824 = vpop.f32.mrf.mxu0
          %v825 = vadd.f32 %v740, %v824
          %v826 = vpop.f32.mrf.mxu0
          %v827 = vadd.f32 %v740, %v826
          %828 = vmatmul.bf16.gmra.mxu0 %v759
          %v829 = vpop.f32.mrf.mxu0
          %v830 = vadd.f32 %v740, %v829
          %v831 = vpop.f32.mrf.mxu0
          %v832 = vadd.f32 %v740, %v831
          %833 = vmatmul.bf16.gmra.mxu0 %v762
          %v834 = vpop.f32.mrf.mxu0
          %v835 = vadd.f32 %v740, %v834
          %v836 = vpop.f32.mrf.mxu0
          %v837 = vadd.f32 %v740, %v836
          %838 = vmatmul.bf16.gmra.mxu0 %v765
          %v839 = vpop.f32.mrf.mxu0
          %v840 = vadd.f32 %v740, %v839
          %v841 = vpop.f32.mrf.mxu0
          %v842 = vadd.f32 %v740, %v841
          %843 = vmatmul.bf16.gmra.mxu0 %v768
          %v844 = vpop.f32.mrf.mxu0
          %v845 = vadd.f32 %v740, %v844
          %v846 = vpop.f32.mrf.mxu0
          %v847 = vadd.f32 %v740, %v846
          %848 = vmatmul.bf16.gmra.mxu0 %v771
          %v849 = vpop.f32.mrf.mxu0
          %v850 = vadd.f32 %v740, %v849
          %v851 = vpop.f32.mrf.mxu0
          %v852 = vadd.f32 %v740, %v851
          %853 = vmatmul.bf16.gmra.mxu0 %v774
          %v854 = vpop.f32.mrf.mxu0
          %v855 = vadd.f32 %v740, %v854
          %v856 = vpop.f32.mrf.mxu0
          %v857 = vadd.f32 %v740, %v856
          %858 = vmatmul.bf16.gmra.mxu0 %v777
          %v859 = vpop.f32.mrf.mxu0
          %v860 = vadd.f32 %v740, %v859
          %v861 = vpop.f32.mrf.mxu0
          %v862 = vadd.f32 %v740, %v861
          %863 = vmatmul.bf16.gmra.mxu0 %v780
          %v864 = vpop.f32.mrf.mxu0
          %v865 = vadd.f32 %v740, %v864
          %v866 = vpop.f32.mrf.mxu0
          %v867 = vadd.f32 %v740, %v866
          %868 = vmatmul.bf16.gmra.mxu0 %v783
          %v869 = vpop.f32.mrf.mxu0
          %v870 = vadd.f32 %v740, %v869
          %v871 = vpop.f32.mrf.mxu0
          %v872 = vadd.f32 %v740, %v871
          %873 = vmatmul.bf16.gmra.mxu0 %v786
          %v874 = vpop.f32.mrf.mxu0
          %v875 = vadd.f32 %v740, %v874
          %v876 = vpop.f32.mrf.mxu0
          %v877 = vadd.f32 %v740, %v876
          %878 = vmatmul.bf16.gmra.mxu0 %v789
          %v879 = vpop.f32.mrf.mxu0
          %v880 = vadd.f32 %v740, %v879
          %v881 = vpop.f32.mrf.mxu0
          %v882 = vadd.f32 %v740, %v881
          %883 = vdwg.mxu0
          %s884 = smul.addr %s697, 2
          %s885 = scalar_lea.vmem %s4, %s884
          %v886 = vld [vmem:[%s885] sm:$0x3]
          %s887 = scalar_lea.vmem %s5, %s697
          %v888 = vld [vmem:[%s887] sm:$0x1]
          %v890 = vperm.slane %v888, 0
          %v893 = vsel %vm791, %v886, 0
          %895 = vmatpush.bf16.msra.mxu0 0
          %896 = vmatpush.bf16.msra.mxu0 0
          %897 = vmatpush.bf16.msra.mxu0 0
          %898 = vmatpush.bf16.msra.mxu0 0
          %899 = vmatpush.bf16.msra.mxu0 0
          %900 = vmatpush.bf16.msra.mxu0 0
          %901 = vmatpush.bf16.msra.mxu0 0
          %902 = vmatpush.bf16.msra.mxu0 %v893
          %903 = vmatmul.bf16.gmra.mxu0 %v744
          %v904 = vpop.f32.mrf.mxu0
          %v905 = vadd.f32 %v890, %v904
          %v906 = vpop.f32.mrf.mxu0
          %v907 = vadd.f32 %v890, %v906
          %908 = vmatmul.bf16.gmra.mxu0 %v747
          %v909 = vpop.f32.mrf.mxu0
          %v910 = vadd.f32 %v890, %v909
          %v911 = vpop.f32.mrf.mxu0
          %v912 = vadd.f32 %v890, %v911
          %913 = vmatmul.bf16.gmra.mxu0 %v750
          %v914 = vpop.f32.mrf.mxu0
          %v915 = vadd.f32 %v890, %v914
          %v916 = vpop.f32.mrf.mxu0
          %v917 = vadd.f32 %v890, %v916
          %918 = vmatmul.bf16.gmra.mxu0 %v753
          %v919 = vpop.f32.mrf.mxu0
          %v920 = vadd.f32 %v890, %v919
          %v921 = vpop.f32.mrf.mxu0
          %v922 = vadd.f32 %v890, %v921
          %923 = vmatmul.bf16.gmra.mxu0 %v756
          %v924 = vpop.f32.mrf.mxu0
          %v925 = vadd.f32 %v890, %v924
          %v926 = vpop.f32.mrf.mxu0
          %v927 = vadd.f32 %v890, %v926
          %928 = vmatmul.bf16.gmra.mxu0 %v759
          %v929 = vpop.f32.mrf.mxu0
          %v930 = vadd.f32 %v890, %v929
          %v931 = vpop.f32.mrf.mxu0
          %v932 = vadd.f32 %v890, %v931
          %933 = vmatmul.bf16.gmra.mxu0 %v762
          %v934 = vpop.f32.mrf.mxu0
          %v935 = vadd.f32 %v890, %v934
          %v936 = vpop.f32.mrf.mxu0
          %v937 = vadd.f32 %v890, %v936
          %938 = vmatmul.bf16.gmra.mxu0 %v765
          %v939 = vpop.f32.mrf.mxu0
          %v940 = vadd.f32 %v890, %v939
          %v941 = vpop.f32.mrf.mxu0
          %v942 = vadd.f32 %v890, %v941
          %943 = vmatmul.bf16.gmra.mxu0 %v768
          %v944 = vpop.f32.mrf.mxu0
          %v945 = vadd.f32 %v890, %v944
          %v946 = vpop.f32.mrf.mxu0
          %v947 = vadd.f32 %v890, %v946
          %948 = vmatmul.bf16.gmra.mxu0 %v771
          %v949 = vpop.f32.mrf.mxu0
          %v950 = vadd.f32 %v890, %v949
          %v951 = vpop.f32.mrf.mxu0
          %v952 = vadd.f32 %v890, %v951
          %953 = vmatmul.bf16.gmra.mxu0 %v774
          %v954 = vpop.f32.mrf.mxu0
          %v955 = vadd.f32 %v890, %v954
          %v956 = vpop.f32.mrf.mxu0
          %v957 = vadd.f32 %v890, %v956
          %958 = vmatmul.bf16.gmra.mxu0 %v777
          %v959 = vpop.f32.mrf.mxu0
          %v960 = vadd.f32 %v890, %v959
          %v961 = vpop.f32.mrf.mxu0
          %v962 = vadd.f32 %v890, %v961
          %963 = vmatmul.bf16.gmra.mxu0 %v780
          %v964 = vpop.f32.mrf.mxu0
          %v965 = vadd.f32 %v890, %v964
          %v966 = vpop.f32.mrf.mxu0
          %v967 = vadd.f32 %v890, %v966
          %968 = vmatmul.bf16.gmra.mxu0 %v783
          %v969 = vpop.f32.mrf.mxu0
          %v970 = vadd.f32 %v890, %v969
          %v971 = vpop.f32.mrf.mxu0
          %v972 = vadd.f32 %v890, %v971
          %973 = vmatmul.bf16.gmra.mxu0 %v786
          %v974 = vpop.f32.mrf.mxu0
          %v975 = vadd.f32 %v890, %v974
          %v976 = vpop.f32.mrf.mxu0
          %v977 = vadd.f32 %v890, %v976
          %978 = vmatmul.bf16.gmra.mxu0 %v789
          %v979 = vpop.f32.mrf.mxu0
          %v980 = vadd.f32 %v890, %v979
          %v981 = vpop.f32.mrf.mxu0
          %v982 = vadd.f32 %v890, %v981
          %983 = vdwg.mxu0
          %v985 = vsel %vm742, %v905, 0
          %v988 = vsel %vm742, %v907, 0
          %v991 = vsel %vm742, %v805, 0
          %v994 = vsel %vm742, %v807, 0
          %996 = vmatpush.xpose.msra.mxu0 0.0
          %997 = vmatpush.xpose.msra.mxu0 0.0
          %998 = vmatpush.xpose.msra.mxu0 0.0
          %999 = vmatpush.xpose.msra.mxu0 0.0
          %1000 = vmatpush.xpose.msra.mxu0 0.0
          %1001 = vmatpush.xpose.msra.mxu0 0.0
          %1002 = vmatpush.xpose.msra.mxu0 0.0
          %1003 = vmatpush.xpose.msra.mxu0 0.0
          %1004 = vmatpush.xpose.msra.mxu0 0.0
          %1005 = vmatpush.xpose.msra.mxu0 0.0
          %1006 = vmatpush.xpose.msra.mxu0 0.0
          %1007 = vmatpush.xpose.msra.mxu0 0.0
          %1008 = vmatpush.xpose.msra.mxu0 0.0
          %1009 = vmatpush.xpose.msra.mxu0 0.0
          %1010 = vmatpush.xpose.msra.mxu0 %v994
          %1011 = vmatpush.xpose.msra.mxu0 %v991
          %1012 = vmatmul.f32.gmra.mxu0 %v985
          %v1013 = vpop.f32.mrf.mxu0
          %v1014 = vadd.f32 0.0, %v1013
          %1015 = vmatmul.f32.gmra.mxu0 %v988
          %v1016 = vpop.f32.mrf.mxu0
          %v1017 = vadd.f32 0.0, %v1016
          %1018 = vdwg.mxu0
          %v1020 = vsel %vm742, %v910, 0
          %v1023 = vsel %vm742, %v912, 0
          %v1026 = vsel %vm742, %v810, 0
          %v1029 = vsel %vm742, %v812, 0
          %1031 = vmatpush.xpose.msra.mxu0 0.0
          %1032 = vmatpush.xpose.msra.mxu0 0.0
          %1033 = vmatpush.xpose.msra.mxu0 0.0
          %1034 = vmatpush.xpose.msra.mxu0 0.0
          %1035 = vmatpush.xpose.msra.mxu0 0.0
          %1036 = vmatpush.xpose.msra.mxu0 0.0
          %1037 = vmatpush.xpose.msra.mxu0 0.0
          %1038 = vmatpush.xpose.msra.mxu0 0.0
          %1039 = vmatpush.xpose.msra.mxu0 0.0
          %1040 = vmatpush.xpose.msra.mxu0 0.0
          %1041 = vmatpush.xpose.msra.mxu0 0.0
          %1042 = vmatpush.xpose.msra.mxu0 0.0
          %1043 = vmatpush.xpose.msra.mxu0 0.0
          %1044 = vmatpush.xpose.msra.mxu0 0.0
          %1045 = vmatpush.xpose.msra.mxu0 %v1029
          %1046 = vmatpush.xpose.msra.mxu0 %v1026
          %1047 = vmatmul.f32.gmra.mxu0 %v1020
          %v1048 = vpop.f32.mrf.mxu0
          %v1049 = vadd.f32 0.0, %v1048
          %1050 = vmatmul.f32.gmra.mxu0 %v1023
          %v1051 = vpop.f32.mrf.mxu0
          %v1052 = vadd.f32 0.0, %v1051
          %1053 = vdwg.mxu0
          %v1055 = vsel %vm742, %v915, 0
          %v1058 = vsel %vm742, %v917, 0
          %v1061 = vsel %vm742, %v815, 0
          %v1064 = vsel %vm742, %v817, 0
          %1066 = vmatpush.xpose.msra.mxu0 0.0
          %1067 = vmatpush.xpose.msra.mxu0 0.0
          %1068 = vmatpush.xpose.msra.mxu0 0.0
          %1069 = vmatpush.xpose.msra.mxu0 0.0
          %1070 = vmatpush.xpose.msra.mxu0 0.0
          %1071 = vmatpush.xpose.msra.mxu0 0.0
          %1072 = vmatpush.xpose.msra.mxu0 0.0
          %1073 = vmatpush.xpose.msra.mxu0 0.0
          %1074 = vmatpush.xpose.msra.mxu0 0.0
          %1075 = vmatpush.xpose.msra.mxu0 0.0
          %1076 = vmatpush.xpose.msra.mxu0 0.0
          %1077 = vmatpush.xpose.msra.mxu0 0.0
          %1078 = vmatpush.xpose.msra.mxu0 0.0
          %1079 = vmatpush.xpose.msra.mxu0 0.0
          %1080 = vmatpush.xpose.msra.mxu0 %v1064
          %1081 = vmatpush.xpose.msra.mxu0 %v1061
          %1082 = vmatmul.f32.gmra.mxu0 %v1055
          %v1083 = vpop.f32.mrf.mxu0
          %v1084 = vadd.f32 0.0, %v1083
          %1085 = vmatmul.f32.gmra.mxu0 %v1058
          %v1086 = vpop.f32.mrf.mxu0
          %v1087 = vadd.f32 0.0, %v1086
          %1088 = vdwg.mxu0
          %v1090 = vsel %vm742, %v920, 0
          %v1093 = vsel %vm742, %v922, 0
          %v1096 = vsel %vm742, %v820, 0
          %v1099 = vsel %vm742, %v822, 0
          %1101 = vmatpush.xpose.msra.mxu0 0.0
          %1102 = vmatpush.xpose.msra.mxu0 0.0
          %1103 = vmatpush.xpose.msra.mxu0 0.0
          %1104 = vmatpush.xpose.msra.mxu0 0.0
          %1105 = vmatpush.xpose.msra.mxu0 0.0
          %1106 = vmatpush.xpose.msra.mxu0 0.0
          %1107 = vmatpush.xpose.msra.mxu0 0.0
          %1108 = vmatpush.xpose.msra.mxu0 0.0
          %1109 = vmatpush.xpose.msra.mxu0 0.0
          %1110 = vmatpush.xpose.msra.mxu0 0.0
          %1111 = vmatpush.xpose.msra.mxu0 0.0
          %1112 = vmatpush.xpose.msra.mxu0 0.0
          %1113 = vmatpush.xpose.msra.mxu0 0.0
          %1114 = vmatpush.xpose.msra.mxu0 0.0
          %1115 = vmatpush.xpose.msra.mxu0 %v1099
          %1116 = vmatpush.xpose.msra.mxu0 %v1096
          %1117 = vmatmul.f32.gmra.mxu0 %v1090
          %v1118 = vpop.f32.mrf.mxu0
          %v1119 = vadd.f32 0.0, %v1118
          %1120 = vmatmul.f32.gmra.mxu0 %v1093
          %v1121 = vpop.f32.mrf.mxu0
          %v1122 = vadd.f32 0.0, %v1121
          %1123 = vdwg.mxu0
          %v1125 = vsel %vm742, %v925, 0
          %v1128 = vsel %vm742, %v927, 0
          %v1131 = vsel %vm742, %v825, 0
          %v1134 = vsel %vm742, %v827, 0
          %1136 = vmatpush.xpose.msra.mxu0 0.0
          %1137 = vmatpush.xpose.msra.mxu0 0.0
          %1138 = vmatpush.xpose.msra.mxu0 0.0
          %1139 = vmatpush.xpose.msra.mxu0 0.0
          %1140 = vmatpush.xpose.msra.mxu0 0.0
          %1141 = vmatpush.xpose.msra.mxu0 0.0
          %1142 = vmatpush.xpose.msra.mxu0 0.0
          %1143 = vmatpush.xpose.msra.mxu0 0.0
          %1144 = vmatpush.xpose.msra.mxu0 0.0
          %1145 = vmatpush.xpose.msra.mxu0 0.0
          %1146 = vmatpush.xpose.msra.mxu0 0.0
          %1147 = vmatpush.xpose.msra.mxu0 0.0
          %1148 = vmatpush.xpose.msra.mxu0 0.0
          %1149 = vmatpush.xpose.msra.mxu0 0.0
          %1150 = vmatpush.xpose.msra.mxu0 %v1134
          %1151 = vmatpush.xpose.msra.mxu0 %v1131
          %1152 = vmatmul.f32.gmra.mxu0 %v1125
          %v1153 = vpop.f32.mrf.mxu0
          %v1154 = vadd.f32 0.0, %v1153
          %1155 = vmatmul.f32.gmra.mxu0 %v1128
          %v1156 = vpop.f32.mrf.mxu0
          %v1157 = vadd.f32 0.0, %v1156
          %1158 = vdwg.mxu0
          %v1160 = vsel %vm742, %v930, 0
          %v1163 = vsel %vm742, %v932, 0
          %v1166 = vsel %vm742, %v830, 0
          %v1169 = vsel %vm742, %v832, 0
          %1171 = vmatpush.xpose.msra.mxu0 0.0
          %1172 = vmatpush.xpose.msra.mxu0 0.0
          %1173 = vmatpush.xpose.msra.mxu0 0.0
          %1174 = vmatpush.xpose.msra.mxu0 0.0
          %1175 = vmatpush.xpose.msra.mxu0 0.0
          %1176 = vmatpush.xpose.msra.mxu0 0.0
          %1177 = vmatpush.xpose.msra.mxu0 0.0
          %1178 = vmatpush.xpose.msra.mxu0 0.0
          %1179 = vmatpush.xpose.msra.mxu0 0.0
          %1180 = vmatpush.xpose.msra.mxu0 0.0
          %1181 = vmatpush.xpose.msra.mxu0 0.0
          %1182 = vmatpush.xpose.msra.mxu0 0.0
          %1183 = vmatpush.xpose.msra.mxu0 0.0
          %1184 = vmatpush.xpose.msra.mxu0 0.0
          %1185 = vmatpush.xpose.msra.mxu0 %v1169
          %1186 = vmatpush.xpose.msra.mxu0 %v1166
          %1187 = vmatmul.f32.gmra.mxu0 %v1160
          %v1188 = vpop.f32.mrf.mxu0
          %v1189 = vadd.f32 0.0, %v1188
          %1190 = vmatmul.f32.gmra.mxu0 %v1163
          %v1191 = vpop.f32.mrf.mxu0
          %v1192 = vadd.f32 0.0, %v1191
          %1193 = vdwg.mxu0
          %v1195 = vsel %vm742, %v935, 0
          %v1198 = vsel %vm742, %v937, 0
          %v1201 = vsel %vm742, %v835, 0
          %v1204 = vsel %vm742, %v837, 0
          %1206 = vmatpush.xpose.msra.mxu0 0.0
          %1207 = vmatpush.xpose.msra.mxu0 0.0
          %1208 = vmatpush.xpose.msra.mxu0 0.0
          %1209 = vmatpush.xpose.msra.mxu0 0.0
          %1210 = vmatpush.xpose.msra.mxu0 0.0
          %1211 = vmatpush.xpose.msra.mxu0 0.0
          %1212 = vmatpush.xpose.msra.mxu0 0.0
          %1213 = vmatpush.xpose.msra.mxu0 0.0
          %1214 = vmatpush.xpose.msra.mxu0 0.0
          %1215 = vmatpush.xpose.msra.mxu0 0.0
          %1216 = vmatpush.xpose.msra.mxu0 0.0
          %1217 = vmatpush.xpose.msra.mxu0 0.0
          %1218 = vmatpush.xpose.msra.mxu0 0.0
          %1219 = vmatpush.xpose.msra.mxu0 0.0
          %1220 = vmatpush.xpose.msra.mxu0 %v1204
          %1221 = vmatpush.xpose.msra.mxu0 %v1201
          %1222 = vmatmul.f32.gmra.mxu0 %v1195
          %v1223 = vpop.f32.mrf.mxu0
          %v1224 = vadd.f32 0.0, %v1223
          %1225 = vmatmul.f32.gmra.mxu0 %v1198
          %v1226 = vpop.f32.mrf.mxu0
          %v1227 = vadd.f32 0.0, %v1226
          %1228 = vdwg.mxu0
          %v1230 = vsel %vm742, %v940, 0
          %v1233 = vsel %vm742, %v942, 0
          %v1236 = vsel %vm742, %v840, 0
          %v1239 = vsel %vm742, %v842, 0
          %1241 = vmatpush.xpose.msra.mxu0 0.0
          %1242 = vmatpush.xpose.msra.mxu0 0.0
          %1243 = vmatpush.xpose.msra.mxu0 0.0
          %1244 = vmatpush.xpose.msra.mxu0 0.0
          %1245 = vmatpush.xpose.msra.mxu0 0.0
          %1246 = vmatpush.xpose.msra.mxu0 0.0
          %1247 = vmatpush.xpose.msra.mxu0 0.0
          %1248 = vmatpush.xpose.msra.mxu0 0.0
          %1249 = vmatpush.xpose.msra.mxu0 0.0
          %1250 = vmatpush.xpose.msra.mxu0 0.0
          %1251 = vmatpush.xpose.msra.mxu0 0.0
          %1252 = vmatpush.xpose.msra.mxu0 0.0
          %1253 = vmatpush.xpose.msra.mxu0 0.0
          %1254 = vmatpush.xpose.msra.mxu0 0.0
          %1255 = vmatpush.xpose.msra.mxu0 %v1239
          %1256 = vmatpush.xpose.msra.mxu0 %v1236
          %1257 = vmatmul.f32.gmra.mxu0 %v1230
          %v1258 = vpop.f32.mrf.mxu0
          %v1259 = vadd.f32 0.0, %v1258
          %1260 = vmatmul.f32.gmra.mxu0 %v1233
          %v1261 = vpop.f32.mrf.mxu0
          %v1262 = vadd.f32 0.0, %v1261
          %1263 = vdwg.mxu0
          %v1265 = vsel %vm742, %v945, 0
          %v1268 = vsel %vm742, %v947, 0
          %v1271 = vsel %vm742, %v845, 0
          %v1274 = vsel %vm742, %v847, 0
          %1276 = vmatpush.xpose.msra.mxu0 0.0
          %1277 = vmatpush.xpose.msra.mxu0 0.0
          %1278 = vmatpush.xpose.msra.mxu0 0.0
          %1279 = vmatpush.xpose.msra.mxu0 0.0
          %1280 = vmatpush.xpose.msra.mxu0 0.0
          %1281 = vmatpush.xpose.msra.mxu0 0.0
          %1282 = vmatpush.xpose.msra.mxu0 0.0
          %1283 = vmatpush.xpose.msra.mxu0 0.0
          %1284 = vmatpush.xpose.msra.mxu0 0.0
          %1285 = vmatpush.xpose.msra.mxu0 0.0
          %1286 = vmatpush.xpose.msra.mxu0 0.0
          %1287 = vmatpush.xpose.msra.mxu0 0.0
          %1288 = vmatpush.xpose.msra.mxu0 0.0
          %1289 = vmatpush.xpose.msra.mxu0 0.0
          %1290 = vmatpush.xpose.msra.mxu0 %v1274
          %1291 = vmatpush.xpose.msra.mxu0 %v1271
          %1292 = vmatmul.f32.gmra.mxu0 %v1265
          %v1293 = vpop.f32.mrf.mxu0
          %v1294 = vadd.f32 0.0, %v1293
          %1295 = vmatmul.f32.gmra.mxu0 %v1268
          %v1296 = vpop.f32.mrf.mxu0
          %v1297 = vadd.f32 0.0, %v1296
          %1298 = vdwg.mxu0
          %v1300 = vsel %vm742, %v950, 0
          %v1303 = vsel %vm742, %v952, 0
          %v1306 = vsel %vm742, %v850, 0
          %v1309 = vsel %vm742, %v852, 0
          %1311 = vmatpush.xpose.msra.mxu0 0.0
          %1312 = vmatpush.xpose.msra.mxu0 0.0
          %1313 = vmatpush.xpose.msra.mxu0 0.0
          %1314 = vmatpush.xpose.msra.mxu0 0.0
          %1315 = vmatpush.xpose.msra.mxu0 0.0
          %1316 = vmatpush.xpose.msra.mxu0 0.0
          %1317 = vmatpush.xpose.msra.mxu0 0.0
          %1318 = vmatpush.xpose.msra.mxu0 0.0
          %1319 = vmatpush.xpose.msra.mxu0 0.0
          %1320 = vmatpush.xpose.msra.mxu0 0.0
          %1321 = vmatpush.xpose.msra.mxu0 0.0
          %1322 = vmatpush.xpose.msra.mxu0 0.0
          %1323 = vmatpush.xpose.msra.mxu0 0.0
          %1324 = vmatpush.xpose.msra.mxu0 0.0
          %1325 = vmatpush.xpose.msra.mxu0 %v1309
          %1326 = vmatpush.xpose.msra.mxu0 %v1306
          %1327 = vmatmul.f32.gmra.mxu0 %v1300
          %v1328 = vpop.f32.mrf.mxu0
          %v1329 = vadd.f32 0.0, %v1328
          %1330 = vmatmul.f32.gmra.mxu0 %v1303
          %v1331 = vpop.f32.mrf.mxu0
          %v1332 = vadd.f32 0.0, %v1331
          %1333 = vdwg.mxu0
          %v1335 = vsel %vm742, %v955, 0
          %v1338 = vsel %vm742, %v957, 0
          %v1341 = vsel %vm742, %v855, 0
          %v1344 = vsel %vm742, %v857, 0
          %1346 = vmatpush.xpose.msra.mxu0 0.0
          %1347 = vmatpush.xpose.msra.mxu0 0.0
          %1348 = vmatpush.xpose.msra.mxu0 0.0
          %1349 = vmatpush.xpose.msra.mxu0 0.0
          %1350 = vmatpush.xpose.msra.mxu0 0.0
          %1351 = vmatpush.xpose.msra.mxu0 0.0
          %1352 = vmatpush.xpose.msra.mxu0 0.0
          %1353 = vmatpush.xpose.msra.mxu0 0.0
          %1354 = vmatpush.xpose.msra.mxu0 0.0
          %1355 = vmatpush.xpose.msra.mxu0 0.0
          %1356 = vmatpush.xpose.msra.mxu0 0.0
          %1357 = vmatpush.xpose.msra.mxu0 0.0
          %1358 = vmatpush.xpose.msra.mxu0 0.0
          %1359 = vmatpush.xpose.msra.mxu0 0.0
          %1360 = vmatpush.xpose.msra.mxu0 %v1344
          %1361 = vmatpush.xpose.msra.mxu0 %v1341
          %1362 = vmatmul.f32.gmra.mxu0 %v1335
          %v1363 = vpop.f32.mrf.mxu0
          %v1364 = vadd.f32 0.0, %v1363
          %1365 = vmatmul.f32.gmra.mxu0 %v1338
          %v1366 = vpop.f32.mrf.mxu0
          %v1367 = vadd.f32 0.0, %v1366
          %1368 = vdwg.mxu0
          %v1370 = vsel %vm742, %v960, 0
          %v1373 = vsel %vm742, %v962, 0
          %v1376 = vsel %vm742, %v860, 0
          %v1379 = vsel %vm742, %v862, 0
          %1381 = vmatpush.xpose.msra.mxu0 0.0
          %1382 = vmatpush.xpose.msra.mxu0 0.0
          %1383 = vmatpush.xpose.msra.mxu0 0.0
          %1384 = vmatpush.xpose.msra.mxu0 0.0
          %1385 = vmatpush.xpose.msra.mxu0 0.0
          %1386 = vmatpush.xpose.msra.mxu0 0.0
          %1387 = vmatpush.xpose.msra.mxu0 0.0
          %1388 = vmatpush.xpose.msra.mxu0 0.0
          %1389 = vmatpush.xpose.msra.mxu0 0.0
          %1390 = vmatpush.xpose.msra.mxu0 0.0
          %1391 = vmatpush.xpose.msra.mxu0 0.0
          %1392 = vmatpush.xpose.msra.mxu0 0.0
          %1393 = vmatpush.xpose.msra.mxu0 0.0
          %1394 = vmatpush.xpose.msra.mxu0 0.0
          %1395 = vmatpush.xpose.msra.mxu0 %v1379
          %1396 = vmatpush.xpose.msra.mxu0 %v1376
          %1397 = vmatmul.f32.gmra.mxu0 %v1370
          %v1398 = vpop.f32.mrf.mxu0
          %v1399 = vadd.f32 0.0, %v1398
          %1400 = vmatmul.f32.gmra.mxu0 %v1373
          %v1401 = vpop.f32.mrf.mxu0
          %v1402 = vadd.f32 0.0, %v1401
          %1403 = vdwg.mxu0
          %v1405 = vsel %vm742, %v965, 0
          %v1408 = vsel %vm742, %v967, 0
          %v1411 = vsel %vm742, %v865, 0
          %v1414 = vsel %vm742, %v867, 0
          %1416 = vmatpush.xpose.msra.mxu0 0.0
          %1417 = vmatpush.xpose.msra.mxu0 0.0
          %1418 = vmatpush.xpose.msra.mxu0 0.0
          %1419 = vmatpush.xpose.msra.mxu0 0.0
          %1420 = vmatpush.xpose.msra.mxu0 0.0
          %1421 = vmatpush.xpose.msra.mxu0 0.0
          %1422 = vmatpush.xpose.msra.mxu0 0.0
          %1423 = vmatpush.xpose.msra.mxu0 0.0
          %1424 = vmatpush.xpose.msra.mxu0 0.0
          %1425 = vmatpush.xpose.msra.mxu0 0.0
          %1426 = vmatpush.xpose.msra.mxu0 0.0
          %1427 = vmatpush.xpose.msra.mxu0 0.0
          %1428 = vmatpush.xpose.msra.mxu0 0.0
          %1429 = vmatpush.xpose.msra.mxu0 0.0
          %1430 = vmatpush.xpose.msra.mxu0 %v1414
          %1431 = vmatpush.xpose.msra.mxu0 %v1411
          %1432 = vmatmul.f32.gmra.mxu0 %v1405
          %v1433 = vpop.f32.mrf.mxu0
          %v1434 = vadd.f32 0.0, %v1433
          %1435 = vmatmul.f32.gmra.mxu0 %v1408
          %v1436 = vpop.f32.mrf.mxu0
          %v1437 = vadd.f32 0.0, %v1436
          %1438 = vdwg.mxu0
          %v1440 = vsel %vm742, %v970, 0
          %v1443 = vsel %vm742, %v972, 0
          %v1446 = vsel %vm742, %v870, 0
          %v1449 = vsel %vm742, %v872, 0
          %1451 = vmatpush.xpose.msra.mxu0 0.0
          %1452 = vmatpush.xpose.msra.mxu0 0.0
          %1453 = vmatpush.xpose.msra.mxu0 0.0
          %1454 = vmatpush.xpose.msra.mxu0 0.0
          %1455 = vmatpush.xpose.msra.mxu0 0.0
          %1456 = vmatpush.xpose.msra.mxu0 0.0
          %1457 = vmatpush.xpose.msra.mxu0 0.0
          %1458 = vmatpush.xpose.msra.mxu0 0.0
          %1459 = vmatpush.xpose.msra.mxu0 0.0
          %1460 = vmatpush.xpose.msra.mxu0 0.0
          %1461 = vmatpush.xpose.msra.mxu0 0.0
          %1462 = vmatpush.xpose.msra.mxu0 0.0
          %1463 = vmatpush.xpose.msra.mxu0 0.0
          %1464 = vmatpush.xpose.msra.mxu0 0.0
          %1465 = vmatpush.xpose.msra.mxu0 %v1449
          %1466 = vmatpush.xpose.msra.mxu0 %v1446
          %1467 = vmatmul.f32.gmra.mxu0 %v1440
          %v1468 = vpop.f32.mrf.mxu0
          %v1469 = vadd.f32 0.0, %v1468
          %1470 = vmatmul.f32.gmra.mxu0 %v1443
          %v1471 = vpop.f32.mrf.mxu0
          %v1472 = vadd.f32 0.0, %v1471
          %1473 = vdwg.mxu0
          %v1475 = vsel %vm742, %v975, 0
          %v1478 = vsel %vm742, %v977, 0
          %v1481 = vsel %vm742, %v875, 0
          %v1484 = vsel %vm742, %v877, 0
          %1486 = vmatpush.xpose.msra.mxu0 0.0
          %1487 = vmatpush.xpose.msra.mxu0 0.0
          %1488 = vmatpush.xpose.msra.mxu0 0.0
          %1489 = vmatpush.xpose.msra.mxu0 0.0
          %1490 = vmatpush.xpose.msra.mxu0 0.0
          %1491 = vmatpush.xpose.msra.mxu0 0.0
          %1492 = vmatpush.xpose.msra.mxu0 0.0
          %1493 = vmatpush.xpose.msra.mxu0 0.0
          %1494 = vmatpush.xpose.msra.mxu0 0.0
          %1495 = vmatpush.xpose.msra.mxu0 0.0
          %1496 = vmatpush.xpose.msra.mxu0 0.0
          %1497 = vmatpush.xpose.msra.mxu0 0.0
          %1498 = vmatpush.xpose.msra.mxu0 0.0
          %1499 = vmatpush.xpose.msra.mxu0 0.0
          %1500 = vmatpush.xpose.msra.mxu0 %v1484
          %1501 = vmatpush.xpose.msra.mxu0 %v1481
          %1502 = vmatmul.f32.gmra.mxu0 %v1475
          %v1503 = vpop.f32.mrf.mxu0
          %v1504 = vadd.f32 0.0, %v1503
          %1505 = vmatmul.f32.gmra.mxu0 %v1478
          %v1506 = vpop.f32.mrf.mxu0
          %v1507 = vadd.f32 0.0, %v1506
          %1508 = vdwg.mxu0
          %v1510 = vsel %vm742, %v980, 0
          %v1513 = vsel %vm742, %v982, 0
          %v1516 = vsel %vm742, %v880, 0
          %v1519 = vsel %vm742, %v882, 0
          %1521 = vmatpush.xpose.msra.mxu0 0.0
          %1522 = vmatpush.xpose.msra.mxu0 0.0
          %1523 = vmatpush.xpose.msra.mxu0 0.0
          %1524 = vmatpush.xpose.msra.mxu0 0.0
          %1525 = vmatpush.xpose.msra.mxu0 0.0
          %1526 = vmatpush.xpose.msra.mxu0 0.0
          %1527 = vmatpush.xpose.msra.mxu0 0.0
          %1528 = vmatpush.xpose.msra.mxu0 0.0
          %1529 = vmatpush.xpose.msra.mxu0 0.0
          %1530 = vmatpush.xpose.msra.mxu0 0.0
          %1531 = vmatpush.xpose.msra.mxu0 0.0
          %1532 = vmatpush.xpose.msra.mxu0 0.0
          %1533 = vmatpush.xpose.msra.mxu0 0.0
          %1534 = vmatpush.xpose.msra.mxu0 0.0
          %1535 = vmatpush.xpose.msra.mxu0 %v1519
          %1536 = vmatpush.xpose.msra.mxu0 %v1516
          %1537 = vmatmul.f32.gmra.mxu0 %v1510
          %v1538 = vpop.f32.mrf.mxu0
          %v1539 = vadd.f32 0.0, %v1538
          %1540 = vmatmul.f32.gmra.mxu0 %v1513
          %v1541 = vpop.f32.mrf.mxu0
          %v1542 = vadd.f32 0.0, %v1541
          %1543 = vdwg.mxu0
          %vm1544 = vcmask 130048
          %v1545 = vsel %vm1544, %v1014, 0.0
          %v1546 = vsel %vm1544, %v1049, 0.0
          %v1547 = vadd.f32 %v1545, %v1546
          %v1548 = vsel %vm1544, %v1084, 0.0
          %v1549 = vadd.f32 %v1547, %v1548
          %v1550 = vsel %vm1544, %v1119, 0.0
          %v1551 = vadd.f32 %v1549, %v1550
          %v1552 = vsel %vm1544, %v1154, 0.0
          %v1553 = vadd.f32 %v1551, %v1552
          %v1554 = vsel %vm1544, %v1189, 0.0
          %v1555 = vadd.f32 %v1553, %v1554
          %v1556 = vsel %vm1544, %v1224, 0.0
          %v1557 = vadd.f32 %v1555, %v1556
          %v1558 = vsel %vm1544, %v1259, 0.0
          %v1559 = vadd.f32 %v1557, %v1558
          %v1560 = vsel %vm1544, %v1294, 0.0
          %v1561 = vadd.f32 %v1559, %v1560
          %v1562 = vsel %vm1544, %v1329, 0.0
          %v1563 = vadd.f32 %v1561, %v1562
          %v1564 = vsel %vm1544, %v1364, 0.0
          %v1565 = vadd.f32 %v1563, %v1564
          %v1566 = vsel %vm1544, %v1399, 0.0
          %v1567 = vadd.f32 %v1565, %v1566
          %v1568 = vsel %vm1544, %v1434, 0.0
          %v1569 = vadd.f32 %v1567, %v1568
          %v1570 = vsel %vm1544, %v1469, 0.0
          %v1571 = vadd.f32 %v1569, %v1570
          %v1572 = vsel %vm1544, %v1504, 0.0
          %v1573 = vadd.f32 %v1571, %v1572
          %v1574 = vsel %vm1544, %v1539, 0.0
          %v1575 = vadd.f32 %v1573, %v1574
          %v1576 = vsel %vm1544, %v1017, 0.0
          %v1577 = vsel %vm1544, %v1052, 0.0
          %v1578 = vadd.f32 %v1576, %v1577
          %v1579 = vsel %vm1544, %v1087, 0.0
          %v1580 = vadd.f32 %v1578, %v1579
          %v1581 = vsel %vm1544, %v1122, 0.0
          %v1582 = vadd.f32 %v1580, %v1581
          %v1583 = vsel %vm1544, %v1157, 0.0
          %v1584 = vadd.f32 %v1582, %v1583
          %v1585 = vsel %vm1544, %v1192, 0.0
          %v1586 = vadd.f32 %v1584, %v1585
          %v1587 = vsel %vm1544, %v1227, 0.0
          %v1588 = vadd.f32 %v1586, %v1587
          %v1589 = vsel %vm1544, %v1262, 0.0
          %v1590 = vadd.f32 %v1588, %v1589
          %v1591 = vsel %vm1544, %v1297, 0.0
          %v1592 = vadd.f32 %v1590, %v1591
          %v1593 = vsel %vm1544, %v1332, 0.0
          %v1594 = vadd.f32 %v1592, %v1593
          %v1595 = vsel %vm1544, %v1367, 0.0
          %v1596 = vadd.f32 %v1594, %v1595
          %v1597 = vsel %vm1544, %v1402, 0.0
          %v1598 = vadd.f32 %v1596, %v1597
          %v1599 = vsel %vm1544, %v1437, 0.0
          %v1600 = vadd.f32 %v1598, %v1599
          %v1601 = vsel %vm1544, %v1472, 0.0
          %v1602 = vadd.f32 %v1600, %v1601
          %v1603 = vsel %vm1544, %v1507, 0.0
          %v1604 = vadd.f32 %v1602, %v1603
          %v1605 = vsel %vm1544, %v1542, 0.0
          %v1606 = vadd.f32 %v1604, %v1605
          %s1607 = smul.u32 %s697, 16
          %s1608 = scalar_lea.vmem %s6, %s1607
          %v1609 = vld [vmem:[%s1608] sm:$0xff]
          %v1610 = vld [vmem:[%s1608 + $0x8] sm:$0xff]
          %v1611 = vmul.f32 %v1575, 0.015625
          %v1612 = vmul.f32 %v1606, 0.015625
          %v1613 = vtanh.pop %v1611
          %v1614 = vtanh.pop %v1612
          %v1615 = vstv %s645
          %v1616 = vmul.f32 %v1615, %v1613
          %v1617 = vmul.f32 %v1615, %v1614
          %v1618 = vadd.f32 %v1609, %v1616
          %v1619 = vadd.f32 %v1610, %v1617
          %v1621 = vsel %vm1544, %v1618, 0
          %v1624 = vsel %vm1544, %v1619, 0
          %1626 = vmatpush.msra.mxu0 0.0
          %1627 = vmatpush.msra.mxu0 0.0
          %1628 = vmatpush.msra.mxu0 0.0
          %1629 = vmatpush.msra.mxu0 0.0
          %1630 = vmatpush.msra.mxu0 0.0
          %1631 = vmatpush.msra.mxu0 0.0
          %1632 = vmatpush.msra.mxu0 0.0
          %1633 = vmatpush.msra.mxu0 0.0
          %1634 = vmatpush.msra.mxu0 0.0
          %1635 = vmatpush.msra.mxu0 0.0
          %1636 = vmatpush.msra.mxu0 0.0
          %1637 = vmatpush.msra.mxu0 0.0
          %1638 = vmatpush.msra.mxu0 0.0
          %1639 = vmatpush.msra.mxu0 0.0
          %1640 = vmatpush.msra.mxu0 %v649
          %1641 = vmatpush.msra.mxu0 %v648
          %1642 = vmatmul.f32.gmra.mxu0 %v1621
          %v1643 = vpop.f32.mrf.mxu0
          %v1644 = vadd.f32 0.0, %v1643
          %1645 = vmatmul.f32.gmra.mxu0 %v1624
          %v1646 = vpop.f32.mrf.mxu0
          %v1647 = vadd.f32 0.0, %v1646
          %1648 = vdwg.mxu0
          %1649 = vmatpush.msra.mxu0 0.0
          %1650 = vmatpush.msra.mxu0 0.0
          %1651 = vmatpush.msra.mxu0 0.0
          %1652 = vmatpush.msra.mxu0 0.0
          %1653 = vmatpush.msra.mxu0 0.0
          %1654 = vmatpush.msra.mxu0 0.0
          %1655 = vmatpush.msra.mxu0 0.0
          %1656 = vmatpush.msra.mxu0 0.0
          %1657 = vmatpush.msra.mxu0 0.0
          %1658 = vmatpush.msra.mxu0 0.0
          %1659 = vmatpush.msra.mxu0 0.0
          %1660 = vmatpush.msra.mxu0 0.0
          %1661 = vmatpush.msra.mxu0 0.0
          %1662 = vmatpush.msra.mxu0 0.0
          %1663 = vmatpush.msra.mxu0 %v651
          %1664 = vmatpush.msra.mxu0 %v650
          %1665 = vmatmul.f32.gmra.mxu0 %v1621
          %v1666 = vpop.f32.mrf.mxu0
          %v1667 = vadd.f32 0.0, %v1666
          %1668 = vmatmul.f32.gmra.mxu0 %v1624
          %v1669 = vpop.f32.mrf.mxu0
          %v1670 = vadd.f32 0.0, %v1669
          %1671 = vdwg.mxu0
          %1672 = vmatpush.msra.mxu0 0.0
          %1673 = vmatpush.msra.mxu0 0.0
          %1674 = vmatpush.msra.mxu0 0.0
          %1675 = vmatpush.msra.mxu0 0.0
          %1676 = vmatpush.msra.mxu0 0.0
          %1677 = vmatpush.msra.mxu0 0.0
          %1678 = vmatpush.msra.mxu0 0.0
          %1679 = vmatpush.msra.mxu0 0.0
          %1680 = vmatpush.msra.mxu0 0.0
          %1681 = vmatpush.msra.mxu0 0.0
          %1682 = vmatpush.msra.mxu0 0.0
          %1683 = vmatpush.msra.mxu0 0.0
          %1684 = vmatpush.msra.mxu0 0.0
          %1685 = vmatpush.msra.mxu0 0.0
          %1686 = vmatpush.msra.mxu0 %v653
          %1687 = vmatpush.msra.mxu0 %v652
          %1688 = vmatmul.f32.gmra.mxu0 %v1621
          %v1689 = vpop.f32.mrf.mxu0
          %v1690 = vadd.f32 0.0, %v1689
          %1691 = vmatmul.f32.gmra.mxu0 %v1624
          %v1692 = vpop.f32.mrf.mxu0
          %v1693 = vadd.f32 0.0, %v1692
          %1694 = vdwg.mxu0
          %1695 = vmatpush.msra.mxu0 0.0
          %1696 = vmatpush.msra.mxu0 0.0
          %1697 = vmatpush.msra.mxu0 0.0
          %1698 = vmatpush.msra.mxu0 0.0
          %1699 = vmatpush.msra.mxu0 0.0
          %1700 = vmatpush.msra.mxu0 0.0
          %1701 = vmatpush.msra.mxu0 0.0
          %1702 = vmatpush.msra.mxu0 0.0
          %1703 = vmatpush.msra.mxu0 0.0
          %1704 = vmatpush.msra.mxu0 0.0
          %1705 = vmatpush.msra.mxu0 0.0
          %1706 = vmatpush.msra.mxu0 0.0
          %1707 = vmatpush.msra.mxu0 0.0
          %1708 = vmatpush.msra.mxu0 0.0
          %1709 = vmatpush.msra.mxu0 %v655
          %1710 = vmatpush.msra.mxu0 %v654
          %1711 = vmatmul.f32.gmra.mxu0 %v1621
          %v1712 = vpop.f32.mrf.mxu0
          %v1713 = vadd.f32 0.0, %v1712
          %1714 = vmatmul.f32.gmra.mxu0 %v1624
          %v1715 = vpop.f32.mrf.mxu0
          %v1716 = vadd.f32 0.0, %v1715
          %1717 = vdwg.mxu0
          %1718 = vmatpush.msra.mxu0 0.0
          %1719 = vmatpush.msra.mxu0 0.0
          %1720 = vmatpush.msra.mxu0 0.0
          %1721 = vmatpush.msra.mxu0 0.0
          %1722 = vmatpush.msra.mxu0 0.0
          %1723 = vmatpush.msra.mxu0 0.0
          %1724 = vmatpush.msra.mxu0 0.0
          %1725 = vmatpush.msra.mxu0 0.0
          %1726 = vmatpush.msra.mxu0 0.0
          %1727 = vmatpush.msra.mxu0 0.0
          %1728 = vmatpush.msra.mxu0 0.0
          %1729 = vmatpush.msra.mxu0 0.0
          %1730 = vmatpush.msra.mxu0 0.0
          %1731 = vmatpush.msra.mxu0 0.0
          %1732 = vmatpush.msra.mxu0 %v657
          %1733 = vmatpush.msra.mxu0 %v656
          %1734 = vmatmul.f32.gmra.mxu0 %v1621
          %v1735 = vpop.f32.mrf.mxu0
          %v1736 = vadd.f32 0.0, %v1735
          %1737 = vmatmul.f32.gmra.mxu0 %v1624
          %v1738 = vpop.f32.mrf.mxu0
          %v1739 = vadd.f32 0.0, %v1738
          %1740 = vdwg.mxu0
          %1741 = vmatpush.msra.mxu0 0.0
          %1742 = vmatpush.msra.mxu0 0.0
          %1743 = vmatpush.msra.mxu0 0.0
          %1744 = vmatpush.msra.mxu0 0.0
          %1745 = vmatpush.msra.mxu0 0.0
          %1746 = vmatpush.msra.mxu0 0.0
          %1747 = vmatpush.msra.mxu0 0.0
          %1748 = vmatpush.msra.mxu0 0.0
          %1749 = vmatpush.msra.mxu0 0.0
          %1750 = vmatpush.msra.mxu0 0.0
          %1751 = vmatpush.msra.mxu0 0.0
          %1752 = vmatpush.msra.mxu0 0.0
          %1753 = vmatpush.msra.mxu0 0.0
          %1754 = vmatpush.msra.mxu0 0.0
          %1755 = vmatpush.msra.mxu0 %v659
          %1756 = vmatpush.msra.mxu0 %v658
          %1757 = vmatmul.f32.gmra.mxu0 %v1621
          %v1758 = vpop.f32.mrf.mxu0
          %v1759 = vadd.f32 0.0, %v1758
          %1760 = vmatmul.f32.gmra.mxu0 %v1624
          %v1761 = vpop.f32.mrf.mxu0
          %v1762 = vadd.f32 0.0, %v1761
          %1763 = vdwg.mxu0
          %1764 = vmatpush.msra.mxu0 0.0
          %1765 = vmatpush.msra.mxu0 0.0
          %1766 = vmatpush.msra.mxu0 0.0
          %1767 = vmatpush.msra.mxu0 0.0
          %1768 = vmatpush.msra.mxu0 0.0
          %1769 = vmatpush.msra.mxu0 0.0
          %1770 = vmatpush.msra.mxu0 0.0
          %1771 = vmatpush.msra.mxu0 0.0
          %1772 = vmatpush.msra.mxu0 0.0
          %1773 = vmatpush.msra.mxu0 0.0
          %1774 = vmatpush.msra.mxu0 0.0
          %1775 = vmatpush.msra.mxu0 0.0
          %1776 = vmatpush.msra.mxu0 0.0
          %1777 = vmatpush.msra.mxu0 0.0
          %1778 = vmatpush.msra.mxu0 %v661
          %1779 = vmatpush.msra.mxu0 %v660
          %1780 = vmatmul.f32.gmra.mxu0 %v1621
          %v1781 = vpop.f32.mrf.mxu0
          %v1782 = vadd.f32 0.0, %v1781
          %1783 = vmatmul.f32.gmra.mxu0 %v1624
          %v1784 = vpop.f32.mrf.mxu0
          %v1785 = vadd.f32 0.0, %v1784
          %1786 = vdwg.mxu0
          %1787 = vmatpush.msra.mxu0 0.0
          %1788 = vmatpush.msra.mxu0 0.0
          %1789 = vmatpush.msra.mxu0 0.0
          %1790 = vmatpush.msra.mxu0 0.0
          %1791 = vmatpush.msra.mxu0 0.0
          %1792 = vmatpush.msra.mxu0 0.0
          %1793 = vmatpush.msra.mxu0 0.0
          %1794 = vmatpush.msra.mxu0 0.0
          %1795 = vmatpush.msra.mxu0 0.0
          %1796 = vmatpush.msra.mxu0 0.0
          %1797 = vmatpush.msra.mxu0 0.0
          %1798 = vmatpush.msra.mxu0 0.0
          %1799 = vmatpush.msra.mxu0 0.0
          %1800 = vmatpush.msra.mxu0 0.0
          %1801 = vmatpush.msra.mxu0 %v663
          %1802 = vmatpush.msra.mxu0 %v662
          %1803 = vmatmul.f32.gmra.mxu0 %v1621
          %v1804 = vpop.f32.mrf.mxu0
          %v1805 = vadd.f32 0.0, %v1804
          %1806 = vmatmul.f32.gmra.mxu0 %v1624
          %v1807 = vpop.f32.mrf.mxu0
          %v1808 = vadd.f32 0.0, %v1807
          %1809 = vdwg.mxu0
          %1810 = vmatpush.msra.mxu0 0.0
          %1811 = vmatpush.msra.mxu0 0.0
          %1812 = vmatpush.msra.mxu0 0.0
          %1813 = vmatpush.msra.mxu0 0.0
          %1814 = vmatpush.msra.mxu0 0.0
          %1815 = vmatpush.msra.mxu0 0.0
          %1816 = vmatpush.msra.mxu0 0.0
          %1817 = vmatpush.msra.mxu0 0.0
          %1818 = vmatpush.msra.mxu0 0.0
          %1819 = vmatpush.msra.mxu0 0.0
          %1820 = vmatpush.msra.mxu0 0.0
          %1821 = vmatpush.msra.mxu0 0.0
          %1822 = vmatpush.msra.mxu0 0.0
          %1823 = vmatpush.msra.mxu0 0.0
          %1824 = vmatpush.msra.mxu0 %v665
          %1825 = vmatpush.msra.mxu0 %v664
          %1826 = vmatmul.f32.gmra.mxu0 %v1621
          %v1827 = vpop.f32.mrf.mxu0
          %v1828 = vadd.f32 0.0, %v1827
          %1829 = vmatmul.f32.gmra.mxu0 %v1624
          %v1830 = vpop.f32.mrf.mxu0
          %v1831 = vadd.f32 0.0, %v1830
          %1832 = vdwg.mxu0
          %1833 = vmatpush.msra.mxu0 0.0
          %1834 = vmatpush.msra.mxu0 0.0
          %1835 = vmatpush.msra.mxu0 0.0
          %1836 = vmatpush.msra.mxu0 0.0
          %1837 = vmatpush.msra.mxu0 0.0
          %1838 = vmatpush.msra.mxu0 0.0
          %1839 = vmatpush.msra.mxu0 0.0
          %1840 = vmatpush.msra.mxu0 0.0
          %1841 = vmatpush.msra.mxu0 0.0
          %1842 = vmatpush.msra.mxu0 0.0
          %1843 = vmatpush.msra.mxu0 0.0
          %1844 = vmatpush.msra.mxu0 0.0
          %1845 = vmatpush.msra.mxu0 0.0
          %1846 = vmatpush.msra.mxu0 0.0
          %1847 = vmatpush.msra.mxu0 %v667
          %1848 = vmatpush.msra.mxu0 %v666
          %1849 = vmatmul.f32.gmra.mxu0 %v1621
          %v1850 = vpop.f32.mrf.mxu0
          %v1851 = vadd.f32 0.0, %v1850
          %1852 = vmatmul.f32.gmra.mxu0 %v1624
          %v1853 = vpop.f32.mrf.mxu0
          %v1854 = vadd.f32 0.0, %v1853
          %1855 = vdwg.mxu0
          %1856 = vmatpush.msra.mxu0 0.0
          %1857 = vmatpush.msra.mxu0 0.0
          %1858 = vmatpush.msra.mxu0 0.0
          %1859 = vmatpush.msra.mxu0 0.0
          %1860 = vmatpush.msra.mxu0 0.0
          %1861 = vmatpush.msra.mxu0 0.0
          %1862 = vmatpush.msra.mxu0 0.0
          %1863 = vmatpush.msra.mxu0 0.0
          %1864 = vmatpush.msra.mxu0 0.0
          %1865 = vmatpush.msra.mxu0 0.0
          %1866 = vmatpush.msra.mxu0 0.0
          %1867 = vmatpush.msra.mxu0 0.0
          %1868 = vmatpush.msra.mxu0 0.0
          %1869 = vmatpush.msra.mxu0 0.0
          %1870 = vmatpush.msra.mxu0 %v669
          %1871 = vmatpush.msra.mxu0 %v668
          %1872 = vmatmul.f32.gmra.mxu0 %v1621
          %v1873 = vpop.f32.mrf.mxu0
          %v1874 = vadd.f32 0.0, %v1873
          %1875 = vmatmul.f32.gmra.mxu0 %v1624
          %v1876 = vpop.f32.mrf.mxu0
          %v1877 = vadd.f32 0.0, %v1876
          %1878 = vdwg.mxu0
          %1879 = vmatpush.msra.mxu0 0.0
          %1880 = vmatpush.msra.mxu0 0.0
          %1881 = vmatpush.msra.mxu0 0.0
          %1882 = vmatpush.msra.mxu0 0.0
          %1883 = vmatpush.msra.mxu0 0.0
          %1884 = vmatpush.msra.mxu0 0.0
          %1885 = vmatpush.msra.mxu0 0.0
          %1886 = vmatpush.msra.mxu0 0.0
          %1887 = vmatpush.msra.mxu0 0.0
          %1888 = vmatpush.msra.mxu0 0.0
          %1889 = vmatpush.msra.mxu0 0.0
          %1890 = vmatpush.msra.mxu0 0.0
          %1891 = vmatpush.msra.mxu0 0.0
          %1892 = vmatpush.msra.mxu0 0.0
          %1893 = vmatpush.msra.mxu0 %v671
          %1894 = vmatpush.msra.mxu0 %v670
          %1895 = vmatmul.f32.gmra.mxu0 %v1621
          %v1896 = vpop.f32.mrf.mxu0
          %v1897 = vadd.f32 0.0, %v1896
          %1898 = vmatmul.f32.gmra.mxu0 %v1624
          %v1899 = vpop.f32.mrf.mxu0
          %v1900 = vadd.f32 0.0, %v1899
          %1901 = vdwg.mxu0
          %1902 = vmatpush.msra.mxu0 0.0
          %1903 = vmatpush.msra.mxu0 0.0
          %1904 = vmatpush.msra.mxu0 0.0
          %1905 = vmatpush.msra.mxu0 0.0
          %1906 = vmatpush.msra.mxu0 0.0
          %1907 = vmatpush.msra.mxu0 0.0
          %1908 = vmatpush.msra.mxu0 0.0
          %1909 = vmatpush.msra.mxu0 0.0
          %1910 = vmatpush.msra.mxu0 0.0
          %1911 = vmatpush.msra.mxu0 0.0
          %1912 = vmatpush.msra.mxu0 0.0
          %1913 = vmatpush.msra.mxu0 0.0
          %1914 = vmatpush.msra.mxu0 0.0
          %1915 = vmatpush.msra.mxu0 0.0
          %1916 = vmatpush.msra.mxu0 %v673
          %1917 = vmatpush.msra.mxu0 %v672
          %1918 = vmatmul.f32.gmra.mxu0 %v1621
          %v1919 = vpop.f32.mrf.mxu0
          %v1920 = vadd.f32 0.0, %v1919
          %1921 = vmatmul.f32.gmra.mxu0 %v1624
          %v1922 = vpop.f32.mrf.mxu0
          %v1923 = vadd.f32 0.0, %v1922
          %1924 = vdwg.mxu0
          %1925 = vmatpush.msra.mxu0 0.0
          %1926 = vmatpush.msra.mxu0 0.0
          %1927 = vmatpush.msra.mxu0 0.0
          %1928 = vmatpush.msra.mxu0 0.0
          %1929 = vmatpush.msra.mxu0 0.0
          %1930 = vmatpush.msra.mxu0 0.0
          %1931 = vmatpush.msra.mxu0 0.0
          %1932 = vmatpush.msra.mxu0 0.0
          %1933 = vmatpush.msra.mxu0 0.0
          %1934 = vmatpush.msra.mxu0 0.0
          %1935 = vmatpush.msra.mxu0 0.0
          %1936 = vmatpush.msra.mxu0 0.0
          %1937 = vmatpush.msra.mxu0 0.0
          %1938 = vmatpush.msra.mxu0 0.0
          %1939 = vmatpush.msra.mxu0 %v675
          %1940 = vmatpush.msra.mxu0 %v674
          %1941 = vmatmul.f32.gmra.mxu0 %v1621
          %v1942 = vpop.f32.mrf.mxu0
          %v1943 = vadd.f32 0.0, %v1942
          %1944 = vmatmul.f32.gmra.mxu0 %v1624
          %v1945 = vpop.f32.mrf.mxu0
          %v1946 = vadd.f32 0.0, %v1945
          %1947 = vdwg.mxu0
          %1948 = vmatpush.msra.mxu0 0.0
          %1949 = vmatpush.msra.mxu0 0.0
          %1950 = vmatpush.msra.mxu0 0.0
          %1951 = vmatpush.msra.mxu0 0.0
          %1952 = vmatpush.msra.mxu0 0.0
          %1953 = vmatpush.msra.mxu0 0.0
          %1954 = vmatpush.msra.mxu0 0.0
          %1955 = vmatpush.msra.mxu0 0.0
          %1956 = vmatpush.msra.mxu0 0.0
          %1957 = vmatpush.msra.mxu0 0.0
          %1958 = vmatpush.msra.mxu0 0.0
          %1959 = vmatpush.msra.mxu0 0.0
          %1960 = vmatpush.msra.mxu0 0.0
          %1961 = vmatpush.msra.mxu0 0.0
          %1962 = vmatpush.msra.mxu0 %v677
          %1963 = vmatpush.msra.mxu0 %v676
          %1964 = vmatmul.f32.gmra.mxu0 %v1621
          %v1965 = vpop.f32.mrf.mxu0
          %v1966 = vadd.f32 0.0, %v1965
          %1967 = vmatmul.f32.gmra.mxu0 %v1624
          %v1968 = vpop.f32.mrf.mxu0
          %v1969 = vadd.f32 0.0, %v1968
          %1970 = vdwg.mxu0
          %1971 = vmatpush.msra.mxu0 0.0
          %1972 = vmatpush.msra.mxu0 0.0
          %1973 = vmatpush.msra.mxu0 0.0
          %1974 = vmatpush.msra.mxu0 0.0
          %1975 = vmatpush.msra.mxu0 0.0
          %1976 = vmatpush.msra.mxu0 0.0
          %1977 = vmatpush.msra.mxu0 0.0
          %1978 = vmatpush.msra.mxu0 0.0
          %1979 = vmatpush.msra.mxu0 0.0
          %1980 = vmatpush.msra.mxu0 0.0
          %1981 = vmatpush.msra.mxu0 0.0
          %1982 = vmatpush.msra.mxu0 0.0
          %1983 = vmatpush.msra.mxu0 0.0
          %1984 = vmatpush.msra.mxu0 0.0
          %1985 = vmatpush.msra.mxu0 %v679
          %1986 = vmatpush.msra.mxu0 %v678
          %1987 = vmatmul.f32.gmra.mxu0 %v1621
          %v1988 = vpop.f32.mrf.mxu0
          %v1989 = vadd.f32 0.0, %v1988
          %1990 = vmatmul.f32.gmra.mxu0 %v1624
          %v1991 = vpop.f32.mrf.mxu0
          %v1992 = vadd.f32 0.0, %v1991
          %1993 = vdwg.mxu0
          %s1994 = smul.addr %s697, 2
          %s1995 = scalar_lea.vmem %s7, %s1994
          %v1996 = vld [vmem:[%s1995] sm:$0x3]
          %v1997 = vpack.c.bf16 %v1647, %v1644
          %v1998 = vpack.c.bf16 %v1670, %v1667
          %v1999 = vpack.c.bf16 %v1693, %v1690
          %v2000 = vpack.c.bf16 %v1716, %v1713
          %v2001 = vpack.c.bf16 %v1739, %v1736
          %v2002 = vpack.c.bf16 %v1762, %v1759
          %v2003 = vpack.c.bf16 %v1785, %v1782
          %v2004 = vpack.c.bf16 %v1808, %v1805
          %v2005 = vpack.c.bf16 %v1831, %v1828
          %v2006 = vpack.c.bf16 %v1854, %v1851
          %v2007 = vpack.c.bf16 %v1877, %v1874
          %v2008 = vpack.c.bf16 %v1900, %v1897
          %v2009 = vpack.c.bf16 %v1923, %v1920
          %v2010 = vpack.c.bf16 %v1946, %v1943
          %v2011 = vpack.c.bf16 %v1969, %v1966
          %v2012 = vpack.c.bf16 %v1992, %v1989
          %v2014 = vsel %vm742, %v1997, 0
          %v2017 = vsel %vm742, %v1998, 0
          %v2020 = vsel %vm742, %v1999, 0
          %v2023 = vsel %vm742, %v2000, 0
          %v2026 = vsel %vm742, %v2001, 0
          %v2029 = vsel %vm742, %v2002, 0
          %v2032 = vsel %vm742, %v2003, 0
          %v2035 = vsel %vm742, %v2004, 0
          %v2038 = vsel %vm742, %v2005, 0
          %v2041 = vsel %vm742, %v2006, 0
          %v2044 = vsel %vm742, %v2007, 0
          %v2047 = vsel %vm742, %v2008, 0
          %v2050 = vsel %vm742, %v2009, 0
          %v2053 = vsel %vm742, %v2010, 0
          %v2056 = vsel %vm742, %v2011, 0
          %v2059 = vsel %vm742, %v2012, 0
          %v2062 = vsel %vm791, %v1996, 0
          %2064 = vmatpush.bf16.msra.mxu0 0
          %2065 = vmatpush.bf16.msra.mxu0 0
          %2066 = vmatpush.bf16.msra.mxu0 0
          %2067 = vmatpush.bf16.msra.mxu0 0
          %2068 = vmatpush.bf16.msra.mxu0 0
          %2069 = vmatpush.bf16.msra.mxu0 0
          %2070 = vmatpush.bf16.msra.mxu0 0
          %2071 = vmatpush.bf16.msra.mxu0 %v2062
          %2072 = vmatmul.bf16.gmra.mxu0 %v2014
          %v2073 = vpop.f32.mrf.mxu0
          %v2074 = vadd.f32 0.0, %v2073
          %v2075 = vpop.f32.mrf.mxu0
          %v2076 = vadd.f32 0.0, %v2075
          %2077 = vmatmul.bf16.gmra.mxu0 %v2017
          %v2078 = vpop.f32.mrf.mxu0
          %v2079 = vadd.f32 0.0, %v2078
          %v2080 = vpop.f32.mrf.mxu0
          %v2081 = vadd.f32 0.0, %v2080
          %2082 = vmatmul.bf16.gmra.mxu0 %v2020
          %v2083 = vpop.f32.mrf.mxu0
          %v2084 = vadd.f32 0.0, %v2083
          %v2085 = vpop.f32.mrf.mxu0
          %v2086 = vadd.f32 0.0, %v2085
          %2087 = vmatmul.bf16.gmra.mxu0 %v2023
          %v2088 = vpop.f32.mrf.mxu0
          %v2089 = vadd.f32 0.0, %v2088
          %v2090 = vpop.f32.mrf.mxu0
          %v2091 = vadd.f32 0.0, %v2090
          %2092 = vmatmul.bf16.gmra.mxu0 %v2026
          %v2093 = vpop.f32.mrf.mxu0
          %v2094 = vadd.f32 0.0, %v2093
          %v2095 = vpop.f32.mrf.mxu0
          %v2096 = vadd.f32 0.0, %v2095
          %2097 = vmatmul.bf16.gmra.mxu0 %v2029
          %v2098 = vpop.f32.mrf.mxu0
          %v2099 = vadd.f32 0.0, %v2098
          %v2100 = vpop.f32.mrf.mxu0
          %v2101 = vadd.f32 0.0, %v2100
          %2102 = vmatmul.bf16.gmra.mxu0 %v2032
          %v2103 = vpop.f32.mrf.mxu0
          %v2104 = vadd.f32 0.0, %v2103
          %v2105 = vpop.f32.mrf.mxu0
          %v2106 = vadd.f32 0.0, %v2105
          %2107 = vmatmul.bf16.gmra.mxu0 %v2035
          %v2108 = vpop.f32.mrf.mxu0
          %v2109 = vadd.f32 0.0, %v2108
          %v2110 = vpop.f32.mrf.mxu0
          %v2111 = vadd.f32 0.0, %v2110
          %2112 = vmatmul.bf16.gmra.mxu0 %v2038
          %v2113 = vpop.f32.mrf.mxu0
          %v2114 = vadd.f32 0.0, %v2113
          %v2115 = vpop.f32.mrf.mxu0
          %v2116 = vadd.f32 0.0, %v2115
          %2117 = vmatmul.bf16.gmra.mxu0 %v2041
          %v2118 = vpop.f32.mrf.mxu0
          %v2119 = vadd.f32 0.0, %v2118
          %v2120 = vpop.f32.mrf.mxu0
          %v2121 = vadd.f32 0.0, %v2120
          %2122 = vmatmul.bf16.gmra.mxu0 %v2044
          %v2123 = vpop.f32.mrf.mxu0
          %v2124 = vadd.f32 0.0, %v2123
          %v2125 = vpop.f32.mrf.mxu0
          %v2126 = vadd.f32 0.0, %v2125
          %2127 = vmatmul.bf16.gmra.mxu0 %v2047
          %v2128 = vpop.f32.mrf.mxu0
          %v2129 = vadd.f32 0.0, %v2128
          %v2130 = vpop.f32.mrf.mxu0
          %v2131 = vadd.f32 0.0, %v2130
          %2132 = vmatmul.bf16.gmra.mxu0 %v2050
          %v2133 = vpop.f32.mrf.mxu0
          %v2134 = vadd.f32 0.0, %v2133
          %v2135 = vpop.f32.mrf.mxu0
          %v2136 = vadd.f32 0.0, %v2135
          %2137 = vmatmul.bf16.gmra.mxu0 %v2053
          %v2138 = vpop.f32.mrf.mxu0
          %v2139 = vadd.f32 0.0, %v2138
          %v2140 = vpop.f32.mrf.mxu0
          %v2141 = vadd.f32 0.0, %v2140
          %2142 = vmatmul.bf16.gmra.mxu0 %v2056
          %v2143 = vpop.f32.mrf.mxu0
          %v2144 = vadd.f32 0.0, %v2143
          %v2145 = vpop.f32.mrf.mxu0
          %v2146 = vadd.f32 0.0, %v2145
          %2147 = vmatmul.bf16.gmra.mxu0 %v2059
          %v2148 = vpop.f32.mrf.mxu0
          %v2149 = vadd.f32 0.0, %v2148
          %v2150 = vpop.f32.mrf.mxu0
          %v2151 = vadd.f32 0.0, %v2150
          %2152 = vdwg.mxu0
          %v2153 = vadd.f32 %v702, %v2074
          %v2154 = vadd.f32 %v703, %v2076
          %v2155 = vadd.f32 %v704, %v2079
          %v2156 = vadd.f32 %v705, %v2081
          %v2157 = vadd.f32 %v706, %v2084
          %v2158 = vadd.f32 %v707, %v2086
          %v2159 = vadd.f32 %v708, %v2089
          %v2160 = vadd.f32 %v709, %v2091
          %v2161 = vadd.f32 %v710, %v2094
          %v2162 = vadd.f32 %v711, %v2096
          %v2163 = vadd.f32 %v712, %v2099
          %v2164 = vadd.f32 %v713, %v2101
          %v2165 = vadd.f32 %v714, %v2104
          %v2166 = vadd.f32 %v715, %v2106
          %v2167 = vadd.f32 %v716, %v2109
          %v2168 = vadd.f32 %v717, %v2111
          %v2169 = vadd.f32 %v718, %v2114
          %v2170 = vadd.f32 %v719, %v2116
          %v2171 = vadd.f32 %v720, %v2119
          %v2172 = vadd.f32 %v721, %v2121
          %v2173 = vadd.f32 %v722, %v2124
          %v2174 = vadd.f32 %v723, %v2126
          %v2175 = vadd.f32 %v724, %v2129
          %v2176 = vadd.f32 %v725, %v2131
          %v2177 = vadd.f32 %v726, %v2134
          %v2178 = vadd.f32 %v727, %v2136
          %v2179 = vadd.f32 %v728, %v2139
          %v2180 = vadd.f32 %v729, %v2141
          %v2181 = vadd.f32 %v730, %v2144
          %v2182 = vadd.f32 %v731, %v2146
          %v2183 = vadd.f32 %v732, %v2149
          %v2184 = vadd.f32 %v733, %v2151
        $region109: #{tpu_custom_call.1} parent=99 // loop_footer
          %s701 = sadd.s32 1, %s697
        $region110: #{tpu_custom_call.1} parent=99 // loop_footer_branch
          %696 = sbr.rel target = $region106
        $region111: #{tpu_custom_call.1} parent=99 // loop_exit
          _
        %v2185 = vld [vmem:[%s9] sm:$0x1]
        %v2187 = vperm.slane %v2185, 0
        %v2189 = vmul.f32 %v702, %v2187
        %v2190 = vmul.f32 %v703, %v2187
        %v2191 = vmul.f32 %v704, %v2187
        %v2192 = vmul.f32 %v705, %v2187
        %v2193 = vmul.f32 %v706, %v2187
        %v2194 = vmul.f32 %v707, %v2187
        %v2195 = vmul.f32 %v708, %v2187
        %v2196 = vmul.f32 %v709, %v2187
        %v2197 = vmul.f32 %v710, %v2187
        %v2198 = vmul.f32 %v711, %v2187
        %v2199 = vmul.f32 %v712, %v2187
        %v2200 = vmul.f32 %v713, %v2187
        %v2201 = vmul.f32 %v714, %v2187
        %v2202 = vmul.f32 %v715, %v2187
        %v2203 = vmul.f32 %v716, %v2187
        %v2204 = vmul.f32 %v717, %v2187
        %v2205 = vmul.f32 %v718, %v2187
        %v2206 = vmul.f32 %v719, %v2187
        %v2207 = vmul.f32 %v720, %v2187
        %v2208 = vmul.f32 %v721, %v2187
        %v2209 = vmul.f32 %v722, %v2187
        %v2210 = vmul.f32 %v723, %v2187
        %v2211 = vmul.f32 %v724, %v2187
        %v2212 = vmul.f32 %v725, %v2187
        %v2213 = vmul.f32 %v726, %v2187
        %v2214 = vmul.f32 %v727, %v2187
        %v2215 = vmul.f32 %v728, %v2187
        %v2216 = vmul.f32 %v729, %v2187
        %v2217 = vmul.f32 %v730, %v2187
        %v2218 = vmul.f32 %v731, %v2187
        %v2219 = vmul.f32 %v732, %v2187
        %v2220 = vmul.f32 %v733, %v2187
        %v2221 = vld [vmem:[%s10] sm:$0x1]
        %v2223 = vperm.slane %v2221, 0
        %v2225 = vadd.f32 %v2189, %v2223
        %v2226 = vadd.f32 %v2190, %v2223
        %v2227 = vadd.f32 %v2191, %v2223
        %v2228 = vadd.f32 %v2192, %v2223
        %v2229 = vadd.f32 %v2193, %v2223
        %v2230 = vadd.f32 %v2194, %v2223
        %v2231 = vadd.f32 %v2195, %v2223
        %v2232 = vadd.f32 %v2196, %v2223
        %v2233 = vadd.f32 %v2197, %v2223
        %v2234 = vadd.f32 %v2198, %v2223
        %v2235 = vadd.f32 %v2199, %v2223
        %v2236 = vadd.f32 %v2200, %v2223
        %v2237 = vadd.f32 %v2201, %v2223
        %v2238 = vadd.f32 %v2202, %v2223
        %v2239 = vadd.f32 %v2203, %v2223
        %v2240 = vadd.f32 %v2204, %v2223
        %v2241 = vadd.f32 %v2205, %v2223
        %v2242 = vadd.f32 %v2206, %v2223
        %v2243 = vadd.f32 %v2207, %v2223
        %v2244 = vadd.f32 %v2208, %v2223
        %v2245 = vadd.f32 %v2209, %v2223
        %v2246 = vadd.f32 %v2210, %v2223
        %v2247 = vadd.f32 %v2211, %v2223
        %v2248 = vadd.f32 %v2212, %v2223
        %v2249 = vadd.f32 %v2213, %v2223
        %v2250 = vadd.f32 %v2214, %v2223
        %v2251 = vadd.f32 %v2215, %v2223
        %v2252 = vadd.f32 %v2216, %v2223
        %v2253 = vadd.f32 %v2217, %v2223
        %v2254 = vadd.f32 %v2218, %v2223
        %v2255 = vadd.f32 %v2219, %v2223
        %v2256 = vadd.f32 %v2220, %v2223
        %v2257 = vld [vmem:[%s8] sm:$0x3]
        %vm2258 = vcmask 31744
        %v2260 = vsel %vm2258, %v680, 0
        %v2263 = vsel %vm2258, %v681, 0
        %v2266 = vsel %vm2258, %v682, 0
        %v2269 = vsel %vm2258, %v683, 0
        %v2272 = vsel %vm2258, %v684, 0
        %v2275 = vsel %vm2258, %v685, 0
        %v2278 = vsel %vm2258, %v686, 0
        %v2281 = vsel %vm2258, %v687, 0
        %v2284 = vsel %vm2258, %v688, 0
        %v2287 = vsel %vm2258, %v689, 0
        %v2290 = vsel %vm2258, %v690, 0
        %v2293 = vsel %vm2258, %v691, 0
        %v2296 = vsel %vm2258, %v692, 0
        %v2299 = vsel %vm2258, %v693, 0
        %v2302 = vsel %vm2258, %v694, 0
        %v2305 = vsel %vm2258, %v695, 0
        %vm2307 = vcmask 1041408
        %v2309 = vsel %vm2307, %v2257, 0
        %2311 = vmatpush.bf16.msra.mxu0 0
        %2312 = vmatpush.bf16.msra.mxu0 0
        %2313 = vmatpush.bf16.msra.mxu0 0
        %2314 = vmatpush.bf16.msra.mxu0 0
        %2315 = vmatpush.bf16.msra.mxu0 0
        %2316 = vmatpush.bf16.msra.mxu0 0
        %2317 = vmatpush.bf16.msra.mxu0 0
        %2318 = vmatpush.bf16.msra.mxu0 %v2309
        %2319 = vmatmul.bf16.gmra.mxu0 %v2260
        %v2320 = vpop.f32.mrf.mxu0
        %v2321 = vadd.f32 0.0, %v2320
        %v2322 = vpop.f32.mrf.mxu0
        %v2323 = vadd.f32 0.0, %v2322
        %2324 = vmatmul.bf16.gmra.mxu0 %v2263
        %v2325 = vpop.f32.mrf.mxu0
        %v2326 = vadd.f32 0.0, %v2325
        %v2327 = vpop.f32.mrf.mxu0
        %v2328 = vadd.f32 0.0, %v2327
        %2329 = vmatmul.bf16.gmra.mxu0 %v2266
        %v2330 = vpop.f32.mrf.mxu0
        %v2331 = vadd.f32 0.0, %v2330
        %v2332 = vpop.f32.mrf.mxu0
        %v2333 = vadd.f32 0.0, %v2332
        %2334 = vmatmul.bf16.gmra.mxu0 %v2269
        %v2335 = vpop.f32.mrf.mxu0
        %v2336 = vadd.f32 0.0, %v2335
        %v2337 = vpop.f32.mrf.mxu0
        %v2338 = vadd.f32 0.0, %v2337
        %2339 = vmatmul.bf16.gmra.mxu0 %v2272
        %v2340 = vpop.f32.mrf.mxu0
        %v2341 = vadd.f32 0.0, %v2340
        %v2342 = vpop.f32.mrf.mxu0
        %v2343 = vadd.f32 0.0, %v2342
        %2344 = vmatmul.bf16.gmra.mxu0 %v2275
        %v2345 = vpop.f32.mrf.mxu0
        %v2346 = vadd.f32 0.0, %v2345
        %v2347 = vpop.f32.mrf.mxu0
        %v2348 = vadd.f32 0.0, %v2347
        %2349 = vmatmul.bf16.gmra.mxu0 %v2278
        %v2350 = vpop.f32.mrf.mxu0
        %v2351 = vadd.f32 0.0, %v2350
        %v2352 = vpop.f32.mrf.mxu0
        %v2353 = vadd.f32 0.0, %v2352
        %2354 = vmatmul.bf16.gmra.mxu0 %v2281
        %v2355 = vpop.f32.mrf.mxu0
        %v2356 = vadd.f32 0.0, %v2355
        %v2357 = vpop.f32.mrf.mxu0
        %v2358 = vadd.f32 0.0, %v2357
        %2359 = vmatmul.bf16.gmra.mxu0 %v2284
        %v2360 = vpop.f32.mrf.mxu0
        %v2361 = vadd.f32 0.0, %v2360
        %v2362 = vpop.f32.mrf.mxu0
        %v2363 = vadd.f32 0.0, %v2362
        %2364 = vmatmul.bf16.gmra.mxu0 %v2287
        %v2365 = vpop.f32.mrf.mxu0
        %v2366 = vadd.f32 0.0, %v2365
        %v2367 = vpop.f32.mrf.mxu0
        %v2368 = vadd.f32 0.0, %v2367
        %2369 = vmatmul.bf16.gmra.mxu0 %v2290
        %v2370 = vpop.f32.mrf.mxu0
        %v2371 = vadd.f32 0.0, %v2370
        %v2372 = vpop.f32.mrf.mxu0
        %v2373 = vadd.f32 0.0, %v2372
        %2374 = vmatmul.bf16.gmra.mxu0 %v2293
        %v2375 = vpop.f32.mrf.mxu0
        %v2376 = vadd.f32 0.0, %v2375
        %v2377 = vpop.f32.mrf.mxu0
        %v2378 = vadd.f32 0.0, %v2377
        %2379 = vmatmul.bf16.gmra.mxu0 %v2296
        %v2380 = vpop.f32.mrf.mxu0
        %v2381 = vadd.f32 0.0, %v2380
        %v2382 = vpop.f32.mrf.mxu0
        %v2383 = vadd.f32 0.0, %v2382
        %2384 = vmatmul.bf16.gmra.mxu0 %v2299
        %v2385 = vpop.f32.mrf.mxu0
        %v2386 = vadd.f32 0.0, %v2385
        %v2387 = vpop.f32.mrf.mxu0
        %v2388 = vadd.f32 0.0, %v2387
        %2389 = vmatmul.bf16.gmra.mxu0 %v2302
        %v2390 = vpop.f32.mrf.mxu0
        %v2391 = vadd.f32 0.0, %v2390
        %v2392 = vpop.f32.mrf.mxu0
        %v2393 = vadd.f32 0.0, %v2392
        %2394 = vmatmul.bf16.gmra.mxu0 %v2305
        %v2395 = vpop.f32.mrf.mxu0
        %v2396 = vadd.f32 0.0, %v2395
        %v2397 = vpop.f32.mrf.mxu0
        %v2398 = vadd.f32 0.0, %v2397
        %2399 = vdwg.mxu0
        %v2400 = vadd.f32 %v2225, %v2321
        %v2401 = vadd.f32 %v2226, %v2323
        %v2402 = vadd.f32 %v2227, %v2326
        %v2403 = vadd.f32 %v2228, %v2328
        %v2404 = vadd.f32 %v2229, %v2331
        %v2405 = vadd.f32 %v2230, %v2333
        %v2406 = vadd.f32 %v2231, %v2336
        %v2407 = vadd.f32 %v2232, %v2338
        %v2408 = vadd.f32 %v2233, %v2341
        %v2409 = vadd.f32 %v2234, %v2343
        %v2410 = vadd.f32 %v2235, %v2346
        %v2411 = vadd.f32 %v2236, %v2348
        %v2412 = vadd.f32 %v2237, %v2351
        %v2413 = vadd.f32 %v2238, %v2353
        %v2414 = vadd.f32 %v2239, %v2356
        %v2415 = vadd.f32 %v2240, %v2358
        %v2416 = vadd.f32 %v2241, %v2361
        %v2417 = vadd.f32 %v2242, %v2363
        %v2418 = vadd.f32 %v2243, %v2366
        %v2419 = vadd.f32 %v2244, %v2368
        %v2420 = vadd.f32 %v2245, %v2371
        %v2421 = vadd.f32 %v2246, %v2373
        %v2422 = vadd.f32 %v2247, %v2376
        %v2423 = vadd.f32 %v2248, %v2378
        %v2424 = vadd.f32 %v2249, %v2381
        %v2425 = vadd.f32 %v2250, %v2383
        %v2426 = vadd.f32 %v2251, %v2386
        %v2427 = vadd.f32 %v2252, %v2388
        %v2428 = vadd.f32 %v2253, %v2391
        %v2429 = vadd.f32 %v2254, %v2393
        %v2430 = vadd.f32 %v2255, %v2396
        %v2431 = vadd.f32 %v2256, %v2398
        %v2432 = vmax.f32 %v2400, 0.0
        %v2433 = vmax.f32 %v2401, 0.0
        %v2434 = vmax.f32 %v2402, 0.0
        %v2435 = vmax.f32 %v2403, 0.0
        %v2436 = vmax.f32 %v2404, 0.0
        %v2437 = vmax.f32 %v2405, 0.0
        %v2438 = vmax.f32 %v2406, 0.0
        %v2439 = vmax.f32 %v2407, 0.0
        %v2440 = vmax.f32 %v2408, 0.0
        %v2441 = vmax.f32 %v2409, 0.0
        %v2442 = vmax.f32 %v2410, 0.0
        %v2443 = vmax.f32 %v2411, 0.0
        %v2444 = vmax.f32 %v2412, 0.0
        %v2445 = vmax.f32 %v2413, 0.0
        %v2446 = vmax.f32 %v2414, 0.0
        %v2447 = vmax.f32 %v2415, 0.0
        %v2448 = vmax.f32 %v2416, 0.0
        %v2449 = vmax.f32 %v2417, 0.0
        %v2450 = vmax.f32 %v2418, 0.0
        %v2451 = vmax.f32 %v2419, 0.0
        %v2452 = vmax.f32 %v2420, 0.0
        %v2453 = vmax.f32 %v2421, 0.0
        %v2454 = vmax.f32 %v2422, 0.0
        %v2455 = vmax.f32 %v2423, 0.0
        %v2456 = vmax.f32 %v2424, 0.0
        %v2457 = vmax.f32 %v2425, 0.0
        %v2458 = vmax.f32 %v2426, 0.0
        %v2459 = vmax.f32 %v2427, 0.0
        %v2460 = vmax.f32 %v2428, 0.0
        %v2461 = vmax.f32 %v2429, 0.0
        %v2462 = vmax.f32 %v2430, 0.0
        %v2463 = vmax.f32 %v2431, 0.0
        %vm2464 = vcmask 130048
        %v2465 = vsel %vm2464, %v2432, 0.0
        %v2466 = vsel %vm2464, %v2434, 0.0
        %v2467 = vadd.f32 %v2465, %v2466
        %v2468 = vsel %vm2464, %v2436, 0.0
        %v2469 = vadd.f32 %v2467, %v2468
        %v2470 = vsel %vm2464, %v2438, 0.0
        %v2471 = vadd.f32 %v2469, %v2470
        %v2472 = vsel %vm2464, %v2440, 0.0
        %v2473 = vadd.f32 %v2471, %v2472
        %v2474 = vsel %vm2464, %v2442, 0.0
        %v2475 = vadd.f32 %v2473, %v2474
        %v2476 = vsel %vm2464, %v2444, 0.0
        %v2477 = vadd.f32 %v2475, %v2476
        %v2478 = vsel %vm2464, %v2446, 0.0
        %v2479 = vadd.f32 %v2477, %v2478
        %v2480 = vsel %vm2464, %v2448, 0.0
        %v2481 = vadd.f32 %v2479, %v2480
        %v2482 = vsel %vm2464, %v2450, 0.0
        %v2483 = vadd.f32 %v2481, %v2482
        %v2484 = vsel %vm2464, %v2452, 0.0
        %v2485 = vadd.f32 %v2483, %v2484
        %v2486 = vsel %vm2464, %v2454, 0.0
        %v2487 = vadd.f32 %v2485, %v2486
        %v2488 = vsel %vm2464, %v2456, 0.0
        %v2489 = vadd.f32 %v2487, %v2488
        %v2490 = vsel %vm2464, %v2458, 0.0
        %v2491 = vadd.f32 %v2489, %v2490
        %v2492 = vsel %vm2464, %v2460, 0.0
        %v2493 = vadd.f32 %v2491, %v2492
        %v2494 = vsel %vm2464, %v2462, 0.0
        %v2495 = vadd.f32 %v2493, %v2494
        %v2496 = vsel %vm2464, %v2433, 0.0
        %v2497 = vsel %vm2464, %v2435, 0.0
        %v2498 = vadd.f32 %v2496, %v2497
        %v2499 = vsel %vm2464, %v2437, 0.0
        %v2500 = vadd.f32 %v2498, %v2499
        %v2501 = vsel %vm2464, %v2439, 0.0
        %v2502 = vadd.f32 %v2500, %v2501
        %v2503 = vsel %vm2464, %v2441, 0.0
        %v2504 = vadd.f32 %v2502, %v2503
        %v2505 = vsel %vm2464, %v2443, 0.0
        %v2506 = vadd.f32 %v2504, %v2505
        %v2507 = vsel %vm2464, %v2445, 0.0
        %v2508 = vadd.f32 %v2506, %v2507
        %v2509 = vsel %vm2464, %v2447, 0.0
        %v2510 = vadd.f32 %v2508, %v2509
        %v2511 = vsel %vm2464, %v2449, 0.0
        %v2512 = vadd.f32 %v2510, %v2511
        %v2513 = vsel %vm2464, %v2451, 0.0
        %v2514 = vadd.f32 %v2512, %v2513
        %v2515 = vsel %vm2464, %v2453, 0.0
        %v2516 = vadd.f32 %v2514, %v2515
        %v2517 = vsel %vm2464, %v2455, 0.0
        %v2518 = vadd.f32 %v2516, %v2517
        %v2519 = vsel %vm2464, %v2457, 0.0
        %v2520 = vadd.f32 %v2518, %v2519
        %v2521 = vsel %vm2464, %v2459, 0.0
        %v2522 = vadd.f32 %v2520, %v2521
        %v2523 = vsel %vm2464, %v2461, 0.0
        %v2524 = vadd.f32 %v2522, %v2523
        %v2525 = vsel %vm2464, %v2463, 0.0
        %v2526 = vadd.f32 %v2524, %v2525
        %v2527 = vmul.f32 %v2495, 0.0625
        %v2528 = vmul.f32 %v2526, 0.0625
        %v2529 = vld [vmem:[%s11] sm:$0xff]
        %v2530 = vld [vmem:[%s11 + $0x8] sm:$0xff]
        %v2532 = vsel %vm2464, %v2527, 0
        %v2535 = vsel %vm2464, %v2528, 0
        %2537 = vmatpush.msra.mxu0 0.0
        %2538 = vmatpush.msra.mxu0 0.0
        %2539 = vmatpush.msra.mxu0 0.0
        %2540 = vmatpush.msra.mxu0 0.0
        %2541 = vmatpush.msra.mxu0 0.0
        %2542 = vmatpush.msra.mxu0 0.0
        %2543 = vmatpush.msra.mxu0 0.0
        %2544 = vmatpush.msra.mxu0 0.0
        %2545 = vmatpush.msra.mxu0 0.0
        %2546 = vmatpush.msra.mxu0 0.0
        %2547 = vmatpush.msra.mxu0 0.0
        %2548 = vmatpush.msra.mxu0 0.0
        %2549 = vmatpush.msra.mxu0 0.0
        %2550 = vmatpush.msra.mxu0 0.0
        %2551 = vmatpush.msra.mxu0 %v2530
        %2552 = vmatpush.msra.mxu0 %v2529
        %2553 = vmatmul.f32.gmra.mxu0 %v2532
        %v2554 = vpop.f32.mrf.mxu0
        %v2555 = vadd.f32 0.0, %v2554
        %2556 = vmatmul.f32.gmra.mxu0 %v2535
        %v2557 = vpop.f32.mrf.mxu0
        %v2558 = vadd.f32 0.0, %v2557
        %2559 = vdwg.mxu0
        %vm2562 = vcmask 1046528
        %v2563 = vrot.slane %v2555, 1
        %v2564 = vrot.slane %v2558, 1
        %v2565 = vsel %vm2562, %v2563, %v2564
        %v2569 = vsel %vm2562, 0.0, %v2563
        %v2570 = vsel %vm2562, %v2564, 0.0
        %v2571 = vadd.f32 %v2569, 0.0
        %v2572 = vadd.f32 %v2565, 0.0
        %v2575 = vrot.slane %v2569, 1
        %v2576 = vrot.slane %v2565, 1
        %v2577 = vsel %vm2562, %v2575, %v2576
        %v2578 = vrot.slane %v2570, 1
        %v2579 = vsel %vm2562, %v2576, %v2578
        %2580 = vrot.lane.b32.xlu0 %v2577, 127
        %v2581 = vpop.permute.xlu0 %2580
        %2582 = vrot.lane.b32.xlu0 %v2579, 127
        %v2583 = vpop.permute.xlu0 %2582
        %v2586 = vadd.f32 %v2571, %v2581
        %v2587 = vadd.f32 %v2572, %v2583
        %vm2588 = vcmask 1045504
        %v2589 = vrot.slane %v2569, 2
        %v2590 = vrot.slane %v2565, 2
        %v2591 = vsel %vm2588, %v2589, %v2590
        %v2592 = vrot.slane %v2570, 2
        %v2593 = vsel %vm2588, %v2590, %v2592
        %2594 = vrot.lane.b32.xlu0 %v2591, 126
        %v2595 = vpop.permute.xlu0 %2594
        %2596 = vrot.lane.b32.xlu0 %v2593, 126
        %v2597 = vpop.permute.xlu0 %2596
        %v2600 = vadd.f32 %v2586, %v2595
        %v2601 = vadd.f32 %v2587, %v2597
        %vm2602 = vcmask 1044480
        %v2603 = vrot.slane %v2569, 3
        %v2604 = vrot.slane %v2565, 3
        %v2605 = vsel %vm2602, %v2603, %v2604
        %v2606 = vrot.slane %v2570, 3
        %v2607 = vsel %vm2602, %v2604, %v2606
        %2608 = vrot.lane.b32.xlu0 %v2605, 125
        %v2609 = vpop.permute.xlu0 %2608
        %2610 = vrot.lane.b32.xlu0 %v2607, 125
        %v2611 = vpop.permute.xlu0 %2610
        %v2614 = vadd.f32 %v2600, %v2609
        %v2615 = vadd.f32 %v2601, %v2611
        %vm2616 = vcmask 1043456
        %v2617 = vrot.slane %v2569, 4
        %v2618 = vrot.slane %v2565, 4
        %v2619 = vsel %vm2616, %v2617, %v2618
        %v2620 = vrot.slane %v2570, 4
        %v2621 = vsel %vm2616, %v2618, %v2620
        %2622 = vrot.lane.b32.xlu0 %v2619, 124
        %v2623 = vpop.permute.xlu0 %2622
        %2624 = vrot.lane.b32.xlu0 %v2621, 124
        %v2625 = vpop.permute.xlu0 %2624
        %v2628 = vadd.f32 %v2614, %v2623
        %v2629 = vadd.f32 %v2615, %v2625
        %vm2630 = vcmask 1042432
        %v2631 = vrot.slane %v2569, 5
        %v2632 = vrot.slane %v2565, 5
        %v2633 = vsel %vm2630, %v2631, %v2632
        %v2634 = vrot.slane %v2570, 5
        %v2635 = vsel %vm2630, %v2632, %v2634
        %2636 = vrot.lane.b32.xlu0 %v2633, 123
        %v2637 = vpop.permute.xlu0 %2636
        %2638 = vrot.lane.b32.xlu0 %v2635, 123
        %v2639 = vpop.permute.xlu0 %2638
        %v2642 = vadd.f32 %v2628, %v2637
        %v2643 = vadd.f32 %v2629, %v2639
        %v2644 = vrot.slane %v2569, 6
        %v2645 = vrot.slane %v2565, 6
        %v2646 = vsel %vm2307, %v2644, %v2645
        %v2647 = vrot.slane %v2570, 6
        %v2648 = vsel %vm2307, %v2645, %v2647
        %2649 = vrot.lane.b32.xlu0 %v2646, 122
        %v2650 = vpop.permute.xlu0 %2649
        %2651 = vrot.lane.b32.xlu0 %v2648, 122
        %v2652 = vpop.permute.xlu0 %2651
        %v2655 = vadd.f32 %v2642, %v2650
        %v2656 = vadd.f32 %v2643, %v2652
        %vm2657 = vcmask 1040384
        %v2658 = vrot.slane %v2569, 7
        %v2659 = vrot.slane %v2565, 7
        %v2660 = vsel %vm2657, %v2658, %v2659
        %v2661 = vrot.slane %v2570, 7
        %v2662 = vsel %vm2657, %v2659, %v2661
        %2663 = vrot.lane.b32.xlu0 %v2660, 121
        %v2664 = vpop.permute.xlu0 %2663
        %2665 = vrot.lane.b32.xlu0 %v2662, 121
        %v2666 = vpop.permute.xlu0 %2665
        %v2669 = vadd.f32 %v2655, %v2664
        %v2670 = vadd.f32 %v2656, %v2666
        %2671 = vrot.lane.b32.xlu0 %v2565, 120
        %v2672 = vpop.permute.xlu0 %2671
        %2673 = vrot.lane.b32.xlu0 %v2570, 120
        %v2674 = vpop.permute.xlu0 %2673
        %v2677 = vadd.f32 %v2669, %v2672
        %v2678 = vadd.f32 %v2670, %v2674
        %v2680 = vrot.slane 0.0, 1
        %v2681 = vsel %vm2562, %v2578, %v2680
        %2682 = vrot.lane.b32.xlu0 %v2579, 119
        %v2683 = vpop.permute.xlu0 %2682
        %2684 = vrot.lane.b32.xlu0 %v2681, 119
        %v2685 = vpop.permute.xlu0 %2684
        %v2688 = vadd.f32 %v2677, %v2683
        %v2689 = vadd.f32 %v2678, %v2685
        %v2690 = vrot.slane 0.0, 2
        %v2691 = vsel %vm2588, %v2592, %v2690
        %2692 = vrot.lane.b32.xlu0 %v2593, 118
        %v2693 = vpop.permute.xlu0 %2692
        %2694 = vrot.lane.b32.xlu0 %v2691, 118
        %v2695 = vpop.permute.xlu0 %2694
        %v2698 = vadd.f32 %v2688, %v2693
        %v2699 = vadd.f32 %v2689, %v2695
        %v2700 = vrot.slane 0.0, 3
        %v2701 = vsel %vm2602, %v2606, %v2700
        %2702 = vrot.lane.b32.xlu0 %v2607, 117
        %v2703 = vpop.permute.xlu0 %2702
        %2704 = vrot.lane.b32.xlu0 %v2701, 117
        %v2705 = vpop.permute.xlu0 %2704
        %v2708 = vadd.f32 %v2698, %v2703
        %v2709 = vadd.f32 %v2699, %v2705
        %v2710 = vrot.slane 0.0, 4
        %v2711 = vsel %vm2616, %v2620, %v2710
        %2712 = vrot.lane.b32.xlu0 %v2621, 116
        %v2713 = vpop.permute.xlu0 %2712
        %2714 = vrot.lane.b32.xlu0 %v2711, 116
        %v2715 = vpop.permute.xlu0 %2714
        %v2718 = vadd.f32 %v2708, %v2713
        %v2719 = vadd.f32 %v2709, %v2715
        %v2720 = vrot.slane 0.0, 5
        %v2721 = vsel %vm2630, %v2634, %v2720
        %2722 = vrot.lane.b32.xlu0 %v2635, 115
        %v2723 = vpop.permute.xlu0 %2722
        %2724 = vrot.lane.b32.xlu0 %v2721, 115
        %v2725 = vpop.permute.xlu0 %2724
        %v2728 = vadd.f32 %v2718, %v2723
        %v2729 = vadd.f32 %v2719, %v2725
        %v2730 = vrot.slane 0.0, 6
        %v2731 = vsel %vm2307, %v2647, %v2730
        %2732 = vrot.lane.b32.xlu0 %v2648, 114
        %v2733 = vpop.permute.xlu0 %2732
        %2734 = vrot.lane.b32.xlu0 %v2731, 114
        %v2735 = vpop.permute.xlu0 %2734
        %v2738 = vadd.f32 %v2728, %v2733
        %v2739 = vadd.f32 %v2729, %v2735
        %v2740 = vstv %s646
        %v2741 = vadd.f32 %v2738, %v2740
        %v2742 = vadd.f32 %v2739, %v2740
        %v2743 = vxor.u32 %v2741, 2147483648
        %v2744 = vxor.u32 %v2742, 2147483648
        %v2745 = vmul.f32 %v2743, 1.442695
        %v2746 = vpow.pop %v2745
        %v2747 = vmul.f32 %v2744, 1.442695
        %v2748 = vpow.pop %v2747
        %v2749 = vadd.f32 %v2746, 1.0
        %v2750 = vadd.f32 %v2748, 1.0
        %v2751 = vrcp.pop %v2749
        %v2752 = vmul.f32 %v2749, %v2751
        %v2753 = vsub.f32 1.0, %v2752
        %v2754 = vmul.f32 %v2751, %v2753
        %v2755 = vadd.f32 %v2751, %v2754
        %vm2756 = vweird.f32 %v2749
        %vm2757 = vweird.f32 %v2751
        %vm2758 = vmor %vm2756, %vm2757
        %v2759 = vsel %vm2758, %v2751, %v2755
        %v2760 = vand.u32 2147483647, %v2749
        %vm2761 = vcmp.eq.f32.partialorder %v2760, 8.507059e+37
        %v2762 = vand.u32 %v2749, 2147483648
        %v2763 = vor.u32 1.1754944e-38, %v2762
        %v2764 = vsel %vm2761, %v2763, %v2759
        %v2765 = vmul.f32 1.0, %v2764
        %v2766 = vrcp.pop %v2750
        %v2767 = vmul.f32 %v2750, %v2766
        %v2768 = vsub.f32 1.0, %v2767
        %v2769 = vmul.f32 %v2766, %v2768
        %v2770 = vadd.f32 %v2766, %v2769
        %vm2771 = vweird.f32 %v2750
        %vm2772 = vweird.f32 %v2766
        %vm2773 = vmor %vm2771, %vm2772
        %v2774 = vsel %vm2773, %v2766, %v2770
        %v2775 = vand.u32 2147483647, %v2750
        %vm2776 = vcmp.eq.f32.partialorder %v2775, 8.507059e+37
        %v2777 = vand.u32 %v2750, 2147483648
        %v2778 = vor.u32 1.1754944e-38, %v2777
        %v2779 = vsel %vm2776, %v2778, %v2774
        %v2780 = vmul.f32 1.0, %v2779
        %v2781 = vadd.f32 %v2765, 1.0
        %v2782 = vadd.f32 %v2780, 1.0
        %2784 = vset.pattern.permute.xlu0 0
        %2785 = vperm.xlu0 %2784, %v2781
        %v2786 = vpop.permute.xlu0 %2785
        %2789 = vset.pattern.permute.xlu0 0
        %2790 = vperm.xlu0 %2789, %v2782
        %v2791 = vpop.permute.xlu0 %2790
        %v2793 = vmul.f32 %v2432, %v2786
        %v2794 = vmul.f32 %v2433, %v2791
        %v2795 = vmul.f32 %v2434, %v2786
        %v2796 = vmul.f32 %v2435, %v2791
        %v2797 = vmul.f32 %v2436, %v2786
        %v2798 = vmul.f32 %v2437, %v2791
        %v2799 = vmul.f32 %v2438, %v2786
        %v2800 = vmul.f32 %v2439, %v2791
        %v2801 = vmul.f32 %v2440, %v2786
        %v2802 = vmul.f32 %v2441, %v2791
        %v2803 = vmul.f32 %v2442, %v2786
        %v2804 = vmul.f32 %v2443, %v2791
        %v2805 = vmul.f32 %v2444, %v2786
        %v2806 = vmul.f32 %v2445, %v2791
        %v2807 = vmul.f32 %v2446, %v2786
        %v2808 = vmul.f32 %v2447, %v2791
        %v2809 = vmul.f32 %v2448, %v2786
        %v2810 = vmul.f32 %v2449, %v2791
        %v2811 = vmul.f32 %v2450, %v2786
        %v2812 = vmul.f32 %v2451, %v2791
        %v2813 = vmul.f32 %v2452, %v2786
        %v2814 = vmul.f32 %v2453, %v2791
        %v2815 = vmul.f32 %v2454, %v2786
        %v2816 = vmul.f32 %v2455, %v2791
        %v2817 = vmul.f32 %v2456, %v2786
        %v2818 = vmul.f32 %v2457, %v2791
        %v2819 = vmul.f32 %v2458, %v2786
        %v2820 = vmul.f32 %v2459, %v2791
        %v2821 = vmul.f32 %v2460, %v2786
        %v2822 = vmul.f32 %v2461, %v2791
        %v2823 = vmul.f32 %v2462, %v2786
        %v2824 = vmul.f32 %v2463, %v2791
        %v2825 = vsel %vm2464, %v2793, 0.0
        %v2826 = vsel %vm2464, %v2794, 0.0
        %v2827 = vadd.f32 %v2825, %v2826
        %v2828 = vrot.slane %v2827, 4
        %v2829 = vadd.f32 %v2827, %v2828
        %v2830 = vrot.slane %v2829, 2
        %v2831 = vadd.f32 %v2829, %v2830
        %v2832 = vrot.slane %v2831, 1
        %v2833 = vadd.f32 %v2831, %v2832
        %v2834 = vsel %vm2464, %v2795, 0.0
        %v2835 = vsel %vm2464, %v2796, 0.0
        %v2836 = vadd.f32 %v2834, %v2835
        %v2837 = vrot.slane %v2836, 4
        %v2838 = vadd.f32 %v2836, %v2837
        %v2839 = vrot.slane %v2838, 2
        %v2840 = vadd.f32 %v2838, %v2839
        %v2841 = vrot.slane %v2840, 1
        %v2842 = vadd.f32 %v2840, %v2841
        %v2843 = vsel %vm2464, %v2797, 0.0
        %v2844 = vsel %vm2464, %v2798, 0.0
        %v2845 = vadd.f32 %v2843, %v2844
        %v2846 = vrot.slane %v2845, 4
        %v2847 = vadd.f32 %v2845, %v2846
        %v2848 = vrot.slane %v2847, 2
        %v2849 = vadd.f32 %v2847, %v2848
        %v2850 = vrot.slane %v2849, 1
        %v2851 = vadd.f32 %v2849, %v2850
        %v2852 = vsel %vm2464, %v2799, 0.0
        %v2853 = vsel %vm2464, %v2800, 0.0
        %v2854 = vadd.f32 %v2852, %v2853
        %v2855 = vrot.slane %v2854, 4
        %v2856 = vadd.f32 %v2854, %v2855
        %v2857 = vrot.slane %v2856, 2
        %v2858 = vadd.f32 %v2856, %v2857
        %v2859 = vrot.slane %v2858, 1
        %v2860 = vadd.f32 %v2858, %v2859
        %v2861 = vsel %vm2464, %v2801, 0.0
        %v2862 = vsel %vm2464, %v2802, 0.0
        %v2863 = vadd.f32 %v2861, %v2862
        %v2864 = vrot.slane %v2863, 4
        %v2865 = vadd.f32 %v2863, %v2864
        %v2866 = vrot.slane %v2865, 2
        %v2867 = vadd.f32 %v2865, %v2866
        %v2868 = vrot.slane %v2867, 1
        %v2869 = vadd.f32 %v2867, %v2868
        %v2870 = vsel %vm2464, %v2803, 0.0
        %v2871 = vsel %vm2464, %v2804, 0.0
        %v2872 = vadd.f32 %v2870, %v2871
        %v2873 = vrot.slane %v2872, 4
        %v2874 = vadd.f32 %v2872, %v2873
        %v2875 = vrot.slane %v2874, 2
        %v2876 = vadd.f32 %v2874, %v2875
        %v2877 = vrot.slane %v2876, 1
        %v2878 = vadd.f32 %v2876, %v2877
        %v2879 = vsel %vm2464, %v2805, 0.0
        %v2880 = vsel %vm2464, %v2806, 0.0
        %v2881 = vadd.f32 %v2879, %v2880
        %v2882 = vrot.slane %v2881, 4
        %v2883 = vadd.f32 %v2881, %v2882
        %v2884 = vrot.slane %v2883, 2
        %v2885 = vadd.f32 %v2883, %v2884
        %v2886 = vrot.slane %v2885, 1
        %v2887 = vadd.f32 %v2885, %v2886
        %v2888 = vsel %vm2464, %v2807, 0.0
        %v2889 = vsel %vm2464, %v2808, 0.0
        %v2890 = vadd.f32 %v2888, %v2889
        %v2891 = vrot.slane %v2890, 4
        %v2892 = vadd.f32 %v2890, %v2891
        %v2893 = vrot.slane %v2892, 2
        %v2894 = vadd.f32 %v2892, %v2893
        %v2895 = vrot.slane %v2894, 1
        %v2896 = vadd.f32 %v2894, %v2895
        %v2897 = vsel %vm2464, %v2809, 0.0
        %v2898 = vsel %vm2464, %v2810, 0.0
        %v2899 = vadd.f32 %v2897, %v2898
        %v2900 = vrot.slane %v2899, 4
        %v2901 = vadd.f32 %v2899, %v2900
        %v2902 = vrot.slane %v2901, 2
        %v2903 = vadd.f32 %v2901, %v2902
        %v2904 = vrot.slane %v2903, 1
        %v2905 = vadd.f32 %v2903, %v2904
        %v2906 = vsel %vm2464, %v2811, 0.0
        %v2907 = vsel %vm2464, %v2812, 0.0
        %v2908 = vadd.f32 %v2906, %v2907
        %v2909 = vrot.slane %v2908, 4
        %v2910 = vadd.f32 %v2908, %v2909
        %v2911 = vrot.slane %v2910, 2
        %v2912 = vadd.f32 %v2910, %v2911
        %v2913 = vrot.slane %v2912, 1
        %v2914 = vadd.f32 %v2912, %v2913
        %v2915 = vsel %vm2464, %v2813, 0.0
        %v2916 = vsel %vm2464, %v2814, 0.0
        %v2917 = vadd.f32 %v2915, %v2916
        %v2918 = vrot.slane %v2917, 4
        %v2919 = vadd.f32 %v2917, %v2918
        %v2920 = vrot.slane %v2919, 2
        %v2921 = vadd.f32 %v2919, %v2920
        %v2922 = vrot.slane %v2921, 1
        %v2923 = vadd.f32 %v2921, %v2922
        %v2924 = vsel %vm2464, %v2815, 0.0
        %v2925 = vsel %vm2464, %v2816, 0.0
        %v2926 = vadd.f32 %v2924, %v2925
        %v2927 = vrot.slane %v2926, 4
        %v2928 = vadd.f32 %v2926, %v2927
        %v2929 = vrot.slane %v2928, 2
        %v2930 = vadd.f32 %v2928, %v2929
        %v2931 = vrot.slane %v2930, 1
        %v2932 = vadd.f32 %v2930, %v2931
        %v2933 = vsel %vm2464, %v2817, 0.0
        %v2934 = vsel %vm2464, %v2818, 0.0
        %v2935 = vadd.f32 %v2933, %v2934
        %v2936 = vrot.slane %v2935, 4
        %v2937 = vadd.f32 %v2935, %v2936
        %v2938 = vrot.slane %v2937, 2
        %v2939 = vadd.f32 %v2937, %v2938
        %v2940 = vrot.slane %v2939, 1
        %v2941 = vadd.f32 %v2939, %v2940
        %v2942 = vsel %vm2464, %v2819, 0.0
        %v2943 = vsel %vm2464, %v2820, 0.0
        %v2944 = vadd.f32 %v2942, %v2943
        %v2945 = vrot.slane %v2944, 4
        %v2946 = vadd.f32 %v2944, %v2945
        %v2947 = vrot.slane %v2946, 2
        %v2948 = vadd.f32 %v2946, %v2947
        %v2949 = vrot.slane %v2948, 1
        %v2950 = vadd.f32 %v2948, %v2949
        %v2951 = vsel %vm2464, %v2821, 0.0
        %v2952 = vsel %vm2464, %v2822, 0.0
        %v2953 = vadd.f32 %v2951, %v2952
        %v2954 = vrot.slane %v2953, 4
        %v2955 = vadd.f32 %v2953, %v2954
        %v2956 = vrot.slane %v2955, 2
        %v2957 = vadd.f32 %v2955, %v2956
        %v2958 = vrot.slane %v2957, 1
        %v2959 = vadd.f32 %v2957, %v2958
        %v2960 = vsel %vm2464, %v2823, 0.0
        %v2961 = vsel %vm2464, %v2824, 0.0
        %v2962 = vadd.f32 %v2960, %v2961
        %v2963 = vrot.slane %v2962, 4
        %v2964 = vadd.f32 %v2962, %v2963
        %v2965 = vrot.slane %v2964, 2
        %v2966 = vadd.f32 %v2964, %v2965
        %v2967 = vrot.slane %v2966, 1
        %v2968 = vadd.f32 %v2966, %v2967
        %v2969 = vmul.f32 %v2833, 0.0625
        %v2970 = vmul.f32 %v2842, 0.0625
        %v2971 = vmul.f32 %v2851, 0.0625
        %v2972 = vmul.f32 %v2860, 0.0625
        %v2973 = vmul.f32 %v2869, 0.0625
        %v2974 = vmul.f32 %v2878, 0.0625
        %v2975 = vmul.f32 %v2887, 0.0625
        %v2976 = vmul.f32 %v2896, 0.0625
        %v2977 = vmul.f32 %v2905, 0.0625
        %v2978 = vmul.f32 %v2914, 0.0625
        %v2979 = vmul.f32 %v2923, 0.0625
        %v2980 = vmul.f32 %v2932, 0.0625
        %v2981 = vmul.f32 %v2941, 0.0625
        %v2982 = vmul.f32 %v2950, 0.0625
        %v2983 = vmul.f32 %v2959, 0.0625
        %v2984 = vmul.f32 %v2968, 0.0625
        %v2985 = vld [vmem:[%s12] sm:$0xff]
        %v2986 = vld [vmem:[%s12 + $0x8] sm:$0xff]
        %vm3003 = vcmask 1041409
        %v3004 = vsel %vm3003, %v2970, %v2969
        %vm3005 = vcmask 1042434
        %v3006 = vsel %vm3005, %v2971, %v3004
        %vm3007 = vcmask 1043459
        %v3008 = vsel %vm3007, %v2972, %v3006
        %vm3009 = vcmask 1044484
        %v3010 = vsel %vm3009, %v2973, %v3008
        %vm3011 = vcmask 1045509
        %v3012 = vsel %vm3011, %v2974, %v3010
        %vm3013 = vcmask 1046534
        %v3014 = vsel %vm3013, %v2975, %v3012
        %vm3015 = vcmask 1047559
        %v3016 = vsel %vm3015, %v2976, %v3014
        %v3017 = vsel %vm3003, %v2978, %v2977
        %v3018 = vsel %vm3005, %v2979, %v3017
        %v3019 = vsel %vm3007, %v2980, %v3018
        %v3020 = vsel %vm3009, %v2981, %v3019
        %v3021 = vsel %vm3011, %v2982, %v3020
        %v3022 = vsel %vm3013, %v2983, %v3021
        %v3023 = vsel %vm3015, %v2984, %v3022
        %v3024 = vsel %vm2464, %v3016, 0
        %v3026 = vsel %vm2464, %v3023, 0
        %3028 = vmatpush.msra.mxu0 0.0
        %3029 = vmatpush.msra.mxu0 0.0
        %3030 = vmatpush.msra.mxu0 0.0
        %3031 = vmatpush.msra.mxu0 0.0
        %3032 = vmatpush.msra.mxu0 0.0
        %3033 = vmatpush.msra.mxu0 0.0
        %3034 = vmatpush.msra.mxu0 0.0
        %3035 = vmatpush.msra.mxu0 0.0
        %3036 = vmatpush.msra.mxu0 0.0
        %3037 = vmatpush.msra.mxu0 0.0
        %3038 = vmatpush.msra.mxu0 0.0
        %3039 = vmatpush.msra.mxu0 0.0
        %3040 = vmatpush.msra.mxu0 0.0
        %3041 = vmatpush.msra.mxu0 0.0
        %3042 = vmatpush.msra.mxu0 %v2986
        %3043 = vmatpush.msra.mxu0 %v2985
        %3044 = vmatmul.f32.gmra.mxu0 %v3024
        %v3045 = vpop.f32.mrf.mxu0
        %v3046 = vadd.f32 0.0, %v3045
        %3047 = vmatmul.f32.gmra.mxu0 %v3026
        %v3048 = vpop.f32.mrf.mxu0
        %v3049 = vadd.f32 0.0, %v3048
        %3050 = vdwg.mxu0
        %v3053 = vrot.slane %v3046, 4
        %v3054 = vrot.slane %v3049, 4
        %v3055 = vsel %vm2616, %v3053, %v3054
        %v3059 = vsel %vm2616, 0.0, %v3053
        %v3060 = vsel %vm2616, %v3054, 0.0
        %v3061 = vadd.f32 %v3059, 0.0
        %v3062 = vadd.f32 %v3055, 0.0
        %v3065 = vrot.slane %v3059, 1
        %v3066 = vrot.slane %v3055, 1
        %v3067 = vsel %vm2562, %v3065, %v3066
        %v3068 = vrot.slane %v3060, 1
        %v3069 = vsel %vm2562, %v3066, %v3068
        %3070 = vrot.lane.b32.xlu0 %v3067, 127
        %v3071 = vpop.permute.xlu0 %3070
        %3072 = vrot.lane.b32.xlu0 %v3069, 127
        %v3073 = vpop.permute.xlu0 %3072
        %v3076 = vadd.f32 %v3061, %v3071
        %v3077 = vadd.f32 %v3062, %v3073
        %v3078 = vrot.slane %v3059, 2
        %v3079 = vrot.slane %v3055, 2
        %v3080 = vsel %vm2588, %v3078, %v3079
        %v3081 = vrot.slane %v3060, 2
        %v3082 = vsel %vm2588, %v3079, %v3081
        %3083 = vrot.lane.b32.xlu0 %v3080, 126
        %v3084 = vpop.permute.xlu0 %3083
        %3085 = vrot.lane.b32.xlu0 %v3082, 126
        %v3086 = vpop.permute.xlu0 %3085
        %v3089 = vadd.f32 %v3076, %v3084
        %v3090 = vadd.f32 %v3077, %v3086
        %v3091 = vrot.slane %v3059, 3
        %v3092 = vrot.slane %v3055, 3
        %v3093 = vsel %vm2602, %v3091, %v3092
        %v3094 = vrot.slane %v3060, 3
        %v3095 = vsel %vm2602, %v3092, %v3094
        %3096 = vrot.lane.b32.xlu0 %v3093, 125
        %v3097 = vpop.permute.xlu0 %3096
        %3098 = vrot.lane.b32.xlu0 %v3095, 125
        %v3099 = vpop.permute.xlu0 %3098
        %v3102 = vadd.f32 %v3089, %v3097
        %v3103 = vadd.f32 %v3090, %v3099
        %v3104 = vrot.slane %v3059, 4
        %v3105 = vrot.slane %v3055, 4
        %v3106 = vsel %vm2616, %v3104, %v3105
        %v3107 = vrot.slane %v3060, 4
        %v3108 = vsel %vm2616, %v3105, %v3107
        %3109 = vrot.lane.b32.xlu0 %v3106, 124
        %v3110 = vpop.permute.xlu0 %3109
        %3111 = vrot.lane.b32.xlu0 %v3108, 124
        %v3112 = vpop.permute.xlu0 %3111
        %v3115 = vadd.f32 %v3102, %v3110
        %v3116 = vadd.f32 %v3103, %v3112
        %v3117 = vrot.slane %v3059, 5
        %v3118 = vrot.slane %v3055, 5
        %v3119 = vsel %vm2630, %v3117, %v3118
        %v3120 = vrot.slane %v3060, 5
        %v3121 = vsel %vm2630, %v3118, %v3120
        %3122 = vrot.lane.b32.xlu0 %v3119, 123
        %v3123 = vpop.permute.xlu0 %3122
        %3124 = vrot.lane.b32.xlu0 %v3121, 123
        %v3125 = vpop.permute.xlu0 %3124
        %v3128 = vadd.f32 %v3115, %v3123
        %v3129 = vadd.f32 %v3116, %v3125
        %v3130 = vrot.slane %v3059, 6
        %v3131 = vrot.slane %v3055, 6
        %v3132 = vsel %vm2307, %v3130, %v3131
        %v3133 = vrot.slane %v3060, 6
        %v3134 = vsel %vm2307, %v3131, %v3133
        %3135 = vrot.lane.b32.xlu0 %v3132, 122
        %v3136 = vpop.permute.xlu0 %3135
        %3137 = vrot.lane.b32.xlu0 %v3134, 122
        %v3138 = vpop.permute.xlu0 %3137
        %v3141 = vadd.f32 %v3128, %v3136
        %v3142 = vadd.f32 %v3129, %v3138
        %v3143 = vrot.slane %v3059, 7
        %v3144 = vrot.slane %v3055, 7
        %v3145 = vsel %vm2657, %v3143, %v3144
        %v3146 = vrot.slane %v3060, 7
        %v3147 = vsel %vm2657, %v3144, %v3146
        %3148 = vrot.lane.b32.xlu0 %v3145, 121
        %v3149 = vpop.permute.xlu0 %3148
        %3150 = vrot.lane.b32.xlu0 %v3147, 121
        %v3151 = vpop.permute.xlu0 %3150
        %v3154 = vadd.f32 %v3141, %v3149
        %v3155 = vadd.f32 %v3142, %v3151
        %3156 = vrot.lane.b32.xlu0 %v3055, 120
        %v3157 = vpop.permute.xlu0 %3156
        %3158 = vrot.lane.b32.xlu0 %v3060, 120
        %v3159 = vpop.permute.xlu0 %3158
        %v3162 = vadd.f32 %v3154, %v3157
        %v3163 = vadd.f32 %v3155, %v3159
        %v3164 = vstv %s647
        %v3165 = vadd.f32 %v3162, %v3164
        %v3166 = vadd.f32 %v3163, %v3164
        %v3167 = vxor.u32 %v3165, 2147483648
        %v3168 = vxor.u32 %v3166, 2147483648
        %v3169 = vmul.f32 %v3167, 1.442695
        %v3170 = vpow.pop %v3169
        %v3171 = vmul.f32 %v3168, 1.442695
        %v3172 = vpow.pop %v3171
        %v3173 = vadd.f32 %v3170, 1.0
        %v3174 = vadd.f32 %v3172, 1.0
        %v3175 = vrcp.pop %v3173
        %v3176 = vmul.f32 %v3173, %v3175
        %v3177 = vsub.f32 1.0, %v3176
        %v3178 = vmul.f32 %v3175, %v3177
        %v3179 = vadd.f32 %v3175, %v3178
        %vm3180 = vweird.f32 %v3173
        %vm3181 = vweird.f32 %v3175
        %vm3182 = vmor %vm3180, %vm3181
        %v3183 = vsel %vm3182, %v3175, %v3179
        %v3184 = vand.u32 2147483647, %v3173
        %vm3185 = vcmp.eq.f32.partialorder %v3184, 8.507059e+37
        %v3186 = vand.u32 %v3173, 2147483648
        %v3187 = vor.u32 1.1754944e-38, %v3186
        %v3188 = vsel %vm3185, %v3187, %v3183
        %v3189 = vmul.f32 1.0, %v3188
        %v3190 = vrcp.pop %v3174
        %v3191 = vmul.f32 %v3174, %v3190
        %v3192 = vsub.f32 1.0, %v3191
        %v3193 = vmul.f32 %v3190, %v3192
        %v3194 = vadd.f32 %v3190, %v3193
        %vm3195 = vweird.f32 %v3174
        %vm3196 = vweird.f32 %v3190
        %vm3197 = vmor %vm3195, %vm3196
        %v3198 = vsel %vm3197, %v3190, %v3194
        %v3199 = vand.u32 2147483647, %v3174
        %vm3200 = vcmp.eq.f32.partialorder %v3199, 8.507059e+37
        %v3201 = vand.u32 %v3174, 2147483648
        %v3202 = vor.u32 1.1754944e-38, %v3201
        %v3203 = vsel %vm3200, %v3202, %v3198
        %v3204 = vmul.f32 1.0, %v3203
        %v3207 = vrot.slane %v3189, 1
        %v3208 = vrot.slane %v3189, 2
        %v3209 = vrot.slane %v3189, 3
        %v3210 = vrot.slane %v3189, 4
        %v3211 = vrot.slane %v3189, 5
        %v3212 = vrot.slane %v3189, 6
        %v3213 = vrot.slane %v3189, 7
        %v3214 = vrot.slane %v3204, 1
        %v3215 = vrot.slane %v3204, 2
        %v3216 = vrot.slane %v3204, 3
        %v3217 = vrot.slane %v3204, 4
        %v3218 = vrot.slane %v3204, 5
        %v3219 = vrot.slane %v3204, 6
        %v3220 = vrot.slane %v3204, 7
        %v3235 = vadd.f32 %v3189, 1.0
        %v3236 = vadd.f32 %v3207, 1.0
        %v3237 = vadd.f32 %v3208, 1.0
        %v3238 = vadd.f32 %v3209, 1.0
        %v3239 = vadd.f32 %v3210, 1.0
        %v3240 = vadd.f32 %v3211, 1.0
        %v3241 = vadd.f32 %v3212, 1.0
        %v3242 = vadd.f32 %v3213, 1.0
        %v3243 = vadd.f32 %v3204, 1.0
        %v3244 = vadd.f32 %v3214, 1.0
        %v3245 = vadd.f32 %v3215, 1.0
        %v3246 = vadd.f32 %v3216, 1.0
        %v3247 = vadd.f32 %v3217, 1.0
        %v3248 = vadd.f32 %v3218, 1.0
        %v3249 = vadd.f32 %v3219, 1.0
        %v3250 = vadd.f32 %v3220, 1.0
        %v3267 = vperm.slane %v3235, 0
        %v3268 = vperm.slane %v3236, 0
        %v3269 = vperm.slane %v3237, 0
        %v3270 = vperm.slane %v3238, 0
        %v3271 = vperm.slane %v3239, 0
        %v3272 = vperm.slane %v3240, 0
        %v3273 = vperm.slane %v3241, 0
        %v3274 = vperm.slane %v3242, 0
        %v3275 = vperm.slane %v3243, 0
        %v3276 = vperm.slane %v3244, 0
        %v3277 = vperm.slane %v3245, 0
        %v3278 = vperm.slane %v3246, 0
        %v3279 = vperm.slane %v3247, 0
        %v3280 = vperm.slane %v3248, 0
        %v3281 = vperm.slane %v3249, 0
        %v3282 = vperm.slane %v3250, 0
        %3283 = vset.pattern.permute.xlu0 0
        %3284 = vperm.xlu0 %3283, %v3267
        %v3285 = vpop.permute.xlu0 %3284
        %3287 = vset.pattern.permute.xlu0 0
        %3288 = vperm.xlu0 %3287, %v3268
        %v3289 = vpop.permute.xlu0 %3288
        %3291 = vset.pattern.permute.xlu0 0
        %3292 = vperm.xlu0 %3291, %v3269
        %v3293 = vpop.permute.xlu0 %3292
        %3295 = vset.pattern.permute.xlu0 0
        %3296 = vperm.xlu0 %3295, %v3270
        %v3297 = vpop.permute.xlu0 %3296
        %3299 = vset.pattern.permute.xlu0 0
        %3300 = vperm.xlu0 %3299, %v3271
        %v3301 = vpop.permute.xlu0 %3300
        %3303 = vset.pattern.permute.xlu0 0
        %3304 = vperm.xlu0 %3303, %v3272
        %v3305 = vpop.permute.xlu0 %3304
        %3307 = vset.pattern.permute.xlu0 0
        %3308 = vperm.xlu0 %3307, %v3273
        %v3309 = vpop.permute.xlu0 %3308
        %3311 = vset.pattern.permute.xlu0 0
        %3312 = vperm.xlu0 %3311, %v3274
        %v3313 = vpop.permute.xlu0 %3312
        %3315 = vset.pattern.permute.xlu0 0
        %3316 = vperm.xlu0 %3315, %v3275
        %v3317 = vpop.permute.xlu0 %3316
        %3319 = vset.pattern.permute.xlu0 0
        %3320 = vperm.xlu0 %3319, %v3276
        %v3321 = vpop.permute.xlu0 %3320
        %3323 = vset.pattern.permute.xlu0 0
        %3324 = vperm.xlu0 %3323, %v3277
        %v3325 = vpop.permute.xlu0 %3324
        %3327 = vset.pattern.permute.xlu0 0
        %3328 = vperm.xlu0 %3327, %v3278
        %v3329 = vpop.permute.xlu0 %3328
        %3331 = vset.pattern.permute.xlu0 0
        %3332 = vperm.xlu0 %3331, %v3279
        %v3333 = vpop.permute.xlu0 %3332
        %3335 = vset.pattern.permute.xlu0 0
        %3336 = vperm.xlu0 %3335, %v3280
        %v3337 = vpop.permute.xlu0 %3336
        %3339 = vset.pattern.permute.xlu0 0
        %3340 = vperm.xlu0 %3339, %v3281
        %v3341 = vpop.permute.xlu0 %3340
        %3343 = vset.pattern.permute.xlu0 0
        %3344 = vperm.xlu0 %3343, %v3282
        %v3345 = vpop.permute.xlu0 %3344
        %v3347 = vmul.f32 %v2793, %v3285
        %v3348 = vmul.f32 %v2794, %v3285
        %v3349 = vmul.f32 %v2795, %v3289
        %v3350 = vmul.f32 %v2796, %v3289
        %v3351 = vmul.f32 %v2797, %v3293
        %v3352 = vmul.f32 %v2798, %v3293
        %v3353 = vmul.f32 %v2799, %v3297
        %v3354 = vmul.f32 %v2800, %v3297
        %v3355 = vmul.f32 %v2801, %v3301
        %v3356 = vmul.f32 %v2802, %v3301
        %v3357 = vmul.f32 %v2803, %v3305
        %v3358 = vmul.f32 %v2804, %v3305
        %v3359 = vmul.f32 %v2805, %v3309
        %v3360 = vmul.f32 %v2806, %v3309
        %v3361 = vmul.f32 %v2807, %v3313
        %v3362 = vmul.f32 %v2808, %v3313
        %v3363 = vmul.f32 %v2809, %v3317
        %v3364 = vmul.f32 %v2810, %v3317
        %v3365 = vmul.f32 %v2811, %v3321
        %v3366 = vmul.f32 %v2812, %v3321
        %v3367 = vmul.f32 %v2813, %v3325
        %v3368 = vmul.f32 %v2814, %v3325
        %v3369 = vmul.f32 %v2815, %v3329
        %v3370 = vmul.f32 %v2816, %v3329
        %v3371 = vmul.f32 %v2817, %v3333
        %v3372 = vmul.f32 %v2818, %v3333
        %v3373 = vmul.f32 %v2819, %v3337
        %v3374 = vmul.f32 %v2820, %v3337
        %v3375 = vmul.f32 %v2821, %v3341
        %v3376 = vmul.f32 %v2822, %v3341
        %v3377 = vmul.f32 %v2823, %v3345
        %v3378 = vmul.f32 %v2824, %v3345
        %v3379 = vsel %vm2464, %v3347, 0.0
        %v3380 = vsel %vm2464, %v3348, 0.0
        %v3381 = vadd.f32 %v3379, %v3380
        %v3382 = vsel %vm2464, %v3349, 0.0
        %v3383 = vadd.f32 %v3381, %v3382
        %v3384 = vsel %vm2464, %v3350, 0.0
        %v3385 = vadd.f32 %v3383, %v3384
        %v3386 = vsel %vm2464, %v3351, 0.0
        %v3387 = vadd.f32 %v3385, %v3386
        %v3388 = vsel %vm2464, %v3352, 0.0
        %v3389 = vadd.f32 %v3387, %v3388
        %v3390 = vsel %vm2464, %v3353, 0.0
        %v3391 = vadd.f32 %v3389, %v3390
        %v3392 = vsel %vm2464, %v3354, 0.0
        %v3393 = vadd.f32 %v3391, %v3392
        %v3394 = vsel %vm2464, %v3355, 0.0
        %v3395 = vadd.f32 %v3393, %v3394
        %v3396 = vsel %vm2464, %v3356, 0.0
        %v3397 = vadd.f32 %v3395, %v3396
        %v3398 = vsel %vm2464, %v3357, 0.0
        %v3399 = vadd.f32 %v3397, %v3398
        %v3400 = vsel %vm2464, %v3358, 0.0
        %v3401 = vadd.f32 %v3399, %v3400
        %v3402 = vsel %vm2464, %v3359, 0.0
        %v3403 = vadd.f32 %v3401, %v3402
        %v3404 = vsel %vm2464, %v3360, 0.0
        %v3405 = vadd.f32 %v3403, %v3404
        %v3406 = vsel %vm2464, %v3361, 0.0
        %v3407 = vadd.f32 %v3405, %v3406
        %v3408 = vsel %vm2464, %v3362, 0.0
        %v3409 = vadd.f32 %v3407, %v3408
        %v3410 = vsel %vm2464, %v3363, 0.0
        %v3411 = vadd.f32 %v3409, %v3410
        %v3412 = vsel %vm2464, %v3364, 0.0
        %v3413 = vadd.f32 %v3411, %v3412
        %v3414 = vsel %vm2464, %v3365, 0.0
        %v3415 = vadd.f32 %v3413, %v3414
        %v3416 = vsel %vm2464, %v3366, 0.0
        %v3417 = vadd.f32 %v3415, %v3416
        %v3418 = vsel %vm2464, %v3367, 0.0
        %v3419 = vadd.f32 %v3417, %v3418
        %v3420 = vsel %vm2464, %v3368, 0.0
        %v3421 = vadd.f32 %v3419, %v3420
        %v3422 = vsel %vm2464, %v3369, 0.0
        %v3423 = vadd.f32 %v3421, %v3422
        %v3424 = vsel %vm2464, %v3370, 0.0
        %v3425 = vadd.f32 %v3423, %v3424
        %v3426 = vsel %vm2464, %v3371, 0.0
        %v3427 = vadd.f32 %v3425, %v3426
        %v3428 = vsel %vm2464, %v3372, 0.0
        %v3429 = vadd.f32 %v3427, %v3428
        %v3430 = vsel %vm2464, %v3373, 0.0
        %v3431 = vadd.f32 %v3429, %v3430
        %v3432 = vsel %vm2464, %v3374, 0.0
        %v3433 = vadd.f32 %v3431, %v3432
        %v3434 = vsel %vm2464, %v3375, 0.0
        %v3435 = vadd.f32 %v3433, %v3434
        %v3436 = vsel %vm2464, %v3376, 0.0
        %v3437 = vadd.f32 %v3435, %v3436
        %v3438 = vsel %vm2464, %v3377, 0.0
        %v3439 = vadd.f32 %v3437, %v3438
        %v3440 = vsel %vm2464, %v3378, 0.0
        %v3441 = vadd.f32 %v3439, %v3440
        %v3442 = vrot.slane %v3441, 4
        %v3443 = vadd.f32 %v3441, %v3442
        %v3444 = vrot.slane %v3443, 2
        %v3445 = vadd.f32 %v3443, %v3444
        %v3446 = vrot.slane %v3445, 1
        %v3447 = vadd.f32 %v3445, %v3446
        %v3448 = vmul.f32 %v3447, 0.00390625
        %v3449 = vld [vmem:[%s13] sm:$0xff]
        %v3450 = vld [vmem:[%s13 + $0x8] sm:$0xff]
        %v3451 = vld [vmem:[%s14] sm:$0x1]
        %v3453 = vsel %vm2464, %v3448, 0
        %3455 = vmatpush.msra.mxu0 0.0
        %3456 = vmatpush.msra.mxu0 0.0
        %3457 = vmatpush.msra.mxu0 0.0
        %3458 = vmatpush.msra.mxu0 0.0
        %3459 = vmatpush.msra.mxu0 0.0
        %3460 = vmatpush.msra.mxu0 0.0
        %3461 = vmatpush.msra.mxu0 0.0
        %3462 = vmatpush.msra.mxu0 0.0
        %3463 = vmatpush.msra.mxu0 0.0
        %3464 = vmatpush.msra.mxu0 0.0
        %3465 = vmatpush.msra.mxu0 0.0
        %3466 = vmatpush.msra.mxu0 0.0
        %3467 = vmatpush.msra.mxu0 0.0
        %3468 = vmatpush.msra.mxu0 0.0
        %3469 = vmatpush.msra.mxu0 %v3450
        %3470 = vmatpush.msra.mxu0 %v3449
        %3471 = vmatmul.f32.gmra.mxu0 %v3453
        %v3472 = vpop.f32.mrf.mxu0
        %v3473 = vadd.f32 %v3451, %v3472
        %3474 = vdwg.mxu0
        %v3475 = vmax.f32 %v3473, 0.0
        %v3476 = vld [vmem:[%s15] sm:$0xff]
        %v3477 = vld [vmem:[%s16] sm:$0x1]
        %vm3478 = vcmask 64512
        %v3480 = vsel %vm3478, %v3475, 0
        %3482 = vmatpush.msra.mxu0 0.0
        %3483 = vmatpush.msra.mxu0 0.0
        %3484 = vmatpush.msra.mxu0 0.0
        %3485 = vmatpush.msra.mxu0 0.0
        %3486 = vmatpush.msra.mxu0 0.0
        %3487 = vmatpush.msra.mxu0 0.0
        %3488 = vmatpush.msra.mxu0 0.0
        %3489 = vmatpush.msra.mxu0 0.0
        %3490 = vmatpush.msra.mxu0 0.0
        %3491 = vmatpush.msra.mxu0 0.0
        %3492 = vmatpush.msra.mxu0 0.0
        %3493 = vmatpush.msra.mxu0 0.0
        %3494 = vmatpush.msra.mxu0 0.0
        %3495 = vmatpush.msra.mxu0 0.0
        %3496 = vmatpush.msra.mxu0 0.0
        %3497 = vmatpush.msra.mxu0 %v3476
        %3498 = vmatmul.f32.gmra.mxu0 %v3480
        %v3499 = vpop.f32.mrf.mxu0
        %v3500 = vadd.f32 %v3477, %v3499
        %3501 = vdwg.mxu0
        %v3502 = vxor.u32 %v3500, 2147483648
        %v3503 = vmul.f32 %v3502, 1.442695
        %v3504 = vpow.pop %v3503
        %v3505 = vadd.f32 %v3504, 1.0
        %v3506 = vrcp.pop %v3505
        %v3507 = vmul.f32 %v3505, %v3506
        %v3508 = vsub.f32 1.0, %v3507
        %v3509 = vmul.f32 %v3506, %v3508
        %v3510 = vadd.f32 %v3506, %v3509
        %vm3511 = vweird.f32 %v3505
        %vm3512 = vweird.f32 %v3506
        %vm3513 = vmor %vm3511, %vm3512
        %v3514 = vsel %vm3513, %v3506, %v3510
        %v3515 = vand.u32 2147483647, %v3505
        %vm3516 = vcmp.eq.f32.partialorder %v3515, 8.507059e+37
        %v3517 = vand.u32 %v3505, 2147483648
        %v3518 = vor.u32 1.1754944e-38, %v3517
        %v3519 = vsel %vm3516, %v3518, %v3514
        %v3520 = vmul.f32 1.0, %v3519
        %v3521 = vadd.f32 %v3520, 1.0
        %v3522 = vperm.slane %v3521, 0
        %v3523 = vmul.f32 %v3347, %v3522
        %v3524 = vmul.f32 %v3348, %v3522
        %v3525 = vmul.f32 %v3349, %v3522
        %v3526 = vmul.f32 %v3350, %v3522
        %v3527 = vmul.f32 %v3351, %v3522
        %v3528 = vmul.f32 %v3352, %v3522
        %v3529 = vmul.f32 %v3353, %v3522
        %v3530 = vmul.f32 %v3354, %v3522
        %v3531 = vmul.f32 %v3355, %v3522
        %v3532 = vmul.f32 %v3356, %v3522
        %v3533 = vmul.f32 %v3357, %v3522
        %v3534 = vmul.f32 %v3358, %v3522
        %v3535 = vmul.f32 %v3359, %v3522
        %v3536 = vmul.f32 %v3360, %v3522
        %v3537 = vmul.f32 %v3361, %v3522
        %v3538 = vmul.f32 %v3362, %v3522
        %v3539 = vmul.f32 %v3363, %v3522
        %v3540 = vmul.f32 %v3364, %v3522
        %v3541 = vmul.f32 %v3365, %v3522
        %v3542 = vmul.f32 %v3366, %v3522
        %v3543 = vmul.f32 %v3367, %v3522
        %v3544 = vmul.f32 %v3368, %v3522
        %v3545 = vmul.f32 %v3369, %v3522
        %v3546 = vmul.f32 %v3370, %v3522
        %v3547 = vmul.f32 %v3371, %v3522
        %v3548 = vmul.f32 %v3372, %v3522
        %v3549 = vmul.f32 %v3373, %v3522
        %v3550 = vmul.f32 %v3374, %v3522
        %v3551 = vmul.f32 %v3375, %v3522
        %v3552 = vmul.f32 %v3376, %v3522
        %v3553 = vmul.f32 %v3377, %v3522
        %v3554 = vmul.f32 %v3378, %v3522
        %vm3555 = vcmask 125952
        %3556 = vst.msk [vmem:[#allocation2] sm:$0xf] %vm3555, 0
        %3557 = vst.msk [vmem:[#allocation2 + $0x4] sm:$0xf] %vm3555, 0
        %3558 = vst.msk [vmem:[#allocation2 + $0x8] sm:$0xf] %vm3555, 0
        %3559 = vst.msk [vmem:[#allocation2 + $0xc] sm:$0xf] %vm3555, 0
        %3560 = vst.msk [vmem:[#allocation2 + $0x10] sm:$0xf] %vm3555, 0
        %3561 = vst.msk [vmem:[#allocation2 + $0x14] sm:$0xf] %vm3555, 0
        %3562 = vst.msk [vmem:[#allocation2 + $0x18] sm:$0xf] %vm3555, 0
        %3563 = vst.msk [vmem:[#allocation2 + $0x1c] sm:$0xf] %vm3555, 0
        %3564 = vst.msk [vmem:[#allocation2 + $0xa0] sm:$0xf] %vm3555, 0
        %3565 = vst.msk [vmem:[#allocation2 + $0xa4] sm:$0xf] %vm3555, 0
        %3566 = vst.msk [vmem:[#allocation2 + $0xa8] sm:$0xf] %vm3555, 0
        %3567 = vst.msk [vmem:[#allocation2 + $0xac] sm:$0xf] %vm3555, 0
        %3568 = vst.msk [vmem:[#allocation2 + $0xb0] sm:$0xf] %vm3555, 0
        %3569 = vst.msk [vmem:[#allocation2 + $0xb4] sm:$0xf] %vm3555, 0
        %3570 = vst.msk [vmem:[#allocation2 + $0xb8] sm:$0xf] %vm3555, 0
        %3571 = vst.msk [vmem:[#allocation2 + $0xbc] sm:$0xf] %vm3555, 0
        %v3572 = vpack.c.bf16 %v3523, %v3523
        %v3573 = vpack.c.bf16 %v3524, %v3524
        %v3574 = vpack.c.bf16 %v3525, %v3525
        %v3575 = vpack.c.bf16 %v3526, %v3526
        %v3576 = vpack.c.bf16 %v3527, %v3527
        %v3577 = vpack.c.bf16 %v3528, %v3528
        %v3578 = vpack.c.bf16 %v3529, %v3529
        %v3579 = vpack.c.bf16 %v3530, %v3530
        %v3580 = vpack.c.bf16 %v3531, %v3531
        %v3581 = vpack.c.bf16 %v3532, %v3532
        %v3582 = vpack.c.bf16 %v3533, %v3533
        %v3583 = vpack.c.bf16 %v3534, %v3534
        %v3584 = vpack.c.bf16 %v3535, %v3535
        %v3585 = vpack.c.bf16 %v3536, %v3536
        %v3586 = vpack.c.bf16 %v3537, %v3537
        %v3587 = vpack.c.bf16 %v3538, %v3538
        %v3588 = vpack.c.bf16 %v3539, %v3539
        %v3589 = vpack.c.bf16 %v3540, %v3540
        %v3590 = vpack.c.bf16 %v3541, %v3541
        %v3591 = vpack.c.bf16 %v3542, %v3542
        %v3592 = vpack.c.bf16 %v3543, %v3543
        %v3593 = vpack.c.bf16 %v3544, %v3544
        %v3594 = vpack.c.bf16 %v3545, %v3545
        %v3595 = vpack.c.bf16 %v3546, %v3546
        %v3596 = vpack.c.bf16 %v3547, %v3547
        %v3597 = vpack.c.bf16 %v3548, %v3548
        %v3598 = vpack.c.bf16 %v3549, %v3549
        %v3599 = vpack.c.bf16 %v3550, %v3550
        %v3600 = vpack.c.bf16 %v3551, %v3551
        %v3601 = vpack.c.bf16 %v3552, %v3552
        %v3602 = vpack.c.bf16 %v3553, %v3553
        %v3603 = vpack.c.bf16 %v3554, %v3554
        %3604 = vst.msk [vmem:[#allocation2 + $0x20] sm:$0xf] %vm3555, %v3572
        %3605 = vst.msk [vmem:[#allocation2 + $0x24] sm:$0xf] %vm3555, %v3573
        %3606 = vst.msk [vmem:[#allocation2 + $0x28] sm:$0xf] %vm3555, %v3574
        %3607 = vst.msk [vmem:[#allocation2 + $0x2c] sm:$0xf] %vm3555, %v3575
        %3608 = vst.msk [vmem:[#allocation2 + $0x30] sm:$0xf] %vm3555, %v3576
        %3609 = vst.msk [vmem:[#allocation2 + $0x34] sm:$0xf] %vm3555, %v3577
        %3610 = vst.msk [vmem:[#allocation2 + $0x38] sm:$0xf] %vm3555, %v3578
        %3611 = vst.msk [vmem:[#allocation2 + $0x3c] sm:$0xf] %vm3555, %v3579
        %3612 = vst.msk [vmem:[#allocation2 + $0x40] sm:$0xf] %vm3555, %v3580
        %3613 = vst.msk [vmem:[#allocation2 + $0x44] sm:$0xf] %vm3555, %v3581
        %3614 = vst.msk [vmem:[#allocation2 + $0x48] sm:$0xf] %vm3555, %v3582
        %3615 = vst.msk [vmem:[#allocation2 + $0x4c] sm:$0xf] %vm3555, %v3583
        %3616 = vst.msk [vmem:[#allocation2 + $0x50] sm:$0xf] %vm3555, %v3584
        %3617 = vst.msk [vmem:[#allocation2 + $0x54] sm:$0xf] %vm3555, %v3585
        %3618 = vst.msk [vmem:[#allocation2 + $0x58] sm:$0xf] %vm3555, %v3586
        %3619 = vst.msk [vmem:[#allocation2 + $0x5c] sm:$0xf] %vm3555, %v3587
        %3620 = vst.msk [vmem:[#allocation2 + $0x60] sm:$0xf] %vm3555, %v3588
        %3621 = vst.msk [vmem:[#allocation2 + $0x64] sm:$0xf] %vm3555, %v3589
        %3622 = vst.msk [vmem:[#allocation2 + $0x68] sm:$0xf] %vm3555, %v3590
        %3623 = vst.msk [vmem:[#allocation2 + $0x6c] sm:$0xf] %vm3555, %v3591
        %3624 = vst.msk [vmem:[#allocation2 + $0x70] sm:$0xf] %vm3555, %v3592
        %3625 = vst.msk [vmem:[#allocation2 + $0x74] sm:$0xf] %vm3555, %v3593
        %3626 = vst.msk [vmem:[#allocation2 + $0x78] sm:$0xf] %vm3555, %v3594
        %3627 = vst.msk [vmem:[#allocation2 + $0x7c] sm:$0xf] %vm3555, %v3595
        %3628 = vst.msk [vmem:[#allocation2 + $0x80] sm:$0xf] %vm3555, %v3596
        %3629 = vst.msk [vmem:[#allocation2 + $0x84] sm:$0xf] %vm3555, %v3597
        %3630 = vst.msk [vmem:[#allocation2 + $0x88] sm:$0xf] %vm3555, %v3598
        %3631 = vst.msk [vmem:[#allocation2 + $0x8c] sm:$0xf] %vm3555, %v3599
        %3632 = vst.msk [vmem:[#allocation2 + $0x90] sm:$0xf] %vm3555, %v3600
        %3633 = vst.msk [vmem:[#allocation2 + $0x94] sm:$0xf] %vm3555, %v3601
        %3634 = vst.msk [vmem:[#allocation2 + $0x98] sm:$0xf] %vm3555, %v3602
        %3635 = vst.msk [vmem:[#allocation2 + $0x9c] sm:$0xf] %vm3555, %v3603
        %v3636 = vld [vmem:[%s19] sm:$0x1]
        %v3637 = vld [vmem:[%s18] sm:$0x3]
        %v3639 = vsel %vm2307, %v3637, 0
        %3641 = vmatpush.bf16.msra.mxu0 0
        %3642 = vmatpush.bf16.msra.mxu0 0
        %3643 = vmatpush.bf16.msra.mxu0 0
        %3644 = vmatpush.bf16.msra.mxu0 0
        %3645 = vmatpush.bf16.msra.mxu0 0
        %3646 = vmatpush.bf16.msra.mxu0 0
        %3647 = vmatpush.bf16.msra.mxu0 0
        %3648 = vmatpush.bf16.msra.mxu0 %v3639
        %3649 = vmatmul.bf16.gmra.mxu0 %v2260
        %v3650 = vpop.f32.mrf.mxu0
        %v3651 = vadd.f32 0.0, %v3650
        %v3652 = vpop.f32.mrf.mxu0
        %v3653 = vadd.f32 0.0, %v3652
        %3654 = vmatmul.bf16.gmra.mxu0 %v2263
        %v3655 = vpop.f32.mrf.mxu0
        %v3656 = vadd.f32 0.0, %v3655
        %v3657 = vpop.f32.mrf.mxu0
        %v3658 = vadd.f32 0.0, %v3657
        %3659 = vmatmul.bf16.gmra.mxu0 %v2266
        %v3660 = vpop.f32.mrf.mxu0
        %v3661 = vadd.f32 0.0, %v3660
        %v3662 = vpop.f32.mrf.mxu0
        %v3663 = vadd.f32 0.0, %v3662
        %3664 = vmatmul.bf16.gmra.mxu0 %v2269
        %v3665 = vpop.f32.mrf.mxu0
        %v3666 = vadd.f32 0.0, %v3665
        %v3667 = vpop.f32.mrf.mxu0
        %v3668 = vadd.f32 0.0, %v3667
        %3669 = vmatmul.bf16.gmra.mxu0 %v2272
        %v3670 = vpop.f32.mrf.mxu0
        %v3671 = vadd.f32 0.0, %v3670
        %v3672 = vpop.f32.mrf.mxu0
        %v3673 = vadd.f32 0.0, %v3672
        %3674 = vmatmul.bf16.gmra.mxu0 %v2275
        %v3675 = vpop.f32.mrf.mxu0
        %v3676 = vadd.f32 0.0, %v3675
        %v3677 = vpop.f32.mrf.mxu0
        %v3678 = vadd.f32 0.0, %v3677
        %3679 = vmatmul.bf16.gmra.mxu0 %v2278
        %v3680 = vpop.f32.mrf.mxu0
        %v3681 = vadd.f32 0.0, %v3680
        %v3682 = vpop.f32.mrf.mxu0
        %v3683 = vadd.f32 0.0, %v3682
        %3684 = vmatmul.bf16.gmra.mxu0 %v2281
        %v3685 = vpop.f32.mrf.mxu0
        %v3686 = vadd.f32 0.0, %v3685
        %v3687 = vpop.f32.mrf.mxu0
        %v3688 = vadd.f32 0.0, %v3687
        %3689 = vmatmul.bf16.gmra.mxu0 %v2284
        %v3690 = vpop.f32.mrf.mxu0
        %v3691 = vadd.f32 0.0, %v3690
        %v3692 = vpop.f32.mrf.mxu0
        %v3693 = vadd.f32 0.0, %v3692
        %3694 = vmatmul.bf16.gmra.mxu0 %v2287
        %v3695 = vpop.f32.mrf.mxu0
        %v3696 = vadd.f32 0.0, %v3695
        %v3697 = vpop.f32.mrf.mxu0
        %v3698 = vadd.f32 0.0, %v3697
        %3699 = vmatmul.bf16.gmra.mxu0 %v2290
        %v3700 = vpop.f32.mrf.mxu0
        %v3701 = vadd.f32 0.0, %v3700
        %v3702 = vpop.f32.mrf.mxu0
        %v3703 = vadd.f32 0.0, %v3702
        %3704 = vmatmul.bf16.gmra.mxu0 %v2293
        %v3705 = vpop.f32.mrf.mxu0
        %v3706 = vadd.f32 0.0, %v3705
        %v3707 = vpop.f32.mrf.mxu0
        %v3708 = vadd.f32 0.0, %v3707
        %3709 = vmatmul.bf16.gmra.mxu0 %v2296
        %v3710 = vpop.f32.mrf.mxu0
        %v3711 = vadd.f32 0.0, %v3710
        %v3712 = vpop.f32.mrf.mxu0
        %v3713 = vadd.f32 0.0, %v3712
        %3714 = vmatmul.bf16.gmra.mxu0 %v2299
        %v3715 = vpop.f32.mrf.mxu0
        %v3716 = vadd.f32 0.0, %v3715
        %v3717 = vpop.f32.mrf.mxu0
        %v3718 = vadd.f32 0.0, %v3717
        %3719 = vmatmul.bf16.gmra.mxu0 %v2302
        %v3720 = vpop.f32.mrf.mxu0
        %v3721 = vadd.f32 0.0, %v3720
        %v3722 = vpop.f32.mrf.mxu0
        %v3723 = vadd.f32 0.0, %v3722
        %3724 = vmatmul.bf16.gmra.mxu0 %v2305
        %v3725 = vpop.f32.mrf.mxu0
        %v3726 = vadd.f32 0.0, %v3725
        %v3727 = vpop.f32.mrf.mxu0
        %v3728 = vadd.f32 0.0, %v3727
        %3729 = vdwg.mxu0
        %v3731 = vperm.slane %v3636, 0
        %v3733 = vadd.f32 %v3731, %v3651
        %v3734 = vadd.f32 %v3731, %v3653
        %v3735 = vadd.f32 %v3731, %v3656
        %v3736 = vadd.f32 %v3731, %v3658
        %v3737 = vadd.f32 %v3731, %v3661
        %v3738 = vadd.f32 %v3731, %v3663
        %v3739 = vadd.f32 %v3731, %v3666
        %v3740 = vadd.f32 %v3731, %v3668
        %v3741 = vadd.f32 %v3731, %v3671
        %v3742 = vadd.f32 %v3731, %v3673
        %v3743 = vadd.f32 %v3731, %v3676
        %v3744 = vadd.f32 %v3731, %v3678
        %v3745 = vadd.f32 %v3731, %v3681
        %v3746 = vadd.f32 %v3731, %v3683
        %v3747 = vadd.f32 %v3731, %v3686
        %v3748 = vadd.f32 %v3731, %v3688
        %v3749 = vadd.f32 %v3731, %v3691
        %v3750 = vadd.f32 %v3731, %v3693
        %v3751 = vadd.f32 %v3731, %v3696
        %v3752 = vadd.f32 %v3731, %v3698
        %v3753 = vadd.f32 %v3731, %v3701
        %v3754 = vadd.f32 %v3731, %v3703
        %v3755 = vadd.f32 %v3731, %v3706
        %v3756 = vadd.f32 %v3731, %v3708
        %v3757 = vadd.f32 %v3731, %v3711
        %v3758 = vadd.f32 %v3731, %v3713
        %v3759 = vadd.f32 %v3731, %v3716
        %v3760 = vadd.f32 %v3731, %v3718
        %v3761 = vadd.f32 %v3731, %v3721
        %v3762 = vadd.f32 %v3731, %v3723
        %v3763 = vadd.f32 %v3731, %v3726
        %v3764 = vadd.f32 %v3731, %v3728
        loop: start=0, step=1, limit=9
        $region112: #{tpu_custom_call.1} parent=99 // loop_pre_header
          _
        $region113: #{tpu_custom_call.1} parent=99 // loop_header
          %s3766 = sphi 0, %s3770
          %p3767 = scmp.ge.s32.totalorder %s3766, 9
          %v3771 = vphi %v3733, %v4068
          %v3772 = vphi %v3734, %v4069
          %v3773 = vphi %v3735, %v4070
          %v3774 = vphi %v3736, %v4071
          %v3775 = vphi %v3737, %v4072
          %v3776 = vphi %v3738, %v4073
          %v3777 = vphi %v3739, %v4074
          %v3778 = vphi %v3740, %v4075
          %v3779 = vphi %v3741, %v4076
          %v3780 = vphi %v3742, %v4077
          %v3781 = vphi %v3743, %v4078
          %v3782 = vphi %v3744, %v4079
          %v3783 = vphi %v3745, %v4080
          %v3784 = vphi %v3746, %v4081
          %v3785 = vphi %v3747, %v4082
          %v3786 = vphi %v3748, %v4083
          %v3787 = vphi %v3749, %v4084
          %v3788 = vphi %v3750, %v4085
          %v3789 = vphi %v3751, %v4086
          %v3790 = vphi %v3752, %v4087
          %v3791 = vphi %v3753, %v4088
          %v3792 = vphi %v3754, %v4089
          %v3793 = vphi %v3755, %v4090
          %v3794 = vphi %v3756, %v4091
          %v3795 = vphi %v3757, %v4092
          %v3796 = vphi %v3758, %v4093
          %v3797 = vphi %v3759, %v4094
          %v3798 = vphi %v3760, %v4095
          %v3799 = vphi %v3761, %v4096
          %v3800 = vphi %v3762, %v4097
          %v3801 = vphi %v3763, %v4098
          %v3802 = vphi %v3764, %v4099
        $region114: #{tpu_custom_call.1} parent=99 // loop_header_branch
          %3769 = sbr.rel (%p3767) target = $region118
        $region115: #{tpu_custom_call.1} parent=99 // loop_body
          %s3803 = smul.u32 %s3766, 16
          %s3804 = sshra.s32 %s3803, 3
          %s3805 = sand.u32 %s3803, 7
          %s3806 = smul.addr %s3804, 4
          %s3807 = scalar_lea.vmem [#allocation2], %s3806
          %v3808 = vld [vmem:[%s3807] sm:$0xf]
          %v3809 = vld [vmem:[%s3807 + $0x4] sm:$0xf]
          %v3810 = vld [vmem:[%s3807 + $0x8] sm:$0xf]
          %v3811 = vld [vmem:[%s3807 + $0xc] sm:$0xf]
          %v3812 = vld [vmem:[%s3807 + $0x10] sm:$0xf]
          %v3813 = vld [vmem:[%s3807 + $0x14] sm:$0xf]
          %v3814 = vld [vmem:[%s3807 + $0x18] sm:$0xf]
          %v3815 = vld [vmem:[%s3807 + $0x1c] sm:$0xf]
          %v3816 = vld [vmem:[%s3807 + $0x20] sm:$0xf]
          %v3817 = vld [vmem:[%s3807 + $0x24] sm:$0xf]
          %v3818 = vld [vmem:[%s3807 + $0x28] sm:$0xf]
          %v3819 = vld [vmem:[%s3807 + $0x2c] sm:$0xf]
          %v3820 = vld [vmem:[%s3807 + $0x30] sm:$0xf]
          %v3821 = vld [vmem:[%s3807 + $0x34] sm:$0xf]
          %v3822 = vld [vmem:[%s3807 + $0x38] sm:$0xf]
          %v3823 = vld [vmem:[%s3807 + $0x3c] sm:$0xf]
          %v3824 = vld [vmem:[%s3807 + $0x40] sm:$0xf]
          %v3825 = vld [vmem:[%s3807 + $0x44] sm:$0xf]
          %v3826 = vld [vmem:[%s3807 + $0x48] sm:$0xf]
          %v3827 = vld [vmem:[%s3807 + $0x4c] sm:$0xf]
          %v3828 = vld [vmem:[%s3807 + $0x50] sm:$0xf]
          %v3829 = vld [vmem:[%s3807 + $0x54] sm:$0xf]
          %v3830 = vld [vmem:[%s3807 + $0x58] sm:$0xf]
          %v3831 = vld [vmem:[%s3807 + $0x5c] sm:$0xf]
          %v3832 = vld [vmem:[%s3807 + $0x60] sm:$0xf]
          %v3833 = vld [vmem:[%s3807 + $0x64] sm:$0xf]
          %v3834 = vld [vmem:[%s3807 + $0x68] sm:$0xf]
          %v3835 = vld [vmem:[%s3807 + $0x6c] sm:$0xf]
          %v3836 = vld [vmem:[%s3807 + $0x70] sm:$0xf]
          %v3837 = vld [vmem:[%s3807 + $0x74] sm:$0xf]
          %v3838 = vld [vmem:[%s3807 + $0x78] sm:$0xf]
          %v3839 = vld [vmem:[%s3807 + $0x7c] sm:$0xf]
          %s3840 = smul.u32 %s3766, 2
          %s3841 = smul.addr %s3840, 4
          %s3842 = scalar_lea.vmem %s17, %s3841
          %v3843 = vld [vmem:[%s3842] sm:$0xf]
          %v3844 = vld [vmem:[%s3842 + $0x4] sm:$0xf]
          %v3877 = vunpack.c.l.b16 %v3808
          %v3878 = vunpack.c.l.b16 %v3809
          %v3879 = vunpack.c.l.b16 %v3810
          %v3880 = vunpack.c.l.b16 %v3811
          %v3881 = vunpack.c.l.b16 %v3812
          %v3882 = vunpack.c.l.b16 %v3813
          %v3883 = vunpack.c.l.b16 %v3814
          %v3884 = vunpack.c.l.b16 %v3815
          %v3885 = vunpack.c.l.b16 %v3816
          %v3886 = vunpack.c.l.b16 %v3817
          %v3887 = vunpack.c.l.b16 %v3818
          %v3888 = vunpack.c.l.b16 %v3819
          %v3889 = vunpack.c.l.b16 %v3820
          %v3890 = vunpack.c.l.b16 %v3821
          %v3891 = vunpack.c.l.b16 %v3822
          %v3892 = vunpack.c.l.b16 %v3823
          %v3893 = vunpack.c.l.b16 %v3824
          %v3894 = vunpack.c.l.b16 %v3825
          %v3895 = vunpack.c.l.b16 %v3826
          %v3896 = vunpack.c.l.b16 %v3827
          %v3897 = vunpack.c.l.b16 %v3828
          %v3898 = vunpack.c.l.b16 %v3829
          %v3899 = vunpack.c.l.b16 %v3830
          %v3900 = vunpack.c.l.b16 %v3831
          %v3901 = vunpack.c.l.b16 %v3832
          %v3902 = vunpack.c.l.b16 %v3833
          %v3903 = vunpack.c.l.b16 %v3834
          %v3904 = vunpack.c.l.b16 %v3835
          %v3905 = vunpack.c.l.b16 %v3836
          %v3906 = vunpack.c.l.b16 %v3837
          %v3907 = vunpack.c.l.b16 %v3838
          %v3908 = vunpack.c.l.b16 %v3839
          %v3909 = vpack.c.b16 %v3878, %v3877
          %v3910 = vpack.c.b16 %v3880, %v3879
          %v3911 = vpack.c.b16 %v3882, %v3881
          %v3912 = vpack.c.b16 %v3884, %v3883
          %v3913 = vpack.c.b16 %v3886, %v3885
          %v3914 = vpack.c.b16 %v3888, %v3887
          %v3915 = vpack.c.b16 %v3890, %v3889
          %v3916 = vpack.c.b16 %v3892, %v3891
          %v3917 = vpack.c.b16 %v3894, %v3893
          %v3918 = vpack.c.b16 %v3896, %v3895
          %v3919 = vpack.c.b16 %v3898, %v3897
          %v3920 = vpack.c.b16 %v3900, %v3899
          %v3921 = vpack.c.b16 %v3902, %v3901
          %v3922 = vpack.c.b16 %v3904, %v3903
          %v3923 = vpack.c.b16 %v3906, %v3905
          %v3924 = vpack.c.b16 %v3908, %v3907
          %v3927 = vunpack.c.l.b16 %v3843
          %v3928 = vunpack.c.l.b16 %v3844
          %v3929 = vpack.c.b16 %v3928, %v3927
          %v3932 = vsel %vm2464, %v3909, 0
          %v3935 = vsel %vm2464, %v3910, 0
          %v3938 = vsel %vm2464, %v3911, 0
          %v3941 = vsel %vm2464, %v3912, 0
          %v3944 = vsel %vm2464, %v3913, 0
          %v3947 = vsel %vm2464, %v3914, 0
          %v3950 = vsel %vm2464, %v3915, 0
          %v3953 = vsel %vm2464, %v3916, 0
          %v3956 = vsel %vm2464, %v3917, 0
          %v3959 = vsel %vm2464, %v3918, 0
          %v3962 = vsel %vm2464, %v3919, 0
          %v3965 = vsel %vm2464, %v3920, 0
          %v3968 = vsel %vm2464, %v3921, 0
          %v3971 = vsel %vm2464, %v3922, 0
          %v3974 = vsel %vm2464, %v3923, 0
          %v3977 = vsel %vm2464, %v3924, 0
          %3979 = vmatpush.bf16.msra.mxu0 0
          %3980 = vmatpush.bf16.msra.mxu0 0
          %3981 = vmatpush.bf16.msra.mxu0 0
          %3982 = vmatpush.bf16.msra.mxu0 0
          %3983 = vmatpush.bf16.msra.mxu0 0
          %3984 = vmatpush.bf16.msra.mxu0 0
          %3985 = vmatpush.bf16.msra.mxu0 0
          %3986 = vmatpush.bf16.msra.mxu0 %v3929
          %3987 = vmatmul.bf16.gmra.mxu0 %v3932
          %v3988 = vpop.f32.mrf.mxu0
          %v3989 = vadd.f32 0.0, %v3988
          %v3990 = vpop.f32.mrf.mxu0
          %v3991 = vadd.f32 0.0, %v3990
          %3992 = vmatmul.bf16.gmra.mxu0 %v3935
          %v3993 = vpop.f32.mrf.mxu0
          %v3994 = vadd.f32 0.0, %v3993
          %v3995 = vpop.f32.mrf.mxu0
          %v3996 = vadd.f32 0.0, %v3995
          %3997 = vmatmul.bf16.gmra.mxu0 %v3938
          %v3998 = vpop.f32.mrf.mxu0
          %v3999 = vadd.f32 0.0, %v3998
          %v4000 = vpop.f32.mrf.mxu0
          %v4001 = vadd.f32 0.0, %v4000
          %4002 = vmatmul.bf16.gmra.mxu0 %v3941
          %v4003 = vpop.f32.mrf.mxu0
          %v4004 = vadd.f32 0.0, %v4003
          %v4005 = vpop.f32.mrf.mxu0
          %v4006 = vadd.f32 0.0, %v4005
          %4007 = vmatmul.bf16.gmra.mxu0 %v3944
          %v4008 = vpop.f32.mrf.mxu0
          %v4009 = vadd.f32 0.0, %v4008
          %v4010 = vpop.f32.mrf.mxu0
          %v4011 = vadd.f32 0.0, %v4010
          %4012 = vmatmul.bf16.gmra.mxu0 %v3947
          %v4013 = vpop.f32.mrf.mxu0
          %v4014 = vadd.f32 0.0, %v4013
          %v4015 = vpop.f32.mrf.mxu0
          %v4016 = vadd.f32 0.0, %v4015
          %4017 = vmatmul.bf16.gmra.mxu0 %v3950
          %v4018 = vpop.f32.mrf.mxu0
          %v4019 = vadd.f32 0.0, %v4018
          %v4020 = vpop.f32.mrf.mxu0
          %v4021 = vadd.f32 0.0, %v4020
          %4022 = vmatmul.bf16.gmra.mxu0 %v3953
          %v4023 = vpop.f32.mrf.mxu0
          %v4024 = vadd.f32 0.0, %v4023
          %v4025 = vpop.f32.mrf.mxu0
          %v4026 = vadd.f32 0.0, %v4025
          %4027 = vmatmul.bf16.gmra.mxu0 %v3956
          %v4028 = vpop.f32.mrf.mxu0
          %v4029 = vadd.f32 0.0, %v4028
          %v4030 = vpop.f32.mrf.mxu0
          %v4031 = vadd.f32 0.0, %v4030
          %4032 = vmatmul.bf16.gmra.mxu0 %v3959
          %v4033 = vpop.f32.mrf.mxu0
          %v4034 = vadd.f32 0.0, %v4033
          %v4035 = vpop.f32.mrf.mxu0
          %v4036 = vadd.f32 0.0, %v4035
          %4037 = vmatmul.bf16.gmra.mxu0 %v3962
          %v4038 = vpop.f32.mrf.mxu0
          %v4039 = vadd.f32 0.0, %v4038
          %v4040 = vpop.f32.mrf.mxu0
          %v4041 = vadd.f32 0.0, %v4040
          %4042 = vmatmul.bf16.gmra.mxu0 %v3965
          %v4043 = vpop.f32.mrf.mxu0
          %v4044 = vadd.f32 0.0, %v4043
          %v4045 = vpop.f32.mrf.mxu0
          %v4046 = vadd.f32 0.0, %v4045
          %4047 = vmatmul.bf16.gmra.mxu0 %v3968
          %v4048 = vpop.f32.mrf.mxu0
          %v4049 = vadd.f32 0.0, %v4048
          %v4050 = vpop.f32.mrf.mxu0
          %v4051 = vadd.f32 0.0, %v4050
          %4052 = vmatmul.bf16.gmra.mxu0 %v3971
          %v4053 = vpop.f32.mrf.mxu0
          %v4054 = vadd.f32 0.0, %v4053
          %v4055 = vpop.f32.mrf.mxu0
          %v4056 = vadd.f32 0.0, %v4055
          %4057 = vmatmul.bf16.gmra.mxu0 %v3974
          %v4058 = vpop.f32.mrf.mxu0
          %v4059 = vadd.f32 0.0, %v4058
          %v4060 = vpop.f32.mrf.mxu0
          %v4061 = vadd.f32 0.0, %v4060
          %4062 = vmatmul.bf16.gmra.mxu0 %v3977
          %v4063 = vpop.f32.mrf.mxu0
          %v4064 = vadd.f32 0.0, %v4063
          %v4065 = vpop.f32.mrf.mxu0
          %v4066 = vadd.f32 0.0, %v4065
          %4067 = vdwg.mxu0
          %v4068 = vadd.f32 %v3771, %v3989
          %v4069 = vadd.f32 %v3772, %v3991
          %v4070 = vadd.f32 %v3773, %v3994
          %v4071 = vadd.f32 %v3774, %v3996
          %v4072 = vadd.f32 %v3775, %v3999
          %v4073 = vadd.f32 %v3776, %v4001
          %v4074 = vadd.f32 %v3777, %v4004
          %v4075 = vadd.f32 %v3778, %v4006
          %v4076 = vadd.f32 %v3779, %v4009
          %v4077 = vadd.f32 %v3780, %v4011
          %v4078 = vadd.f32 %v3781, %v4014
          %v4079 = vadd.f32 %v3782, %v4016
          %v4080 = vadd.f32 %v3783, %v4019
          %v4081 = vadd.f32 %v3784, %v4021
          %v4082 = vadd.f32 %v3785, %v4024
          %v4083 = vadd.f32 %v3786, %v4026
          %v4084 = vadd.f32 %v3787, %v4029
          %v4085 = vadd.f32 %v3788, %v4031
          %v4086 = vadd.f32 %v3789, %v4034
          %v4087 = vadd.f32 %v3790, %v4036
          %v4088 = vadd.f32 %v3791, %v4039
          %v4089 = vadd.f32 %v3792, %v4041
          %v4090 = vadd.f32 %v3793, %v4044
          %v4091 = vadd.f32 %v3794, %v4046
          %v4092 = vadd.f32 %v3795, %v4049
          %v4093 = vadd.f32 %v3796, %v4051
          %v4094 = vadd.f32 %v3797, %v4054
          %v4095 = vadd.f32 %v3798, %v4056
          %v4096 = vadd.f32 %v3799, %v4059
          %v4097 = vadd.f32 %v3800, %v4061
          %v4098 = vadd.f32 %v3801, %v4064
          %v4099 = vadd.f32 %v3802, %v4066
        $region116: #{tpu_custom_call.1} parent=99 // loop_footer
          %s3770 = sadd.s32 1, %s3766
        $region117: #{tpu_custom_call.1} parent=99 // loop_footer_branch
          %3765 = sbr.rel target = $region113
        $region118: #{tpu_custom_call.1} parent=99 // loop_exit
          _
        %v4100 = vmax.f32 %v3771, 0.0
        %v4101 = vmax.f32 %v3772, 0.0
        %v4102 = vmax.f32 %v3773, 0.0
        %v4103 = vmax.f32 %v3774, 0.0
        %v4104 = vmax.f32 %v3775, 0.0
        %v4105 = vmax.f32 %v3776, 0.0
        %v4106 = vmax.f32 %v3777, 0.0
        %v4107 = vmax.f32 %v3778, 0.0
        %v4108 = vmax.f32 %v3779, 0.0
        %v4109 = vmax.f32 %v3780, 0.0
        %v4110 = vmax.f32 %v3781, 0.0
        %v4111 = vmax.f32 %v3782, 0.0
        %v4112 = vmax.f32 %v3783, 0.0
        %v4113 = vmax.f32 %v3784, 0.0
        %v4114 = vmax.f32 %v3785, 0.0
        %v4115 = vmax.f32 %v3786, 0.0
        %v4116 = vmax.f32 %v3787, 0.0
        %v4117 = vmax.f32 %v3788, 0.0
        %v4118 = vmax.f32 %v3789, 0.0
        %v4119 = vmax.f32 %v3790, 0.0
        %v4120 = vmax.f32 %v3791, 0.0
        %v4121 = vmax.f32 %v3792, 0.0
        %v4122 = vmax.f32 %v3793, 0.0
        %v4123 = vmax.f32 %v3794, 0.0
        %v4124 = vmax.f32 %v3795, 0.0
        %v4125 = vmax.f32 %v3796, 0.0
        %v4126 = vmax.f32 %v3797, 0.0
        %v4127 = vmax.f32 %v3798, 0.0
        %v4128 = vmax.f32 %v3799, 0.0
        %v4129 = vmax.f32 %v3800, 0.0
        %v4130 = vmax.f32 %v3801, 0.0
        %v4131 = vmax.f32 %v3802, 0.0
        %4132 = vst.msk [vmem:[%s643] sm:$0xff] %vm2464, %v4100
        %4133 = vst.msk [vmem:[%s643 + $0x8] sm:$0xff] %vm2464, %v4101
        %4134 = vst.msk [vmem:[%s643 + $0x10] sm:$0xff] %vm2464, %v4102
        %4135 = vst.msk [vmem:[%s643 + $0x18] sm:$0xff] %vm2464, %v4103
        %4136 = vst.msk [vmem:[%s643 + $0x20] sm:$0xff] %vm2464, %v4104
        %4137 = vst.msk [vmem:[%s643 + $0x28] sm:$0xff] %vm2464, %v4105
        %4138 = vst.msk [vmem:[%s643 + $0x30] sm:$0xff] %vm2464, %v4106
        %4139 = vst.msk [vmem:[%s643 + $0x38] sm:$0xff] %vm2464, %v4107
        %4140 = vst.msk [vmem:[%s643 + $0x40] sm:$0xff] %vm2464, %v4108
        %4141 = vst.msk [vmem:[%s643 + $0x48] sm:$0xff] %vm2464, %v4109
        %4142 = vst.msk [vmem:[%s643 + $0x50] sm:$0xff] %vm2464, %v4110
        %4143 = vst.msk [vmem:[%s643 + $0x58] sm:$0xff] %vm2464, %v4111
        %4144 = vst.msk [vmem:[%s643 + $0x60] sm:$0xff] %vm2464, %v4112
        %4145 = vst.msk [vmem:[%s643 + $0x68] sm:$0xff] %vm2464, %v4113
        %4146 = vst.msk [vmem:[%s643 + $0x70] sm:$0xff] %vm2464, %v4114
        %4147 = vst.msk [vmem:[%s643 + $0x78] sm:$0xff] %vm2464, %v4115
        %4148 = vst.msk [vmem:[%s643 + $0x80] sm:$0xff] %vm2464, %v4116
        %4149 = vst.msk [vmem:[%s643 + $0x88] sm:$0xff] %vm2464, %v4117
        %4150 = vst.msk [vmem:[%s643 + $0x90] sm:$0xff] %vm2464, %v4118
        %4151 = vst.msk [vmem:[%s643 + $0x98] sm:$0xff] %vm2464, %v4119
        %4152 = vst.msk [vmem:[%s643 + $0xa0] sm:$0xff] %vm2464, %v4120
        %4153 = vst.msk [vmem:[%s643 + $0xa8] sm:$0xff] %vm2464, %v4121
        %4154 = vst.msk [vmem:[%s643 + $0xb0] sm:$0xff] %vm2464, %v4122
        %4155 = vst.msk [vmem:[%s643 + $0xb8] sm:$0xff] %vm2464, %v4123
        %4156 = vst.msk [vmem:[%s643 + $0xc0] sm:$0xff] %vm2464, %v4124
        %4157 = vst.msk [vmem:[%s643 + $0xc8] sm:$0xff] %vm2464, %v4125
        %4158 = vst.msk [vmem:[%s643 + $0xd0] sm:$0xff] %vm2464, %v4126
        %4159 = vst.msk [vmem:[%s643 + $0xd8] sm:$0xff] %vm2464, %v4127
        %4160 = vst.msk [vmem:[%s643 + $0xe0] sm:$0xff] %vm2464, %v4128
        %4161 = vst.msk [vmem:[%s643 + $0xe8] sm:$0xff] %vm2464, %v4129
        %4162 = vst.msk [vmem:[%s643 + $0xf0] sm:$0xff] %vm2464, %v4130
        %4163 = vst.msk [vmem:[%s643 + $0xf8] sm:$0xff] %vm2464, %v4131
        %p4164 = scmp.lt.s32.totalorder %s32, 1
        %s4165 = scalar_select %p4164, %s32, 1
        %s4166 = smul.addr %s4165, 32
        %s4167 = smul.addr %s4166, 8
        %s4168 = scalar_lea.vmem %s20, %s4167
        // Predicated region
        $region119: #{tpu_custom_call.1} parent=99 // pred_check
          %p4169 = pneg %p475
        $region120: #{tpu_custom_call.1} parent=99 // pred_check_branch
          %4171 = sbr.rel (%p4169) target = $region122
        $region121: #{tpu_custom_call.1} parent=99 // pred_region
          _
        $region122: #{tpu_custom_call.1} parent=99 // pred_fallthru
          _
      $region100: #{tpu_custom_call.1} parent=5 // pred_fallthru
        _
      %p4172 = scmp.le.s32.totalorder 2, %s27
      // Predicated region
      $region123: #{tpu_custom_call.1} parent=5 // pred_check
        %p4173 = pneg %p4172
      $region124: #{tpu_custom_call.1} parent=5 // pred_check_branch
        %4175 = sbr.rel (%p4173) target = $region126
      $region125: #{tpu_custom_call.1} parent=5 // pred_region
        %s4176 = ssub.s32 %s27, 2
        // Predicated region
        $region127: #{tpu_custom_call.1} parent=125 // pred_check
          %p4177 = pneg %p481
        $region128: #{tpu_custom_call.1} parent=125 // pred_check_branch
          %4179 = sbr.rel (%p4177) target = $region130
        $region129: #{tpu_custom_call.1} parent=125 // pred_region
          %p4180 = scmp.lt.s32.totalorder %s33, 1
          %s4181 = scalar_select %p4180, %s33, 1
          %s4182 = smul.addr %s4181, 32
          %s4183 = smul.addr %s4182, 8
          %s4184 = scalar_lea.vmem %s20, %s4183
        $region130: #{tpu_custom_call.1} parent=125 // pred_fallthru
          _
      $region126: #{tpu_custom_call.1} parent=5 // pred_fallthru
        _
    $region6: #{tpu_custom_call.1} parent=1 // loop_footer
      %s31 = sadd.s32 1, %s27
    $region7: #{tpu_custom_call.1} parent=1 // loop_footer_branch
      %26 = sbr.rel target = $region3
    $region8: #{tpu_custom_call.1} parent=1 // loop_exit
      _
    %4185 = vsyncpa [#allocation4], 1
    %s4186 = scalar_lea.sflag [#allocation4], 1
    %4187 = vsyncpa %s4186, 1

// kernel: tpu_custom_call.1
$region0: #{tpu_custom_call.1}
  #allocation0 [shape = 'u32[]', space=smem, size = 0x4, offset = 0x4, fixed_abs, tag = 'smem constant byte address 0x4 - core index']
  #allocation1 [shape = 'u32[72,128]{1,0:T(1,128)}', space=vmem, size = 0x9000, scoped, tag = 'internal scratch']
  #allocation2 [shape = 'bf16[384,16]{1,0:T(8,128)(2,1)}', space=vmem, size = 0x18000, scoped, tag = 'scratch operand']
  %s0 = inlined_call_operand.vmem [shape: f32[4], index: 0, kind: input, shape index: {}]
  %s1 = inlined_call_operand.vmem [shape: f32[2,16,16,4], index: 1, kind: input, shape index: {}]
  %s2 = inlined_call_operand.vmem [shape: bf16[3,4,4], index: 2, kind: input, shape index: {}]
  %s3 = inlined_call_operand.vmem [shape: f32[3,1,4], index: 3, kind: input, shape index: {}]
  %s4 = inlined_call_operand.vmem [shape: bf16[3,4,4], index: 4, kind: input, shape index: {}]
  %s5 = inlined_call_operand.vmem [shape: f32[3,1,4], index: 5, kind: input, shape index: {}]
  %s6 = inlined_call_operand.vmem [shape: f32[3,16,16], index: 6, kind: input, shape index: {}]
  %s7 = inlined_call_operand.vmem [shape: bf16[3,4,16], index: 7, kind: input, shape index: {}]
  %s8 = inlined_call_operand.vmem [shape: bf16[4,16], index: 8, kind: input, shape index: {}]
  %s9 = inlined_call_operand.vmem [shape: f32[1,16], index: 9, kind: input, shape index: {}]
  %s10 = inlined_call_operand.vmem [shape: f32[1,16], index: 10, kind: input, shape index: {}]
  %s11 = inlined_call_operand.vmem [shape: f32[16,15], index: 11, kind: input, shape index: {}]
  %s12 = inlined_call_operand.vmem [shape: f32[16,9], index: 12, kind: input, shape index: {}]
  %s13 = inlined_call_operand.vmem [shape: f32[16,8], index: 13, kind: input, shape index: {}]
  %s14 = inlined_call_operand.vmem [shape: f32[1,8], index: 14, kind: input, shape index: {}]
  %s15 = inlined_call_operand.vmem [shape: f32[8,16], index: 15, kind: input, shape index: {}]
  %s16 = inlined_call_operand.vmem [shape: f32[1,16], index: 16, kind: input, shape index: {}]
  %s17 = inlined_call_operand.vmem [shape: bf16[9,16,16], index: 17, kind: input, shape index: {}]
  %s18 = inlined_call_operand.vmem [shape: bf16[4,16], index: 18, kind: input, shape index: {}]
  %s19 = inlined_call_operand.vmem [shape: f32[1,16], index: 19, kind: input, shape index: {}]
  %s20 = inlined_call_operand.vmem [shape: f32[2,256,16], index: 20, kind: output, shape index: {}]
  %s21 = sld [smem:[#allocation0]]
  $region131: #{tpu_custom_call.1} parent=0
    _
  %s23 = ssub.s32 1, %s21
  %s24 = scalar_select 0, %s23, %s21
  $region1: #{tpu_custom_call.1} parent=0
    #allocation3 [shape = 'u8[512]{0}', space=smem, size = 0x200, scoped, tag = 'input window, operand 0, single buffered']
    #allocation4 [shape = 's32[2]{0}', space=sflag, size = 0x8, scoped, tag = 'scoped memory for tpu_custom_call.1']
    %25 = vsyncpa [#allocation4], 0
    loop: start=0, step=1, limit=4
    $region2: #{tpu_custom_call.1} parent=1 // loop_pre_header
      _
    $region3: #{tpu_custom_call.1} parent=1 // loop_header
      %s27 = sphi 0, %s31
      %p28 = scmp.ge.s32.totalorder %s27, 4
      %s35 = sphi 0, %s35
      %s37 = sphi 0, %s35
      %s38 = sphi 0, %s37
      %s52 = sphi 0, %s38
      %s58 = sphi 0, %s60
      %s61 = sphi 0, %s58
      %s62 = sphi 0, %s61
      %s78 = sphi 0, %s62
      %s82 = sphi 0, %s82
      %s84 = sphi 0, %s82
      %s85 = sphi 0, %s84
      %s99 = sphi 0, %s85
      %s103 = sphi 0, %s103
      %s105 = sphi 0, %s103
      %s106 = sphi 0, %s105
      %s120 = sphi 0, %s106
      %s124 = sphi 0, %s124
      %s126 = sphi 0, %s124
      %s127 = sphi 0, %s126
      %s141 = sphi 0, %s127
      %s145 = sphi 0, %s145
      %s147 = sphi 0, %s145
      %s148 = sphi 0, %s147
      %s162 = sphi 0, %s148
      %s166 = sphi 0, %s166
      %s168 = sphi 0, %s166
      %s169 = sphi 0, %s168
      %s183 = sphi 0, %s169
      %s187 = sphi 0, %s187
      %s189 = sphi 0, %s187
      %s190 = sphi 0, %s189
      %s204 = sphi 0, %s190
      %s208 = sphi 0, %s208
      %s210 = sphi 0, %s208
      %s211 = sphi 0, %s210
      %s225 = sphi 0, %s211
      %s229 = sphi 0, %s229
      %s231 = sphi 0, %s229
      %s232 = sphi 0, %s231
      %s246 = sphi 0, %s232
      %s250 = sphi 0, %s250
      %s252 = sphi 0, %s250
      %s253 = sphi 0, %s252
      %s267 = sphi 0, %s253
      %s271 = sphi 0, %s271
      %s273 = sphi 0, %s271
      %s274 = sphi 0, %s273
      %s288 = sphi 0, %s274
      %s292 = sphi 0, %s292
      %s294 = sphi 0, %s292
      %s295 = sphi 0, %s294
      %s309 = sphi 0, %s295
      %s313 = sphi 0, %s313
      %s315 = sphi 0, %s313
      %s316 = sphi 0, %s315
      %s330 = sphi 0, %s316
      %s334 = sphi 0, %s334
      %s336 = sphi 0, %s334
      %s337 = sphi 0, %s336
      %s351 = sphi 0, %s337
      %s355 = sphi 0, %s355
      %s357 = sphi 0, %s355
      %s358 = sphi 0, %s357
      %s372 = sphi 0, %s358
      %s376 = sphi 0, %s376
      %s378 = sphi 0, %s376
      %s379 = sphi 0, %s378
      %s393 = sphi 0, %s379
      %s397 = sphi 0, %s397
      %s399 = sphi 0, %s397
      %s400 = sphi 0, %s399
      %s414 = sphi 0, %s400
      %s418 = sphi 0, %s418
      %s420 = sphi 0, %s418
      %s421 = sphi 0, %s420
      %s435 = sphi 0, %s421
      %s439 = sphi 0, %s439
      %s441 = sphi 0, %s439
      %s442 = sphi 0, %s441
      %s456 = sphi 0, %s442
      %s462 = sphi 0, %s464
      %s465 = sphi 0, %s462
      %s466 = sphi 0, %s465
      %s482 = sphi 0, %s466
    $region4: #{tpu_custom_call.1} parent=1 // loop_header_branch
      %30 = sbr.rel (%p28) target = $region8
    $region5: #{tpu_custom_call.1} parent=1 // loop_body
      %s32 = ssub.s32 %s27, 1
      %s33 = ssub.s32 %s27, 2
      %s34 = sadd.s32 %s27, 1
      %s36 = sadd.s32 %s35, 1
      %p39 = scmp.eq.s32.totalorder %s27, 1
      %p40 = scmp.ne.s32.totalorder %s35, %s37
      %p41 = scmp.eq.s32.totalorder %s27, 0
      %p42 = por %p40, %p41
      %p43 = scmp.ne.s32.totalorder %s35, %s37
      %p44 = scmp.eq.s32.totalorder %s32, 1
      %p45 = por %p43, %p44
      %p46 = scmp.ne.s32.totalorder %s37, %s38
      %p47 = scmp.eq.s32.totalorder %s32, 0
      %p48 = por %p46, %p47
      %p49 = scmp.ne.s32.totalorder %s37, %s38
      %p50 = scmp.eq.s32.totalorder %s33, 1
      %p51 = por %p49, %p50
      %p53 = scmp.ne.s32.totalorder %s38, %s52
      %p54 = scmp.eq.s32.totalorder %s33, 0
      %p55 = por %p53, %p54
      %s56 = ssub.s32 %s27, %s34
      %p57 = scmp.eq.s32.totalorder %s56, 0
      %s59 = sadd.s32 %s58, 1
      %s60 = scalar_select %p57, %s58, %s59
      %p63 = pneg %p57
      %p64 = scmp.eq.s32.totalorder %s27, 1
      %p65 = por %p63, %p64
      %p66 = scmp.ne.s32.totalorder %s58, %s61
      %p67 = scmp.eq.s32.totalorder %s27, 0
      %p68 = por %p66, %p67
      %p69 = scmp.ne.s32.totalorder %s58, %s61
      %p70 = scmp.eq.s32.totalorder %s32, 1
      %p71 = por %p69, %p70
      %p72 = scmp.ne.s32.totalorder %s61, %s62
      %p73 = scmp.eq.s32.totalorder %s32, 0
      %p74 = por %p72, %p73
      %p75 = scmp.ne.s32.totalorder %s61, %s62
      %p76 = scmp.eq.s32.totalorder %s33, 1
      %p77 = por %p75, %p76
      %p79 = scmp.ne.s32.totalorder %s62, %s78
      %p80 = scmp.eq.s32.totalorder %s33, 0
      %p81 = por %p79, %p80
      %s83 = sadd.s32 %s82, 1
      %p86 = scmp.eq.s32.totalorder %s27, 1
      %p87 = scmp.ne.s32.totalorder %s82, %s84
      %p88 = scmp.eq.s32.totalorder %s27, 0
      %p89 = por %p87, %p88
      %p90 = scmp.ne.s32.totalorder %s82, %s84
      %p91 = scmp.eq.s32.totalorder %s32, 1
      %p92 = por %p90, %p91
      %p93 = scmp.ne.s32.totalorder %s84, %s85
      %p94 = scmp.eq.s32.totalorder %s32, 0
      %p95 = por %p93, %p94
      %p96 = scmp.ne.s32.totalorder %s84, %s85
      %p97 = scmp.eq.s32.totalorder %s33, 1
      %p98 = por %p96, %p97
      %p100 = scmp.ne.s32.totalorder %s85, %s99
      %p101 = scmp.eq.s32.totalorder %s33, 0
      %p102 = por %p100, %p101
      %s104 = sadd.s32 %s103, 1
      %p107 = scmp.eq.s32.totalorder %s27, 1
      %p108 = scmp.ne.s32.totalorder %s103, %s105
      %p109 = scmp.eq.s32.totalorder %s27, 0
      %p110 = por %p108, %p109
      %p111 = scmp.ne.s32.totalorder %s103, %s105
      %p112 = scmp.eq.s32.totalorder %s32, 1
      %p113 = por %p111, %p112
      %p114 = scmp.ne.s32.totalorder %s105, %s106
      %p115 = scmp.eq.s32.totalorder %s32, 0
      %p116 = por %p114, %p115
      %p117 = scmp.ne.s32.totalorder %s105, %s106
      %p118 = scmp.eq.s32.totalorder %s33, 1
      %p119 = por %p117, %p118
      %p121 = scmp.ne.s32.totalorder %s106, %s120
      %p122 = scmp.eq.s32.totalorder %s33, 0
      %p123 = por %p121, %p122
      %s125 = sadd.s32 %s124, 1
      %p128 = scmp.eq.s32.totalorder %s27, 1
      %p129 = scmp.ne.s32.totalorder %s124, %s126
      %p130 = scmp.eq.s32.totalorder %s27, 0
      %p131 = por %p129, %p130
      %p132 = scmp.ne.s32.totalorder %s124, %s126
      %p133 = scmp.eq.s32.totalorder %s32, 1
      %p134 = por %p132, %p133
      %p135 = scmp.ne.s32.totalorder %s126, %s127
      %p136 = scmp.eq.s32.totalorder %s32, 0
      %p137 = por %p135, %p136
      %p138 = scmp.ne.s32.totalorder %s126, %s127
      %p139 = scmp.eq.s32.totalorder %s33, 1
      %p140 = por %p138, %p139
      %p142 = scmp.ne.s32.totalorder %s127, %s141
      %p143 = scmp.eq.s32.totalorder %s33, 0
      %p144 = por %p142, %p143
      %s146 = sadd.s32 %s145, 1
      %p149 = scmp.eq.s32.totalorder %s27, 1
      %p150 = scmp.ne.s32.totalorder %s145, %s147
      %p151 = scmp.eq.s32.totalorder %s27, 0
      %p152 = por %p150, %p151
      %p153 = scmp.ne.s32.totalorder %s145, %s147
      %p154 = scmp.eq.s32.totalorder %s32, 1
      %p155 = por %p153, %p154
      %p156 = scmp.ne.s32.totalorder %s147, %s148
      %p157 = scmp.eq.s32.totalorder %s32, 0
      %p158 = por %p156, %p157
      %p159 = scmp.ne.s32.totalorder %s147, %s148
      %p160 = scmp.eq.s32.totalorder %s33, 1
      %p161 = por %p159, %p160
      %p163 = scmp.ne.s32.totalorder %s148, %s162
      %p164 = scmp.eq.s32.totalorder %s33, 0
      %p165 = por %p163, %p164
      %s167 = sadd.s32 %s166, 1
      %p170 = scmp.eq.s32.totalorder %s27, 1
      %p171 = scmp.ne.s32.totalorder %s166, %s168
      %p172 = scmp.eq.s32.totalorder %s27, 0
      %p173 = por %p171, %p172
      %p174 = scmp.ne.s32.totalorder %s166, %s168
      %p175 = scmp.eq.s32.totalorder %s32, 1
      %p176 = por %p174, %p175
      %p177 = scmp.ne.s32.totalorder %s168, %s169
      %p178 = scmp.eq.s32.totalorder %s32, 0
      %p179 = por %p177, %p178
      %p180 = scmp.ne.s32.totalorder %s168, %s169
      %p181 = scmp.eq.s32.totalorder %s33, 1
      %p182 = por %p180, %p181
      %p184 = scmp.ne.s32.totalorder %s169, %s183
      %p185 = scmp.eq.s32.totalorder %s33, 0
      %p186 = por %p184, %p185
      %s188 = sadd.s32 %s187, 1
      %p191 = scmp.eq.s32.totalorder %s27, 1
      %p192 = scmp.ne.s32.totalorder %s187, %s189
      %p193 = scmp.eq.s32.totalorder %s27, 0
      %p194 = por %p192, %p193
      %p195 = scmp.ne.s32.totalorder %s187, %s189
      %p196 = scmp.eq.s32.totalorder %s32, 1
      %p197 = por %p195, %p196
      %p198 = scmp.ne.s32.totalorder %s189, %s190
      %p199 = scmp.eq.s32.totalorder %s32, 0
      %p200 = por %p198, %p199
      %p201 = scmp.ne.s32.totalorder %s189, %s190
      %p202 = scmp.eq.s32.totalorder %s33, 1
      %p203 = por %p201, %p202
      %p205 = scmp.ne.s32.totalorder %s190, %s204
      %p206 = scmp.eq.s32.totalorder %s33, 0
      %p207 = por %p205, %p206
      %s209 = sadd.s32 %s208, 1
      %p212 = scmp.eq.s32.totalorder %s27, 1
      %p213 = scmp.ne.s32.totalorder %s208, %s210
      %p214 = scmp.eq.s32.totalorder %s27, 0
      %p215 = por %p213, %p214
      %p216 = scmp.ne.s32.totalorder %s208, %s210
      %p217 = scmp.eq.s32.totalorder %s32, 1
      %p218 = por %p216, %p217
      %p219 = scmp.ne.s32.totalorder %s210, %s211
      %p220 = scmp.eq.s32.totalorder %s32, 0
      %p221 = por %p219, %p220
      %p222 = scmp.ne.s32.totalorder %s210, %s211
      %p223 = scmp.eq.s32.totalorder %s33, 1
      %p224 = por %p222, %p223
      %p226 = scmp.ne.s32.totalorder %s211, %s225
      %p227 = scmp.eq.s32.totalorder %s33, 0
      %p228 = por %p226, %p227
      %s230 = sadd.s32 %s229, 1
      %p233 = scmp.eq.s32.totalorder %s27, 1
      %p234 = scmp.ne.s32.totalorder %s229, %s231
      %p235 = scmp.eq.s32.totalorder %s27, 0
      %p236 = por %p234, %p235
      %p237 = scmp.ne.s32.totalorder %s229, %s231
      %p238 = scmp.eq.s32.totalorder %s32, 1
      %p239 = por %p237, %p238
      %p240 = scmp.ne.s32.totalorder %s231, %s232
      %p241 = scmp.eq.s32.totalorder %s32, 0
      %p242 = por %p240, %p241
      %p243 = scmp.ne.s32.totalorder %s231, %s232
      %p244 = scmp.eq.s32.totalorder %s33, 1
      %p245 = por %p243, %p244
      %p247 = scmp.ne.s32.totalorder %s232, %s246
      %p248 = scmp.eq.s32.totalorder %s33, 0
      %p249 = por %p247, %p248
      %s251 = sadd.s32 %s250, 1
      %p254 = scmp.eq.s32.totalorder %s27, 1
      %p255 = scmp.ne.s32.totalorder %s250, %s252
      %p256 = scmp.eq.s32.totalorder %s27, 0
      %p257 = por %p255, %p256
      %p258 = scmp.ne.s32.totalorder %s250, %s252
      %p259 = scmp.eq.s32.totalorder %s32, 1
      %p260 = por %p258, %p259
      %p261 = scmp.ne.s32.totalorder %s252, %s253
      %p262 = scmp.eq.s32.totalorder %s32, 0
      %p263 = por %p261, %p262
      %p264 = scmp.ne.s32.totalorder %s252, %s253
      %p265 = scmp.eq.s32.totalorder %s33, 1
      %p266 = por %p264, %p265
      %p268 = scmp.ne.s32.totalorder %s253, %s267
      %p269 = scmp.eq.s32.totalorder %s33, 0
      %p270 = por %p268, %p269
      %s272 = sadd.s32 %s271, 1
      %p275 = scmp.eq.s32.totalorder %s27, 1
      %p276 = scmp.ne.s32.totalorder %s271, %s273
      %p277 = scmp.eq.s32.totalorder %s27, 0
      %p278 = por %p276, %p277
      %p279 = scmp.ne.s32.totalorder %s271, %s273
      %p280 = scmp.eq.s32.totalorder %s32, 1
      %p281 = por %p279, %p280
      %p282 = scmp.ne.s32.totalorder %s273, %s274
      %p283 = scmp.eq.s32.totalorder %s32, 0
      %p284 = por %p282, %p283
      %p285 = scmp.ne.s32.totalorder %s273, %s274
      %p286 = scmp.eq.s32.totalorder %s33, 1
      %p287 = por %p285, %p286
      %p289 = scmp.ne.s32.totalorder %s274, %s288
      %p290 = scmp.eq.s32.totalorder %s33, 0
      %p291 = por %p289, %p290
      %s293 = sadd.s32 %s292, 1
      %p296 = scmp.eq.s32.totalorder %s27, 1
      %p297 = scmp.ne.s32.totalorder %s292, %s294
      %p298 = scmp.eq.s32.totalorder %s27, 0
      %p299 = por %p297, %p298
      %p300 = scmp.ne.s32.totalorder %s292, %s294
      %p301 = scmp.eq.s32.totalorder %s32, 1
      %p302 = por %p300, %p301
      %p303 = scmp.ne.s32.totalorder %s294, %s295
      %p304 = scmp.eq.s32.totalorder %s32, 0
      %p305 = por %p303, %p304
      %p306 = scmp.ne.s32.totalorder %s294, %s295
      %p307 = scmp.eq.s32.totalorder %s33, 1
      %p308 = por %p306, %p307
      %p310 = scmp.ne.s32.totalorder %s295, %s309
      %p311 = scmp.eq.s32.totalorder %s33, 0
      %p312 = por %p310, %p311
      %s314 = sadd.s32 %s313, 1
      %p317 = scmp.eq.s32.totalorder %s27, 1
      %p318 = scmp.ne.s32.totalorder %s313, %s315
      %p319 = scmp.eq.s32.totalorder %s27, 0
      %p320 = por %p318, %p319
      %p321 = scmp.ne.s32.totalorder %s313, %s315
      %p322 = scmp.eq.s32.totalorder %s32, 1
      %p323 = por %p321, %p322
      %p324 = scmp.ne.s32.totalorder %s315, %s316
      %p325 = scmp.eq.s32.totalorder %s32, 0
      %p326 = por %p324, %p325
      %p327 = scmp.ne.s32.totalorder %s315, %s316
      %p328 = scmp.eq.s32.totalorder %s33, 1
      %p329 = por %p327, %p328
      %p331 = scmp.ne.s32.totalorder %s316, %s330
      %p332 = scmp.eq.s32.totalorder %s33, 0
      %p333 = por %p331, %p332
      %s335 = sadd.s32 %s334, 1
      %p338 = scmp.eq.s32.totalorder %s27, 1
      %p339 = scmp.ne.s32.totalorder %s334, %s336
      %p340 = scmp.eq.s32.totalorder %s27, 0
      %p341 = por %p339, %p340
      %p342 = scmp.ne.s32.totalorder %s334, %s336
      %p343 = scmp.eq.s32.totalorder %s32, 1
      %p344 = por %p342, %p343
      %p345 = scmp.ne.s32.totalorder %s336, %s337
      %p346 = scmp.eq.s32.totalorder %s32, 0
      %p347 = por %p345, %p346
      %p348 = scmp.ne.s32.totalorder %s336, %s337
      %p349 = scmp.eq.s32.totalorder %s33, 1
      %p350 = por %p348, %p349
      %p352 = scmp.ne.s32.totalorder %s337, %s351
      %p353 = scmp.eq.s32.totalorder %s33, 0
      %p354 = por %p352, %p353
      %s356 = sadd.s32 %s355, 1
      %p359 = scmp.eq.s32.totalorder %s27, 1
      %p360 = scmp.ne.s32.totalorder %s355, %s357
      %p361 = scmp.eq.s32.totalorder %s27, 0
      %p362 = por %p360, %p361
      %p363 = scmp.ne.s32.totalorder %s355, %s357
      %p364 = scmp.eq.s32.totalorder %s32, 1
      %p365 = por %p363, %p364
      %p366 = scmp.ne.s32.totalorder %s357, %s358
      %p367 = scmp.eq.s32.totalorder %s32, 0
      %p368 = por %p366, %p367
      %p369 = scmp.ne.s32.totalorder %s357, %s358
      %p370 = scmp.eq.s32.totalorder %s33, 1
      %p371 = por %p369, %p370
      %p373 = scmp.ne.s32.totalorder %s358, %s372
      %p374 = scmp.eq.s32.totalorder %s33, 0
      %p375 = por %p373, %p374
      %s377 = sadd.s32 %s376, 1
      %p380 = scmp.eq.s32.totalorder %s27, 1
      %p381 = scmp.ne.s32.totalorder %s376, %s378
      %p382 = scmp.eq.s32.totalorder %s27, 0
      %p383 = por %p381, %p382
      %p384 = scmp.ne.s32.totalorder %s376, %s378
      %p385 = scmp.eq.s32.totalorder %s32, 1
      %p386 = por %p384, %p385
      %p387 = scmp.ne.s32.totalorder %s378, %s379
      %p388 = scmp.eq.s32.totalorder %s32, 0
      %p389 = por %p387, %p388
      %p390 = scmp.ne.s32.totalorder %s378, %s379
      %p391 = scmp.eq.s32.totalorder %s33, 1
      %p392 = por %p390, %p391
      %p394 = scmp.ne.s32.totalorder %s379, %s393
      %p395 = scmp.eq.s32.totalorder %s33, 0
      %p396 = por %p394, %p395
      %s398 = sadd.s32 %s397, 1
      %p401 = scmp.eq.s32.totalorder %s27, 1
      %p402 = scmp.ne.s32.totalorder %s397, %s399
      %p403 = scmp.eq.s32.totalorder %s27, 0
      %p404 = por %p402, %p403
      %p405 = scmp.ne.s32.totalorder %s397, %s399
      %p406 = scmp.eq.s32.totalorder %s32, 1
      %p407 = por %p405, %p406
      %p408 = scmp.ne.s32.totalorder %s399, %s400
      %p409 = scmp.eq.s32.totalorder %s32, 0
      %p410 = por %p408, %p409
      %p411 = scmp.ne.s32.totalorder %s399, %s400
      %p412 = scmp.eq.s32.totalorder %s33, 1
      %p413 = por %p411, %p412
      %p415 = scmp.ne.s32.totalorder %s400, %s414
      %p416 = scmp.eq.s32.totalorder %s33, 0
      %p417 = por %p415, %p416
      %s419 = sadd.s32 %s418, 1
      %p422 = scmp.eq.s32.totalorder %s27, 1
      %p423 = scmp.ne.s32.totalorder %s418, %s420
      %p424 = scmp.eq.s32.totalorder %s27, 0
      %p425 = por %p423, %p424
      %p426 = scmp.ne.s32.totalorder %s418, %s420
      %p427 = scmp.eq.s32.totalorder %s32, 1
      %p428 = por %p426, %p427
      %p429 = scmp.ne.s32.totalorder %s420, %s421
      %p430 = scmp.eq.s32.totalorder %s32, 0
      %p431 = por %p429, %p430
      %p432 = scmp.ne.s32.totalorder %s420, %s421
      %p433 = scmp.eq.s32.totalorder %s33, 1
      %p434 = por %p432, %p433
      %p436 = scmp.ne.s32.totalorder %s421, %s435
      %p437 = scmp.eq.s32.totalorder %s33, 0
      %p438 = por %p436, %p437
      %s440 = sadd.s32 %s439, 1
      %p443 = scmp.eq.s32.totalorder %s27, 1
      %p444 = scmp.ne.s32.totalorder %s439, %s441
      %p445 = scmp.eq.s32.totalorder %s27, 0
      %p446 = por %p444, %p445
      %p447 = scmp.ne.s32.totalorder %s439, %s441
      %p448 = scmp.eq.s32.totalorder %s32, 1
      %p449 = por %p447, %p448
      %p450 = scmp.ne.s32.totalorder %s441, %s442
      %p451 = scmp.eq.s32.totalorder %s32, 0
      %p452 = por %p450, %p451
      %p453 = scmp.ne.s32.totalorder %s441, %s442
      %p454 = scmp.eq.s32.totalorder %s33, 1
      %p455 = por %p453, %p454
      %p457 = scmp.ne.s32.totalorder %s442, %s456
      %p458 = scmp.eq.s32.totalorder %s33, 0
      %p459 = por %p457, %p458
      %s460 = ssub.s32 %s27, %s34
      %p461 = scmp.eq.s32.totalorder %s460, 0
      %s463 = sadd.s32 %s462, 1
      %s464 = scalar_select %p461, %s462, %s463
      %p467 = pneg %p461
      %p468 = scmp.eq.s32.totalorder %s27, 1
      %p469 = por %p467, %p468
      %p470 = scmp.ne.s32.totalorder %s462, %s465
      %p471 = scmp.eq.s32.totalorder %s27, 0
      %p472 = por %p470, %p471
      %p473 = scmp.ne.s32.totalorder %s462, %s465
      %p474 = scmp.eq.s32.totalorder %s32, 1
      %p475 = por %p473, %p474
      %p476 = scmp.ne.s32.totalorder %s465, %s466
      %p477 = scmp.eq.s32.totalorder %s32, 0
      %p478 = por %p476, %p477
      %p479 = scmp.ne.s32.totalorder %s465, %s466
      %p480 = scmp.eq.s32.totalorder %s33, 1
      %p481 = por %p479, %p480
      %p483 = scmp.ne.s32.totalorder %s466, %s482
      %p484 = scmp.eq.s32.totalorder %s33, 0
      %p485 = por %p483, %p484
      %p486 = scmp.le.s32.totalorder 1, %s27
      %p487 = scmp.lt.s32.totalorder %s27, 3
      %p488 = pnand %p486, %p487
      %p489 = pneg %p488
      // Predicated region
      $region9: #{tpu_custom_call.1} parent=5 // pred_check
        _
      $region10: #{tpu_custom_call.1} parent=5 // pred_check_branch
        %491 = sbr.rel (%p488) target = $region12
      $region11: #{tpu_custom_call.1} parent=5 // pred_region
        %s492 = ssub.s32 %s27, 1
        // Predicated region
        $region13: #{tpu_custom_call.1} parent=11 // pred_check
          %p493 = pneg %p48
        $region14: #{tpu_custom_call.1} parent=11 // pred_check_branch
          %495 = sbr.rel (%p493) target = $region16
        $region15: #{tpu_custom_call.1} parent=11 // pred_region
          %497 = vsyncadd [#allocation4], 0
          %s499 = sshll.u32 %s0, 4
          %s500 = int_to_ptr.vmem [resolvable:$true] %s499
          %502 = dma.vmem_to_smem %s500, 16, [#allocation3], [#allocation4]
        $region16: #{tpu_custom_call.1} parent=11 // pred_fallthru
          _
        // Predicated region
        $region17: #{tpu_custom_call.1} parent=11 // pred_check
          %p503 = pneg %p95
        $region18: #{tpu_custom_call.1} parent=11 // pred_check_branch
          %505 = sbr.rel (%p503) target = $region20
        $region19: #{tpu_custom_call.1} parent=11 // pred_region
          _
        $region20: #{tpu_custom_call.1} parent=11 // pred_fallthru
          _
        // Predicated region
        $region21: #{tpu_custom_call.1} parent=11 // pred_check
          %p506 = pneg %p116
        $region22: #{tpu_custom_call.1} parent=11 // pred_check_branch
          %508 = sbr.rel (%p506) target = $region24
        $region23: #{tpu_custom_call.1} parent=11 // pred_region
          _
        $region24: #{tpu_custom_call.1} parent=11 // pred_fallthru
          _
        // Predicated region
        $region25: #{tpu_custom_call.1} parent=11 // pred_check
          %p509 = pneg %p137
        $region26: #{tpu_custom_call.1} parent=11 // pred_check_branch
          %511 = sbr.rel (%p509) target = $region28
        $region27: #{tpu_custom_call.1} parent=11 // pred_region
          _
        $region28: #{tpu_custom_call.1} parent=11 // pred_fallthru
          _
        // Predicated region
        $region29: #{tpu_custom_call.1} parent=11 // pred_check
          %p512 = pneg %p158
        $region30: #{tpu_custom_call.1} parent=11 // pred_check_branch
          %514 = sbr.rel (%p512) target = $region32
        $region31: #{tpu_custom_call.1} parent=11 // pred_region
          _
        $region32: #{tpu_custom_call.1} parent=11 // pred_fallthru
          _
        // Predicated region
        $region33: #{tpu_custom_call.1} parent=11 // pred_check
          %p515 = pneg %p179
        $region34: #{tpu_custom_call.1} parent=11 // pred_check_branch
          %517 = sbr.rel (%p515) target = $region36
        $region35: #{tpu_custom_call.1} parent=11 // pred_region
          _
        $region36: #{tpu_custom_call.1} parent=11 // pred_fallthru
          _
        // Predicated region
        $region37: #{tpu_custom_call.1} parent=11 // pred_check
          %p518 = pneg %p200
        $region38: #{tpu_custom_call.1} parent=11 // pred_check_branch
          %520 = sbr.rel (%p518) target = $region40
        $region39: #{tpu_custom_call.1} parent=11 // pred_region
          _
        $region40: #{tpu_custom_call.1} parent=11 // pred_fallthru
          _
        // Predicated region
        $region41: #{tpu_custom_call.1} parent=11 // pred_check
          %p521 = pneg %p221
        $region42: #{tpu_custom_call.1} parent=11 // pred_check_branch
          %523 = sbr.rel (%p521) target = $region44
        $region43: #{tpu_custom_call.1} parent=11 // pred_region
          _
        $region44: #{tpu_custom_call.1} parent=11 // pred_fallthru
          _
        // Predicated region
        $region45: #{tpu_custom_call.1} parent=11 // pred_check
          %p524 = pneg %p242
        $region46: #{tpu_custom_call.1} parent=11 // pred_check_branch
          %526 = sbr.rel (%p524) target = $region48
        $region47: #{tpu_custom_call.1} parent=11 // pred_region
          _
        $region48: #{tpu_custom_call.1} parent=11 // pred_fallthru
          _
        // Predicated region
        $region49: #{tpu_custom_call.1} parent=11 // pred_check
          %p527 = pneg %p263
        $region50: #{tpu_custom_call.1} parent=11 // pred_check_branch
          %529 = sbr.rel (%p527) target = $region52
        $region51: #{tpu_custom_call.1} parent=11 // pred_region
          _
        $region52: #{tpu_custom_call.1} parent=11 // pred_fallthru
          _
        // Predicated region
        $region53: #{tpu_custom_call.1} parent=11 // pred_check
          %p530 = pneg %p284
        $region54: #{tpu_custom_call.1} parent=11 // pred_check_branch
          %532 = sbr.rel (%p530) target = $region56
        $region55: #{tpu_custom_call.1} parent=11 // pred_region
          _
        $region56: #{tpu_custom_call.1} parent=11 // pred_fallthru
          _
        // Predicated region
        $region57: #{tpu_custom_call.1} parent=11 // pred_check
          %p533 = pneg %p305
        $region58: #{tpu_custom_call.1} parent=11 // pred_check_branch
          %535 = sbr.rel (%p533) target = $region60
        $region59: #{tpu_custom_call.1} parent=11 // pred_region
          _
        $region60: #{tpu_custom_call.1} parent=11 // pred_fallthru
          _
        // Predicated region
        $region61: #{tpu_custom_call.1} parent=11 // pred_check
          %p536 = pneg %p326
        $region62: #{tpu_custom_call.1} parent=11 // pred_check_branch
          %538 = sbr.rel (%p536) target = $region64
        $region63: #{tpu_custom_call.1} parent=11 // pred_region
          _
        $region64: #{tpu_custom_call.1} parent=11 // pred_fallthru
          _
        // Predicated region
        $region65: #{tpu_custom_call.1} parent=11 // pred_check
          %p539 = pneg %p347
        $region66: #{tpu_custom_call.1} parent=11 // pred_check_branch
          %541 = sbr.rel (%p539) target = $region68
        $region67: #{tpu_custom_call.1} parent=11 // pred_region
          _
        $region68: #{tpu_custom_call.1} parent=11 // pred_fallthru
          _
        // Predicated region
        $region69: #{tpu_custom_call.1} parent=11 // pred_check
          %p542 = pneg %p368
        $region70: #{tpu_custom_call.1} parent=11 // pred_check_branch
          %544 = sbr.rel (%p542) target = $region72
        $region71: #{tpu_custom_call.1} parent=11 // pred_region
          _
        $region72: #{tpu_custom_call.1} parent=11 // pred_fallthru
          _
        // Predicated region
        $region73: #{tpu_custom_call.1} parent=11 // pred_check
          %p545 = pneg %p389
        $region74: #{tpu_custom_call.1} parent=11 // pred_check_branch
          %547 = sbr.rel (%p545) target = $region76
        $region75: #{tpu_custom_call.1} parent=11 // pred_region
          _
        $region76: #{tpu_custom_call.1} parent=11 // pred_fallthru
          _
        // Predicated region
        $region77: #{tpu_custom_call.1} parent=11 // pred_check
          %p548 = pneg %p410
        $region78: #{tpu_custom_call.1} parent=11 // pred_check_branch
          %550 = sbr.rel (%p548) target = $region80
        $region79: #{tpu_custom_call.1} parent=11 // pred_region
          _
        $region80: #{tpu_custom_call.1} parent=11 // pred_fallthru
          _
        // Predicated region
        $region81: #{tpu_custom_call.1} parent=11 // pred_check
          %p551 = pneg %p431
        $region82: #{tpu_custom_call.1} parent=11 // pred_check_branch
          %553 = sbr.rel (%p551) target = $region84
        $region83: #{tpu_custom_call.1} parent=11 // pred_region
          _
        $region84: #{tpu_custom_call.1} parent=11 // pred_fallthru
          _
        // Predicated region
        $region85: #{tpu_custom_call.1} parent=11 // pred_check
          %p554 = pneg %p452
        $region86: #{tpu_custom_call.1} parent=11 // pred_check_branch
          %556 = sbr.rel (%p554) target = $region88
        $region87: #{tpu_custom_call.1} parent=11 // pred_region
          _
        $region88: #{tpu_custom_call.1} parent=11 // pred_fallthru
          _
      $region12: #{tpu_custom_call.1} parent=5 // pred_fallthru
        _
      %p557 = scmp.lt.s32.totalorder %s27, 2
      // Predicated region
      $region89: #{tpu_custom_call.1} parent=5 // pred_check
        %p558 = pneg %p557
      $region90: #{tpu_custom_call.1} parent=5 // pred_check_branch
        %560 = sbr.rel (%p558) target = $region92
      $region91: #{tpu_custom_call.1} parent=5 // pred_region
        // Predicated region
        $region93: #{tpu_custom_call.1} parent=91 // pred_check
          %p561 = pneg %p68
        $region94: #{tpu_custom_call.1} parent=91 // pred_check_branch
          %563 = sbr.rel (%p561) target = $region96
        $region95: #{tpu_custom_call.1} parent=91 // pred_region
          %p564 = scmp.lt.s32.totalorder %s27, 1
          %s565 = scalar_select %p564, %s27, 1
          %s566 = smul.addr %s565, 32
          %s567 = smul.addr %s566, 8
          %s568 = scalar_lea.vmem %s1, %s567
        $region96: #{tpu_custom_call.1} parent=91 // pred_fallthru
          _
      $region92: #{tpu_custom_call.1} parent=5 // pred_fallthru
        _
      %p569 = scmp.le.s32.totalorder 1, %s27
      %p570 = scmp.lt.s32.totalorder %s27, 3
      %p571 = pnand %p569, %p570
      %p572 = pneg %p571
      // Predicated region
      $region97: #{tpu_custom_call.1} parent=5 // pred_check
        _
      $region98: #{tpu_custom_call.1} parent=5 // pred_check_branch
        %574 = sbr.rel (%p571) target = $region100
      $region99: #{tpu_custom_call.1} parent=5 // pred_region
        %s575 = ssub.s32 %s27, 1
        // Predicated region
        $region101: #{tpu_custom_call.1} parent=99 // pred_check
          %p576 = pneg %p48
        $region102: #{tpu_custom_call.1} parent=99 // pred_check_branch
          %578 = sbr.rel (%p576) target = $region104
        $region103: #{tpu_custom_call.1} parent=99 // pred_region
          %580 = dma.done [#allocation4], 16
        $region104: #{tpu_custom_call.1} parent=99 // pred_fallthru
          _
        %581 = sfence
        %p582 = pneg %p48
        %p583 = pneg %p45
        %p584 = scmp.lt.s32.totalorder %s32, 1
        %s585 = scalar_select %p584, %s32, 1
        %s586 = smul.addr %s585, 32
        %s587 = smul.addr %s586, 8
        %s588 = scalar_lea.vmem %s1, %s587
        %p589 = pneg %p74
        %p590 = pneg %p71
        %p591 = pneg %p95
        %p592 = pneg %p92
        %p593 = pneg %p116
        %p594 = pneg %p113
        %p595 = pneg %p137
        %p596 = pneg %p134
        %p597 = pneg %p158
        %p598 = pneg %p155
        %p599 = pneg %p179
        %p600 = pneg %p176
        %p601 = pneg %p200
        %p602 = pneg %p197
        %p603 = pneg %p221
        %p604 = pneg %p218
        %p605 = pneg %p242
        %p606 = pneg %p239
        %p607 = pneg %p263
        %p608 = pneg %p260
        %p609 = pneg %p284
        %p610 = pneg %p281
        %p611 = pneg %p305
        %p612 = pneg %p302
        %p613 = pneg %p326
        %p614 = pneg %p323
        %p615 = pneg %p347
        %p616 = pneg %p344
        %p617 = pneg %p368
        %p618 = pneg %p365
        %p619 = pneg %p389
        %p620 = pneg %p386
        %p621 = pneg %p410
        %p622 = pneg %p407
        %p623 = pneg %p431
        %p624 = pneg %p428
        %p625 = pneg %p452
        %p626 = pneg %p449
        %p627 = pneg %p478
        %p628 = pneg %p475
        %p629 = scmp.lt.s32.totalorder %s32, 1
        %s630 = scalar_select %p629, %s32, 1
        %s631 = smul.addr %s630, 32
        %s632 = smul.addr %s631, 8
        %s633 = scalar_lea.vmem %s20, %s632
        %p634 = scmp.lt.s32.totalorder %s32, 1
        %s635 = scalar_select %p634, %s32, 1
        %s636 = smul.addr %s635, 32
        %s637 = smul.addr %s636, 8
        %s638 = scalar_lea.vmem %s1, %s637
        %p639 = scmp.lt.s32.totalorder %s32, 1
        %s640 = scalar_select %p639, %s32, 1
        %s641 = smul.addr %s640, 32
        %s642 = smul.addr %s641, 8
        %s643 = scalar_lea.vmem %s20, %s642
        %s645 = sld [smem:[#allocation3]]
        %s646 = sld [smem:[#allocation3 + $0x1]]
        %s647 = sld [smem:[#allocation3 + $0x2]]
        %v648 = vld [vmem:[%s638] sm:$0xff]
        %v649 = vld [vmem:[%s638 + $0x8] sm:$0xff]
        %v650 = vld [vmem:[%s638 + $0x10] sm:$0xff]
        %v651 = vld [vmem:[%s638 + $0x18] sm:$0xff]
        %v652 = vld [vmem:[%s638 + $0x20] sm:$0xff]
        %v653 = vld [vmem:[%s638 + $0x28] sm:$0xff]
        %v654 = vld [vmem:[%s638 + $0x30] sm:$0xff]
        %v655 = vld [vmem:[%s638 + $0x38] sm:$0xff]
        %v656 = vld [vmem:[%s638 + $0x40] sm:$0xff]
        %v657 = vld [vmem:[%s638 + $0x48] sm:$0xff]
        %v658 = vld [vmem:[%s638 + $0x50] sm:$0xff]
        %v659 = vld [vmem:[%s638 + $0x58] sm:$0xff]
        %v660 = vld [vmem:[%s638 + $0x60] sm:$0xff]
        %v661 = vld [vmem:[%s638 + $0x68] sm:$0xff]
        %v662 = vld [vmem:[%s638 + $0x70] sm:$0xff]
        %v663 = vld [vmem:[%s638 + $0x78] sm:$0xff]
        %v664 = vld [vmem:[%s638 + $0x80] sm:$0xff]
        %v665 = vld [vmem:[%s638 + $0x88] sm:$0xff]
        %v666 = vld [vmem:[%s638 + $0x90] sm:$0xff]
        %v667 = vld [vmem:[%s638 + $0x98] sm:$0xff]
        %v668 = vld [vmem:[%s638 + $0xa0] sm:$0xff]
        %v669 = vld [vmem:[%s638 + $0xa8] sm:$0xff]
        %v670 = vld [vmem:[%s638 + $0xb0] sm:$0xff]
        %v671 = vld [vmem:[%s638 + $0xb8] sm:$0xff]
        %v672 = vld [vmem:[%s638 + $0xc0] sm:$0xff]
        %v673 = vld [vmem:[%s638 + $0xc8] sm:$0xff]
        %v674 = vld [vmem:[%s638 + $0xd0] sm:$0xff]
        %v675 = vld [vmem:[%s638 + $0xd8] sm:$0xff]
        %v676 = vld [vmem:[%s638 + $0xe0] sm:$0xff]
        %v677 = vld [vmem:[%s638 + $0xe8] sm:$0xff]
        %v678 = vld [vmem:[%s638 + $0xf0] sm:$0xff]
        %v679 = vld [vmem:[%s638 + $0xf8] sm:$0xff]
        %v680 = vpack.c.bf16 %v649, %v648
        %v681 = vpack.c.bf16 %v651, %v650
        %v682 = vpack.c.bf16 %v653, %v652
        %v683 = vpack.c.bf16 %v655, %v654
        %v684 = vpack.c.bf16 %v657, %v656
        %v685 = vpack.c.bf16 %v659, %v658
        %v686 = vpack.c.bf16 %v661, %v660
        %v687 = vpack.c.bf16 %v663, %v662
        %v688 = vpack.c.bf16 %v665, %v664
        %v689 = vpack.c.bf16 %v667, %v666
        %v690 = vpack.c.bf16 %v669, %v668
        %v691 = vpack.c.bf16 %v671, %v670
        %v692 = vpack.c.bf16 %v673, %v672
        %v693 = vpack.c.bf16 %v675, %v674
        %v694 = vpack.c.bf16 %v677, %v676
        %v695 = vpack.c.bf16 %v679, %v678
        loop: start=0, step=1, limit=3
        $region105: #{tpu_custom_call.1} parent=99 // loop_pre_header
          _
        $region106: #{tpu_custom_call.1} parent=99 // loop_header
          %s697 = sphi 0, %s701
          %p698 = scmp.ge.s32.totalorder %s697, 3
          %v702 = vphi 0.0, %v2153
          %v703 = vphi 0.0, %v2154
          %v704 = vphi 0.0, %v2155
          %v705 = vphi 0.0, %v2156
          %v706 = vphi 0.0, %v2157
          %v707 = vphi 0.0, %v2158
          %v708 = vphi 0.0, %v2159
          %v709 = vphi 0.0, %v2160
          %v710 = vphi 0.0, %v2161
          %v711 = vphi 0.0, %v2162
          %v712 = vphi 0.0, %v2163
          %v713 = vphi 0.0, %v2164
          %v714 = vphi 0.0, %v2165
          %v715 = vphi 0.0, %v2166
          %v716 = vphi 0.0, %v2167
          %v717 = vphi 0.0, %v2168
          %v718 = vphi 0.0, %v2169
          %v719 = vphi 0.0, %v2170
          %v720 = vphi 0.0, %v2171
          %v721 = vphi 0.0, %v2172
          %v722 = vphi 0.0, %v2173
          %v723 = vphi 0.0, %v2174
          %v724 = vphi 0.0, %v2175
          %v725 = vphi 0.0, %v2176
          %v726 = vphi 0.0, %v2177
          %v727 = vphi 0.0, %v2178
          %v728 = vphi 0.0, %v2179
          %v729 = vphi 0.0, %v2180
          %v730 = vphi 0.0, %v2181
          %v731 = vphi 0.0, %v2182
          %v732 = vphi 0.0, %v2183
          %v733 = vphi 0.0, %v2184
        $region107: #{tpu_custom_call.1} parent=99 // loop_header_branch
          %700 = sbr.rel (%p698) target = $region111
        $region108: #{tpu_custom_call.1} parent=99 // loop_body
          %s734 = smul.addr %s697, 2
          %s735 = scalar_lea.vmem %s2, %s734
          %v736 = vld [vmem:[%s735] sm:$0x3]
          %s737 = scalar_lea.vmem %s3, %s697
          %v738 = vld [vmem:[%s737] sm:$0x1]
          %v740 = vperm.slane %v738, 0
          %vm742 = vcmask 31744
          %v744 = vsel %vm742, %v680, 0
          %v747 = vsel %vm742, %v681, 0
          %v750 = vsel %vm742, %v682, 0
          %v753 = vsel %vm742, %v683, 0
          %v756 = vsel %vm742, %v684, 0
          %v759 = vsel %vm742, %v685, 0
          %v762 = vsel %vm742, %v686, 0
          %v765 = vsel %vm742, %v687, 0
          %v768 = vsel %vm742, %v688, 0
          %v771 = vsel %vm742, %v689, 0
          %v774 = vsel %vm742, %v690, 0
          %v777 = vsel %vm742, %v691, 0
          %v780 = vsel %vm742, %v692, 0
          %v783 = vsel %vm742, %v693, 0
          %v786 = vsel %vm742, %v694, 0
          %v789 = vsel %vm742, %v695, 0
          %vm791 = vcmask 1041408
          %v793 = vsel %vm791, %v736, 0
          %795 = vmatpush.bf16.msra.mxu0 0
          %796 = vmatpush.bf16.msra.mxu0 0
          %797 = vmatpush.bf16.msra.mxu0 0
          %798 = vmatpush.bf16.msra.mxu0 0
          %799 = vmatpush.bf16.msra.mxu0 0
          %800 = vmatpush.bf16.msra.mxu0 0
          %801 = vmatpush.bf16.msra.mxu0 0
          %802 = vmatpush.bf16.msra.mxu0 %v793
          %803 = vmatmul.bf16.gmra.mxu0 %v744
          %v804 = vpop.f32.mrf.mxu0
          %v805 = vadd.f32 %v740, %v804
          %v806 = vpop.f32.mrf.mxu0
          %v807 = vadd.f32 %v740, %v806
          %808 = vmatmul.bf16.gmra.mxu0 %v747
          %v809 = vpop.f32.mrf.mxu0
          %v810 = vadd.f32 %v740, %v809
          %v811 = vpop.f32.mrf.mxu0
          %v812 = vadd.f32 %v740, %v811
          %813 = vmatmul.bf16.gmra.mxu0 %v750
          %v814 = vpop.f32.mrf.mxu0
          %v815 = vadd.f32 %v740, %v814
          %v816 = vpop.f32.mrf.mxu0
          %v817 = vadd.f32 %v740, %v816
          %818 = vmatmul.bf16.gmra.mxu0 %v753
          %v819 = vpop.f32.mrf.mxu0
          %v820 = vadd.f32 %v740, %v819
          %v821 = vpop.f32.mrf.mxu0
          %v822 = vadd.f32 %v740, %v821
          %823 = vmatmul.bf16.gmra.mxu0 %v756
          %v824 = vpop.f32.mrf.mxu0
          %v825 = vadd.f32 %v740, %v824
          %v826 = vpop.f32.mrf.mxu0
          %v827 = vadd.f32 %v740, %v826
          %828 = vmatmul.bf16.gmra.mxu0 %v759
          %v829 = vpop.f32.mrf.mxu0
          %v830 = vadd.f32 %v740, %v829
          %v831 = vpop.f32.mrf.mxu0
          %v832 = vadd.f32 %v740, %v831
          %833 = vmatmul.bf16.gmra.mxu0 %v762
          %v834 = vpop.f32.mrf.mxu0
          %v835 = vadd.f32 %v740, %v834
          %v836 = vpop.f32.mrf.mxu0
          %v837 = vadd.f32 %v740, %v836
          %838 = vmatmul.bf16.gmra.mxu0 %v765
          %v839 = vpop.f32.mrf.mxu0
          %v840 = vadd.f32 %v740, %v839
          %v841 = vpop.f32.mrf.mxu0
          %v842 = vadd.f32 %v740, %v841
          %843 = vmatmul.bf16.gmra.mxu0 %v768
          %v844 = vpop.f32.mrf.mxu0
          %v845 = vadd.f32 %v740, %v844
          %v846 = vpop.f32.mrf.mxu0
          %v847 = vadd.f32 %v740, %v846
          %848 = vmatmul.bf16.gmra.mxu0 %v771
          %v849 = vpop.f32.mrf.mxu0
          %v850 = vadd.f32 %v740, %v849
          %v851 = vpop.f32.mrf.mxu0
          %v852 = vadd.f32 %v740, %v851
          %853 = vmatmul.bf16.gmra.mxu0 %v774
          %v854 = vpop.f32.mrf.mxu0
          %v855 = vadd.f32 %v740, %v854
          %v856 = vpop.f32.mrf.mxu0
          %v857 = vadd.f32 %v740, %v856
          %858 = vmatmul.bf16.gmra.mxu0 %v777
          %v859 = vpop.f32.mrf.mxu0
          %v860 = vadd.f32 %v740, %v859
          %v861 = vpop.f32.mrf.mxu0
          %v862 = vadd.f32 %v740, %v861
          %863 = vmatmul.bf16.gmra.mxu0 %v780
          %v864 = vpop.f32.mrf.mxu0
          %v865 = vadd.f32 %v740, %v864
          %v866 = vpop.f32.mrf.mxu0
          %v867 = vadd.f32 %v740, %v866
          %868 = vmatmul.bf16.gmra.mxu0 %v783
          %v869 = vpop.f32.mrf.mxu0
          %v870 = vadd.f32 %v740, %v869
          %v871 = vpop.f32.mrf.mxu0
          %v872 = vadd.f32 %v740, %v871
          %873 = vmatmul.bf16.gmra.mxu0 %v786
          %v874 = vpop.f32.mrf.mxu0
          %v875 = vadd.f32 %v740, %v874
          %v876 = vpop.f32.mrf.mxu0
          %v877 = vadd.f32 %v740, %v876
          %878 = vmatmul.bf16.gmra.mxu0 %v789
          %v879 = vpop.f32.mrf.mxu0
          %v880 = vadd.f32 %v740, %v879
          %v881 = vpop.f32.mrf.mxu0
          %v882 = vadd.f32 %v740, %v881
          %883 = vdwg.mxu0
          %s884 = smul.addr %s697, 2
          %s885 = scalar_lea.vmem %s4, %s884
          %v886 = vld [vmem:[%s885] sm:$0x3]
          %s887 = scalar_lea.vmem %s5, %s697
          %v888 = vld [vmem:[%s887] sm:$0x1]
          %v890 = vperm.slane %v888, 0
          %v893 = vsel %vm791, %v886, 0
          %895 = vmatpush.bf16.msra.mxu0 0
          %896 = vmatpush.bf16.msra.mxu0 0
          %897 = vmatpush.bf16.msra.mxu0 0
          %898 = vmatpush.bf16.msra.mxu0 0
          %899 = vmatpush.bf16.msra.mxu0 0
          %900 = vmatpush.bf16.msra.mxu0 0
          %901 = vmatpush.bf16.msra.mxu0 0
          %902 = vmatpush.bf16.msra.mxu0 %v893
          %903 = vmatmul.bf16.gmra.mxu0 %v744
          %v904 = vpop.f32.mrf.mxu0
          %v905 = vadd.f32 %v890, %v904
          %v906 = vpop.f32.mrf.mxu0
          %v907 = vadd.f32 %v890, %v906
          %908 = vmatmul.bf16.gmra.mxu0 %v747
          %v909 = vpop.f32.mrf.mxu0
          %v910 = vadd.f32 %v890, %v909
          %v911 = vpop.f32.mrf.mxu0
          %v912 = vadd.f32 %v890, %v911
          %913 = vmatmul.bf16.gmra.mxu0 %v750
          %v914 = vpop.f32.mrf.mxu0
          %v915 = vadd.f32 %v890, %v914
          %v916 = vpop.f32.mrf.mxu0
          %v917 = vadd.f32 %v890, %v916
          %918 = vmatmul.bf16.gmra.mxu0 %v753
          %v919 = vpop.f32.mrf.mxu0
          %v920 = vadd.f32 %v890, %v919
          %v921 = vpop.f32.mrf.mxu0
          %v922 = vadd.f32 %v890, %v921
          %923 = vmatmul.bf16.gmra.mxu0 %v756
          %v924 = vpop.f32.mrf.mxu0
          %v925 = vadd.f32 %v890, %v924
          %v926 = vpop.f32.mrf.mxu0
          %v927 = vadd.f32 %v890, %v926
          %928 = vmatmul.bf16.gmra.mxu0 %v759
          %v929 = vpop.f32.mrf.mxu0
          %v930 = vadd.f32 %v890, %v929
          %v931 = vpop.f32.mrf.mxu0
          %v932 = vadd.f32 %v890, %v931
          %933 = vmatmul.bf16.gmra.mxu0 %v762
          %v934 = vpop.f32.mrf.mxu0
          %v935 = vadd.f32 %v890, %v934
          %v936 = vpop.f32.mrf.mxu0
          %v937 = vadd.f32 %v890, %v936
          %938 = vmatmul.bf16.gmra.mxu0 %v765
          %v939 = vpop.f32.mrf.mxu0
          %v940 = vadd.f32 %v890, %v939
          %v941 = vpop.f32.mrf.mxu0
          %v942 = vadd.f32 %v890, %v941
          %943 = vmatmul.bf16.gmra.mxu0 %v768
          %v944 = vpop.f32.mrf.mxu0
          %v945 = vadd.f32 %v890, %v944
          %v946 = vpop.f32.mrf.mxu0
          %v947 = vadd.f32 %v890, %v946
          %948 = vmatmul.bf16.gmra.mxu0 %v771
          %v949 = vpop.f32.mrf.mxu0
          %v950 = vadd.f32 %v890, %v949
          %v951 = vpop.f32.mrf.mxu0
          %v952 = vadd.f32 %v890, %v951
          %953 = vmatmul.bf16.gmra.mxu0 %v774
          %v954 = vpop.f32.mrf.mxu0
          %v955 = vadd.f32 %v890, %v954
          %v956 = vpop.f32.mrf.mxu0
          %v957 = vadd.f32 %v890, %v956
          %958 = vmatmul.bf16.gmra.mxu0 %v777
          %v959 = vpop.f32.mrf.mxu0
          %v960 = vadd.f32 %v890, %v959
          %v961 = vpop.f32.mrf.mxu0
          %v962 = vadd.f32 %v890, %v961
          %963 = vmatmul.bf16.gmra.mxu0 %v780
          %v964 = vpop.f32.mrf.mxu0
          %v965 = vadd.f32 %v890, %v964
          %v966 = vpop.f32.mrf.mxu0
          %v967 = vadd.f32 %v890, %v966
          %968 = vmatmul.bf16.gmra.mxu0 %v783
          %v969 = vpop.f32.mrf.mxu0
          %v970 = vadd.f32 %v890, %v969
          %v971 = vpop.f32.mrf.mxu0
          %v972 = vadd.f32 %v890, %v971
          %973 = vmatmul.bf16.gmra.mxu0 %v786
          %v974 = vpop.f32.mrf.mxu0
          %v975 = vadd.f32 %v890, %v974
          %v976 = vpop.f32.mrf.mxu0
          %v977 = vadd.f32 %v890, %v976
          %978 = vmatmul.bf16.gmra.mxu0 %v789
          %v979 = vpop.f32.mrf.mxu0
          %v980 = vadd.f32 %v890, %v979
          %v981 = vpop.f32.mrf.mxu0
          %v982 = vadd.f32 %v890, %v981
          %983 = vdwg.mxu0
          %v985 = vsel %vm742, %v905, 0
          %v988 = vsel %vm742, %v907, 0
          %v991 = vsel %vm742, %v805, 0
          %v994 = vsel %vm742, %v807, 0
          %996 = vmatpush.xpose.msra.mxu0 0.0
          %997 = vmatpush.xpose.msra.mxu0 0.0
          %998 = vmatpush.xpose.msra.mxu0 0.0
          %999 = vmatpush.xpose.msra.mxu0 0.0
          %1000 = vmatpush.xpose.msra.mxu0 0.0
          %1001 = vmatpush.xpose.msra.mxu0 0.0
          %1002 = vmatpush.xpose.msra.mxu0 0.0
          %1003 = vmatpush.xpose.msra.mxu0 0.0
          %1004 = vmatpush.xpose.msra.mxu0 0.0
          %1005 = vmatpush.xpose.msra.mxu0 0.0
          %1006 = vmatpush.xpose.msra.mxu0 0.0
          %1007 = vmatpush.xpose.msra.mxu0 0.0
          %1008 = vmatpush.xpose.msra.mxu0 0.0
          %1009 = vmatpush.xpose.msra.mxu0 0.0
          %1010 = vmatpush.xpose.msra.mxu0 %v994
          %1011 = vmatpush.xpose.msra.mxu0 %v991
          %1012 = vmatmul.f32.gmra.mxu0 %v985
          %v1013 = vpop.f32.mrf.mxu0
          %v1014 = vadd.f32 0.0, %v1013
          %1015 = vmatmul.f32.gmra.mxu0 %v988
          %v1016 = vpop.f32.mrf.mxu0
          %v1017 = vadd.f32 0.0, %v1016
          %1018 = vdwg.mxu0
          %v1020 = vsel %vm742, %v910, 0
          %v1023 = vsel %vm742, %v912, 0
          %v1026 = vsel %vm742, %v810, 0
          %v1029 = vsel %vm742, %v812, 0
          %1031 = vmatpush.xpose.msra.mxu0 0.0
          %1032 = vmatpush.xpose.msra.mxu0 0.0
          %1033 = vmatpush.xpose.msra.mxu0 0.0
          %1034 = vmatpush.xpose.msra.mxu0 0.0
          %1035 = vmatpush.xpose.msra.mxu0 0.0
          %1036 = vmatpush.xpose.msra.mxu0 0.0
          %1037 = vmatpush.xpose.msra.mxu0 0.0
          %1038 = vmatpush.xpose.msra.mxu0 0.0
          %1039 = vmatpush.xpose.msra.mxu0 0.0
          %1040 = vmatpush.xpose.msra.mxu0 0.0
          %1041 = vmatpush.xpose.msra.mxu0 0.0
          %1042 = vmatpush.xpose.msra.mxu0 0.0
          %1043 = vmatpush.xpose.msra.mxu0 0.0
          %1044 = vmatpush.xpose.msra.mxu0 0.0
          %1045 = vmatpush.xpose.msra.mxu0 %v1029
          %1046 = vmatpush.xpose.msra.mxu0 %v1026
          %1047 = vmatmul.f32.gmra.mxu0 %v1020
          %v1048 = vpop.f32.mrf.mxu0
          %v1049 = vadd.f32 0.0, %v1048
          %1050 = vmatmul.f32.gmra.mxu0 %v1023
          %v1051 = vpop.f32.mrf.mxu0
          %v1052 = vadd.f32 0.0, %v1051
          %1053 = vdwg.mxu0
          %v1055 = vsel %vm742, %v915, 0
          %v1058 = vsel %vm742, %v917, 0
          %v1061 = vsel %vm742, %v815, 0
          %v1064 = vsel %vm742, %v817, 0
          %1066 = vmatpush.xpose.msra.mxu0 0.0
          %1067 = vmatpush.xpose.msra.mxu0 0.0
          %1068 = vmatpush.xpose.msra.mxu0 0.0
          %1069 = vmatpush.xpose.msra.mxu0 0.0
          %1070 = vmatpush.xpose.msra.mxu0 0.0
          %1071 = vmatpush.xpose.msra.mxu0 0.0
          %1072 = vmatpush.xpose.msra.mxu0 0.0
          %1073 = vmatpush.xpose.msra.mxu0 0.0
          %1074 = vmatpush.xpose.msra.mxu0 0.0
          %1075 = vmatpush.xpose.msra.mxu0 0.0
          %1076 = vmatpush.xpose.msra.mxu0 0.0
          %1077 = vmatpush.xpose.msra.mxu0 0.0
          %1078 = vmatpush.xpose.msra.mxu0 0.0
          %1079 = vmatpush.xpose.msra.mxu0 0.0
          %1080 = vmatpush.xpose.msra.mxu0 %v1064
          %1081 = vmatpush.xpose.msra.mxu0 %v1061
          %1082 = vmatmul.f32.gmra.mxu0 %v1055
          %v1083 = vpop.f32.mrf.mxu0
          %v1084 = vadd.f32 0.0, %v1083
          %1085 = vmatmul.f32.gmra.mxu0 %v1058
          %v1086 = vpop.f32.mrf.mxu0
          %v1087 = vadd.f32 0.0, %v1086
          %1088 = vdwg.mxu0
          %v1090 = vsel %vm742, %v920, 0
          %v1093 = vsel %vm742, %v922, 0
          %v1096 = vsel %vm742, %v820, 0
          %v1099 = vsel %vm742, %v822, 0
          %1101 = vmatpush.xpose.msra.mxu0 0.0
          %1102 = vmatpush.xpose.msra.mxu0 0.0
          %1103 = vmatpush.xpose.msra.mxu0 0.0
          %1104 = vmatpush.xpose.msra.mxu0 0.0
          %1105 = vmatpush.xpose.msra.mxu0 0.0
          %1106 = vmatpush.xpose.msra.mxu0 0.0
          %1107 = vmatpush.xpose.msra.mxu0 0.0
          %1108 = vmatpush.xpose.msra.mxu0 0.0
          %1109 = vmatpush.xpose.msra.mxu0 0.0
          %1110 = vmatpush.xpose.msra.mxu0 0.0
          %1111 = vmatpush.xpose.msra.mxu0 0.0
          %1112 = vmatpush.xpose.msra.mxu0 0.0
          %1113 = vmatpush.xpose.msra.mxu0 0.0
          %1114 = vmatpush.xpose.msra.mxu0 0.0
          %1115 = vmatpush.xpose.msra.mxu0 %v1099
          %1116 = vmatpush.xpose.msra.mxu0 %v1096
          %1117 = vmatmul.f32.gmra.mxu0 %v1090
          %v1118 = vpop.f32.mrf.mxu0
          %v1119 = vadd.f32 0.0, %v1118
          %1120 = vmatmul.f32.gmra.mxu0 %v1093
          %v1121 = vpop.f32.mrf.mxu0
          %v1122 = vadd.f32 0.0, %v1121
          %1123 = vdwg.mxu0
          %v1125 = vsel %vm742, %v925, 0
          %v1128 = vsel %vm742, %v927, 0
          %v1131 = vsel %vm742, %v825, 0
          %v1134 = vsel %vm742, %v827, 0
          %1136 = vmatpush.xpose.msra.mxu0 0.0
          %1137 = vmatpush.xpose.msra.mxu0 0.0
          %1138 = vmatpush.xpose.msra.mxu0 0.0
          %1139 = vmatpush.xpose.msra.mxu0 0.0
          %1140 = vmatpush.xpose.msra.mxu0 0.0
          %1141 = vmatpush.xpose.msra.mxu0 0.0
          %1142 = vmatpush.xpose.msra.mxu0 0.0
          %1143 = vmatpush.xpose.msra.mxu0 0.0
          %1144 = vmatpush.xpose.msra.mxu0 0.0
          %1145 = vmatpush.xpose.msra.mxu0 0.0
          %1146 = vmatpush.xpose.msra.mxu0 0.0
          %1147 = vmatpush.xpose.msra.mxu0 0.0
          %1148 = vmatpush.xpose.msra.mxu0 0.0
          %1149 = vmatpush.xpose.msra.mxu0 0.0
          %1150 = vmatpush.xpose.msra.mxu0 %v1134
          %1151 = vmatpush.xpose.msra.mxu0 %v1131
          %1152 = vmatmul.f32.gmra.mxu0 %v1125
          %v1153 = vpop.f32.mrf.mxu0
          %v1154 = vadd.f32 0.0, %v1153
          %1155 = vmatmul.f32.gmra.mxu0 %v1128
          %v1156 = vpop.f32.mrf.mxu0
          %v1157 = vadd.f32 0.0, %v1156
          %1158 = vdwg.mxu0
          %v1160 = vsel %vm742, %v930, 0
          %v1163 = vsel %vm742, %v932, 0
          %v1166 = vsel %vm742, %v830, 0
          %v1169 = vsel %vm742, %v832, 0
          %1171 = vmatpush.xpose.msra.mxu0 0.0
          %1172 = vmatpush.xpose.msra.mxu0 0.0
          %1173 = vmatpush.xpose.msra.mxu0 0.0
          %1174 = vmatpush.xpose.msra.mxu0 0.0
          %1175 = vmatpush.xpose.msra.mxu0 0.0
          %1176 = vmatpush.xpose.msra.mxu0 0.0
          %1177 = vmatpush.xpose.msra.mxu0 0.0
          %1178 = vmatpush.xpose.msra.mxu0 0.0
          %1179 = vmatpush.xpose.msra.mxu0 0.0
          %1180 = vmatpush.xpose.msra.mxu0 0.0
          %1181 = vmatpush.xpose.msra.mxu0 0.0
          %1182 = vmatpush.xpose.msra.mxu0 0.0
          %1183 = vmatpush.xpose.msra.mxu0 0.0
          %1184 = vmatpush.xpose.msra.mxu0 0.0
          %1185 = vmatpush.xpose.msra.mxu0 %v1169
          %1186 = vmatpush.xpose.msra.mxu0 %v1166
          %1187 = vmatmul.f32.gmra.mxu0 %v1160
          %v1188 = vpop.f32.mrf.mxu0
          %v1189 = vadd.f32 0.0, %v1188
          %1190 = vmatmul.f32.gmra.mxu0 %v1163
          %v1191 = vpop.f32.mrf.mxu0
          %v1192 = vadd.f32 0.0, %v1191
          %1193 = vdwg.mxu0
          %v1195 = vsel %vm742, %v935, 0
          %v1198 = vsel %vm742, %v937, 0
          %v1201 = vsel %vm742, %v835, 0
          %v1204 = vsel %vm742, %v837, 0
          %1206 = vmatpush.xpose.msra.mxu0 0.0
          %1207 = vmatpush.xpose.msra.mxu0 0.0
          %1208 = vmatpush.xpose.msra.mxu0 0.0
          %1209 = vmatpush.xpose.msra.mxu0 0.0
          %1210 = vmatpush.xpose.msra.mxu0 0.0
          %1211 = vmatpush.xpose.msra.mxu0 0.0
          %1212 = vmatpush.xpose.msra.mxu0 0.0
          %1213 = vmatpush.xpose.msra.mxu0 0.0
          %1214 = vmatpush.xpose.msra.mxu0 0.0
          %1215 = vmatpush.xpose.msra.mxu0 0.0
          %1216 = vmatpush.xpose.msra.mxu0 0.0
          %1217 = vmatpush.xpose.msra.mxu0 0.0
          %1218 = vmatpush.xpose.msra.mxu0 0.0
          %1219 = vmatpush.xpose.msra.mxu0 0.0
          %1220 = vmatpush.xpose.msra.mxu0 %v1204
          %1221 = vmatpush.xpose.msra.mxu0 %v1201
          %1222 = vmatmul.f32.gmra.mxu0 %v1195
          %v1223 = vpop.f32.mrf.mxu0
          %v1224 = vadd.f32 0.0, %v1223
          %1225 = vmatmul.f32.gmra.mxu0 %v1198
          %v1226 = vpop.f32.mrf.mxu0
          %v1227 = vadd.f32 0.0, %v1226
          %1228 = vdwg.mxu0
          %v1230 = vsel %vm742, %v940, 0
          %v1233 = vsel %vm742, %v942, 0
          %v1236 = vsel %vm742, %v840, 0
          %v1239 = vsel %vm742, %v842, 0
          %1241 = vmatpush.xpose.msra.mxu0 0.0
          %1242 = vmatpush.xpose.msra.mxu0 0.0
          %1243 = vmatpush.xpose.msra.mxu0 0.0
          %1244 = vmatpush.xpose.msra.mxu0 0.0
          %1245 = vmatpush.xpose.msra.mxu0 0.0
          %1246 = vmatpush.xpose.msra.mxu0 0.0
          %1247 = vmatpush.xpose.msra.mxu0 0.0
          %1248 = vmatpush.xpose.msra.mxu0 0.0
          %1249 = vmatpush.xpose.msra.mxu0 0.0
          %1250 = vmatpush.xpose.msra.mxu0 0.0
          %1251 = vmatpush.xpose.msra.mxu0 0.0
          %1252 = vmatpush.xpose.msra.mxu0 0.0
          %1253 = vmatpush.xpose.msra.mxu0 0.0
          %1254 = vmatpush.xpose.msra.mxu0 0.0
          %1255 = vmatpush.xpose.msra.mxu0 %v1239
          %1256 = vmatpush.xpose.msra.mxu0 %v1236
          %1257 = vmatmul.f32.gmra.mxu0 %v1230
          %v1258 = vpop.f32.mrf.mxu0
          %v1259 = vadd.f32 0.0, %v1258
          %1260 = vmatmul.f32.gmra.mxu0 %v1233
          %v1261 = vpop.f32.mrf.mxu0
          %v1262 = vadd.f32 0.0, %v1261
          %1263 = vdwg.mxu0
          %v1265 = vsel %vm742, %v945, 0
          %v1268 = vsel %vm742, %v947, 0
          %v1271 = vsel %vm742, %v845, 0
          %v1274 = vsel %vm742, %v847, 0
          %1276 = vmatpush.xpose.msra.mxu0 0.0
          %1277 = vmatpush.xpose.msra.mxu0 0.0
          %1278 = vmatpush.xpose.msra.mxu0 0.0
          %1279 = vmatpush.xpose.msra.mxu0 0.0
          %1280 = vmatpush.xpose.msra.mxu0 0.0
          %1281 = vmatpush.xpose.msra.mxu0 0.0
          %1282 = vmatpush.xpose.msra.mxu0 0.0
          %1283 = vmatpush.xpose.msra.mxu0 0.0
          %1284 = vmatpush.xpose.msra.mxu0 0.0
          %1285 = vmatpush.xpose.msra.mxu0 0.0
          %1286 = vmatpush.xpose.msra.mxu0 0.0
          %1287 = vmatpush.xpose.msra.mxu0 0.0
          %1288 = vmatpush.xpose.msra.mxu0 0.0
          %1289 = vmatpush.xpose.msra.mxu0 0.0
          %1290 = vmatpush.xpose.msra.mxu0 %v1274
          %1291 = vmatpush.xpose.msra.mxu0 %v1271
          %1292 = vmatmul.f32.gmra.mxu0 %v1265
          %v1293 = vpop.f32.mrf.mxu0
          %v1294 = vadd.f32 0.0, %v1293
          %1295 = vmatmul.f32.gmra.mxu0 %v1268
          %v1296 = vpop.f32.mrf.mxu0
          %v1297 = vadd.f32 0.0, %v1296
          %1298 = vdwg.mxu0
          %v1300 = vsel %vm742, %v950, 0
          %v1303 = vsel %vm742, %v952, 0
          %v1306 = vsel %vm742, %v850, 0
          %v1309 = vsel %vm742, %v852, 0
          %1311 = vmatpush.xpose.msra.mxu0 0.0
          %1312 = vmatpush.xpose.msra.mxu0 0.0
          %1313 = vmatpush.xpose.msra.mxu0 0.0
          %1314 = vmatpush.xpose.msra.mxu0 0.0
          %1315 = vmatpush.xpose.msra.mxu0 0.0
          %1316 = vmatpush.xpose.msra.mxu0 0.0
          %1317 = vmatpush.xpose.msra.mxu0 0.0
          %1318 = vmatpush.xpose.msra.mxu0 0.0
          %1319 = vmatpush.xpose.msra.mxu0 0.0
          %1320 = vmatpush.xpose.msra.mxu0 0.0
          %1321 = vmatpush.xpose.msra.mxu0 0.0
          %1322 = vmatpush.xpose.msra.mxu0 0.0
          %1323 = vmatpush.xpose.msra.mxu0 0.0
          %1324 = vmatpush.xpose.msra.mxu0 0.0
          %1325 = vmatpush.xpose.msra.mxu0 %v1309
          %1326 = vmatpush.xpose.msra.mxu0 %v1306
          %1327 = vmatmul.f32.gmra.mxu0 %v1300
          %v1328 = vpop.f32.mrf.mxu0
          %v1329 = vadd.f32 0.0, %v1328
          %1330 = vmatmul.f32.gmra.mxu0 %v1303
          %v1331 = vpop.f32.mrf.mxu0
          %v1332 = vadd.f32 0.0, %v1331
          %1333 = vdwg.mxu0
          %v1335 = vsel %vm742, %v955, 0
          %v1338 = vsel %vm742, %v957, 0
          %v1341 = vsel %vm742, %v855, 0
          %v1344 = vsel %vm742, %v857, 0
          %1346 = vmatpush.xpose.msra.mxu0 0.0
          %1347 = vmatpush.xpose.msra.mxu0 0.0
          %1348 = vmatpush.xpose.msra.mxu0 0.0
          %1349 = vmatpush.xpose.msra.mxu0 0.0
          %1350 = vmatpush.xpose.msra.mxu0 0.0
          %1351 = vmatpush.xpose.msra.mxu0 0.0
          %1352 = vmatpush.xpose.msra.mxu0 0.0
          %1353 = vmatpush.xpose.msra.mxu0 0.0
          %1354 = vmatpush.xpose.msra.mxu0 0.0
          %1355 = vmatpush.xpose.msra.mxu0 0.0
          %1356 = vmatpush.xpose.msra.mxu0 0.0
          %1357 = vmatpush.xpose.msra.mxu0 0.0
          %1358 = vmatpush.xpose.msra.mxu0 0.0
          %1359 = vmatpush.xpose.msra.mxu0 0.0
          %1360 = vmatpush.xpose.msra.mxu0 %v1344
          %1361 = vmatpush.xpose.msra.mxu0 %v1341
          %1362 = vmatmul.f32.gmra.mxu0 %v1335
          %v1363 = vpop.f32.mrf.mxu0
          %v1364 = vadd.f32 0.0, %v1363
          %1365 = vmatmul.f32.gmra.mxu0 %v1338
          %v1366 = vpop.f32.mrf.mxu0
          %v1367 = vadd.f32 0.0, %v1366
          %1368 = vdwg.mxu0
          %v1370 = vsel %vm742, %v960, 0
          %v1373 = vsel %vm742, %v962, 0
          %v1376 = vsel %vm742, %v860, 0
          %v1379 = vsel %vm742, %v862, 0
          %1381 = vmatpush.xpose.msra.mxu0 0.0
          %1382 = vmatpush.xpose.msra.mxu0 0.0
          %1383 = vmatpush.xpose.msra.mxu0 0.0
          %1384 = vmatpush.xpose.msra.mxu0 0.0
          %1385 = vmatpush.xpose.msra.mxu0 0.0
          %1386 = vmatpush.xpose.msra.mxu0 0.0
          %1387 = vmatpush.xpose.msra.mxu0 0.0
          %1388 = vmatpush.xpose.msra.mxu0 0.0
          %1389 = vmatpush.xpose.msra.mxu0 0.0
          %1390 = vmatpush.xpose.msra.mxu0 0.0
          %1391 = vmatpush.xpose.msra.mxu0 0.0
          %1392 = vmatpush.xpose.msra.mxu0 0.0
          %1393 = vmatpush.xpose.msra.mxu0 0.0
          %1394 = vmatpush.xpose.msra.mxu0 0.0
          %1395 = vmatpush.xpose.msra.mxu0 %v1379
          %1396 = vmatpush.xpose.msra.mxu0 %v1376
          %1397 = vmatmul.f32.gmra.mxu0 %v1370
          %v1398 = vpop.f32.mrf.mxu0
          %v1399 = vadd.f32 0.0, %v1398
          %1400 = vmatmul.f32.gmra.mxu0 %v1373
          %v1401 = vpop.f32.mrf.mxu0
          %v1402 = vadd.f32 0.0, %v1401
          %1403 = vdwg.mxu0
          %v1405 = vsel %vm742, %v965, 0
          %v1408 = vsel %vm742, %v967, 0
          %v1411 = vsel %vm742, %v865, 0
          %v1414 = vsel %vm742, %v867, 0
          %1416 = vmatpush.xpose.msra.mxu0 0.0
          %1417 = vmatpush.xpose.msra.mxu0 0.0
          %1418 = vmatpush.xpose.msra.mxu0 0.0
          %1419 = vmatpush.xpose.msra.mxu0 0.0
          %1420 = vmatpush.xpose.msra.mxu0 0.0
          %1421 = vmatpush.xpose.msra.mxu0 0.0
          %1422 = vmatpush.xpose.msra.mxu0 0.0
          %1423 = vmatpush.xpose.msra.mxu0 0.0
          %1424 = vmatpush.xpose.msra.mxu0 0.0
          %1425 = vmatpush.xpose.msra.mxu0 0.0
          %1426 = vmatpush.xpose.msra.mxu0 0.0
          %1427 = vmatpush.xpose.msra.mxu0 0.0
          %1428 = vmatpush.xpose.msra.mxu0 0.0
          %1429 = vmatpush.xpose.msra.mxu0 0.0
          %1430 = vmatpush.xpose.msra.mxu0 %v1414
          %1431 = vmatpush.xpose.msra.mxu0 %v1411
          %1432 = vmatmul.f32.gmra.mxu0 %v1405
          %v1433 = vpop.f32.mrf.mxu0
          %v1434 = vadd.f32 0.0, %v1433
          %1435 = vmatmul.f32.gmra.mxu0 %v1408
          %v1436 = vpop.f32.mrf.mxu0
          %v1437 = vadd.f32 0.0, %v1436
          %1438 = vdwg.mxu0
          %v1440 = vsel %vm742, %v970, 0
          %v1443 = vsel %vm742, %v972, 0
          %v1446 = vsel %vm742, %v870, 0
          %v1449 = vsel %vm742, %v872, 0
          %1451 = vmatpush.xpose.msra.mxu0 0.0
          %1452 = vmatpush.xpose.msra.mxu0 0.0
          %1453 = vmatpush.xpose.msra.mxu0 0.0
          %1454 = vmatpush.xpose.msra.mxu0 0.0
          %1455 = vmatpush.xpose.msra.mxu0 0.0
          %1456 = vmatpush.xpose.msra.mxu0 0.0
          %1457 = vmatpush.xpose.msra.mxu0 0.0
          %1458 = vmatpush.xpose.msra.mxu0 0.0
          %1459 = vmatpush.xpose.msra.mxu0 0.0
          %1460 = vmatpush.xpose.msra.mxu0 0.0
          %1461 = vmatpush.xpose.msra.mxu0 0.0
          %1462 = vmatpush.xpose.msra.mxu0 0.0
          %1463 = vmatpush.xpose.msra.mxu0 0.0
          %1464 = vmatpush.xpose.msra.mxu0 0.0
          %1465 = vmatpush.xpose.msra.mxu0 %v1449
          %1466 = vmatpush.xpose.msra.mxu0 %v1446
          %1467 = vmatmul.f32.gmra.mxu0 %v1440
          %v1468 = vpop.f32.mrf.mxu0
          %v1469 = vadd.f32 0.0, %v1468
          %1470 = vmatmul.f32.gmra.mxu0 %v1443
          %v1471 = vpop.f32.mrf.mxu0
          %v1472 = vadd.f32 0.0, %v1471
          %1473 = vdwg.mxu0
          %v1475 = vsel %vm742, %v975, 0
          %v1478 = vsel %vm742, %v977, 0
          %v1481 = vsel %vm742, %v875, 0
          %v1484 = vsel %vm742, %v877, 0
          %1486 = vmatpush.xpose.msra.mxu0 0.0
          %1487 = vmatpush.xpose.msra.mxu0 0.0
          %1488 = vmatpush.xpose.msra.mxu0 0.0
          %1489 = vmatpush.xpose.msra.mxu0 0.0
          %1490 = vmatpush.xpose.msra.mxu0 0.0
          %1491 = vmatpush.xpose.msra.mxu0 0.0
          %1492 = vmatpush.xpose.msra.mxu0 0.0
          %1493 = vmatpush.xpose.msra.mxu0 0.0
          %1494 = vmatpush.xpose.msra.mxu0 0.0
          %1495 = vmatpush.xpose.msra.mxu0 0.0
          %1496 = vmatpush.xpose.msra.mxu0 0.0
          %1497 = vmatpush.xpose.msra.mxu0 0.0
          %1498 = vmatpush.xpose.msra.mxu0 0.0
          %1499 = vmatpush.xpose.msra.mxu0 0.0
          %1500 = vmatpush.xpose.msra.mxu0 %v1484
          %1501 = vmatpush.xpose.msra.mxu0 %v1481
          %1502 = vmatmul.f32.gmra.mxu0 %v1475
          %v1503 = vpop.f32.mrf.mxu0
          %v1504 = vadd.f32 0.0, %v1503
          %1505 = vmatmul.f32.gmra.mxu0 %v1478
          %v1506 = vpop.f32.mrf.mxu0
          %v1507 = vadd.f32 0.0, %v1506
          %1508 = vdwg.mxu0
          %v1510 = vsel %vm742, %v980, 0
          %v1513 = vsel %vm742, %v982, 0
          %v1516 = vsel %vm742, %v880, 0
          %v1519 = vsel %vm742, %v882, 0
          %1521 = vmatpush.xpose.msra.mxu0 0.0
          %1522 = vmatpush.xpose.msra.mxu0 0.0
          %1523 = vmatpush.xpose.msra.mxu0 0.0
          %1524 = vmatpush.xpose.msra.mxu0 0.0
          %1525 = vmatpush.xpose.msra.mxu0 0.0
          %1526 = vmatpush.xpose.msra.mxu0 0.0
          %1527 = vmatpush.xpose.msra.mxu0 0.0
          %1528 = vmatpush.xpose.msra.mxu0 0.0
          %1529 = vmatpush.xpose.msra.mxu0 0.0
          %1530 = vmatpush.xpose.msra.mxu0 0.0
          %1531 = vmatpush.xpose.msra.mxu0 0.0
          %1532 = vmatpush.xpose.msra.mxu0 0.0
          %1533 = vmatpush.xpose.msra.mxu0 0.0
          %1534 = vmatpush.xpose.msra.mxu0 0.0
          %1535 = vmatpush.xpose.msra.mxu0 %v1519
          %1536 = vmatpush.xpose.msra.mxu0 %v1516
          %1537 = vmatmul.f32.gmra.mxu0 %v1510
          %v1538 = vpop.f32.mrf.mxu0
          %v1539 = vadd.f32 0.0, %v1538
          %1540 = vmatmul.f32.gmra.mxu0 %v1513
          %v1541 = vpop.f32.mrf.mxu0
          %v1542 = vadd.f32 0.0, %v1541
          %1543 = vdwg.mxu0
          %vm1544 = vcmask 130048
          %v1545 = vsel %vm1544, %v1014, 0.0
          %v1546 = vsel %vm1544, %v1049, 0.0
          %v1547 = vadd.f32 %v1545, %v1546
          %v1548 = vsel %vm1544, %v1084, 0.0
          %v1549 = vadd.f32 %v1547, %v1548
          %v1550 = vsel %vm1544, %v1119, 0.0
          %v1551 = vadd.f32 %v1549, %v1550
          %v1552 = vsel %vm1544, %v1154, 0.0
          %v1553 = vadd.f32 %v1551, %v1552
          %v1554 = vsel %vm1544, %v1189, 0.0
          %v1555 = vadd.f32 %v1553, %v1554
          %v1556 = vsel %vm1544, %v1224, 0.0
          %v1557 = vadd.f32 %v1555, %v1556
          %v1558 = vsel %vm1544, %v1259, 0.0
          %v1559 = vadd.f32 %v1557, %v1558
          %v1560 = vsel %vm1544, %v1294, 0.0
          %v1561 = vadd.f32 %v1559, %v1560
          %v1562 = vsel %vm1544, %v1329, 0.0
          %v1563 = vadd.f32 %v1561, %v1562
          %v1564 = vsel %vm1544, %v1364, 0.0
          %v1565 = vadd.f32 %v1563, %v1564
          %v1566 = vsel %vm1544, %v1399, 0.0
          %v1567 = vadd.f32 %v1565, %v1566
          %v1568 = vsel %vm1544, %v1434, 0.0
          %v1569 = vadd.f32 %v1567, %v1568
          %v1570 = vsel %vm1544, %v1469, 0.0
          %v1571 = vadd.f32 %v1569, %v1570
          %v1572 = vsel %vm1544, %v1504, 0.0
          %v1573 = vadd.f32 %v1571, %v1572
          %v1574 = vsel %vm1544, %v1539, 0.0
          %v1575 = vadd.f32 %v1573, %v1574
          %v1576 = vsel %vm1544, %v1017, 0.0
          %v1577 = vsel %vm1544, %v1052, 0.0
          %v1578 = vadd.f32 %v1576, %v1577
          %v1579 = vsel %vm1544, %v1087, 0.0
          %v1580 = vadd.f32 %v1578, %v1579
          %v1581 = vsel %vm1544, %v1122, 0.0
          %v1582 = vadd.f32 %v1580, %v1581
          %v1583 = vsel %vm1544, %v1157, 0.0
          %v1584 = vadd.f32 %v1582, %v1583
          %v1585 = vsel %vm1544, %v1192, 0.0
          %v1586 = vadd.f32 %v1584, %v1585
          %v1587 = vsel %vm1544, %v1227, 0.0
          %v1588 = vadd.f32 %v1586, %v1587
          %v1589 = vsel %vm1544, %v1262, 0.0
          %v1590 = vadd.f32 %v1588, %v1589
          %v1591 = vsel %vm1544, %v1297, 0.0
          %v1592 = vadd.f32 %v1590, %v1591
          %v1593 = vsel %vm1544, %v1332, 0.0
          %v1594 = vadd.f32 %v1592, %v1593
          %v1595 = vsel %vm1544, %v1367, 0.0
          %v1596 = vadd.f32 %v1594, %v1595
          %v1597 = vsel %vm1544, %v1402, 0.0
          %v1598 = vadd.f32 %v1596, %v1597
          %v1599 = vsel %vm1544, %v1437, 0.0
          %v1600 = vadd.f32 %v1598, %v1599
          %v1601 = vsel %vm1544, %v1472, 0.0
          %v1602 = vadd.f32 %v1600, %v1601
          %v1603 = vsel %vm1544, %v1507, 0.0
          %v1604 = vadd.f32 %v1602, %v1603
          %v1605 = vsel %vm1544, %v1542, 0.0
          %v1606 = vadd.f32 %v1604, %v1605
          %s1607 = smul.u32 %s697, 16
          %s1608 = scalar_lea.vmem %s6, %s1607
          %v1609 = vld [vmem:[%s1608] sm:$0xff]
          %v1610 = vld [vmem:[%s1608 + $0x8] sm:$0xff]
          %v1611 = vmul.f32 %v1575, 0.015625
          %v1612 = vmul.f32 %v1606, 0.015625
          %v1613 = vtanh.pop %v1611
          %v1614 = vtanh.pop %v1612
          %v1615 = vstv %s645
          %v1616 = vmul.f32 %v1615, %v1613
          %v1617 = vmul.f32 %v1615, %v1614
          %v1618 = vadd.f32 %v1609, %v1616
          %v1619 = vadd.f32 %v1610, %v1617
          %v1621 = vsel %vm1544, %v1618, 0
          %v1624 = vsel %vm1544, %v1619, 0
          %1626 = vmatpush.msra.mxu0 0.0
          %1627 = vmatpush.msra.mxu0 0.0
          %1628 = vmatpush.msra.mxu0 0.0
          %1629 = vmatpush.msra.mxu0 0.0
          %1630 = vmatpush.msra.mxu0 0.0
          %1631 = vmatpush.msra.mxu0 0.0
          %1632 = vmatpush.msra.mxu0 0.0
          %1633 = vmatpush.msra.mxu0 0.0
          %1634 = vmatpush.msra.mxu0 0.0
          %1635 = vmatpush.msra.mxu0 0.0
          %1636 = vmatpush.msra.mxu0 0.0
          %1637 = vmatpush.msra.mxu0 0.0
          %1638 = vmatpush.msra.mxu0 0.0
          %1639 = vmatpush.msra.mxu0 0.0
          %1640 = vmatpush.msra.mxu0 %v649
          %1641 = vmatpush.msra.mxu0 %v648
          %1642 = vmatmul.f32.gmra.mxu0 %v1621
          %v1643 = vpop.f32.mrf.mxu0
          %v1644 = vadd.f32 0.0, %v1643
          %1645 = vmatmul.f32.gmra.mxu0 %v1624
          %v1646 = vpop.f32.mrf.mxu0
          %v1647 = vadd.f32 0.0, %v1646
          %1648 = vdwg.mxu0
          %1649 = vmatpush.msra.mxu0 0.0
          %1650 = vmatpush.msra.mxu0 0.0
          %1651 = vmatpush.msra.mxu0 0.0
          %1652 = vmatpush.msra.mxu0 0.0
          %1653 = vmatpush.msra.mxu0 0.0
          %1654 = vmatpush.msra.mxu0 0.0
          %1655 = vmatpush.msra.mxu0 0.0
          %1656 = vmatpush.msra.mxu0 0.0
          %1657 = vmatpush.msra.mxu0 0.0
          %1658 = vmatpush.msra.mxu0 0.0
          %1659 = vmatpush.msra.mxu0 0.0
          %1660 = vmatpush.msra.mxu0 0.0
          %1661 = vmatpush.msra.mxu0 0.0
          %1662 = vmatpush.msra.mxu0 0.0
          %1663 = vmatpush.msra.mxu0 %v651
          %1664 = vmatpush.msra.mxu0 %v650
          %1665 = vmatmul.f32.gmra.mxu0 %v1621
          %v1666 = vpop.f32.mrf.mxu0
          %v1667 = vadd.f32 0.0, %v1666
          %1668 = vmatmul.f32.gmra.mxu0 %v1624
          %v1669 = vpop.f32.mrf.mxu0
          %v1670 = vadd.f32 0.0, %v1669
          %1671 = vdwg.mxu0
          %1672 = vmatpush.msra.mxu0 0.0
          %1673 = vmatpush.msra.mxu0 0.0
          %1674 = vmatpush.msra.mxu0 0.0
          %1675 = vmatpush.msra.mxu0 0.0
          %1676 = vmatpush.msra.mxu0 0.0
          %1677 = vmatpush.msra.mxu0 0.0
          %1678 = vmatpush.msra.mxu0 0.0
          %1679 = vmatpush.msra.mxu0 0.0
          %1680 = vmatpush.msra.mxu0 0.0
          %1681 = vmatpush.msra.mxu0 0.0
          %1682 = vmatpush.msra.mxu0 0.0
          %1683 = vmatpush.msra.mxu0 0.0
          %1684 = vmatpush.msra.mxu0 0.0
          %1685 = vmatpush.msra.mxu0 0.0
          %1686 = vmatpush.msra.mxu0 %v653
          %1687 = vmatpush.msra.mxu0 %v652
          %1688 = vmatmul.f32.gmra.mxu0 %v1621
          %v1689 = vpop.f32.mrf.mxu0
          %v1690 = vadd.f32 0.0, %v1689
          %1691 = vmatmul.f32.gmra.mxu0 %v1624
          %v1692 = vpop.f32.mrf.mxu0
          %v1693 = vadd.f32 0.0, %v1692
          %1694 = vdwg.mxu0
          %1695 = vmatpush.msra.mxu0 0.0
          %1696 = vmatpush.msra.mxu0 0.0
          %1697 = vmatpush.msra.mxu0 0.0
          %1698 = vmatpush.msra.mxu0 0.0
          %1699 = vmatpush.msra.mxu0 0.0
          %1700 = vmatpush.msra.mxu0 0.0
          %1701 = vmatpush.msra.mxu0 0.0
          %1702 = vmatpush.msra.mxu0 0.0
          %1703 = vmatpush.msra.mxu0 0.0
          %1704 = vmatpush.msra.mxu0 0.0
          %1705 = vmatpush.msra.mxu0 0.0
          %1706 = vmatpush.msra.mxu0 0.0
          %1707 = vmatpush.msra.mxu0 0.0
          %1708 = vmatpush.msra.mxu0 0.0
          %1709 = vmatpush.msra.mxu0 %v655
          %1710 = vmatpush.msra.mxu0 %v654
          %1711 = vmatmul.f32.gmra.mxu0 %v1621
          %v1712 = vpop.f32.mrf.mxu0
          %v1713 = vadd.f32 0.0, %v1712
          %1714 = vmatmul.f32.gmra.mxu0 %v1624
          %v1715 = vpop.f32.mrf.mxu0
          %v1716 = vadd.f32 0.0, %v1715
          %1717 = vdwg.mxu0
          %1718 = vmatpush.msra.mxu0 0.0
          %1719 = vmatpush.msra.mxu0 0.0
          %1720 = vmatpush.msra.mxu0 0.0
          %1721 = vmatpush.msra.mxu0 0.0
          %1722 = vmatpush.msra.mxu0 0.0
          %1723 = vmatpush.msra.mxu0 0.0
          %1724 = vmatpush.msra.mxu0 0.0
          %1725 = vmatpush.msra.mxu0 0.0
          %1726 = vmatpush.msra.mxu0 0.0
          %1727 = vmatpush.msra.mxu0 0.0
          %1728 = vmatpush.msra.mxu0 0.0
          %1729 = vmatpush.msra.mxu0 0.0
          %1730 = vmatpush.msra.mxu0 0.0
          %1731 = vmatpush.msra.mxu0 0.0
          %1732 = vmatpush.msra.mxu0 %v657
          %1733 = vmatpush.msra.mxu0 %v656
          %1734 = vmatmul.f32.gmra.mxu0 %v1621
          %v1735 = vpop.f32.mrf.mxu0
          %v1736 = vadd.f32 0.0, %v1735
          %1737 = vmatmul.f32.gmra.mxu0 %v1624
          %v1738 = vpop.f32.mrf.mxu0
          %v1739 = vadd.f32 0.0, %v1738
          %1740 = vdwg.mxu0
          %1741 = vmatpush.msra.mxu0 0.0
          %1742 = vmatpush.msra.mxu0 0.0
          %1743 = vmatpush.msra.mxu0 0.0
          %1744 = vmatpush.msra.mxu0 0.0
          %1745 = vmatpush.msra.mxu0 0.0
          %1746 = vmatpush.msra.mxu0 0.0
          %1747 = vmatpush.msra.mxu0 0.0
          %1748 = vmatpush.msra.mxu0 0.0
          %1749 = vmatpush.msra.mxu0 0.0
          %1750 = vmatpush.msra.mxu0 0.0
          %1751 = vmatpush.msra.mxu0 0.0
          %1752 = vmatpush.msra.mxu0 0.0
          %1753 = vmatpush.msra.mxu0 0.0
          %1754 = vmatpush.msra.mxu0 0.0
          %1755 = vmatpush.msra.mxu0 %v659
          %1756 = vmatpush.msra.mxu0 %v658
          %1757 = vmatmul.f32.gmra.mxu0 %v1621
          %v1758 = vpop.f32.mrf.mxu0
          %v1759 = vadd.f32 0.0, %v1758
          %1760 = vmatmul.f32.gmra.mxu0 %v1624
          %v1761 = vpop.f32.mrf.mxu0
          %v1762 = vadd.f32 0.0, %v1761
          %1763 = vdwg.mxu0
          %1764 = vmatpush.msra.mxu0 0.0
          %1765 = vmatpush.msra.mxu0 0.0
          %1766 = vmatpush.msra.mxu0 0.0
          %1767 = vmatpush.msra.mxu0 0.0
          %1768 = vmatpush.msra.mxu0 0.0
          %1769 = vmatpush.msra.mxu0 0.0
          %1770 = vmatpush.msra.mxu0 0.0
          %1771 = vmatpush.msra.mxu0 0.0
          %1772 = vmatpush.msra.mxu0 0.0
          %1773 = vmatpush.msra.mxu0 0.0
          %1774 = vmatpush.msra.mxu0 0.0
          %1775 = vmatpush.msra.mxu0 0.0
          %1776 = vmatpush.msra.mxu0 0.0
          %1777 = vmatpush.msra.mxu0 0.0
          %1778 = vmatpush.msra.mxu0 %v661
          %1779 = vmatpush.msra.mxu0 %v660
          %1780 = vmatmul.f32.gmra.mxu0 %v1621
          %v1781 = vpop.f32.mrf.mxu0
          %v1782 = vadd.f32 0.0, %v1781
          %1783 = vmatmul.f32.gmra.mxu0 %v1624
          %v1784 = vpop.f32.mrf.mxu0
          %v1785 = vadd.f32 0.0, %v1784
          %1786 = vdwg.mxu0
          %1787 = vmatpush.msra.mxu0 0.0
          %1788 = vmatpush.msra.mxu0 0.0
          %1789 = vmatpush.msra.mxu0 0.0
          %1790 = vmatpush.msra.mxu0 0.0
          %1791 = vmatpush.msra.mxu0 0.0
          %1792 = vmatpush.msra.mxu0 0.0
          %1793 = vmatpush.msra.mxu0 0.0
          %1794 = vmatpush.msra.mxu0 0.0
          %1795 = vmatpush.msra.mxu0 0.0
          %1796 = vmatpush.msra.mxu0 0.0
          %1797 = vmatpush.msra.mxu0 0.0
          %1798 = vmatpush.msra.mxu0 0.0
          %1799 = vmatpush.msra.mxu0 0.0
          %1800 = vmatpush.msra.mxu0 0.0
          %1801 = vmatpush.msra.mxu0 %v663
          %1802 = vmatpush.msra.mxu0 %v662
          %1803 = vmatmul.f32.gmra.mxu0 %v1621
          %v1804 = vpop.f32.mrf.mxu0
          %v1805 = vadd.f32 0.0, %v1804
          %1806 = vmatmul.f32.gmra.mxu0 %v1624
          %v1807 = vpop.f32.mrf.mxu0
          %v1808 = vadd.f32 0.0, %v1807
          %1809 = vdwg.mxu0
          %1810 = vmatpush.msra.mxu0 0.0
          %1811 = vmatpush.msra.mxu0 0.0
          %1812 = vmatpush.msra.mxu0 0.0
          %1813 = vmatpush.msra.mxu0 0.0
          %1814 = vmatpush.msra.mxu0 0.0
          %1815 = vmatpush.msra.mxu0 0.0
          %1816 = vmatpush.msra.mxu0 0.0
          %1817 = vmatpush.msra.mxu0 0.0
          %1818 = vmatpush.msra.mxu0 0.0
          %1819 = vmatpush.msra.mxu0 0.0
          %1820 = vmatpush.msra.mxu0 0.0
          %1821 = vmatpush.msra.mxu0 0.0
          %1822 = vmatpush.msra.mxu0 0.0
          %1823 = vmatpush.msra.mxu0 0.0
          %1824 = vmatpush.msra.mxu0 %v665
          %1825 = vmatpush.msra.mxu0 %v664
          %1826 = vmatmul.f32.gmra.mxu0 %v1621
          %v1827 = vpop.f32.mrf.mxu0
          %v1828 = vadd.f32 0.0, %v1827
          %1829 = vmatmul.f32.gmra.mxu0 %v1624
          %v1830 = vpop.f32.mrf.mxu0
          %v1831 = vadd.f32 0.0, %v1830
          %1832 = vdwg.mxu0
          %1833 = vmatpush.msra.mxu0 0.0
          %1834 = vmatpush.msra.mxu0 0.0
          %1835 = vmatpush.msra.mxu0 0.0
          %1836 = vmatpush.msra.mxu0 0.0
          %1837 = vmatpush.msra.mxu0 0.0
          %1838 = vmatpush.msra.mxu0 0.0
          %1839 = vmatpush.msra.mxu0 0.0
          %1840 = vmatpush.msra.mxu0 0.0
          %1841 = vmatpush.msra.mxu0 0.0
          %1842 = vmatpush.msra.mxu0 0.0
          %1843 = vmatpush.msra.mxu0 0.0
          %1844 = vmatpush.msra.mxu0 0.0
          %1845 = vmatpush.msra.mxu0 0.0
          %1846 = vmatpush.msra.mxu0 0.0
          %1847 = vmatpush.msra.mxu0 %v667
          %1848 = vmatpush.msra.mxu0 %v666
          %1849 = vmatmul.f32.gmra.mxu0 %v1621
          %v1850 = vpop.f32.mrf.mxu0
          %v1851 = vadd.f32 0.0, %v1850
          %1852 = vmatmul.f32.gmra.mxu0 %v1624
          %v1853 = vpop.f32.mrf.mxu0
          %v1854 = vadd.f32 0.0, %v1853
          %1855 = vdwg.mxu0
          %1856 = vmatpush.msra.mxu0 0.0
          %1857 = vmatpush.msra.mxu0 0.0
          %1858 = vmatpush.msra.mxu0 0.0
          %1859 = vmatpush.msra.mxu0 0.0
          %1860 = vmatpush.msra.mxu0 0.0
          %1861 = vmatpush.msra.mxu0 0.0
          %1862 = vmatpush.msra.mxu0 0.0
          %1863 = vmatpush.msra.mxu0 0.0
          %1864 = vmatpush.msra.mxu0 0.0
          %1865 = vmatpush.msra.mxu0 0.0
          %1866 = vmatpush.msra.mxu0 0.0
          %1867 = vmatpush.msra.mxu0 0.0
          %1868 = vmatpush.msra.mxu0 0.0
          %1869 = vmatpush.msra.mxu0 0.0
          %1870 = vmatpush.msra.mxu0 %v669
          %1871 = vmatpush.msra.mxu0 %v668
          %1872 = vmatmul.f32.gmra.mxu0 %v1621
          %v1873 = vpop.f32.mrf.mxu0
          %v1874 = vadd.f32 0.0, %v1873
          %1875 = vmatmul.f32.gmra.mxu0 %v1624
          %v1876 = vpop.f32.mrf.mxu0
          %v1877 = vadd.f32 0.0, %v1876
          %1878 = vdwg.mxu0
          %1879 = vmatpush.msra.mxu0 0.0
          %1880 = vmatpush.msra.mxu0 0.0
          %1881 = vmatpush.msra.mxu0 0.0
          %1882 = vmatpush.msra.mxu0 0.0
          %1883 = vmatpush.msra.mxu0 0.0
          %1884 = vmatpush.msra.mxu0 0.0
          %1885 = vmatpush.msra.mxu0 0.0
          %1886 = vmatpush.msra.mxu0 0.0
          %1887 = vmatpush.msra.mxu0 0.0
          %1888 = vmatpush.msra.mxu0 0.0
          %1889 = vmatpush.msra.mxu0 0.0
          %1890 = vmatpush.msra.mxu0 0.0
          %1891 = vmatpush.msra.mxu0 0.0
          %1892 = vmatpush.msra.mxu0 0.0
          %1893 = vmatpush.msra.mxu0 %v671
          %1894 = vmatpush.msra.mxu0 %v670
          %1895 = vmatmul.f32.gmra.mxu0 %v1621
          %v1896 = vpop.f32.mrf.mxu0
          %v1897 = vadd.f32 0.0, %v1896
          %1898 = vmatmul.f32.gmra.mxu0 %v1624
          %v1899 = vpop.f32.mrf.mxu0
          %v1900 = vadd.f32 0.0, %v1899
          %1901 = vdwg.mxu0
          %1902 = vmatpush.msra.mxu0 0.0
          %1903 = vmatpush.msra.mxu0 0.0
          %1904 = vmatpush.msra.mxu0 0.0
          %1905 = vmatpush.msra.mxu0 0.0
          %1906 = vmatpush.msra.mxu0 0.0
          %1907 = vmatpush.msra.mxu0 0.0
          %1908 = vmatpush.msra.mxu0 0.0
          %1909 = vmatpush.msra.mxu0 0.0
          %1910 = vmatpush.msra.mxu0 0.0
          %1911 = vmatpush.msra.mxu0 0.0
          %1912 = vmatpush.msra.mxu0 0.0
          %1913 = vmatpush.msra.mxu0 0.0
          %1914 = vmatpush.msra.mxu0 0.0
          %1915 = vmatpush.msra.mxu0 0.0
          %1916 = vmatpush.msra.mxu0 %v673
          %1917 = vmatpush.msra.mxu0 %v672
          %1918 = vmatmul.f32.gmra.mxu0 %v1621
          %v1919 = vpop.f32.mrf.mxu0
          %v1920 = vadd.f32 0.0, %v1919
          %1921 = vmatmul.f32.gmra.mxu0 %v1624
          %v1922 = vpop.f32.mrf.mxu0
          %v1923 = vadd.f32 0.0, %v1922
          %1924 = vdwg.mxu0
          %1925 = vmatpush.msra.mxu0 0.0
          %1926 = vmatpush.msra.mxu0 0.0
          %1927 = vmatpush.msra.mxu0 0.0
          %1928 = vmatpush.msra.mxu0 0.0
          %1929 = vmatpush.msra.mxu0 0.0
          %1930 = vmatpush.msra.mxu0 0.0
          %1931 = vmatpush.msra.mxu0 0.0
          %1932 = vmatpush.msra.mxu0 0.0
          %1933 = vmatpush.msra.mxu0 0.0
          %1934 = vmatpush.msra.mxu0 0.0
          %1935 = vmatpush.msra.mxu0 0.0
          %1936 = vmatpush.msra.mxu0 0.0
          %1937 = vmatpush.msra.mxu0 0.0
          %1938 = vmatpush.msra.mxu0 0.0
          %1939 = vmatpush.msra.mxu0 %v675
          %1940 = vmatpush.msra.mxu0 %v674
          %1941 = vmatmul.f32.gmra.mxu0 %v1621
          %v1942 = vpop.f32.mrf.mxu0
          %v1943 = vadd.f32 0.0, %v1942
          %1944 = vmatmul.f32.gmra.mxu0 %v1624
          %v1945 = vpop.f32.mrf.mxu0
          %v1946 = vadd.f32 0.0, %v1945
          %1947 = vdwg.mxu0
          %1948 = vmatpush.msra.mxu0 0.0
          %1949 = vmatpush.msra.mxu0 0.0
          %1950 = vmatpush.msra.mxu0 0.0
          %1951 = vmatpush.msra.mxu0 0.0
          %1952 = vmatpush.msra.mxu0 0.0
          %1953 = vmatpush.msra.mxu0 0.0
          %1954 = vmatpush.msra.mxu0 0.0
          %1955 = vmatpush.msra.mxu0 0.0
          %1956 = vmatpush.msra.mxu0 0.0
          %1957 = vmatpush.msra.mxu0 0.0
          %1958 = vmatpush.msra.mxu0 0.0
          %1959 = vmatpush.msra.mxu0 0.0
          %1960 = vmatpush.msra.mxu0 0.0
          %1961 = vmatpush.msra.mxu0 0.0
          %1962 = vmatpush.msra.mxu0 %v677
          %1963 = vmatpush.msra.mxu0 %v676
          %1964 = vmatmul.f32.gmra.mxu0 %v1621
          %v1965 = vpop.f32.mrf.mxu0
          %v1966 = vadd.f32 0.0, %v1965
          %1967 = vmatmul.f32.gmra.mxu0 %v1624
          %v1968 = vpop.f32.mrf.mxu0
          %v1969 = vadd.f32 0.0, %v1968
          %1970 = vdwg.mxu0
          %1971 = vmatpush.msra.mxu0 0.0
          %1972 = vmatpush.msra.mxu0 0.0
          %1973 = vmatpush.msra.mxu0 0.0
          %1974 = vmatpush.msra.mxu0 0.0
          %1975 = vmatpush.msra.mxu0 0.0
          %1976 = vmatpush.msra.mxu0 0.0
          %1977 = vmatpush.msra.mxu0 0.0
          %1978 = vmatpush.msra.mxu0 0.0
          %1979 = vmatpush.msra.mxu0 0.0
          %1980 = vmatpush.msra.mxu0 0.0
          %1981 = vmatpush.msra.mxu0 0.0
          %1982 = vmatpush.msra.mxu0 0.0
          %1983 = vmatpush.msra.mxu0 0.0
          %1984 = vmatpush.msra.mxu0 0.0
          %1985 = vmatpush.msra.mxu0 %v679
          %1986 = vmatpush.msra.mxu0 %v678
          %1987 = vmatmul.f32.gmra.mxu0 %v1621
          %v1988 = vpop.f32.mrf.mxu0
          %v1989 = vadd.f32 0.0, %v1988
          %1990 = vmatmul.f32.gmra.mxu0 %v1624
          %v1991 = vpop.f32.mrf.mxu0
          %v1992 = vadd.f32 0.0, %v1991
          %1993 = vdwg.mxu0
          %s1994 = smul.addr %s697, 2
          %s1995 = scalar_lea.vmem %s7, %s1994
          %v1996 = vld [vmem:[%s1995] sm:$0x3]
          %v1997 = vpack.c.bf16 %v1647, %v1644
          %v1998 = vpack.c.bf16 %v1670, %v1667
          %v1999 = vpack.c.bf16 %v1693, %v1690
          %v2000 = vpack.c.bf16 %v1716, %v1713
          %v2001 = vpack.c.bf16 %v1739, %v1736
          %v2002 = vpack.c.bf16 %v1762, %v1759
          %v2003 = vpack.c.bf16 %v1785, %v1782
          %v2004 = vpack.c.bf16 %v1808, %v1805
          %v2005 = vpack.c.bf16 %v1831, %v1828
          %v2006 = vpack.c.bf16 %v1854, %v1851
          %v2007 = vpack.c.bf16 %v1877, %v1874
          %v2008 = vpack.c.bf16 %v1900, %v1897
          %v2009 = vpack.c.bf16 %v1923, %v1920
          %v2010 = vpack.c.bf16 %v1946, %v1943
          %v2011 = vpack.c.bf16 %v1969, %v1966
          %v2012 = vpack.c.bf16 %v1992, %v1989
          %v2014 = vsel %vm742, %v1997, 0
          %v2017 = vsel %vm742, %v1998, 0
          %v2020 = vsel %vm742, %v1999, 0
          %v2023 = vsel %vm742, %v2000, 0
          %v2026 = vsel %vm742, %v2001, 0
          %v2029 = vsel %vm742, %v2002, 0
          %v2032 = vsel %vm742, %v2003, 0
          %v2035 = vsel %vm742, %v2004, 0
          %v2038 = vsel %vm742, %v2005, 0
          %v2041 = vsel %vm742, %v2006, 0
          %v2044 = vsel %vm742, %v2007, 0
          %v2047 = vsel %vm742, %v2008, 0
          %v2050 = vsel %vm742, %v2009, 0
          %v2053 = vsel %vm742, %v2010, 0
          %v2056 = vsel %vm742, %v2011, 0
          %v2059 = vsel %vm742, %v2012, 0
          %v2062 = vsel %vm791, %v1996, 0
          %2064 = vmatpush.bf16.msra.mxu0 0
          %2065 = vmatpush.bf16.msra.mxu0 0
          %2066 = vmatpush.bf16.msra.mxu0 0
          %2067 = vmatpush.bf16.msra.mxu0 0
          %2068 = vmatpush.bf16.msra.mxu0 0
          %2069 = vmatpush.bf16.msra.mxu0 0
          %2070 = vmatpush.bf16.msra.mxu0 0
          %2071 = vmatpush.bf16.msra.mxu0 %v2062
          %2072 = vmatmul.bf16.gmra.mxu0 %v2014
          %v2073 = vpop.f32.mrf.mxu0
          %v2074 = vadd.f32 0.0, %v2073
          %v2075 = vpop.f32.mrf.mxu0
          %v2076 = vadd.f32 0.0, %v2075
          %2077 = vmatmul.bf16.gmra.mxu0 %v2017
          %v2078 = vpop.f32.mrf.mxu0
          %v2079 = vadd.f32 0.0, %v2078
          %v2080 = vpop.f32.mrf.mxu0
          %v2081 = vadd.f32 0.0, %v2080
          %2082 = vmatmul.bf16.gmra.mxu0 %v2020
          %v2083 = vpop.f32.mrf.mxu0
          %v2084 = vadd.f32 0.0, %v2083
          %v2085 = vpop.f32.mrf.mxu0
          %v2086 = vadd.f32 0.0, %v2085
          %2087 = vmatmul.bf16.gmra.mxu0 %v2023
          %v2088 = vpop.f32.mrf.mxu0
          %v2089 = vadd.f32 0.0, %v2088
          %v2090 = vpop.f32.mrf.mxu0
          %v2091 = vadd.f32 0.0, %v2090
          %2092 = vmatmul.bf16.gmra.mxu0 %v2026
          %v2093 = vpop.f32.mrf.mxu0
          %v2094 = vadd.f32 0.0, %v2093
          %v2095 = vpop.f32.mrf.mxu0
          %v2096 = vadd.f32 0.0, %v2095
          %2097 = vmatmul.bf16.gmra.mxu0 %v2029
          %v2098 = vpop.f32.mrf.mxu0
          %v2099 = vadd.f32 0.0, %v2098
          %v2100 = vpop.f32.mrf.mxu0
          %v2101 = vadd.f32 0.0, %v2100
          %2102 = vmatmul.bf16.gmra.mxu0 %v2032
          %v2103 = vpop.f32.mrf.mxu0
          %v2104 = vadd.f32 0.0, %v2103
          %v2105 = vpop.f32.mrf.mxu0
          %v2106 = vadd.f32 0.0, %v2105
          %2107 = vmatmul.bf16.gmra.mxu0 %v2035
          %v2108 = vpop.f32.mrf.mxu0
          %v2109 = vadd.f32 0.0, %v2108
          %v2110 = vpop.f32.mrf.mxu0
          %v2111 = vadd.f32 0.0, %v2110
          %2112 = vmatmul.bf16.gmra.mxu0 %v2038
          %v2113 = vpop.f32.mrf.mxu0
          %v2114 = vadd.f32 0.0, %v2113
          %v2115 = vpop.f32.mrf.mxu0
          %v2116 = vadd.f32 0.0, %v2115
          %2117 = vmatmul.bf16.gmra.mxu0 %v2041
          %v2118 = vpop.f32.mrf.mxu0
          %v2119 = vadd.f32 0.0, %v2118
          %v2120 = vpop.f32.mrf.mxu0
          %v2121 = vadd.f32 0.0, %v2120
          %2122 = vmatmul.bf16.gmra.mxu0 %v2044
          %v2123 = vpop.f32.mrf.mxu0
          %v2124 = vadd.f32 0.0, %v2123
          %v2125 = vpop.f32.mrf.mxu0
          %v2126 = vadd.f32 0.0, %v2125
          %2127 = vmatmul.bf16.gmra.mxu0 %v2047
          %v2128 = vpop.f32.mrf.mxu0
          %v2129 = vadd.f32 0.0, %v2128
          %v2130 = vpop.f32.mrf.mxu0
          %v2131 = vadd.f32 0.0, %v2130
          %2132 = vmatmul.bf16.gmra.mxu0 %v2050
          %v2133 = vpop.f32.mrf.mxu0
          %v2134 = vadd.f32 0.0, %v2133
          %v2135 = vpop.f32.mrf.mxu0
          %v2136 = vadd.f32 0.0, %v2135
          %2137 = vmatmul.bf16.gmra.mxu0 %v2053
          %v2138 = vpop.f32.mrf.mxu0
          %v2139 = vadd.f32 0.0, %v2138
          %v2140 = vpop.f32.mrf.mxu0
          %v2141 = vadd.f32 0.0, %v2140
          %2142 = vmatmul.bf16.gmra.mxu0 %v2056
          %v2143 = vpop.f32.mrf.mxu0
          %v2144 = vadd.f32 0.0, %v2143
          %v2145 = vpop.f32.mrf.mxu0
          %v2146 = vadd.f32 0.0, %v2145
          %2147 = vmatmul.bf16.gmra.mxu0 %v2059
          %v2148 = vpop.f32.mrf.mxu0
          %v2149 = vadd.f32 0.0, %v2148
          %v2150 = vpop.f32.mrf.mxu0
          %v2151 = vadd.f32 0.0, %v2150
          %2152 = vdwg.mxu0
          %v2153 = vadd.f32 %v702, %v2074
          %v2154 = vadd.f32 %v703, %v2076
          %v2155 = vadd.f32 %v704, %v2079
          %v2156 = vadd.f32 %v705, %v2081
          %v2157 = vadd.f32 %v706, %v2084
          %v2158 = vadd.f32 %v707, %v2086
          %v2159 = vadd.f32 %v708, %v2089
          %v2160 = vadd.f32 %v709, %v2091
          %v2161 = vadd.f32 %v710, %v2094
          %v2162 = vadd.f32 %v711, %v2096
          %v2163 = vadd.f32 %v712, %v2099
          %v2164 = vadd.f32 %v713, %v2101
          %v2165 = vadd.f32 %v714, %v2104
          %v2166 = vadd.f32 %v715, %v2106
          %v2167 = vadd.f32 %v716, %v2109
          %v2168 = vadd.f32 %v717, %v2111
          %v2169 = vadd.f32 %v718, %v2114
          %v2170 = vadd.f32 %v719, %v2116
          %v2171 = vadd.f32 %v720, %v2119
          %v2172 = vadd.f32 %v721, %v2121
          %v2173 = vadd.f32 %v722, %v2124
          %v2174 = vadd.f32 %v723, %v2126
          %v2175 = vadd.f32 %v724, %v2129
          %v2176 = vadd.f32 %v725, %v2131
          %v2177 = vadd.f32 %v726, %v2134
          %v2178 = vadd.f32 %v727, %v2136
          %v2179 = vadd.f32 %v728, %v2139
          %v2180 = vadd.f32 %v729, %v2141
          %v2181 = vadd.f32 %v730, %v2144
          %v2182 = vadd.f32 %v731, %v2146
          %v2183 = vadd.f32 %v732, %v2149
          %v2184 = vadd.f32 %v733, %v2151
        $region109: #{tpu_custom_call.1} parent=99 // loop_footer
          %s701 = sadd.s32 1, %s697
        $region110: #{tpu_custom_call.1} parent=99 // loop_footer_branch
          %696 = sbr.rel target = $region106
        $region111: #{tpu_custom_call.1} parent=99 // loop_exit
          _
        %v2185 = vld [vmem:[%s9] sm:$0x1]
        %v2187 = vperm.slane %v2185, 0
        %v2189 = vmul.f32 %v702, %v2187
        %v2190 = vmul.f32 %v703, %v2187
        %v2191 = vmul.f32 %v704, %v2187
        %v2192 = vmul.f32 %v705, %v2187
        %v2193 = vmul.f32 %v706, %v2187
        %v2194 = vmul.f32 %v707, %v2187
        %v2195 = vmul.f32 %v708, %v2187
        %v2196 = vmul.f32 %v709, %v2187
        %v2197 = vmul.f32 %v710, %v2187
        %v2198 = vmul.f32 %v711, %v2187
        %v2199 = vmul.f32 %v712, %v2187
        %v2200 = vmul.f32 %v713, %v2187
        %v2201 = vmul.f32 %v714, %v2187
        %v2202 = vmul.f32 %v715, %v2187
        %v2203 = vmul.f32 %v716, %v2187
        %v2204 = vmul.f32 %v717, %v2187
        %v2205 = vmul.f32 %v718, %v2187
        %v2206 = vmul.f32 %v719, %v2187
        %v2207 = vmul.f32 %v720, %v2187
        %v2208 = vmul.f32 %v721, %v2187
        %v2209 = vmul.f32 %v722, %v2187
        %v2210 = vmul.f32 %v723, %v2187
        %v2211 = vmul.f32 %v724, %v2187
        %v2212 = vmul.f32 %v725, %v2187
        %v2213 = vmul.f32 %v726, %v2187
        %v2214 = vmul.f32 %v727, %v2187
        %v2215 = vmul.f32 %v728, %v2187
        %v2216 = vmul.f32 %v729, %v2187
        %v2217 = vmul.f32 %v730, %v2187
        %v2218 = vmul.f32 %v731, %v2187
        %v2219 = vmul.f32 %v732, %v2187
        %v2220 = vmul.f32 %v733, %v2187
        %v2221 = vld [vmem:[%s10] sm:$0x1]
        %v2223 = vperm.slane %v2221, 0
        %v2225 = vadd.f32 %v2189, %v2223
        %v2226 = vadd.f32 %v2190, %v2223
        %v2227 = vadd.f32 %v2191, %v2223
        %v2228 = vadd.f32 %v2192, %v2223
        %v2229 = vadd.f32 %v2193, %v2223
        %v2230 = vadd.f32 %v2194, %v2223
        %v2231 = vadd.f32 %v2195, %v2223
        %v2232 = vadd.f32 %v2196, %v2223
        %v2233 = vadd.f32 %v2197, %v2223
        %v2234 = vadd.f32 %v2198, %v2223
        %v2235 = vadd.f32 %v2199, %v2223
        %v2236 = vadd.f32 %v2200, %v2223
        %v2237 = vadd.f32 %v2201, %v2223
        %v2238 = vadd.f32 %v2202, %v2223
        %v2239 = vadd.f32 %v2203, %v2223
        %v2240 = vadd.f32 %v2204, %v2223
        %v2241 = vadd.f32 %v2205, %v2223
        %v2242 = vadd.f32 %v2206, %v2223
        %v2243 = vadd.f32 %v2207, %v2223
        %v2244 = vadd.f32 %v2208, %v2223
        %v2245 = vadd.f32 %v2209, %v2223
        %v2246 = vadd.f32 %v2210, %v2223
        %v2247 = vadd.f32 %v2211, %v2223
        %v2248 = vadd.f32 %v2212, %v2223
        %v2249 = vadd.f32 %v2213, %v2223
        %v2250 = vadd.f32 %v2214, %v2223
        %v2251 = vadd.f32 %v2215, %v2223
        %v2252 = vadd.f32 %v2216, %v2223
        %v2253 = vadd.f32 %v2217, %v2223
        %v2254 = vadd.f32 %v2218, %v2223
        %v2255 = vadd.f32 %v2219, %v2223
        %v2256 = vadd.f32 %v2220, %v2223
        %v2257 = vld [vmem:[%s8] sm:$0x3]
        %vm2258 = vcmask 31744
        %v2260 = vsel %vm2258, %v680, 0
        %v2263 = vsel %vm2258, %v681, 0
        %v2266 = vsel %vm2258, %v682, 0
        %v2269 = vsel %vm2258, %v683, 0
        %v2272 = vsel %vm2258, %v684, 0
        %v2275 = vsel %vm2258, %v685, 0
        %v2278 = vsel %vm2258, %v686, 0
        %v2281 = vsel %vm2258, %v687, 0
        %v2284 = vsel %vm2258, %v688, 0
        %v2287 = vsel %vm2258, %v689, 0
        %v2290 = vsel %vm2258, %v690, 0
        %v2293 = vsel %vm2258, %v691, 0
        %v2296 = vsel %vm2258, %v692, 0
        %v2299 = vsel %vm2258, %v693, 0
        %v2302 = vsel %vm2258, %v694, 0
        %v2305 = vsel %vm2258, %v695, 0
        %vm2307 = vcmask 1041408
        %v2309 = vsel %vm2307, %v2257, 0
        %2311 = vmatpush.bf16.msra.mxu0 0
        %2312 = vmatpush.bf16.msra.mxu0 0
        %2313 = vmatpush.bf16.msra.mxu0 0
        %2314 = vmatpush.bf16.msra.mxu0 0
        %2315 = vmatpush.bf16.msra.mxu0 0
        %2316 = vmatpush.bf16.msra.mxu0 0
        %2317 = vmatpush.bf16.msra.mxu0 0
        %2318 = vmatpush.bf16.msra.mxu0 %v2309
        %2319 = vmatmul.bf16.gmra.mxu0 %v2260
        %v2320 = vpop.f32.mrf.mxu0
        %v2321 = vadd.f32 0.0, %v2320
        %v2322 = vpop.f32.mrf.mxu0
        %v2323 = vadd.f32 0.0, %v2322
        %2324 = vmatmul.bf16.gmra.mxu0 %v2263
        %v2325 = vpop.f32.mrf.mxu0
        %v2326 = vadd.f32 0.0, %v2325
        %v2327 = vpop.f32.mrf.mxu0
        %v2328 = vadd.f32 0.0, %v2327
        %2329 = vmatmul.bf16.gmra.mxu0 %v2266
        %v2330 = vpop.f32.mrf.mxu0
        %v2331 = vadd.f32 0.0, %v2330
        %v2332 = vpop.f32.mrf.mxu0
        %v2333 = vadd.f32 0.0, %v2332
        %2334 = vmatmul.bf16.gmra.mxu0 %v2269
        %v2335 = vpop.f32.mrf.mxu0
        %v2336 = vadd.f32 0.0, %v2335
        %v2337 = vpop.f32.mrf.mxu0
        %v2338 = vadd.f32 0.0, %v2337
        %2339 = vmatmul.bf16.gmra.mxu0 %v2272
        %v2340 = vpop.f32.mrf.mxu0
        %v2341 = vadd.f32 0.0, %v2340
        %v2342 = vpop.f32.mrf.mxu0
        %v2343 = vadd.f32 0.0, %v2342
        %2344 = vmatmul.bf16.gmra.mxu0 %v2275
        %v2345 = vpop.f32.mrf.mxu0
        %v2346 = vadd.f32 0.0, %v2345
        %v2347 = vpop.f32.mrf.mxu0
        %v2348 = vadd.f32 0.0, %v2347
        %2349 = vmatmul.bf16.gmra.mxu0 %v2278
        %v2350 = vpop.f32.mrf.mxu0
        %v2351 = vadd.f32 0.0, %v2350
        %v2352 = vpop.f32.mrf.mxu0
        %v2353 = vadd.f32 0.0, %v2352
        %2354 = vmatmul.bf16.gmra.mxu0 %v2281
        %v2355 = vpop.f32.mrf.mxu0
        %v2356 = vadd.f32 0.0, %v2355
        %v2357 = vpop.f32.mrf.mxu0
        %v2358 = vadd.f32 0.0, %v2357
        %2359 = vmatmul.bf16.gmra.mxu0 %v2284
        %v2360 = vpop.f32.mrf.mxu0
        %v2361 = vadd.f32 0.0, %v2360
        %v2362 = vpop.f32.mrf.mxu0
        %v2363 = vadd.f32 0.0, %v2362
        %2364 = vmatmul.bf16.gmra.mxu0 %v2287
        %v2365 = vpop.f32.mrf.mxu0
        %v2366 = vadd.f32 0.0, %v2365
        %v2367 = vpop.f32.mrf.mxu0
        %v2368 = vadd.f32 0.0, %v2367
        %2369 = vmatmul.bf16.gmra.mxu0 %v2290
        %v2370 = vpop.f32.mrf.mxu0
        %v2371 = vadd.f32 0.0, %v2370
        %v2372 = vpop.f32.mrf.mxu0
        %v2373 = vadd.f32 0.0, %v2372
        %2374 = vmatmul.bf16.gmra.mxu0 %v2293
        %v2375 = vpop.f32.mrf.mxu0
        %v2376 = vadd.f32 0.0, %v2375
        %v2377 = vpop.f32.mrf.mxu0
        %v2378 = vadd.f32 0.0, %v2377
        %2379 = vmatmul.bf16.gmra.mxu0 %v2296
        %v2380 = vpop.f32.mrf.mxu0
        %v2381 = vadd.f32 0.0, %v2380
        %v2382 = vpop.f32.mrf.mxu0
        %v2383 = vadd.f32 0.0, %v2382
        %2384 = vmatmul.bf16.gmra.mxu0 %v2299
        %v2385 = vpop.f32.mrf.mxu0
        %v2386 = vadd.f32 0.0, %v2385
        %v2387 = vpop.f32.mrf.mxu0
        %v2388 = vadd.f32 0.0, %v2387
        %2389 = vmatmul.bf16.gmra.mxu0 %v2302
        %v2390 = vpop.f32.mrf.mxu0
        %v2391 = vadd.f32 0.0, %v2390
        %v2392 = vpop.f32.mrf.mxu0
        %v2393 = vadd.f32 0.0, %v2392
        %2394 = vmatmul.bf16.gmra.mxu0 %v2305
        %v2395 = vpop.f32.mrf.mxu0
        %v2396 = vadd.f32 0.0, %v2395
        %v2397 = vpop.f32.mrf.mxu0
        %v2398 = vadd.f32 0.0, %v2397
        %2399 = vdwg.mxu0
        %v2400 = vadd.f32 %v2225, %v2321
        %v2401 = vadd.f32 %v2226, %v2323
        %v2402 = vadd.f32 %v2227, %v2326
        %v2403 = vadd.f32 %v2228, %v2328
        %v2404 = vadd.f32 %v2229, %v2331
        %v2405 = vadd.f32 %v2230, %v2333
        %v2406 = vadd.f32 %v2231, %v2336
        %v2407 = vadd.f32 %v2232, %v2338
        %v2408 = vadd.f32 %v2233, %v2341
        %v2409 = vadd.f32 %v2234, %v2343
        %v2410 = vadd.f32 %v2235, %v2346
        %v2411 = vadd.f32 %v2236, %v2348
        %v2412 = vadd.f32 %v2237, %v2351
        %v2413 = vadd.f32 %v2238, %v2353
        %v2414 = vadd.f32 %v2239, %v2356
        %v2415 = vadd.f32 %v2240, %v2358
        %v2416 = vadd.f32 %v2241, %v2361
        %v2417 = vadd.f32 %v2242, %v2363
        %v2418 = vadd.f32 %v2243, %v2366
        %v2419 = vadd.f32 %v2244, %v2368
        %v2420 = vadd.f32 %v2245, %v2371
        %v2421 = vadd.f32 %v2246, %v2373
        %v2422 = vadd.f32 %v2247, %v2376
        %v2423 = vadd.f32 %v2248, %v2378
        %v2424 = vadd.f32 %v2249, %v2381
        %v2425 = vadd.f32 %v2250, %v2383
        %v2426 = vadd.f32 %v2251, %v2386
        %v2427 = vadd.f32 %v2252, %v2388
        %v2428 = vadd.f32 %v2253, %v2391
        %v2429 = vadd.f32 %v2254, %v2393
        %v2430 = vadd.f32 %v2255, %v2396
        %v2431 = vadd.f32 %v2256, %v2398
        %v2432 = vmax.f32 %v2400, 0.0
        %v2433 = vmax.f32 %v2401, 0.0
        %v2434 = vmax.f32 %v2402, 0.0
        %v2435 = vmax.f32 %v2403, 0.0
        %v2436 = vmax.f32 %v2404, 0.0
        %v2437 = vmax.f32 %v2405, 0.0
        %v2438 = vmax.f32 %v2406, 0.0
        %v2439 = vmax.f32 %v2407, 0.0
        %v2440 = vmax.f32 %v2408, 0.0
        %v2441 = vmax.f32 %v2409, 0.0
        %v2442 = vmax.f32 %v2410, 0.0
        %v2443 = vmax.f32 %v2411, 0.0
        %v2444 = vmax.f32 %v2412, 0.0
        %v2445 = vmax.f32 %v2413, 0.0
        %v2446 = vmax.f32 %v2414, 0.0
        %v2447 = vmax.f32 %v2415, 0.0
        %v2448 = vmax.f32 %v2416, 0.0
        %v2449 = vmax.f32 %v2417, 0.0
        %v2450 = vmax.f32 %v2418, 0.0
        %v2451 = vmax.f32 %v2419, 0.0
        %v2452 = vmax.f32 %v2420, 0.0
        %v2453 = vmax.f32 %v2421, 0.0
        %v2454 = vmax.f32 %v2422, 0.0
        %v2455 = vmax.f32 %v2423, 0.0
        %v2456 = vmax.f32 %v2424, 0.0
        %v2457 = vmax.f32 %v2425, 0.0
        %v2458 = vmax.f32 %v2426, 0.0
        %v2459 = vmax.f32 %v2427, 0.0
        %v2460 = vmax.f32 %v2428, 0.0
        %v2461 = vmax.f32 %v2429, 0.0
        %v2462 = vmax.f32 %v2430, 0.0
        %v2463 = vmax.f32 %v2431, 0.0
        %vm2464 = vcmask 130048
        %v2465 = vsel %vm2464, %v2432, 0.0
        %v2466 = vsel %vm2464, %v2434, 0.0
        %v2467 = vadd.f32 %v2465, %v2466
        %v2468 = vsel %vm2464, %v2436, 0.0
        %v2469 = vadd.f32 %v2467, %v2468
        %v2470 = vsel %vm2464, %v2438, 0.0
        %v2471 = vadd.f32 %v2469, %v2470
        %v2472 = vsel %vm2464, %v2440, 0.0
        %v2473 = vadd.f32 %v2471, %v2472
        %v2474 = vsel %vm2464, %v2442, 0.0
        %v2475 = vadd.f32 %v2473, %v2474
        %v2476 = vsel %vm2464, %v2444, 0.0
        %v2477 = vadd.f32 %v2475, %v2476
        %v2478 = vsel %vm2464, %v2446, 0.0
        %v2479 = vadd.f32 %v2477, %v2478
        %v2480 = vsel %vm2464, %v2448, 0.0
        %v2481 = vadd.f32 %v2479, %v2480
        %v2482 = vsel %vm2464, %v2450, 0.0
        %v2483 = vadd.f32 %v2481, %v2482
        %v2484 = vsel %vm2464, %v2452, 0.0
        %v2485 = vadd.f32 %v2483, %v2484
        %v2486 = vsel %vm2464, %v2454, 0.0
        %v2487 = vadd.f32 %v2485, %v2486
        %v2488 = vsel %vm2464, %v2456, 0.0
        %v2489 = vadd.f32 %v2487, %v2488
        %v2490 = vsel %vm2464, %v2458, 0.0
        %v2491 = vadd.f32 %v2489, %v2490
        %v2492 = vsel %vm2464, %v2460, 0.0
        %v2493 = vadd.f32 %v2491, %v2492
        %v2494 = vsel %vm2464, %v2462, 0.0
        %v2495 = vadd.f32 %v2493, %v2494
        %v2496 = vsel %vm2464, %v2433, 0.0
        %v2497 = vsel %vm2464, %v2435, 0.0
        %v2498 = vadd.f32 %v2496, %v2497
        %v2499 = vsel %vm2464, %v2437, 0.0
        %v2500 = vadd.f32 %v2498, %v2499
        %v2501 = vsel %vm2464, %v2439, 0.0
        %v2502 = vadd.f32 %v2500, %v2501
        %v2503 = vsel %vm2464, %v2441, 0.0
        %v2504 = vadd.f32 %v2502, %v2503
        %v2505 = vsel %vm2464, %v2443, 0.0
        %v2506 = vadd.f32 %v2504, %v2505
        %v2507 = vsel %vm2464, %v2445, 0.0
        %v2508 = vadd.f32 %v2506, %v2507
        %v2509 = vsel %vm2464, %v2447, 0.0
        %v2510 = vadd.f32 %v2508, %v2509
        %v2511 = vsel %vm2464, %v2449, 0.0
        %v2512 = vadd.f32 %v2510, %v2511
        %v2513 = vsel %vm2464, %v2451, 0.0
        %v2514 = vadd.f32 %v2512, %v2513
        %v2515 = vsel %vm2464, %v2453, 0.0
        %v2516 = vadd.f32 %v2514, %v2515
        %v2517 = vsel %vm2464, %v2455, 0.0
        %v2518 = vadd.f32 %v2516, %v2517
        %v2519 = vsel %vm2464, %v2457, 0.0
        %v2520 = vadd.f32 %v2518, %v2519
        %v2521 = vsel %vm2464, %v2459, 0.0
        %v2522 = vadd.f32 %v2520, %v2521
        %v2523 = vsel %vm2464, %v2461, 0.0
        %v2524 = vadd.f32 %v2522, %v2523
        %v2525 = vsel %vm2464, %v2463, 0.0
        %v2526 = vadd.f32 %v2524, %v2525
        %v2527 = vmul.f32 %v2495, 0.0625
        %v2528 = vmul.f32 %v2526, 0.0625
        %v2529 = vld [vmem:[%s11] sm:$0xff]
        %v2530 = vld [vmem:[%s11 + $0x8] sm:$0xff]
        %v2532 = vsel %vm2464, %v2527, 0
        %v2535 = vsel %vm2464, %v2528, 0
        %2537 = vmatpush.msra.mxu0 0.0
        %2538 = vmatpush.msra.mxu0 0.0
        %2539 = vmatpush.msra.mxu0 0.0
        %2540 = vmatpush.msra.mxu0 0.0
        %2541 = vmatpush.msra.mxu0 0.0
        %2542 = vmatpush.msra.mxu0 0.0
        %2543 = vmatpush.msra.mxu0 0.0
        %2544 = vmatpush.msra.mxu0 0.0
        %2545 = vmatpush.msra.mxu0 0.0
        %2546 = vmatpush.msra.mxu0 0.0
        %2547 = vmatpush.msra.mxu0 0.0
        %2548 = vmatpush.msra.mxu0 0.0
        %2549 = vmatpush.msra.mxu0 0.0
        %2550 = vmatpush.msra.mxu0 0.0
        %2551 = vmatpush.msra.mxu0 %v2530
        %2552 = vmatpush.msra.mxu0 %v2529
        %2553 = vmatmul.f32.gmra.mxu0 %v2532
        %v2554 = vpop.f32.mrf.mxu0
        %v2555 = vadd.f32 0.0, %v2554
        %2556 = vmatmul.f32.gmra.mxu0 %v2535
        %v2557 = vpop.f32.mrf.mxu0
        %v2558 = vadd.f32 0.0, %v2557
        %2559 = vdwg.mxu0
        %vm2562 = vcmask 1046528
        %v2563 = vrot.slane %v2555, 1
        %v2564 = vrot.slane %v2558, 1
        %v2565 = vsel %vm2562, %v2563, %v2564
        %v2569 = vsel %vm2562, 0.0, %v2563
        %v2570 = vsel %vm2562, %v2564, 0.0
        %v2571 = vadd.f32 %v2569, 0.0
        %v2572 = vadd.f32 %v2565, 0.0
        %v2575 = vrot.slane %v2569, 1
        %v2576 = vrot.slane %v2565, 1
        %v2577 = vsel %vm2562, %v2575, %v2576
        %v2578 = vrot.slane %v2570, 1
        %v2579 = vsel %vm2562, %v2576, %v2578
        %2580 = vrot.lane.b32.xlu0 %v2577, 127
        %v2581 = vpop.permute.xlu0 %2580
        %2582 = vrot.lane.b32.xlu0 %v2579, 127
        %v2583 = vpop.permute.xlu0 %2582
        %v2586 = vadd.f32 %v2571, %v2581
        %v2587 = vadd.f32 %v2572, %v2583
        %vm2588 = vcmask 1045504
        %v2589 = vrot.slane %v2569, 2
        %v2590 = vrot.slane %v2565, 2
        %v2591 = vsel %vm2588, %v2589, %v2590
        %v2592 = vrot.slane %v2570, 2
        %v2593 = vsel %vm2588, %v2590, %v2592
        %2594 = vrot.lane.b32.xlu0 %v2591, 126
        %v2595 = vpop.permute.xlu0 %2594
        %2596 = vrot.lane.b32.xlu0 %v2593, 126
        %v2597 = vpop.permute.xlu0 %2596
        %v2600 = vadd.f32 %v2586, %v2595
        %v2601 = vadd.f32 %v2587, %v2597
        %vm2602 = vcmask 1044480
        %v2603 = vrot.slane %v2569, 3
        %v2604 = vrot.slane %v2565, 3
        %v2605 = vsel %vm2602, %v2603, %v2604
        %v2606 = vrot.slane %v2570, 3
        %v2607 = vsel %vm2602, %v2604, %v2606
        %2608 = vrot.lane.b32.xlu0 %v2605, 125
        %v2609 = vpop.permute.xlu0 %2608
        %2610 = vrot.lane.b32.xlu0 %v2607, 125
        %v2611 = vpop.permute.xlu0 %2610
        %v2614 = vadd.f32 %v2600, %v2609
        %v2615 = vadd.f32 %v2601, %v2611
        %vm2616 = vcmask 1043456
        %v2617 = vrot.slane %v2569, 4
        %v2618 = vrot.slane %v2565, 4
        %v2619 = vsel %vm2616, %v2617, %v2618
        %v2620 = vrot.slane %v2570, 4
        %v2621 = vsel %vm2616, %v2618, %v2620
        %2622 = vrot.lane.b32.xlu0 %v2619, 124
        %v2623 = vpop.permute.xlu0 %2622
        %2624 = vrot.lane.b32.xlu0 %v2621, 124
        %v2625 = vpop.permute.xlu0 %2624
        %v2628 = vadd.f32 %v2614, %v2623
        %v2629 = vadd.f32 %v2615, %v2625
        %vm2630 = vcmask 1042432
        %v2631 = vrot.slane %v2569, 5
        %v2632 = vrot.slane %v2565, 5
        %v2633 = vsel %vm2630, %v2631, %v2632
        %v2634 = vrot.slane %v2570, 5
        %v2635 = vsel %vm2630, %v2632, %v2634
        %2636 = vrot.lane.b32.xlu0 %v2633, 123
        %v2637 = vpop.permute.xlu0 %2636
        %2638 = vrot.lane.b32.xlu0 %v2635, 123
        %v2639 = vpop.permute.xlu0 %2638
        %v2642 = vadd.f32 %v2628, %v2637
        %v2643 = vadd.f32 %v2629, %v2639
        %v2644 = vrot.slane %v2569, 6
        %v2645 = vrot.slane %v2565, 6
        %v2646 = vsel %vm2307, %v2644, %v2645
        %v2647 = vrot.slane %v2570, 6
        %v2648 = vsel %vm2307, %v2645, %v2647
        %2649 = vrot.lane.b32.xlu0 %v2646, 122
        %v2650 = vpop.permute.xlu0 %2649
        %2651 = vrot.lane.b32.xlu0 %v2648, 122
        %v2652 = vpop.permute.xlu0 %2651
        %v2655 = vadd.f32 %v2642, %v2650
        %v2656 = vadd.f32 %v2643, %v2652
        %vm2657 = vcmask 1040384
        %v2658 = vrot.slane %v2569, 7
        %v2659 = vrot.slane %v2565, 7
        %v2660 = vsel %vm2657, %v2658, %v2659
        %v2661 = vrot.slane %v2570, 7
        %v2662 = vsel %vm2657, %v2659, %v2661
        %2663 = vrot.lane.b32.xlu0 %v2660, 121
        %v2664 = vpop.permute.xlu0 %2663
        %2665 = vrot.lane.b32.xlu0 %v2662, 121
        %v2666 = vpop.permute.xlu0 %2665
        %v2669 = vadd.f32 %v2655, %v2664
        %v2670 = vadd.f32 %v2656, %v2666
        %2671 = vrot.lane.b32.xlu0 %v2565, 120
        %v2672 = vpop.permute.xlu0 %2671
        %2673 = vrot.lane.b32.xlu0 %v2570, 120
        %v2674 = vpop.permute.xlu0 %2673
        %v2677 = vadd.f32 %v2669, %v2672
        %v2678 = vadd.f32 %v2670, %v2674
        %v2680 = vrot.slane 0.0, 1
        %v2681 = vsel %vm2562, %v2578, %v2680
        %2682 = vrot.lane.b32.xlu0 %v2579, 119
        %v2683 = vpop.permute.xlu0 %2682
        %2684 = vrot.lane.b32.xlu0 %v2681, 119
        %v2685 = vpop.permute.xlu0 %2684
        %v2688 = vadd.f32 %v2677, %v2683
        %v2689 = vadd.f32 %v2678, %v2685
        %v2690 = vrot.slane 0.0, 2
        %v2691 = vsel %vm2588, %v2592, %v2690
        %2692 = vrot.lane.b32.xlu0 %v2593, 118
        %v2693 = vpop.permute.xlu0 %2692
        %2694 = vrot.lane.b32.xlu0 %v2691, 118
        %v2695 = vpop.permute.xlu0 %2694
        %v2698 = vadd.f32 %v2688, %v2693
        %v2699 = vadd.f32 %v2689, %v2695
        %v2700 = vrot.slane 0.0, 3
        %v2701 = vsel %vm2602, %v2606, %v2700
        %2702 = vrot.lane.b32.xlu0 %v2607, 117
        %v2703 = vpop.permute.xlu0 %2702
        %2704 = vrot.lane.b32.xlu0 %v2701, 117
        %v2705 = vpop.permute.xlu0 %2704
        %v2708 = vadd.f32 %v2698, %v2703
        %v2709 = vadd.f32 %v2699, %v2705
        %v2710 = vrot.slane 0.0, 4
        %v2711 = vsel %vm2616, %v2620, %v2710
        %2712 = vrot.lane.b32.xlu0 %v2621, 116
        %v2713 = vpop.permute.xlu0 %2712
        %2714 = vrot.lane.b32.xlu0 %v2711, 116
        %v2715 = vpop.permute.xlu0 %2714
        %v2718 = vadd.f32 %v2708, %v2713
        %v2719 = vadd.f32 %v2709, %v2715
        %v2720 = vrot.slane 0.0, 5
        %v2721 = vsel %vm2630, %v2634, %v2720
        %2722 = vrot.lane.b32.xlu0 %v2635, 115
        %v2723 = vpop.permute.xlu0 %2722
        %2724 = vrot.lane.b32.xlu0 %v2721, 115
        %v2725 = vpop.permute.xlu0 %2724
        %v2728 = vadd.f32 %v2718, %v2723
        %v2729 = vadd.f32 %v2719, %v2725
        %v2730 = vrot.slane 0.0, 6
        %v2731 = vsel %vm2307, %v2647, %v2730
        %2732 = vrot.lane.b32.xlu0 %v2648, 114
        %v2733 = vpop.permute.xlu0 %2732
        %2734 = vrot.lane.b32.xlu0 %v2731, 114
        %v2735 = vpop.permute.xlu0 %2734
        %v2738 = vadd.f32 %v2728, %v2733
        %v2739 = vadd.f32 %v2729, %v2735
        %v2740 = vstv %s646
        %v2741 = vadd.f32 %v2738, %v2740
        %v2742 = vadd.f32 %v2739, %v2740
        %v2743 = vxor.u32 %v2741, 2147483648
        %v2744 = vxor.u32 %v2742, 2147483648
        %v2745 = vmul.f32 %v2743, 1.442695
        %v2746 = vpow.pop %v2745
        %v2747 = vmul.f32 %v2744, 1.442695
        %v2748 = vpow.pop %v2747
        %v2749 = vadd.f32 %v2746, 1.0
        %v2750 = vadd.f32 %v2748, 1.0
        %v2751 = vrcp.pop %v2749
        %v2752 = vmul.f32 %v2749, %v2751
        %v2753 = vsub.f32 1.0, %v2752
        %v2754 = vmul.f32 %v2751, %v2753
        %v2755 = vadd.f32 %v2751, %v2754
        %vm2756 = vweird.f32 %v2749
        %vm2757 = vweird.f32 %v2751
        %vm2758 = vmor %vm2756, %vm2757
        %v2759 = vsel %vm2758, %v2751, %v2755
        %v2760 = vand.u32 2147483647, %v2749
        %vm2761 = vcmp.eq.f32.partialorder %v2760, 8.507059e+37
        %v2762 = vand.u32 %v2749, 2147483648
        %v2763 = vor.u32 1.1754944e-38, %v2762
        %v2764 = vsel %vm2761, %v2763, %v2759
        %v2765 = vmul.f32 1.0, %v2764
        %v2766 = vrcp.pop %v2750
        %v2767 = vmul.f32 %v2750, %v2766
        %v2768 = vsub.f32 1.0, %v2767
        %v2769 = vmul.f32 %v2766, %v2768
        %v2770 = vadd.f32 %v2766, %v2769
        %vm2771 = vweird.f32 %v2750
        %vm2772 = vweird.f32 %v2766
        %vm2773 = vmor %vm2771, %vm2772
        %v2774 = vsel %vm2773, %v2766, %v2770
        %v2775 = vand.u32 2147483647, %v2750
        %vm2776 = vcmp.eq.f32.partialorder %v2775, 8.507059e+37
        %v2777 = vand.u32 %v2750, 2147483648
        %v2778 = vor.u32 1.1754944e-38, %v2777
        %v2779 = vsel %vm2776, %v2778, %v2774
        %v2780 = vmul.f32 1.0, %v2779
        %v2781 = vadd.f32 %v2765, 1.0
        %v2782 = vadd.f32 %v2780, 1.0
        %2784 = vset.pattern.permute.xlu0 0
        %2785 = vperm.xlu0 %2784, %v2781
        %v2786 = vpop.permute.xlu0 %2785
        %2789 = vset.pattern.permute.xlu0 0
        %2790 = vperm.xlu0 %2789, %v2782
        %v2791 = vpop.permute.xlu0 %2790
        %v2793 = vmul.f32 %v2432, %v2786
        %v2794 = vmul.f32 %v2433, %v2791
        %v2795 = vmul.f32 %v2434, %v2786
        %v2796 = vmul.f32 %v2435, %v2791
        %v2797 = vmul.f32 %v2436, %v2786
        %v2798 = vmul.f32 %v2437, %v2791
        %v2799 = vmul.f32 %v2438, %v2786
        %v2800 = vmul.f32 %v2439, %v2791
        %v2801 = vmul.f32 %v2440, %v2786
        %v2802 = vmul.f32 %v2441, %v2791
        %v2803 = vmul.f32 %v2442, %v2786
        %v2804 = vmul.f32 %v2443, %v2791
        %v2805 = vmul.f32 %v2444, %v2786
        %v2806 = vmul.f32 %v2445, %v2791
        %v2807 = vmul.f32 %v2446, %v2786
        %v2808 = vmul.f32 %v2447, %v2791
        %v2809 = vmul.f32 %v2448, %v2786
        %v2810 = vmul.f32 %v2449, %v2791
        %v2811 = vmul.f32 %v2450, %v2786
        %v2812 = vmul.f32 %v2451, %v2791
        %v2813 = vmul.f32 %v2452, %v2786
        %v2814 = vmul.f32 %v2453, %v2791
        %v2815 = vmul.f32 %v2454, %v2786
        %v2816 = vmul.f32 %v2455, %v2791
        %v2817 = vmul.f32 %v2456, %v2786
        %v2818 = vmul.f32 %v2457, %v2791
        %v2819 = vmul.f32 %v2458, %v2786
        %v2820 = vmul.f32 %v2459, %v2791
        %v2821 = vmul.f32 %v2460, %v2786
        %v2822 = vmul.f32 %v2461, %v2791
        %v2823 = vmul.f32 %v2462, %v2786
        %v2824 = vmul.f32 %v2463, %v2791
        %v2825 = vsel %vm2464, %v2793, 0.0
        %v2826 = vsel %vm2464, %v2794, 0.0
        %v2827 = vadd.f32 %v2825, %v2826
        %v2828 = vrot.slane %v2827, 4
        %v2829 = vadd.f32 %v2827, %v2828
        %v2830 = vrot.slane %v2829, 2
        %v2831 = vadd.f32 %v2829, %v2830
        %v2832 = vrot.slane %v2831, 1
        %v2833 = vadd.f32 %v2831, %v2832
        %v2834 = vsel %vm2464, %v2795, 0.0
        %v2835 = vsel %vm2464, %v2796, 0.0
        %v2836 = vadd.f32 %v2834, %v2835
        %v2837 = vrot.slane %v2836, 4
        %v2838 = vadd.f32 %v2836, %v2837
        %v2839 = vrot.slane %v2838, 2
        %v2840 = vadd.f32 %v2838, %v2839
        %v2841 = vrot.slane %v2840, 1
        %v2842 = vadd.f32 %v2840, %v2841
        %v2843 = vsel %vm2464, %v2797, 0.0
        %v2844 = vsel %vm2464, %v2798, 0.0
        %v2845 = vadd.f32 %v2843, %v2844
        %v2846 = vrot.slane %v2845, 4
        %v2847 = vadd.f32 %v2845, %v2846
        %v2848 = vrot.slane %v2847, 2
        %v2849 = vadd.f32 %v2847, %v2848
        %v2850 = vrot.slane %v2849, 1
        %v2851 = vadd.f32 %v2849, %v2850
        %v2852 = vsel %vm2464, %v2799, 0.0
        %v2853 = vsel %vm2464, %v2800, 0.0
        %v2854 = vadd.f32 %v2852, %v2853
        %v2855 = vrot.slane %v2854, 4
        %v2856 = vadd.f32 %v2854, %v2855
        %v2857 = vrot.slane %v2856, 2
        %v2858 = vadd.f32 %v2856, %v2857
        %v2859 = vrot.slane %v2858, 1
        %v2860 = vadd.f32 %v2858, %v2859
        %v2861 = vsel %vm2464, %v2801, 0.0
        %v2862 = vsel %vm2464, %v2802, 0.0
        %v2863 = vadd.f32 %v2861, %v2862
        %v2864 = vrot.slane %v2863, 4
        %v2865 = vadd.f32 %v2863, %v2864
        %v2866 = vrot.slane %v2865, 2
        %v2867 = vadd.f32 %v2865, %v2866
        %v2868 = vrot.slane %v2867, 1
        %v2869 = vadd.f32 %v2867, %v2868
        %v2870 = vsel %vm2464, %v2803, 0.0
        %v2871 = vsel %vm2464, %v2804, 0.0
        %v2872 = vadd.f32 %v2870, %v2871
        %v2873 = vrot.slane %v2872, 4
        %v2874 = vadd.f32 %v2872, %v2873
        %v2875 = vrot.slane %v2874, 2
        %v2876 = vadd.f32 %v2874, %v2875
        %v2877 = vrot.slane %v2876, 1
        %v2878 = vadd.f32 %v2876, %v2877
        %v2879 = vsel %vm2464, %v2805, 0.0
        %v2880 = vsel %vm2464, %v2806, 0.0
        %v2881 = vadd.f32 %v2879, %v2880
        %v2882 = vrot.slane %v2881, 4
        %v2883 = vadd.f32 %v2881, %v2882
        %v2884 = vrot.slane %v2883, 2
        %v2885 = vadd.f32 %v2883, %v2884
        %v2886 = vrot.slane %v2885, 1
        %v2887 = vadd.f32 %v2885, %v2886
        %v2888 = vsel %vm2464, %v2807, 0.0
        %v2889 = vsel %vm2464, %v2808, 0.0
        %v2890 = vadd.f32 %v2888, %v2889
        %v2891 = vrot.slane %v2890, 4
        %v2892 = vadd.f32 %v2890, %v2891
        %v2893 = vrot.slane %v2892, 2
        %v2894 = vadd.f32 %v2892, %v2893
        %v2895 = vrot.slane %v2894, 1
        %v2896 = vadd.f32 %v2894, %v2895
        %v2897 = vsel %vm2464, %v2809, 0.0
        %v2898 = vsel %vm2464, %v2810, 0.0
        %v2899 = vadd.f32 %v2897, %v2898
        %v2900 = vrot.slane %v2899, 4
        %v2901 = vadd.f32 %v2899, %v2900
        %v2902 = vrot.slane %v2901, 2
        %v2903 = vadd.f32 %v2901, %v2902
        %v2904 = vrot.slane %v2903, 1
        %v2905 = vadd.f32 %v2903, %v2904
        %v2906 = vsel %vm2464, %v2811, 0.0
        %v2907 = vsel %vm2464, %v2812, 0.0
        %v2908 = vadd.f32 %v2906, %v2907
        %v2909 = vrot.slane %v2908, 4
        %v2910 = vadd.f32 %v2908, %v2909
        %v2911 = vrot.slane %v2910, 2
        %v2912 = vadd.f32 %v2910, %v2911
        %v2913 = vrot.slane %v2912, 1
        %v2914 = vadd.f32 %v2912, %v2913
        %v2915 = vsel %vm2464, %v2813, 0.0
        %v2916 = vsel %vm2464, %v2814, 0.0
        %v2917 = vadd.f32 %v2915, %v2916
        %v2918 = vrot.slane %v2917, 4
        %v2919 = vadd.f32 %v2917, %v2918
        %v2920 = vrot.slane %v2919, 2
        %v2921 = vadd.f32 %v2919, %v2920
        %v2922 = vrot.slane %v2921, 1
        %v2923 = vadd.f32 %v2921, %v2922
        %v2924 = vsel %vm2464, %v2815, 0.0
        %v2925 = vsel %vm2464, %v2816, 0.0
        %v2926 = vadd.f32 %v2924, %v2925
        %v2927 = vrot.slane %v2926, 4
        %v2928 = vadd.f32 %v2926, %v2927
        %v2929 = vrot.slane %v2928, 2
        %v2930 = vadd.f32 %v2928, %v2929
        %v2931 = vrot.slane %v2930, 1
        %v2932 = vadd.f32 %v2930, %v2931
        %v2933 = vsel %vm2464, %v2817, 0.0
        %v2934 = vsel %vm2464, %v2818, 0.0
        %v2935 = vadd.f32 %v2933, %v2934
        %v2936 = vrot.slane %v2935, 4
        %v2937 = vadd.f32 %v2935, %v2936
        %v2938 = vrot.slane %v2937, 2
        %v2939 = vadd.f32 %v2937, %v2938
        %v2940 = vrot.slane %v2939, 1
        %v2941 = vadd.f32 %v2939, %v2940
        %v2942 = vsel %vm2464, %v2819, 0.0
        %v2943 = vsel %vm2464, %v2820, 0.0
        %v2944 = vadd.f32 %v2942, %v2943
        %v2945 = vrot.slane %v2944, 4
        %v2946 = vadd.f32 %v2944, %v2945
        %v2947 = vrot.slane %v2946, 2
        %v2948 = vadd.f32 %v2946, %v2947
        %v2949 = vrot.slane %v2948, 1
        %v2950 = vadd.f32 %v2948, %v2949
        %v2951 = vsel %vm2464, %v2821, 0.0
        %v2952 = vsel %vm2464, %v2822, 0.0
        %v2953 = vadd.f32 %v2951, %v2952
        %v2954 = vrot.slane %v2953, 4
        %v2955 = vadd.f32 %v2953, %v2954
        %v2956 = vrot.slane %v2955, 2
        %v2957 = vadd.f32 %v2955, %v2956
        %v2958 = vrot.slane %v2957, 1
        %v2959 = vadd.f32 %v2957, %v2958
        %v2960 = vsel %vm2464, %v2823, 0.0
        %v2961 = vsel %vm2464, %v2824, 0.0
        %v2962 = vadd.f32 %v2960, %v2961
        %v2963 = vrot.slane %v2962, 4
        %v2964 = vadd.f32 %v2962, %v2963
        %v2965 = vrot.slane %v2964, 2
        %v2966 = vadd.f32 %v2964, %v2965
        %v2967 = vrot.slane %v2966, 1
        %v2968 = vadd.f32 %v2966, %v2967
        %v2969 = vmul.f32 %v2833, 0.0625
        %v2970 = vmul.f32 %v2842, 0.0625
        %v2971 = vmul.f32 %v2851, 0.0625
        %v2972 = vmul.f32 %v2860, 0.0625
        %v2973 = vmul.f32 %v2869, 0.0625
        %v2974 = vmul.f32 %v2878, 0.0625
        %v2975 = vmul.f32 %v2887, 0.0625
        %v2976 = vmul.f32 %v2896, 0.0625
        %v2977 = vmul.f32 %v2905, 0.0625
        %v2978 = vmul.f32 %v2914, 0.0625
        %v2979 = vmul.f32 %v2923, 0.0625
        %v2980 = vmul.f32 %v2932, 0.0625
        %v2981 = vmul.f32 %v2941, 0.0625
        %v2982 = vmul.f32 %v2950, 0.0625
        %v2983 = vmul.f32 %v2959, 0.0625
        %v2984 = vmul.f32 %v2968, 0.0625
        %v2985 = vld [vmem:[%s12] sm:$0xff]
        %v2986 = vld [vmem:[%s12 + $0x8] sm:$0xff]
        %vm3003 = vcmask 1041409
        %v3004 = vsel %vm3003, %v2970, %v2969
        %vm3005 = vcmask 1042434
        %v3006 = vsel %vm3005, %v2971, %v3004
        %vm3007 = vcmask 1043459
        %v3008 = vsel %vm3007, %v2972, %v3006
        %vm3009 = vcmask 1044484
        %v3010 = vsel %vm3009, %v2973, %v3008
        %vm3011 = vcmask 1045509
        %v3012 = vsel %vm3011, %v2974, %v3010
        %vm3013 = vcmask 1046534
        %v3014 = vsel %vm3013, %v2975, %v3012
        %vm3015 = vcmask 1047559
        %v3016 = vsel %vm3015, %v2976, %v3014
        %v3017 = vsel %vm3003, %v2978, %v2977
        %v3018 = vsel %vm3005, %v2979, %v3017
        %v3019 = vsel %vm3007, %v2980, %v3018
        %v3020 = vsel %vm3009, %v2981, %v3019
        %v3021 = vsel %vm3011, %v2982, %v3020
        %v3022 = vsel %vm3013, %v2983, %v3021
        %v3023 = vsel %vm3015, %v2984, %v3022
        %v3024 = vsel %vm2464, %v3016, 0
        %v3026 = vsel %vm2464, %v3023, 0
        %3028 = vmatpush.msra.mxu0 0.0
        %3029 = vmatpush.msra.mxu0 0.0
        %3030 = vmatpush.msra.mxu0 0.0
        %3031 = vmatpush.msra.mxu0 0.0
        %3032 = vmatpush.msra.mxu0 0.0
        %3033 = vmatpush.msra.mxu0 0.0
        %3034 = vmatpush.msra.mxu0 0.0
        %3035 = vmatpush.msra.mxu0 0.0
        %3036 = vmatpush.msra.mxu0 0.0
        %3037 = vmatpush.msra.mxu0 0.0
        %3038 = vmatpush.msra.mxu0 0.0
        %3039 = vmatpush.msra.mxu0 0.0
        %3040 = vmatpush.msra.mxu0 0.0
        %3041 = vmatpush.msra.mxu0 0.0
        %3042 = vmatpush.msra.mxu0 %v2986
        %3043 = vmatpush.msra.mxu0 %v2985
        %3044 = vmatmul.f32.gmra.mxu0 %v3024
        %v3045 = vpop.f32.mrf.mxu0
        %v3046 = vadd.f32 0.0, %v3045
        %3047 = vmatmul.f32.gmra.mxu0 %v3026
        %v3048 = vpop.f32.mrf.mxu0
        %v3049 = vadd.f32 0.0, %v3048
        %3050 = vdwg.mxu0
        %v3053 = vrot.slane %v3046, 4
        %v3054 = vrot.slane %v3049, 4
        %v3055 = vsel %vm2616, %v3053, %v3054
        %v3059 = vsel %vm2616, 0.0, %v3053
        %v3060 = vsel %vm2616, %v3054, 0.0
        %v3061 = vadd.f32 %v3059, 0.0
        %v3062 = vadd.f32 %v3055, 0.0
        %v3065 = vrot.slane %v3059, 1
        %v3066 = vrot.slane %v3055, 1
        %v3067 = vsel %vm2562, %v3065, %v3066
        %v3068 = vrot.slane %v3060, 1
        %v3069 = vsel %vm2562, %v3066, %v3068
        %3070 = vrot.lane.b32.xlu0 %v3067, 127
        %v3071 = vpop.permute.xlu0 %3070
        %3072 = vrot.lane.b32.xlu0 %v3069, 127
        %v3073 = vpop.permute.xlu0 %3072
        %v3076 = vadd.f32 %v3061, %v3071
        %v3077 = vadd.f32 %v3062, %v3073
        %v3078 = vrot.slane %v3059, 2
        %v3079 = vrot.slane %v3055, 2
        %v3080 = vsel %vm2588, %v3078, %v3079
        %v3081 = vrot.slane %v3060, 2
        %v3082 = vsel %vm2588, %v3079, %v3081
        %3083 = vrot.lane.b32.xlu0 %v3080, 126
        %v3084 = vpop.permute.xlu0 %3083
        %3085 = vrot.lane.b32.xlu0 %v3082, 126
        %v3086 = vpop.permute.xlu0 %3085
        %v3089 = vadd.f32 %v3076, %v3084
        %v3090 = vadd.f32 %v3077, %v3086
        %v3091 = vrot.slane %v3059, 3
        %v3092 = vrot.slane %v3055, 3
        %v3093 = vsel %vm2602, %v3091, %v3092
        %v3094 = vrot.slane %v3060, 3
        %v3095 = vsel %vm2602, %v3092, %v3094
        %3096 = vrot.lane.b32.xlu0 %v3093, 125
        %v3097 = vpop.permute.xlu0 %3096
        %3098 = vrot.lane.b32.xlu0 %v3095, 125
        %v3099 = vpop.permute.xlu0 %3098
        %v3102 = vadd.f32 %v3089, %v3097
        %v3103 = vadd.f32 %v3090, %v3099
        %v3104 = vrot.slane %v3059, 4
        %v3105 = vrot.slane %v3055, 4
        %v3106 = vsel %vm2616, %v3104, %v3105
        %v3107 = vrot.slane %v3060, 4
        %v3108 = vsel %vm2616, %v3105, %v3107
        %3109 = vrot.lane.b32.xlu0 %v3106, 124
        %v3110 = vpop.permute.xlu0 %3109
        %3111 = vrot.lane.b32.xlu0 %v3108, 124
        %v3112 = vpop.permute.xlu0 %3111
        %v3115 = vadd.f32 %v3102, %v3110
        %v3116 = vadd.f32 %v3103, %v3112
        %v3117 = vrot.slane %v3059, 5
        %v3118 = vrot.slane %v3055, 5
        %v3119 = vsel %vm2630, %v3117, %v3118
        %v3120 = vrot.slane %v3060, 5
        %v3121 = vsel %vm2630, %v3118, %v3120
        %3122 = vrot.lane.b32.xlu0 %v3119, 123
        %v3123 = vpop.permute.xlu0 %3122
        %3124 = vrot.lane.b32.xlu0 %v3121, 123
        %v3125 = vpop.permute.xlu0 %3124
        %v3128 = vadd.f32 %v3115, %v3123
        %v3129 = vadd.f32 %v3116, %v3125
        %v3130 = vrot.slane %v3059, 6
        %v3131 = vrot.slane %v3055, 6
        %v3132 = vsel %vm2307, %v3130, %v3131
        %v3133 = vrot.slane %v3060, 6
        %v3134 = vsel %vm2307, %v3131, %v3133
        %3135 = vrot.lane.b32.xlu0 %v3132, 122
        %v3136 = vpop.permute.xlu0 %3135
        %3137 = vrot.lane.b32.xlu0 %v3134, 122
        %v3138 = vpop.permute.xlu0 %3137
        %v3141 = vadd.f32 %v3128, %v3136
        %v3142 = vadd.f32 %v3129, %v3138
        %v3143 = vrot.slane %v3059, 7
        %v3144 = vrot.slane %v3055, 7
        %v3145 = vsel %vm2657, %v3143, %v3144
        %v3146 = vrot.slane %v3060, 7
        %v3147 = vsel %vm2657, %v3144, %v3146
        %3148 = vrot.lane.b32.xlu0 %v3145, 121
        %v3149 = vpop.permute.xlu0 %3148
        %3150 = vrot.lane.b32.xlu0 %v3147, 121
        %v3151 = vpop.permute.xlu0 %3150
        %v3154 = vadd.f32 %v3141, %v3149
        %v3155 = vadd.f32 %v3142, %v3151
        %3156 = vrot.lane.b32.xlu0 %v3055, 120
        %v3157 = vpop.permute.xlu0 %3156
        %3158 = vrot.lane.b32.xlu0 %v3060, 120
        %v3159 = vpop.permute.xlu0 %3158
        %v3162 = vadd.f32 %v3154, %v3157
        %v3163 = vadd.f32 %v3155, %v3159
        %v3164 = vstv %s647
        %v3165 = vadd.f32 %v3162, %v3164
        %v3166 = vadd.f32 %v3163, %v3164
        %v3167 = vxor.u32 %v3165, 2147483648
        %v3168 = vxor.u32 %v3166, 2147483648
        %v3169 = vmul.f32 %v3167, 1.442695
        %v3170 = vpow.pop %v3169
        %v3171 = vmul.f32 %v3168, 1.442695
        %v3172 = vpow.pop %v3171
        %v3173 = vadd.f32 %v3170, 1.0
        %v3174 = vadd.f32 %v3172, 1.0
        %v3175 = vrcp.pop %v3173
        %v3176 = vmul.f32 %v3173, %v3175
        %v3177 = vsub.f32 1.0, %v3176
        %v3178 = vmul.f32 %v3175, %v3177
        %v3179 = vadd.f32 %v3175, %v3178
        %vm3180 = vweird.f32 %v3173
        %vm3181 = vweird.f32 %v3175
        %vm3182 = vmor %vm3180, %vm3181
        %v3183 = vsel %vm3182, %v3175, %v3179
        %v3184 = vand.u32 2147483647, %v3173
        %vm3185 = vcmp.eq.f32.partialorder %v3184, 8.507059e+37
        %v3186 = vand.u32 %v3173, 2147483648
        %v3187 = vor.u32 1.1754944e-38, %v3186
        %v3188 = vsel %vm3185, %v3187, %v3183
        %v3189 = vmul.f32 1.0, %v3188
        %v3190 = vrcp.pop %v3174
        %v3191 = vmul.f32 %v3174, %v3190
        %v3192 = vsub.f32 1.0, %v3191
        %v3193 = vmul.f32 %v3190, %v3192
        %v3194 = vadd.f32 %v3190, %v3193
        %vm3195 = vweird.f32 %v3174
        %vm3196 = vweird.f32 %v3190
        %vm3197 = vmor %vm3195, %vm3196
        %v3198 = vsel %vm3197, %v3190, %v3194
        %v3199 = vand.u32 2147483647, %v3174
        %vm3200 = vcmp.eq.f32.partialorder %v3199, 8.507059e+37
        %v3201 = vand.u32 %v3174, 2147483648
        %v3202 = vor.u32 1.1754944e-38, %v3201
        %v3203 = vsel %vm3200, %v3202, %v3198
        %v3204 = vmul.f32 1.0, %v3203
        %v3207 = vrot.slane %v3189, 1
        %v3208 = vrot.slane %v3189, 2
        %v3209 = vrot.slane %v3189, 3
        %v3210 = vrot.slane %v3189, 4
        %v3211 = vrot.slane %v3189, 5
        %v3212 = vrot.slane %v3189, 6
        %v3213 = vrot.slane %v3189, 7
        %v3214 = vrot.slane %v3204, 1
        %v3215 = vrot.slane %v3204, 2
        %v3216 = vrot.slane %v3204, 3
        %v3217 = vrot.slane %v3204, 4
        %v3218 = vrot.slane %v3204, 5
        %v3219 = vrot.slane %v3204, 6
        %v3220 = vrot.slane %v3204, 7
        %v3235 = vadd.f32 %v3189, 1.0
        %v3236 = vadd.f32 %v3207, 1.0
        %v3237 = vadd.f32 %v3208, 1.0
        %v3238 = vadd.f32 %v3209, 1.0
        %v3239 = vadd.f32 %v3210, 1.0
        %v3240 = vadd.f32 %v3211, 1.0
        %v3241 = vadd.f32 %v3212, 1.0
        %v3242 = vadd.f32 %v3213, 1.0
        %v3243 = vadd.f32 %v3204, 1.0
        %v3244 = vadd.f32 %v3214, 1.0
        %v3245 = vadd.f32 %v3215, 1.0
        %v3246 = vadd.f32 %v3216, 1.0
        %v3247 = vadd.f32 %v3217, 1.0
        %v3248 = vadd.f32 %v3218, 1.0
        %v3249 = vadd.f32 %v3219, 1.0
        %v3250 = vadd.f32 %v3220, 1.0
        %v3267 = vperm.slane %v3235, 0
        %v3268 = vperm.slane %v3236, 0
        %v3269 = vperm.slane %v3237, 0
        %v3270 = vperm.slane %v3238, 0
        %v3271 = vperm.slane %v3239, 0
        %v3272 = vperm.slane %v3240, 0
        %v3273 = vperm.slane %v3241, 0
        %v3274 = vperm.slane %v3242, 0
        %v3275 = vperm.slane %v3243, 0
        %v3276 = vperm.slane %v3244, 0
        %v3277 = vperm.slane %v3245, 0
        %v3278 = vperm.slane %v3246, 0
        %v3279 = vperm.slane %v3247, 0
        %v3280 = vperm.slane %v3248, 0
        %v3281 = vperm.slane %v3249, 0
        %v3282 = vperm.slane %v3250, 0
        %3283 = vset.pattern.permute.xlu0 0
        %3284 = vperm.xlu0 %3283, %v3267
        %v3285 = vpop.permute.xlu0 %3284
        %3287 = vset.pattern.permute.xlu0 0
        %3288 = vperm.xlu0 %3287, %v3268
        %v3289 = vpop.permute.xlu0 %3288
        %3291 = vset.pattern.permute.xlu0 0
        %3292 = vperm.xlu0 %3291, %v3269
        %v3293 = vpop.permute.xlu0 %3292
        %3295 = vset.pattern.permute.xlu0 0
        %3296 = vperm.xlu0 %3295, %v3270
        %v3297 = vpop.permute.xlu0 %3296
        %3299 = vset.pattern.permute.xlu0 0
        %3300 = vperm.xlu0 %3299, %v3271
        %v3301 = vpop.permute.xlu0 %3300
        %3303 = vset.pattern.permute.xlu0 0
        %3304 = vperm.xlu0 %3303, %v3272
        %v3305 = vpop.permute.xlu0 %3304
        %3307 = vset.pattern.permute.xlu0 0
        %3308 = vperm.xlu0 %3307, %v3273
        %v3309 = vpop.permute.xlu0 %3308
        %3311 = vset.pattern.permute.xlu0 0
        %3312 = vperm.xlu0 %3311, %v3274
        %v3313 = vpop.permute.xlu0 %3312
        %3315 = vset.pattern.permute.xlu0 0
        %3316 = vperm.xlu0 %3315, %v3275
        %v3317 = vpop.permute.xlu0 %3316
        %3319 = vset.pattern.permute.xlu0 0
        %3320 = vperm.xlu0 %3319, %v3276
        %v3321 = vpop.permute.xlu0 %3320
        %3323 = vset.pattern.permute.xlu0 0
        %3324 = vperm.xlu0 %3323, %v3277
        %v3325 = vpop.permute.xlu0 %3324
        %3327 = vset.pattern.permute.xlu0 0
        %3328 = vperm.xlu0 %3327, %v3278
        %v3329 = vpop.permute.xlu0 %3328
        %3331 = vset.pattern.permute.xlu0 0
        %3332 = vperm.xlu0 %3331, %v3279
        %v3333 = vpop.permute.xlu0 %3332
        %3335 = vset.pattern.permute.xlu0 0
        %3336 = vperm.xlu0 %3335, %v3280
        %v3337 = vpop.permute.xlu0 %3336
        %3339 = vset.pattern.permute.xlu0 0
        %3340 = vperm.xlu0 %3339, %v3281
        %v3341 = vpop.permute.xlu0 %3340
        %3343 = vset.pattern.permute.xlu0 0
        %3344 = vperm.xlu0 %3343, %v3282
        %v3345 = vpop.permute.xlu0 %3344
        %v3347 = vmul.f32 %v2793, %v3285
        %v3348 = vmul.f32 %v2794, %v3285
        %v3349 = vmul.f32 %v2795, %v3289
        %v3350 = vmul.f32 %v2796, %v3289
        %v3351 = vmul.f32 %v2797, %v3293
        %v3352 = vmul.f32 %v2798, %v3293
        %v3353 = vmul.f32 %v2799, %v3297
        %v3354 = vmul.f32 %v2800, %v3297
        %v3355 = vmul.f32 %v2801, %v3301
        %v3356 = vmul.f32 %v2802, %v3301
        %v3357 = vmul.f32 %v2803, %v3305
        %v3358 = vmul.f32 %v2804, %v3305
        %v3359 = vmul.f32 %v2805, %v3309
        %v3360 = vmul.f32 %v2806, %v3309
        %v3361 = vmul.f32 %v2807, %v3313
        %v3362 = vmul.f32 %v2808, %v3313
        %v3363 = vmul.f32 %v2809, %v3317
        %v3364 = vmul.f32 %v2810, %v3317
        %v3365 = vmul.f32 %v2811, %v3321
        %v3366 = vmul.f32 %v2812, %v3321
        %v3367 = vmul.f32 %v2813, %v3325
        %v3368 = vmul.f32 %v2814, %v3325
        %v3369 = vmul.f32 %v2815, %v3329
        %v3370 = vmul.f32 %v2816, %v3329
        %v3371 = vmul.f32 %v2817, %v3333
        %v3372 = vmul.f32 %v2818, %v3333
        %v3373 = vmul.f32 %v2819, %v3337
        %v3374 = vmul.f32 %v2820, %v3337
        %v3375 = vmul.f32 %v2821, %v3341
        %v3376 = vmul.f32 %v2822, %v3341
        %v3377 = vmul.f32 %v2823, %v3345
        %v3378 = vmul.f32 %v2824, %v3345
        %v3379 = vsel %vm2464, %v3347, 0.0
        %v3380 = vsel %vm2464, %v3348, 0.0
        %v3381 = vadd.f32 %v3379, %v3380
        %v3382 = vsel %vm2464, %v3349, 0.0
        %v3383 = vadd.f32 %v3381, %v3382
        %v3384 = vsel %vm2464, %v3350, 0.0
        %v3385 = vadd.f32 %v3383, %v3384
        %v3386 = vsel %vm2464, %v3351, 0.0
        %v3387 = vadd.f32 %v3385, %v3386
        %v3388 = vsel %vm2464, %v3352, 0.0
        %v3389 = vadd.f32 %v3387, %v3388
        %v3390 = vsel %vm2464, %v3353, 0.0
        %v3391 = vadd.f32 %v3389, %v3390
        %v3392 = vsel %vm2464, %v3354, 0.0
        %v3393 = vadd.f32 %v3391, %v3392
        %v3394 = vsel %vm2464, %v3355, 0.0
        %v3395 = vadd.f32 %v3393, %v3394
        %v3396 = vsel %vm2464, %v3356, 0.0
        %v3397 = vadd.f32 %v3395, %v3396
        %v3398 = vsel %vm2464, %v3357, 0.0
        %v3399 = vadd.f32 %v3397, %v3398
        %v3400 = vsel %vm2464, %v3358, 0.0
        %v3401 = vadd.f32 %v3399, %v3400
        %v3402 = vsel %vm2464, %v3359, 0.0
        %v3403 = vadd.f32 %v3401, %v3402
        %v3404 = vsel %vm2464, %v3360, 0.0
        %v3405 = vadd.f32 %v3403, %v3404
        %v3406 = vsel %vm2464, %v3361, 0.0
        %v3407 = vadd.f32 %v3405, %v3406
        %v3408 = vsel %vm2464, %v3362, 0.0
        %v3409 = vadd.f32 %v3407, %v3408
        %v3410 = vsel %vm2464, %v3363, 0.0
        %v3411 = vadd.f32 %v3409, %v3410
        %v3412 = vsel %vm2464, %v3364, 0.0
        %v3413 = vadd.f32 %v3411, %v3412
        %v3414 = vsel %vm2464, %v3365, 0.0
        %v3415 = vadd.f32 %v3413, %v3414
        %v3416 = vsel %vm2464, %v3366, 0.0
        %v3417 = vadd.f32 %v3415, %v3416
        %v3418 = vsel %vm2464, %v3367, 0.0
        %v3419 = vadd.f32 %v3417, %v3418
        %v3420 = vsel %vm2464, %v3368, 0.0
        %v3421 = vadd.f32 %v3419, %v3420
        %v3422 = vsel %vm2464, %v3369, 0.0
        %v3423 = vadd.f32 %v3421, %v3422
        %v3424 = vsel %vm2464, %v3370, 0.0
        %v3425 = vadd.f32 %v3423, %v3424
        %v3426 = vsel %vm2464, %v3371, 0.0
        %v3427 = vadd.f32 %v3425, %v3426
        %v3428 = vsel %vm2464, %v3372, 0.0
        %v3429 = vadd.f32 %v3427, %v3428
        %v3430 = vsel %vm2464, %v3373, 0.0
        %v3431 = vadd.f32 %v3429, %v3430
        %v3432 = vsel %vm2464, %v3374, 0.0
        %v3433 = vadd.f32 %v3431, %v3432
        %v3434 = vsel %vm2464, %v3375, 0.0
        %v3435 = vadd.f32 %v3433, %v3434
        %v3436 = vsel %vm2464, %v3376, 0.0
        %v3437 = vadd.f32 %v3435, %v3436
        %v3438 = vsel %vm2464, %v3377, 0.0
        %v3439 = vadd.f32 %v3437, %v3438
        %v3440 = vsel %vm2464, %v3378, 0.0
        %v3441 = vadd.f32 %v3439, %v3440
        %v3442 = vrot.slane %v3441, 4
        %v3443 = vadd.f32 %v3441, %v3442
        %v3444 = vrot.slane %v3443, 2
        %v3445 = vadd.f32 %v3443, %v3444
        %v3446 = vrot.slane %v3445, 1
        %v3447 = vadd.f32 %v3445, %v3446
        %v3448 = vmul.f32 %v3447, 0.00390625
        %v3449 = vld [vmem:[%s13] sm:$0xff]
        %v3450 = vld [vmem:[%s13 + $0x8] sm:$0xff]
        %v3451 = vld [vmem:[%s14] sm:$0x1]
        %v3453 = vsel %vm2464, %v3448, 0
        %3455 = vmatpush.msra.mxu0 0.0
        %3456 = vmatpush.msra.mxu0 0.0
        %3457 = vmatpush.msra.mxu0 0.0
        %3458 = vmatpush.msra.mxu0 0.0
        %3459 = vmatpush.msra.mxu0 0.0
        %3460 = vmatpush.msra.mxu0 0.0
        %3461 = vmatpush.msra.mxu0 0.0
        %3462 = vmatpush.msra.mxu0 0.0
        %3463 = vmatpush.msra.mxu0 0.0
        %3464 = vmatpush.msra.mxu0 0.0
        %3465 = vmatpush.msra.mxu0 0.0
        %3466 = vmatpush.msra.mxu0 0.0
        %3467 = vmatpush.msra.mxu0 0.0
        %3468 = vmatpush.msra.mxu0 0.0
        %3469 = vmatpush.msra.mxu0 %v3450
        %3470 = vmatpush.msra.mxu0 %v3449
        %3471 = vmatmul.f32.gmra.mxu0 %v3453
        %v3472 = vpop.f32.mrf.mxu0
        %v3473 = vadd.f32 %v3451, %v3472
        %3474 = vdwg.mxu0
        %v3475 = vmax.f32 %v3473, 0.0
        %v3476 = vld [vmem:[%s15] sm:$0xff]
        %v3477 = vld [vmem:[%s16] sm:$0x1]
        %vm3478 = vcmask 64512
        %v3480 = vsel %vm3478, %v3475, 0
        %3482 = vmatpush.msra.mxu0 0.0
        %3483 = vmatpush.msra.mxu0 0.0
        %3484 = vmatpush.msra.mxu0 0.0
        %3485 = vmatpush.msra.mxu0 0.0
        %3486 = vmatpush.msra.mxu0 0.0
        %3487 = vmatpush.msra.mxu0 0.0
        %3488 = vmatpush.msra.mxu0 0.0
        %3489 = vmatpush.msra.mxu0 0.0
        %3490 = vmatpush.msra.mxu0 0.0
        %3491 = vmatpush.msra.mxu0 0.0
        %3492 = vmatpush.msra.mxu0 0.0
        %3493 = vmatpush.msra.mxu0 0.0
        %3494 = vmatpush.msra.mxu0 0.0
        %3495 = vmatpush.msra.mxu0 0.0
        %3496 = vmatpush.msra.mxu0 0.0
        %3497 = vmatpush.msra.mxu0 %v3476
        %3498 = vmatmul.f32.gmra.mxu0 %v3480
        %v3499 = vpop.f32.mrf.mxu0
        %v3500 = vadd.f32 %v3477, %v3499
        %3501 = vdwg.mxu0
        %v3502 = vxor.u32 %v3500, 2147483648
        %v3503 = vmul.f32 %v3502, 1.442695
        %v3504 = vpow.pop %v3503
        %v3505 = vadd.f32 %v3504, 1.0
        %v3506 = vrcp.pop %v3505
        %v3507 = vmul.f32 %v3505, %v3506
        %v3508 = vsub.f32 1.0, %v3507
        %v3509 = vmul.f32 %v3506, %v3508
        %v3510 = vadd.f32 %v3506, %v3509
        %vm3511 = vweird.f32 %v3505
        %vm3512 = vweird.f32 %v3506
        %vm3513 = vmor %vm3511, %vm3512
        %v3514 = vsel %vm3513, %v3506, %v3510
        %v3515 = vand.u32 2147483647, %v3505
        %vm3516 = vcmp.eq.f32.partialorder %v3515, 8.507059e+37
        %v3517 = vand.u32 %v3505, 2147483648
        %v3518 = vor.u32 1.1754944e-38, %v3517
        %v3519 = vsel %vm3516, %v3518, %v3514
        %v3520 = vmul.f32 1.0, %v3519
        %v3521 = vadd.f32 %v3520, 1.0
        %v3522 = vperm.slane %v3521, 0
        %v3523 = vmul.f32 %v3347, %v3522
        %v3524 = vmul.f32 %v3348, %v3522
        %v3525 = vmul.f32 %v3349, %v3522
        %v3526 = vmul.f32 %v3350, %v3522
        %v3527 = vmul.f32 %v3351, %v3522
        %v3528 = vmul.f32 %v3352, %v3522
        %v3529 = vmul.f32 %v3353, %v3522
        %v3530 = vmul.f32 %v3354, %v3522
        %v3531 = vmul.f32 %v3355, %v3522
        %v3532 = vmul.f32 %v3356, %v3522
        %v3533 = vmul.f32 %v3357, %v3522
        %v3534 = vmul.f32 %v3358, %v3522
        %v3535 = vmul.f32 %v3359, %v3522
        %v3536 = vmul.f32 %v3360, %v3522
        %v3537 = vmul.f32 %v3361, %v3522
        %v3538 = vmul.f32 %v3362, %v3522
        %v3539 = vmul.f32 %v3363, %v3522
        %v3540 = vmul.f32 %v3364, %v3522
        %v3541 = vmul.f32 %v3365, %v3522
        %v3542 = vmul.f32 %v3366, %v3522
        %v3543 = vmul.f32 %v3367, %v3522
        %v3544 = vmul.f32 %v3368, %v3522
        %v3545 = vmul.f32 %v3369, %v3522
        %v3546 = vmul.f32 %v3370, %v3522
        %v3547 = vmul.f32 %v3371, %v3522
        %v3548 = vmul.f32 %v3372, %v3522
        %v3549 = vmul.f32 %v3373, %v3522
        %v3550 = vmul.f32 %v3374, %v3522
        %v3551 = vmul.f32 %v3375, %v3522
        %v3552 = vmul.f32 %v3376, %v3522
        %v3553 = vmul.f32 %v3377, %v3522
        %v3554 = vmul.f32 %v3378, %v3522
        %vm3555 = vcmask 125952
        %3556 = vst.msk [vmem:[#allocation2] sm:$0xf] %vm3555, 0
        %3557 = vst.msk [vmem:[#allocation2 + $0x4] sm:$0xf] %vm3555, 0
        %3558 = vst.msk [vmem:[#allocation2 + $0x8] sm:$0xf] %vm3555, 0
        %3559 = vst.msk [vmem:[#allocation2 + $0xc] sm:$0xf] %vm3555, 0
        %3560 = vst.msk [vmem:[#allocation2 + $0x10] sm:$0xf] %vm3555, 0
        %3561 = vst.msk [vmem:[#allocation2 + $0x14] sm:$0xf] %vm3555, 0
        %3562 = vst.msk [vmem:[#allocation2 + $0x18] sm:$0xf] %vm3555, 0
        %3563 = vst.msk [vmem:[#allocation2 + $0x1c] sm:$0xf] %vm3555, 0
        %3564 = vst.msk [vmem:[#allocation2 + $0xa0] sm:$0xf] %vm3555, 0
        %3565 = vst.msk [vmem:[#allocation2 + $0xa4] sm:$0xf] %vm3555, 0
        %3566 = vst.msk [vmem:[#allocation2 + $0xa8] sm:$0xf] %vm3555, 0
        %3567 = vst.msk [vmem:[#allocation2 + $0xac] sm:$0xf] %vm3555, 0
        %3568 = vst.msk [vmem:[#allocation2 + $0xb0] sm:$0xf] %vm3555, 0
        %3569 = vst.msk [vmem:[#allocation2 + $0xb4] sm:$0xf] %vm3555, 0
        %3570 = vst.msk [vmem:[#allocation2 + $0xb8] sm:$0xf] %vm3555, 0
        %3571 = vst.msk [vmem:[#allocation2 + $0xbc] sm:$0xf] %vm3555, 0
        %v3572 = vpack.c.bf16 %v3523, %v3523
        %v3573 = vpack.c.bf16 %v3524, %v3524
        %v3574 = vpack.c.bf16 %v3525, %v3525
        %v3575 = vpack.c.bf16 %v3526, %v3526
        %v3576 = vpack.c.bf16 %v3527, %v3527
        %v3577 = vpack.c.bf16 %v3528, %v3528
        %v3578 = vpack.c.bf16 %v3529, %v3529
        %v3579 = vpack.c.bf16 %v3530, %v3530
        %v3580 = vpack.c.bf16 %v3531, %v3531
        %v3581 = vpack.c.bf16 %v3532, %v3532
        %v3582 = vpack.c.bf16 %v3533, %v3533
        %v3583 = vpack.c.bf16 %v3534, %v3534
        %v3584 = vpack.c.bf16 %v3535, %v3535
        %v3585 = vpack.c.bf16 %v3536, %v3536
        %v3586 = vpack.c.bf16 %v3537, %v3537
        %v3587 = vpack.c.bf16 %v3538, %v3538
        %v3588 = vpack.c.bf16 %v3539, %v3539
        %v3589 = vpack.c.bf16 %v3540, %v3540
        %v3590 = vpack.c.bf16 %v3541, %v3541
        %v3591 = vpack.c.bf16 %v3542, %v3542
        %v3592 = vpack.c.bf16 %v3543, %v3543
        %v3593 = vpack.c.bf16 %v3544, %v3544
        %v3594 = vpack.c.bf16 %v3545, %v3545
        %v3595 = vpack.c.bf16 %v3546, %v3546
        %v3596 = vpack.c.bf16 %v3547, %v3547
        %v3597 = vpack.c.bf16 %v3548, %v3548
        %v3598 = vpack.c.bf16 %v3549, %v3549
        %v3599 = vpack.c.bf16 %v3550, %v3550
        %v3600 = vpack.c.bf16 %v3551, %v3551
        %v3601 = vpack.c.bf16 %v3552, %v3552
        %v3602 = vpack.c.bf16 %v3553, %v3553
        %v3603 = vpack.c.bf16 %v3554, %v3554
        %3604 = vst.msk [vmem:[#allocation2 + $0x20] sm:$0xf] %vm3555, %v3572
        %3605 = vst.msk [vmem:[#allocation2 + $0x24] sm:$0xf] %vm3555, %v3573
        %3606 = vst.msk [vmem:[#allocation2 + $0x28] sm:$0xf] %vm3555, %v3574
        %3607 = vst.msk [vmem:[#allocation2 + $0x2c] sm:$0xf] %vm3555, %v3575
        %3608 = vst.msk [vmem:[#allocation2 + $0x30] sm:$0xf] %vm3555, %v3576
        %3609 = vst.msk [vmem:[#allocation2 + $0x34] sm:$0xf] %vm3555, %v3577
        %3610 = vst.msk [vmem:[#allocation2 + $0x38] sm:$0xf] %vm3555, %v3578
        %3611 = vst.msk [vmem:[#allocation2 + $0x3c] sm:$0xf] %vm3555, %v3579
        %3612 = vst.msk [vmem:[#allocation2 + $0x40] sm:$0xf] %vm3555, %v3580
        %3613 = vst.msk [vmem:[#allocation2 + $0x44] sm:$0xf] %vm3555, %v3581
        %3614 = vst.msk [vmem:[#allocation2 + $0x48] sm:$0xf] %vm3555, %v3582
        %3615 = vst.msk [vmem:[#allocation2 + $0x4c] sm:$0xf] %vm3555, %v3583
        %3616 = vst.msk [vmem:[#allocation2 + $0x50] sm:$0xf] %vm3555, %v3584
        %3617 = vst.msk [vmem:[#allocation2 + $0x54] sm:$0xf] %vm3555, %v3585
        %3618 = vst.msk [vmem:[#allocation2 + $0x58] sm:$0xf] %vm3555, %v3586
        %3619 = vst.msk [vmem:[#allocation2 + $0x5c] sm:$0xf] %vm3555, %v3587
        %3620 = vst.msk [vmem:[#allocation2 + $0x60] sm:$0xf] %vm3555, %v3588
        %3621 = vst.msk [vmem:[#allocation2 + $0x64] sm:$0xf] %vm3555, %v3589
        %3622 = vst.msk [vmem:[#allocation2 + $0x68] sm:$0xf] %vm3555, %v3590
        %3623 = vst.msk [vmem:[#allocation2 + $0x6c] sm:$0xf] %vm3555, %v3591
        %3624 = vst.msk [vmem:[#allocation2 + $0x70] sm:$0xf] %vm3555, %v3592
        %3625 = vst.msk [vmem:[#allocation2 + $0x74] sm:$0xf] %vm3555, %v3593
        %3626 = vst.msk [vmem:[#allocation2 + $0x78] sm:$0xf] %vm3555, %v3594
        %3627 = vst.msk [vmem:[#allocation2 + $0x7c] sm:$0xf] %vm3555, %v3595
        %3628 = vst.msk [vmem:[#allocation2 + $0x80] sm:$0xf] %vm3555, %v3596
        %3629 = vst.msk [vmem:[#allocation2 + $0x84] sm:$0xf] %vm3555, %v3597
        %3630 = vst.msk [vmem:[#allocation2 + $0x88] sm:$0xf] %vm3555, %v3598
        %3631 = vst.msk [vmem:[#allocation2 + $0x8c] sm:$0xf] %vm3555, %v3599
        %3632 = vst.msk [vmem:[#allocation2 + $0x90] sm:$0xf] %vm3555, %v3600
        %3633 = vst.msk [vmem:[#allocation2 + $0x94] sm:$0xf] %vm3555, %v3601
        %3634 = vst.msk [vmem:[#allocation2 + $0x98] sm:$0xf] %vm3555, %v3602
        %3635 = vst.msk [vmem:[#allocation2 + $0x9c] sm:$0xf] %vm3555, %v3603
        %v3636 = vld [vmem:[%s19] sm:$0x1]
        %v3637 = vld [vmem:[%s18] sm:$0x3]
        %v3639 = vsel %vm2307, %v3637, 0
        %3641 = vmatpush.bf16.msra.mxu0 0
        %3642 = vmatpush.bf16.msra.mxu0 0
        %3643 = vmatpush.bf16.msra.mxu0 0
        %3644 = vmatpush.bf16.msra.mxu0 0
        %3645 = vmatpush.bf16.msra.mxu0 0
        %3646 = vmatpush.bf16.msra.mxu0 0
        %3647 = vmatpush.bf16.msra.mxu0 0
        %3648 = vmatpush.bf16.msra.mxu0 %v3639
        %3649 = vmatmul.bf16.gmra.mxu0 %v2260
        %v3650 = vpop.f32.mrf.mxu0
        %v3651 = vadd.f32 0.0, %v3650
        %v3652 = vpop.f32.mrf.mxu0
        %v3653 = vadd.f32 0.0, %v3652
        %3654 = vmatmul.bf16.gmra.mxu0 %v2263
        %v3655 = vpop.f32.mrf.mxu0
        %v3656 = vadd.f32 0.0, %v3655
        %v3657 = vpop.f32.mrf.mxu0
        %v3658 = vadd.f32 0.0, %v3657
        %3659 = vmatmul.bf16.gmra.mxu0 %v2266
        %v3660 = vpop.f32.mrf.mxu0
        %v3661 = vadd.f32 0.0, %v3660
        %v3662 = vpop.f32.mrf.mxu0
        %v3663 = vadd.f32 0.0, %v3662
        %3664 = vmatmul.bf16.gmra.mxu0 %v2269
        %v3665 = vpop.f32.mrf.mxu0
        %v3666 = vadd.f32 0.0, %v3665
        %v3667 = vpop.f32.mrf.mxu0
        %v3668 = vadd.f32 0.0, %v3667
        %3669 = vmatmul.bf16.gmra.mxu0 %v2272
        %v3670 = vpop.f32.mrf.mxu0
        %v3671 = vadd.f32 0.0, %v3670
        %v3672 = vpop.f32.mrf.mxu0
        %v3673 = vadd.f32 0.0, %v3672
        %3674 = vmatmul.bf16.gmra.mxu0 %v2275
        %v3675 = vpop.f32.mrf.mxu0
        %v3676 = vadd.f32 0.0, %v3675
        %v3677 = vpop.f32.mrf.mxu0
        %v3678 = vadd.f32 0.0, %v3677
        %3679 = vmatmul.bf16.gmra.mxu0 %v2278
        %v3680 = vpop.f32.mrf.mxu0
        %v3681 = vadd.f32 0.0, %v3680
        %v3682 = vpop.f32.mrf.mxu0
        %v3683 = vadd.f32 0.0, %v3682
        %3684 = vmatmul.bf16.gmra.mxu0 %v2281
        %v3685 = vpop.f32.mrf.mxu0
        %v3686 = vadd.f32 0.0, %v3685
        %v3687 = vpop.f32.mrf.mxu0
        %v3688 = vadd.f32 0.0, %v3687
        %3689 = vmatmul.bf16.gmra.mxu0 %v2284
        %v3690 = vpop.f32.mrf.mxu0
        %v3691 = vadd.f32 0.0, %v3690
        %v3692 = vpop.f32.mrf.mxu0
        %v3693 = vadd.f32 0.0, %v3692
        %3694 = vmatmul.bf16.gmra.mxu0 %v2287
        %v3695 = vpop.f32.mrf.mxu0
        %v3696 = vadd.f32 0.0, %v3695
        %v3697 = vpop.f32.mrf.mxu0
        %v3698 = vadd.f32 0.0, %v3697
        %3699 = vmatmul.bf16.gmra.mxu0 %v2290
        %v3700 = vpop.f32.mrf.mxu0
        %v3701 = vadd.f32 0.0, %v3700
        %v3702 = vpop.f32.mrf.mxu0
        %v3703 = vadd.f32 0.0, %v3702
        %3704 = vmatmul.bf16.gmra.mxu0 %v2293
        %v3705 = vpop.f32.mrf.mxu0
        %v3706 = vadd.f32 0.0, %v3705
        %v3707 = vpop.f32.mrf.mxu0
        %v3708 = vadd.f32 0.0, %v3707
        %3709 = vmatmul.bf16.gmra.mxu0 %v2296
        %v3710 = vpop.f32.mrf.mxu0
        %v3711 = vadd.f32 0.0, %v3710
        %v3712 = vpop.f32.mrf.mxu0
        %v3713 = vadd.f32 0.0, %v3712
        %3714 = vmatmul.bf16.gmra.mxu0 %v2299
        %v3715 = vpop.f32.mrf.mxu0
        %v3716 = vadd.f32 0.0, %v3715
        %v3717 = vpop.f32.mrf.mxu0
        %v3718 = vadd.f32 0.0, %v3717
        %3719 = vmatmul.bf16.gmra.mxu0 %v2302
        %v3720 = vpop.f32.mrf.mxu0
        %v3721 = vadd.f32 0.0, %v3720
        %v3722 = vpop.f32.mrf.mxu0
        %v3723 = vadd.f32 0.0, %v3722
        %3724 = vmatmul.bf16.gmra.mxu0 %v2305
        %v3725 = vpop.f32.mrf.mxu0
        %v3726 = vadd.f32 0.0, %v3725
        %v3727 = vpop.f32.mrf.mxu0
        %v3728 = vadd.f32 0.0, %v3727
        %3729 = vdwg.mxu0
        %v3731 = vperm.slane %v3636, 0
        %v3733 = vadd.f32 %v3731, %v3651
        %v3734 = vadd.f32 %v3731, %v3653
        %v3735 = vadd.f32 %v3731, %v3656
        %v3736 = vadd.f32 %v3731, %v3658
        %v3737 = vadd.f32 %v3731, %v3661
        %v3738 = vadd.f32 %v3731, %v3663
        %v3739 = vadd.f32 %v3731, %v3666
        %v3740 = vadd.f32 %v3731, %v3668
        %v3741 = vadd.f32 %v3731, %v3671
        %v3742 = vadd.f32 %v3731, %v3673
        %v3743 = vadd.f32 %v3731, %v3676
        %v3744 = vadd.f32 %v3731, %v3678
        %v3745 = vadd.f32 %v3731, %v3681
        %v3746 = vadd.f32 %v3731, %v3683
        %v3747 = vadd.f32 %v3731, %v3686
        %v3748 = vadd.f32 %v3731, %v3688
        %v3749 = vadd.f32 %v3731, %v3691
        %v3750 = vadd.f32 %v3731, %v3693
        %v3751 = vadd.f32 %v3731, %v3696
        %v3752 = vadd.f32 %v3731, %v3698
        %v3753 = vadd.f32 %v3731, %v3701
        %v3754 = vadd.f32 %v3731, %v3703
        %v3755 = vadd.f32 %v3731, %v3706
        %v3756 = vadd.f32 %v3731, %v3708
        %v3757 = vadd.f32 %v3731, %v3711
        %v3758 = vadd.f32 %v3731, %v3713
        %v3759 = vadd.f32 %v3731, %v3716
        %v3760 = vadd.f32 %v3731, %v3718
        %v3761 = vadd.f32 %v3731, %v3721
        %v3762 = vadd.f32 %v3731, %v3723
        %v3763 = vadd.f32 %v3731, %v3726
        %v3764 = vadd.f32 %v3731, %v3728
        loop: start=0, step=1, limit=9
        $region112: #{tpu_custom_call.1} parent=99 // loop_pre_header
          _
        $region113: #{tpu_custom_call.1} parent=99 // loop_header
          %s3766 = sphi 0, %s3770
          %p3767 = scmp.ge.s32.totalorder %s3766, 9
          %v3771 = vphi %v3733, %v4068
          %v3772 = vphi %v3734, %v4069
          %v3773 = vphi %v3735, %v4070
          %v3774 = vphi %v3736, %v4071
          %v3775 = vphi %v3737, %v4072
          %v3776 = vphi %v3738, %v4073
          %v3777 = vphi %v3739, %v4074
          %v3778 = vphi %v3740, %v4075
          %v3779 = vphi %v3741, %v4076
          %v3780 = vphi %v3742, %v4077
          %v3781 = vphi %v3743, %v4078
          %v3782 = vphi %v3744, %v4079
          %v3783 = vphi %v3745, %v4080
          %v3784 = vphi %v3746, %v4081
          %v3785 = vphi %v3747, %v4082
          %v3786 = vphi %v3748, %v4083
          %v3787 = vphi %v3749, %v4084
          %v3788 = vphi %v3750, %v4085
          %v3789 = vphi %v3751, %v4086
          %v3790 = vphi %v3752, %v4087
          %v3791 = vphi %v3753, %v4088
          %v3792 = vphi %v3754, %v4089
          %v3793 = vphi %v3755, %v4090
          %v3794 = vphi %v3756, %v4091
          %v3795 = vphi %v3757, %v4092
          %v3796 = vphi %v3758, %v4093
          %v3797 = vphi %v3759, %v4094
          %v3798 = vphi %v3760, %v4095
          %v3799 = vphi %v3761, %v4096
          %v3800 = vphi %v3762, %v4097
          %v3801 = vphi %v3763, %v4098
          %v3802 = vphi %v3764, %v4099
        $region114: #{tpu_custom_call.1} parent=99 // loop_header_branch
          %3769 = sbr.rel (%p3767) target = $region118
        $region115: #{tpu_custom_call.1} parent=99 // loop_body
          %s3803 = smul.u32 %s3766, 16
          %s3804 = sshra.s32 %s3803, 3
          %s3805 = sand.u32 %s3803, 7
          %s3806 = smul.addr %s3804, 4
          %s3807 = scalar_lea.vmem [#allocation2], %s3806
          %v3808 = vld [vmem:[%s3807] sm:$0xf]
          %v3809 = vld [vmem:[%s3807 + $0x4] sm:$0xf]
          %v3810 = vld [vmem:[%s3807 + $0x8] sm:$0xf]
          %v3811 = vld [vmem:[%s3807 + $0xc] sm:$0xf]
          %v3812 = vld [vmem:[%s3807 + $0x10] sm:$0xf]
          %v3813 = vld [vmem:[%s3807 + $0x14] sm:$0xf]
          %v3814 = vld [vmem:[%s3807 + $0x18] sm:$0xf]
          %v3815 = vld [vmem:[%s3807 + $0x1c] sm:$0xf]
          %v3816 = vld [vmem:[%s3807 + $0x20] sm:$0xf]
          %v3817 = vld [vmem:[%s3807 + $0x24] sm:$0xf]
          %v3818 = vld [vmem:[%s3807 + $0x28] sm:$0xf]
          %v3819 = vld [vmem:[%s3807 + $0x2c] sm:$0xf]
          %v3820 = vld [vmem:[%s3807 + $0x30] sm:$0xf]
          %v3821 = vld [vmem:[%s3807 + $0x34] sm:$0xf]
          %v3822 = vld [vmem:[%s3807 + $0x38] sm:$0xf]
          %v3823 = vld [vmem:[%s3807 + $0x3c] sm:$0xf]
          %v3824 = vld [vmem:[%s3807 + $0x40] sm:$0xf]
          %v3825 = vld [vmem:[%s3807 + $0x44] sm:$0xf]
          %v3826 = vld [vmem:[%s3807 + $0x48] sm:$0xf]
          %v3827 = vld [vmem:[%s3807 + $0x4c] sm:$0xf]
          %v3828 = vld [vmem:[%s3807 + $0x50] sm:$0xf]
          %v3829 = vld [vmem:[%s3807 + $0x54] sm:$0xf]
          %v3830 = vld [vmem:[%s3807 + $0x58] sm:$0xf]
          %v3831 = vld [vmem:[%s3807 + $0x5c] sm:$0xf]
          %v3832 = vld [vmem:[%s3807 + $0x60] sm:$0xf]
          %v3833 = vld [vmem:[%s3807 + $0x64] sm:$0xf]
          %v3834 = vld [vmem:[%s3807 + $0x68] sm:$0xf]
          %v3835 = vld [vmem:[%s3807 + $0x6c] sm:$0xf]
          %v3836 = vld [vmem:[%s3807 + $0x70] sm:$0xf]
          %v3837 = vld [vmem:[%s3807 + $0x74] sm:$0xf]
          %v3838 = vld [vmem:[%s3807 + $0x78] sm:$0xf]
          %v3839 = vld [vmem:[%s3807 + $0x7c] sm:$0xf]
          %s3840 = smul.u32 %s3766, 2
          %s3841 = smul.addr %s3840, 4
          %s3842 = scalar_lea.vmem %s17, %s3841
          %v3843 = vld [vmem:[%s3842] sm:$0xf]
          %v3844 = vld [vmem:[%s3842 + $0x4] sm:$0xf]
          %v3877 = vunpack.c.l.b16 %v3808
          %v3878 = vunpack.c.l.b16 %v3809
          %v3879 = vunpack.c.l.b16 %v3810
          %v3880 = vunpack.c.l.b16 %v3811
          %v3881 = vunpack.c.l.b16 %v3812
          %v3882 = vunpack.c.l.b16 %v3813
          %v3883 = vunpack.c.l.b16 %v3814
          %v3884 = vunpack.c.l.b16 %v3815
          %v3885 = vunpack.c.l.b16 %v3816
          %v3886 = vunpack.c.l.b16 %v3817
          %v3887 = vunpack.c.l.b16 %v3818
          %v3888 = vunpack.c.l.b16 %v3819
          %v3889 = vunpack.c.l.b16 %v3820
          %v3890 = vunpack.c.l.b16 %v3821
          %v3891 = vunpack.c.l.b16 %v3822
          %v3892 = vunpack.c.l.b16 %v3823
          %v3893 = vunpack.c.l.b16 %v3824
          %v3894 = vunpack.c.l.b16 %v3825
          %v3895 = vunpack.c.l.b16 %v3826
          %v3896 = vunpack.c.l.b16 %v3827
          %v3897 = vunpack.c.l.b16 %v3828
          %v3898 = vunpack.c.l.b16 %v3829
          %v3899 = vunpack.c.l.b16 %v3830
          %v3900 = vunpack.c.l.b16 %v3831
          %v3901 = vunpack.c.l.b16 %v3832
          %v3902 = vunpack.c.l.b16 %v3833
          %v3903 = vunpack.c.l.b16 %v3834
          %v3904 = vunpack.c.l.b16 %v3835
          %v3905 = vunpack.c.l.b16 %v3836
          %v3906 = vunpack.c.l.b16 %v3837
          %v3907 = vunpack.c.l.b16 %v3838
          %v3908 = vunpack.c.l.b16 %v3839
          %v3909 = vpack.c.b16 %v3878, %v3877
          %v3910 = vpack.c.b16 %v3880, %v3879
          %v3911 = vpack.c.b16 %v3882, %v3881
          %v3912 = vpack.c.b16 %v3884, %v3883
          %v3913 = vpack.c.b16 %v3886, %v3885
          %v3914 = vpack.c.b16 %v3888, %v3887
          %v3915 = vpack.c.b16 %v3890, %v3889
          %v3916 = vpack.c.b16 %v3892, %v3891
          %v3917 = vpack.c.b16 %v3894, %v3893
          %v3918 = vpack.c.b16 %v3896, %v3895
          %v3919 = vpack.c.b16 %v3898, %v3897
          %v3920 = vpack.c.b16 %v3900, %v3899
          %v3921 = vpack.c.b16 %v3902, %v3901
          %v3922 = vpack.c.b16 %v3904, %v3903
          %v3923 = vpack.c.b16 %v3906, %v3905
          %v3924 = vpack.c.b16 %v3908, %v3907
          %v3927 = vunpack.c.l.b16 %v3843
          %v3928 = vunpack.c.l.b16 %v3844
          %v3929 = vpack.c.b16 %v3928, %v3927
          %v3932 = vsel %vm2464, %v3909, 0
          %v3935 = vsel %vm2464, %v3910, 0
          %v3938 = vsel %vm2464, %v3911, 0
          %v3941 = vsel %vm2464, %v3912, 0
          %v3944 = vsel %vm2464, %v3913, 0
          %v3947 = vsel %vm2464, %v3914, 0
          %v3950 = vsel %vm2464, %v3915, 0
          %v3953 = vsel %vm2464, %v3916, 0
          %v3956 = vsel %vm2464, %v3917, 0
          %v3959 = vsel %vm2464, %v3918, 0
          %v3962 = vsel %vm2464, %v3919, 0
          %v3965 = vsel %vm2464, %v3920, 0
          %v3968 = vsel %vm2464, %v3921, 0
          %v3971 = vsel %vm2464, %v3922, 0
          %v3974 = vsel %vm2464, %v3923, 0
          %v3977 = vsel %vm2464, %v3924, 0
          %3979 = vmatpush.bf16.msra.mxu0 0
          %3980 = vmatpush.bf16.msra.mxu0 0
          %3981 = vmatpush.bf16.msra.mxu0 0
          %3982 = vmatpush.bf16.msra.mxu0 0
          %3983 = vmatpush.bf16.msra.mxu0 0
          %3984 = vmatpush.bf16.msra.mxu0 0
          %3985 = vmatpush.bf16.msra.mxu0 0
          %3986 = vmatpush.bf16.msra.mxu0 %v3929
          %3987 = vmatmul.bf16.gmra.mxu0 %v3932
          %v3988 = vpop.f32.mrf.mxu0
          %v3989 = vadd.f32 0.0, %v3988
          %v3990 = vpop.f32.mrf.mxu0
          %v3991 = vadd.f32 0.0, %v3990
          %3992 = vmatmul.bf16.gmra.mxu0 %v3935
          %v3993 = vpop.f32.mrf.mxu0
          %v3994 = vadd.f32 0.0, %v3993
          %v3995 = vpop.f32.mrf.mxu0
          %v3996 = vadd.f32 0.0, %v3995
          %3997 = vmatmul.bf16.gmra.mxu0 %v3938
          %v3998 = vpop.f32.mrf.mxu0
          %v3999 = vadd.f32 0.0, %v3998
          %v4000 = vpop.f32.mrf.mxu0
          %v4001 = vadd.f32 0.0, %v4000
          %4002 = vmatmul.bf16.gmra.mxu0 %v3941
          %v4003 = vpop.f32.mrf.mxu0
          %v4004 = vadd.f32 0.0, %v4003
          %v4005 = vpop.f32.mrf.mxu0
          %v4006 = vadd.f32 0.0, %v4005
          %4007 = vmatmul.bf16.gmra.mxu0 %v3944
          %v4008 = vpop.f32.mrf.mxu0
          %v4009 = vadd.f32 0.0, %v4008
          %v4010 = vpop.f32.mrf.mxu0
          %v4011 = vadd.f32 0.0, %v4010
          %4012 = vmatmul.bf16.gmra.mxu0 %v3947
          %v4013 = vpop.f32.mrf.mxu0
          %v4014 = vadd.f32 0.0, %v4013
          %v4015 = vpop.f32.mrf.mxu0
          %v4016 = vadd.f32 0.0, %v4015
          %4017 = vmatmul.bf16.gmra.mxu0 %v3950
          %v4018 = vpop.f32.mrf.mxu0
          %v4019 = vadd.f32 0.0, %v4018
          %v4020 = vpop.f32.mrf.mxu0
          %v4021 = vadd.f32 0.0, %v4020
          %4022 = vmatmul.bf16.gmra.mxu0 %v3953
          %v4023 = vpop.f32.mrf.mxu0
          %v4024 = vadd.f32 0.0, %v4023
          %v4025 = vpop.f32.mrf.mxu0
          %v4026 = vadd.f32 0.0, %v4025
          %4027 = vmatmul.bf16.gmra.mxu0 %v3956
          %v4028 = vpop.f32.mrf.mxu0
          %v4029 = vadd.f32 0.0, %v4028
          %v4030 = vpop.f32.mrf.mxu0
          %v4031 = vadd.f32 0.0, %v4030
          %4032 = vmatmul.bf16.gmra.mxu0 %v3959
          %v4033 = vpop.f32.mrf.mxu0
          %v4034 = vadd.f32 0.0, %v4033
          %v4035 = vpop.f32.mrf.mxu0
          %v4036 = vadd.f32 0.0, %v4035
          %4037 = vmatmul.bf16.gmra.mxu0 %v3962
          %v4038 = vpop.f32.mrf.mxu0
          %v4039 = vadd.f32 0.0, %v4038
          %v4040 = vpop.f32.mrf.mxu0
          %v4041 = vadd.f32 0.0, %v4040
          %4042 = vmatmul.bf16.gmra.mxu0 %v3965
          %v4043 = vpop.f32.mrf.mxu0
          %v4044 = vadd.f32 0.0, %v4043
          %v4045 = vpop.f32.mrf.mxu0
          %v4046 = vadd.f32 0.0, %v4045
          %4047 = vmatmul.bf16.gmra.mxu0 %v3968
          %v4048 = vpop.f32.mrf.mxu0
          %v4049 = vadd.f32 0.0, %v4048
          %v4050 = vpop.f32.mrf.mxu0
          %v4051 = vadd.f32 0.0, %v4050
          %4052 = vmatmul.bf16.gmra.mxu0 %v3971
          %v4053 = vpop.f32.mrf.mxu0
          %v4054 = vadd.f32 0.0, %v4053
          %v4055 = vpop.f32.mrf.mxu0
          %v4056 = vadd.f32 0.0, %v4055
          %4057 = vmatmul.bf16.gmra.mxu0 %v3974
          %v4058 = vpop.f32.mrf.mxu0
          %v4059 = vadd.f32 0.0, %v4058
          %v4060 = vpop.f32.mrf.mxu0
          %v4061 = vadd.f32 0.0, %v4060
          %4062 = vmatmul.bf16.gmra.mxu0 %v3977
          %v4063 = vpop.f32.mrf.mxu0
          %v4064 = vadd.f32 0.0, %v4063
          %v4065 = vpop.f32.mrf.mxu0
          %v4066 = vadd.f32 0.0, %v4065
          %4067 = vdwg.mxu0
          %v4068 = vadd.f32 %v3771, %v3989
          %v4069 = vadd.f32 %v3772, %v3991
          %v4070 = vadd.f32 %v3773, %v3994
          %v4071 = vadd.f32 %v3774, %v3996
          %v4072 = vadd.f32 %v3775, %v3999
          %v4073 = vadd.f32 %v3776, %v4001
          %v4074 = vadd.f32 %v3777, %v4004
          %v4075 = vadd.f32 %v3778, %v4006
          %v4076 = vadd.f32 %v3779, %v4009
          %v4077 = vadd.f32 %v3780, %v4011
          %v4078 = vadd.f32 %v3781, %v4014
          %v4079 = vadd.f32 %v3782, %v4016
          %v4080 = vadd.f32 %v3783, %v4019
          %v4081 = vadd.f32 %v3784, %v4021
          %v4082 = vadd.f32 %v3785, %v4024
          %v4083 = vadd.f32 %v3786, %v4026
          %v4084 = vadd.f32 %v3787, %v4029
          %v4085 = vadd.f32 %v3788, %v4031
          %v4086 = vadd.f32 %v3789, %v4034
          %v4087 = vadd.f32 %v3790, %v4036
          %v4088 = vadd.f32 %v3791, %v4039
          %v4089 = vadd.f32 %v3792, %v4041
          %v4090 = vadd.f32 %v3793, %v4044
          %v4091 = vadd.f32 %v3794, %v4046
          %v4092 = vadd.f32 %v3795, %v4049
          %v4093 = vadd.f32 %v3796, %v4051
          %v4094 = vadd.f32 %v3797, %v4054
          %v4095 = vadd.f32 %v3798, %v4056
          %v4096 = vadd.f32 %v3799, %v4059
          %v4097 = vadd.f32 %v3800, %v4061
          %v4098 = vadd.f32 %v3801, %v4064
          %v4099 = vadd.f32 %v3802, %v4066
        $region116: #{tpu_custom_call.1} parent=99 // loop_footer
          %s3770 = sadd.s32 1, %s3766
        $region117: #{tpu_custom_call.1} parent=99 // loop_footer_branch
          %3765 = sbr.rel target = $region113
        $region118: #{tpu_custom_call.1} parent=99 // loop_exit
          _
        %v4100 = vmax.f32 %v3771, 0.0
        %v4101 = vmax.f32 %v3772, 0.0
        %v4102 = vmax.f32 %v3773, 0.0
        %v4103 = vmax.f32 %v3774, 0.0
        %v4104 = vmax.f32 %v3775, 0.0
        %v4105 = vmax.f32 %v3776, 0.0
        %v4106 = vmax.f32 %v3777, 0.0
        %v4107 = vmax.f32 %v3778, 0.0
        %v4108 = vmax.f32 %v3779, 0.0
        %v4109 = vmax.f32 %v3780, 0.0
        %v4110 = vmax.f32 %v3781, 0.0
        %v4111 = vmax.f32 %v3782, 0.0
        %v4112 = vmax.f32 %v3783, 0.0
        %v4113 = vmax.f32 %v3784, 0.0
        %v4114 = vmax.f32 %v3785, 0.0
        %v4115 = vmax.f32 %v3786, 0.0
        %v4116 = vmax.f32 %v3787, 0.0
        %v4117 = vmax.f32 %v3788, 0.0
        %v4118 = vmax.f32 %v3789, 0.0
        %v4119 = vmax.f32 %v3790, 0.0
        %v4120 = vmax.f32 %v3791, 0.0
        %v4121 = vmax.f32 %v3792, 0.0
        %v4122 = vmax.f32 %v3793, 0.0
        %v4123 = vmax.f32 %v3794, 0.0
        %v4124 = vmax.f32 %v3795, 0.0
        %v4125 = vmax.f32 %v3796, 0.0
        %v4126 = vmax.f32 %v3797, 0.0
        %v4127 = vmax.f32 %v3798, 0.0
        %v4128 = vmax.f32 %v3799, 0.0
        %v4129 = vmax.f32 %v3800, 0.0
        %v4130 = vmax.f32 %v3801, 0.0
        %v4131 = vmax.f32 %v3802, 0.0
        %4132 = vst.msk [vmem:[%s643] sm:$0xff] %vm2464, %v4100
        %4133 = vst.msk [vmem:[%s643 + $0x8] sm:$0xff] %vm2464, %v4101
        %4134 = vst.msk [vmem:[%s643 + $0x10] sm:$0xff] %vm2464, %v4102
        %4135 = vst.msk [vmem:[%s643 + $0x18] sm:$0xff] %vm2464, %v4103
        %4136 = vst.msk [vmem:[%s643 + $0x20] sm:$0xff] %vm2464, %v4104
        %4137 = vst.msk [vmem:[%s643 + $0x28] sm:$0xff] %vm2464, %v4105
        %4138 = vst.msk [vmem:[%s643 + $0x30] sm:$0xff] %vm2464, %v4106
        %4139 = vst.msk [vmem:[%s643 + $0x38] sm:$0xff] %vm2464, %v4107
        %4140 = vst.msk [vmem:[%s643 + $0x40] sm:$0xff] %vm2464, %v4108
        %4141 = vst.msk [vmem:[%s643 + $0x48] sm:$0xff] %vm2464, %v4109
        %4142 = vst.msk [vmem:[%s643 + $0x50] sm:$0xff] %vm2464, %v4110
        %4143 = vst.msk [vmem:[%s643 + $0x58] sm:$0xff] %vm2464, %v4111
        %4144 = vst.msk [vmem:[%s643 + $0x60] sm:$0xff] %vm2464, %v4112
        %4145 = vst.msk [vmem:[%s643 + $0x68] sm:$0xff] %vm2464, %v4113
        %4146 = vst.msk [vmem:[%s643 + $0x70] sm:$0xff] %vm2464, %v4114
        %4147 = vst.msk [vmem:[%s643 + $0x78] sm:$0xff] %vm2464, %v4115
        %4148 = vst.msk [vmem:[%s643 + $0x80] sm:$0xff] %vm2464, %v4116
        %4149 = vst.msk [vmem:[%s643 + $0x88] sm:$0xff] %vm2464, %v4117
        %4150 = vst.msk [vmem:[%s643 + $0x90] sm:$0xff] %vm2464, %v4118
        %4151 = vst.msk [vmem:[%s643 + $0x98] sm:$0xff] %vm2464, %v4119
        %4152 = vst.msk [vmem:[%s643 + $0xa0] sm:$0xff] %vm2464, %v4120
        %4153 = vst.msk [vmem:[%s643 + $0xa8] sm:$0xff] %vm2464, %v4121
        %4154 = vst.msk [vmem:[%s643 + $0xb0] sm:$0xff] %vm2464, %v4122
        %4155 = vst.msk [vmem:[%s643 + $0xb8] sm:$0xff] %vm2464, %v4123
        %4156 = vst.msk [vmem:[%s643 + $0xc0] sm:$0xff] %vm2464, %v4124
        %4157 = vst.msk [vmem:[%s643 + $0xc8] sm:$0xff] %vm2464, %v4125
        %4158 = vst.msk [vmem:[%s643 + $0xd0] sm:$0xff] %vm2464, %v4126
        %4159 = vst.msk [vmem:[%s643 + $0xd8] sm:$0xff] %vm2464, %v4127
        %4160 = vst.msk [vmem:[%s643 + $0xe0] sm:$0xff] %vm2464, %v4128
        %4161 = vst.msk [vmem:[%s643 + $0xe8] sm:$0xff] %vm2464, %v4129
        %4162 = vst.msk [vmem:[%s643 + $0xf0] sm:$0xff] %vm2464, %v4130
        %4163 = vst.msk [vmem:[%s643 + $0xf8] sm:$0xff] %vm2464, %v4131
        %p4164 = scmp.lt.s32.totalorder %s32, 1
        %s4165 = scalar_select %p4164, %s32, 1
        %s4166 = smul.addr %s4165, 32
        %s4167 = smul.addr %s4166, 8
        %s4168 = scalar_lea.vmem %s20, %s4167
        // Predicated region
        $region119: #{tpu_custom_call.1} parent=99 // pred_check
          %p4169 = pneg %p475
        $region120: #{tpu_custom_call.1} parent=99 // pred_check_branch
          %4171 = sbr.rel (%p4169) target = $region122
        $region121: #{tpu_custom_call.1} parent=99 // pred_region
          _
        $region122: #{tpu_custom_call.1} parent=99 // pred_fallthru
          _
      $region100: #{tpu_custom_call.1} parent=5 // pred_fallthru
        _
      %p4172 = scmp.le.s32.totalorder 2, %s27
      // Predicated region
      $region123: #{tpu_custom_call.1} parent=5 // pred_check
        %p4173 = pneg %p4172
      $region124: #{tpu_custom_call.1} parent=5 // pred_check_branch
        %4175 = sbr.rel (%p4173) target = $region126
      $region125: #{tpu_custom_call.1} parent=5 // pred_region
        %s4176 = ssub.s32 %s27, 2
        // Predicated region
        $region127: #{tpu_custom_call.1} parent=125 // pred_check
          %p4177 = pneg %p481
        $region128: #{tpu_custom_call.1} parent=125 // pred_check_branch
          %4179 = sbr.rel (%p4177) target = $region130
        $region129: #{tpu_custom_call.1} parent=125 // pred_region
          %p4180 = scmp.lt.s32.totalorder %s33, 1
          %s4181 = scalar_select %p4180, %s33, 1
          %s4182 = smul.addr %s4181, 32
          %s4183 = smul.addr %s4182, 8
          %s4184 = scalar_lea.vmem %s20, %s4183
        $region130: #{tpu_custom_call.1} parent=125 // pred_fallthru
          _
      $region126: #{tpu_custom_call.1} parent=5 // pred_fallthru
        _
    $region6: #{tpu_custom_call.1} parent=1 // loop_footer
      %s31 = sadd.s32 1, %s27
    $region7: #{tpu_custom_call.1} parent=1 // loop_footer_branch
      %26 = sbr.rel target = $region3
    $region8: #{tpu_custom_call.1} parent=1 // loop_exit
      _
    %4185 = vsyncpa [#allocation4], 1
    %s4186 = scalar_lea.sflag [#allocation4], 1
    %4187 = vsyncpa %s4186, 1

</llo_original>
